<compile_context>
chip_gen: v7x
topology: tpu7x:2x2x1
jax: 0.10.0
libtpu: 0.0.40
codegen_flags: <defaults>
</compile_context>

<pallas_src>
import math

import jax
import jax.numpy as jnp
from jax.experimental import pallas as pl
from jax.experimental.pallas import tpu as pltpu


def _round_up(x, m):
    return (x + m - 1) // m * m


# ----------------------------------------------------------------------------
# In-kernel math helpers (traced inside the Pallas kernel)
# ----------------------------------------------------------------------------
def _erf_poly(x):
    # Abramowitz & Stegun 7.1.26, max abs error ~1.5e-7 (exact-GELU quality).
    a1, a2, a3, a4, a5 = (0.254829592, -0.284496736, 1.421413741,
                          -1.453152027, 1.061405429)
    p = 0.3275911
    sgn = jnp.where(x >= 0.0, 1.0, -1.0)
    ax = jnp.abs(x)
    t = 1.0 / (1.0 + p * ax)
    poly = ((((a5 * t + a4) * t + a3) * t + a2) * t + a1) * t
    return sgn * (1.0 - poly * jnp.exp(-ax * ax))


def _gelu_exact(x):
    # nn.GELU() default is the exact (erf) form.
    return 0.5 * x * (1.0 + _erf_poly(x * 0.7071067811865476))


_TAPS = [(dy, dx) for dy in range(3) for dx in range(3)]


def _make_mask_set(row_w, n):
    """8 combined per-tap validity masks (None for the centre tap) + ones row.

    Hoisted to the kernel prologue: iota/compare work happens once per distinct
    row width instead of once per conv call.
    """
    lane = jax.lax.broadcasted_iota(jnp.int32, (1, n), 1)
    if row_w & (row_w - 1) == 0:
        col = lane & (row_w - 1)          # power-of-two fast path (no int div)
    else:
        col = lane % row_w
    left = jnp.where(col != 0, 1.0, 0.0)              # column x-1 exists
    right = jnp.where(col != row_w - 1, 1.0, 0.0)     # column x+1 exists
    top = jnp.where(lane >= row_w, 1.0, 0.0)          # row y-1 exists
    bot = jnp.where(lane < n - row_w, 1.0, 0.0)       # row y+1 exists
    tap_masks = [top * left, top, top * right,
                 left, None, right,
                 bot * left, bot, bot * right]
    ones = jnp.ones((1, n), jnp.float32)
    return tap_masks, ones


def _conv3x3(x, w_aug, row_w, tap_masks, ones_row):
    """'same' 3x3 conv on a channels-major flattened image, bias folded in.

    x      : (Cin, N)  with N = H*row_w (spatial flattened on lanes)
    w_aug  : (Cout, 9*Cin + 1) tap-major (dy, dx, channel), last column = bias
    returns: (Cout, N)  lane-dense
    """
    cin, n = x.shape
    use_roll = (n % 128 == 0)
    taps = []
    for t, (dy, dx) in enumerate(_TAPS):
        m = (dy - 1) * row_w + (dx - 1)               # flat sample offset
        if m == 0:
            s = x
        elif use_roll:
            # circular lane rotation on the XLU; the wrap is killed by the mask
            s = pltpu.roll(x, shift=(-m) % n, axis=1)
        elif m > 0:
            s = jnp.concatenate([x[:, m:], jnp.zeros((cin, m), x.dtype)], axis=1)
        else:
            s = jnp.concatenate([jnp.zeros((cin, -m), x.dtype), x[:, :n + m]],
                                axis=1)
        mk = tap_masks[t]
        if mk is not None:
            s = s * mk
        taps.append(s)
    taps.append(ones_row)                             # bias row
    patches = jnp.concatenate(taps, axis=0)           # (9*Cin + 1, N)
    return jnp.dot(w_aug, patches, preferred_element_type=jnp.float32)


def _conv1x1(x, w_aug, ones_row):
    patches = jnp.concatenate([x, ones_row], axis=0)  # (Cin + 1, N)
    return jnp.dot(w_aug, patches, preferred_element_type=jnp.float32)


# ----------------------------------------------------------------------------
# The fused whole-network kernel
# ----------------------------------------------------------------------------
def _make_network_kernel(layer_meta, branch_geom, full_row_w, n_full):
    """layer_meta: static per-layer (kind, cout, n_cols, row_offset) in call order.
       branch_geom: ((row_w, n), ...) for the f16/f8/f4/f2 branches."""

    def kernel(d16, d8, d4, d2, u2in, up_ref, w_ref, out_ref):
        # -- prologue: per-row-width boundary masks, built once ---------------
        helpers = {}
        for (rw, n) in list(branch_geom) + [(full_row_w, n_full)]:
            if (rw, n) not in helpers:
                helpers[(rw, n)] = _make_mask_set(rw, n)

        it = iter(layer_meta)

        def conv(x, row_w, n):
            kind, cout, n_cols, r0 = next(it)
            w_aug = w_ref[r0:r0 + cout, 0:n_cols]      # packed constant slice
            masks, ones = helpers[(row_w, n)]
            if kind == 1:
                return _conv1x1(x, w_aug, ones)
            return _conv3x3(x, w_aug, row_w, masks, ones)

        def branch(data_ref, row_w, n):
            x = data_ref[0]                            # (Cin, n)
            y = _gelu_exact(conv(x, row_w, n))         # conv1 + GELU
            y = conv(y, row_w, n)                      # conv2
            return conv(y, row_w, n)                   # conv3 -> (2, n)

        ys = [branch(r, rw, n)
              for r, (rw, n) in zip((d16, d8, d4, d2), branch_geom)]

        # -- fused bilinear upsample + channel concat --------------------------
        # block-diagonal (8, sum Ns) LHS @ stacked kron (sum Ns, N) RHS
        total = sum(n for _, n in branch_geom)
        off = 0
        rows = []
        for y, (_, n) in zip(ys, branch_geom):
            parts = []
            if off:
                parts.append(jnp.zeros((2, off), jnp.float32))
            parts.append(y)
            if total - off - n:
                parts.append(jnp.zeros((2, total - off - n), jnp.float32))
            rows.append(jnp.concatenate(parts, axis=1)
                        if len(parts) > 1 else parts[0])
            off += n
        bd = jnp.concatenate(rows, axis=0)                           # (8, total)
        u1 = jnp.dot(bd, up_ref[...],
                     preferred_element_type=jnp.float32)             # (8, N)

        # -- uncertainty_extract_1 ---------------------------------------------
        u1 = conv(u1, full_row_w, n_full)
        u1 = conv(u1, full_row_w, n_full)
        u1 = conv(u1, full_row_w, n_full)                            # 1x1 -> (4, N)

        # -- uncertainty_extract_2 ---------------------------------------------
        u2 = u2in[0]                                                 # (6, N)
        u2 = conv(u2, full_row_w, n_full)
        u2 = conv(u2, full_row_w, n_full)
        u2 = conv(u2, full_row_w, n_full)                            # 1x1 -> (4, N)

        # -- uncertainty_extract_layer + sigmoid --------------------------------
        u = u1 + u2
        u = conv(u, full_row_w, n_full)
        u = conv(u, full_row_w, n_full)                              # (1, N)

        # numerically stable sigmoid; reciprocal on the EUP slot
        e = jnp.exp(-jnp.abs(u))
        inv = pl.reciprocal(1.0 + e, approx=True)
        sig = jnp.where(u >= 0.0, inv, e * inv)
        out_ref[0] = jnp.clip(sig, 0.0, 1.0)

    return kernel


# ----------------------------------------------------------------------------
# Host-side staging: interpolation matrices & packed-weight re-layout
# ----------------------------------------------------------------------------
def _interp_matrix(in_size, scale):
    """Row-interp weights matching F.interpolate(mode='bilinear', align_corners=False)."""
    out_size = in_size * scale
    i = jnp.arange(out_size, dtype=jnp.float32)
    src = jnp.clip((i + 0.5) / float(scale) - 0.5, 0.0, float(in_size - 1))
    i0 = jnp.floor(src).astype(jnp.int32)
    i1 = jnp.minimum(i0 + 1, in_size - 1)
    w1 = src - i0.astype(jnp.float32)
    rows = jnp.arange(out_size)
    u = jnp.zeros((out_size, in_size), jnp.float32)
    u = u.at[rows, i0].add(1.0 - w1)
    u = u.at[rows, i1].add(w1)
    return u


def _upsample_matmul_weights(h_in, w_in, scale):
    uh = _interp_matrix(h_in, scale)
    uw = _interp_matrix(w_in, scale)
    # out_flat_row = f_flat_row @ kron(Uh, Uw)^T
    return jnp.kron(uh, uw).T.astype(jnp.float32)   # (h*w, h*w*scale^2)


_LAYER_ORDER = ("f16", "f8", "f4", "f2", "ex1", "ex2", "exl")


def _pack_weights(params):
    """Pack all 20 conv weights + biases into ONE f32 constant.

    Each layer occupies an 8-aligned row block [r0, r0+Cout); its first
    k*k*Cin columns hold the tap-major flattened weight and the next column
    holds the bias (zero when the torch layer has bias=False).
    Returns (w_all, layer_meta) with layer_meta being static python ints:
    (kind 0=3x3 / 1=1x1, cout, n_cols, row_offset).
    """
    blocks, meta = [], []
    r0 = 0
    for name in _LAYER_ORDER:
        for (w, b) in params[name]:
            cout, cin, k, _ = w.shape
            if k == 1:
                wf = w.reshape(cout, cin)
            else:
                wf = jnp.transpose(w, (0, 2, 3, 1)).reshape(cout, k * k * cin)
            bias = (jnp.zeros((cout, 1), jnp.float32) if b is None
                    else b.reshape(cout, 1).astype(jnp.float32))
            w_aug = jnp.concatenate([wf.astype(jnp.float32), bias], axis=1)
            meta.append((0 if k == 3 else 1, cout, w_aug.shape[1], r0))
            blocks.append((r0, w_aug))
            r0 += _round_up(cout, 8)
    kmax = _round_up(max(m[2] for m in meta), 128)
    w_all = jnp.zeros((_round_up(r0, 8), kmax), jnp.float32)
    for off, blk in blocks:
        w_all = w_all.at[off:off + blk.shape[0], :blk.shape[1]].set(blk)
    return w_all, meta


# ----------------------------------------------------------------------------
# Deterministic parameter init (matches nn.Conv2d shapes / kaiming-uniform bounds)
# ----------------------------------------------------------------------------
def _conv_params(key, cin, cout, k, bias):
    kw, kb = jax.random.split(key)
    bound = 1.0 / math.sqrt(cin * k * k)
    w = jax.random.uniform(kw, (cout, cin, k, k), jnp.float32, -bound, bound)
    b = jax.random.uniform(kb, (cout,), jnp.float32, -bound, bound) if bias else None
    return w, b


def init_params(key, enc_chan):
    keys = iter(jax.random.split(key, 24))
    nxt = lambda: next(keys)
    p = {}
    p["f16"] = [_conv_params(nxt(), enc_chan[3], enc_chan[3] // 4, 3, True),
                _conv_params(nxt(), enc_chan[3] // 4, 6, 3, False),
                _conv_params(nxt(), 6, 2, 3, False)]
    p["f8"] = [_conv_params(nxt(), enc_chan[2], enc_chan[2] // 2, 3, True),
               _conv_params(nxt(), enc_chan[2] // 2, 6, 3, False),
               _conv_params(nxt(), 6, 2, 3, False)]
    p["f4"] = [_conv_params(nxt(), enc_chan[1], enc_chan[1] // 2, 3, True),
               _conv_params(nxt(), enc_chan[1] // 2, 6, 3, False),
               _conv_params(nxt(), 6, 2, 3, False)]
    p["f2"] = [_conv_params(nxt(), enc_chan[0], enc_chan[0] // 2, 3, True),
               _conv_params(nxt(), enc_chan[0] // 2, 6, 3, False),
               _conv_params(nxt(), 6, 2, 3, False)]
    p["ex1"] = [_conv_params(nxt(), 8, 8, 3, True),
                _conv_params(nxt(), 8, 8, 3, True),
                _conv_params(nxt(), 8, 4, 1, True)]
    p["ex2"] = [_conv_params(nxt(), 6, 8, 3, True),
                _conv_params(nxt(), 8, 8, 3, True),
                _conv_params(nxt(), 8, 4, 1, True)]
    p["exl"] = [_conv_params(nxt(), 4, 4, 3, True),
                _conv_params(nxt(), 4, 1, 3, True)]
    return p


# ----------------------------------------------------------------------------
# Forward pass (mirrors Uncertainty_Network.forward) — one pallas_call
# ----------------------------------------------------------------------------
def uncertainty_network_forward(params, x, encoder_input, trans_value_list):
    enc_2, enc_4, enc_8, enc_16 = encoder_input
    b_sz, _, h, w = x.shape
    n_full = h * w

    def flat(a):
        bb, cc, hh, ww = a.shape
        return a.reshape(bb, cc, hh * ww).astype(jnp.float32)

    t_r, t_g, t_b = trans_value_list
    u2_in = flat(jnp.concatenate([x, t_r, t_g, t_b], axis=1))        # (B, 6, N)
    d16, d8, d4, d2 = flat(enc_16), flat(enc_8), flat(enc_4), flat(enc_2)

    branch_feats = (enc_16, enc_8, enc_4, enc_2)
    scales = (16, 8, 4, 2)
    branch_geom = tuple((f.shape[3], f.shape[2] * f.shape[3]) for f in branch_feats)

    # single stacked kron-upsample RHS (sum Ns, N) and single packed weight blob
    up_all = jnp.concatenate(
        [_upsample_matmul_weights(f.shape[2], f.shape[3], s)
         for f, s in zip(branch_feats, scales)], axis=0)
    w_all, layer_meta = _pack_weights(params)

    kernel = _make_network_kernel(tuple(layer_meta), branch_geom, w, n_full)

    data_inputs = [d16, d8, d4, d2, u2_in]
    const_inputs = [up_all, w_all]

    in_specs = ([pl.BlockSpec((1,) + tuple(a.shape[1:]), lambda bi: (bi, 0, 0))
                 for a in data_inputs]
                + [pl.BlockSpec(tuple(a.shape), lambda bi: (0, 0))
                   for a in const_inputs])

    out = pl.pallas_call(
        kernel,
        out_shape=jax.ShapeDtypeStruct((b_sz, 1, n_full), jnp.float32),
        grid=(b_sz,),
        in_specs=in_specs,
        out_specs=pl.BlockSpec((1, 1, n_full), lambda bi: (bi, 0, 0)),
        compiler_params=pltpu.CompilerParams(
            dimension_semantics=("parallel",),
            vmem_limit_bytes=32 * 1024 * 1024),
    )(*(data_inputs + const_inputs))

    return out.reshape(b_sz, 1, h, w)                                # back to NCHW


# ----------------------------------------------------------------------------
# Pure-JAX reference (for the in-script correctness check)
# ----------------------------------------------------------------------------
def _reference_forward(params, x, encoder_input, trans_value_list):
    def conv(v, wb):
        w, b = wb
        pad = (w.shape[-1] - 1) // 2
        y = jax.lax.conv_general_dilated(
            v, w, window_strides=(1, 1), padding=[(pad, pad), (pad, pad)],
            dimension_numbers=("NCHW", "OIHW", "NCHW"))
        if b is not None:
            y = y + b.reshape(1, -1, 1, 1)
        return y

    def upsample(f, scale):
        _, _, hh, ww = f.shape
        uh = _interp_matrix(hh, scale)
        uw = _interp_matrix(ww, scale)
        return jnp.einsum("Hh,bchw,Ww->bcHW", uh, f, uw)

    def branch(feat, layers, scale):
        y = jax.nn.gelu(conv(feat, layers[0]), approximate=False)
        y = conv(conv(y, layers[1]), layers[2])
        return upsample(y, scale)

    enc_2, enc_4, enc_8, enc_16 = encoder_input
    f16 = branch(enc_16, params["f16"], 16)
    f8 = branch(enc_8, params["f8"], 8)
    f4 = branch(enc_4, params["f4"], 4)
    f2 = branch(enc_2, params["f2"], 2)

    u1 = jnp.concatenate([f16, f8, f4, f2], axis=1)
    for wb in params["ex1"]:
        u1 = conv(u1, wb)
    u2 = jnp.concatenate([x] + list(trans_value_list), axis=1)
    for wb in params["ex2"]:
        u2 = conv(u2, wb)
    u = u1 + u2
    for wb in params["exl"]:
        u = conv(u, wb)
    return jax.nn.sigmoid(u)


# ----------------------------------------------------------------------------
if __name__ == "__main__":
    B, H, W = 2, 32, 32
    enc_chan = [8, 16, 32, 64]    # encoder_output_chan[0..3]

    root = jax.random.PRNGKey(0)
    k_param, k_data = jax.random.split(root)
    params = init_params(k_param, enc_chan)

    kd = jax.random.split(k_data, 8)
    x = jax.random.normal(kd[0], (B, 3, H, W), jnp.float32)
    enc_2 = jax.random.normal(kd[1], (B, enc_chan[0], H // 2, W // 2), jnp.float32)
    enc_4 = jax.random.normal(kd[2], (B, enc_chan[1], H // 4, W // 4), jnp.float32)
    enc_8 = jax.random.normal(kd[3], (B, enc_chan[2], H // 8, W // 8), jnp.float32)
    enc_16 = jax.random.normal(kd[4], (B, enc_chan[3], H // 16, W // 16), jnp.float32)
    t_r = jax.random.normal(kd[5], (B, 1, H, W), jnp.float32)
    t_g = jax.random.normal(kd[6], (B, 1, H, W), jnp.float32)
    t_b = jax.random.normal(kd[7], (B, 1, H, W), jnp.float32)

    enc = (enc_2, enc_4, enc_8, enc_16)
    tvl = (t_r, t_g, t_b)

    fwd = jax.jit(uncertainty_network_forward)
    out = jax.block_until_ready(fwd(params, x, enc, tvl))

    assert out.shape == (B, 1, H, W), out.shape
    assert bool(jnp.all(jnp.isfinite(out)))
    assert bool(jnp.all((out >= 0.0) & (out <= 1.0)))   # sigmoid output range

    ref = jax.block_until_ready(jax.jit(_reference_forward)(params, x, enc, tvl))
    max_err = float(jnp.max(jnp.abs(out - ref)))
    assert max_err < 2e-3, f"kernel vs pure-JAX reference mismatch: {max_err}"

    print("KERNEL_OK")
</pallas_src>

<mosaic_0001>
module attributes {stable_mosaic.version = 11 : i64} {
  func.func private @main(%arg0: i32) attributes {dimension_semantics = [#tpu.dimension_semantics<core_parallel>], iteration_bounds = array<i64: 2>, tpu.core_type = #tpu.core_type<sc_scalar_subcore>, window_params = []} {
    return
  }
}

module attributes {stable_mosaic.version = 11 : i64} {
  func.func private @main(%arg0: i32) attributes {dimension_semantics = [#tpu.dimension_semantics<core_parallel>], iteration_bounds = array<i64: 2>, tpu.core_type = #tpu.core_type<sc_scalar_subcore>, window_params = []} {
    return
  }
}

module attributes {stable_mosaic.version = 11 : i64} {
  func.func @kernel(%arg0: i32, %arg1: memref<1x64x4xf32, #tpu.memory_space<vmem>>, %arg2: memref<1x32x16xf32, #tpu.memory_space<vmem>>, %arg3: memref<1x16x64xf32, #tpu.memory_space<vmem>>, %arg4: memref<1x8x256xf32, #tpu.memory_space<vmem>>, %arg5: memref<1x6x1024xf32, #tpu.memory_space<vmem>>, %arg6: memref<340x1024xf32, #tpu.memory_space<vmem>>, %arg7: memref<176x640xf32, #tpu.memory_space<vmem>>, %arg8: memref<1x1x1024xf32, #tpu.memory_space<vmem>>) attributes {dimension_semantics = [#tpu.dimension_semantics<parallel>], iteration_bounds = array<i64: 2>, scalar_prefetch = 0 : i64, scratch_operands = 0 : i64, tpu.core_type = #tpu.core_type<tc>, window_params = [{transform_indices = @transform_0, window_bounds = array<i64: 1, 64, 4>}, {transform_indices = @transform_1, window_bounds = array<i64: 1, 32, 16>}, {transform_indices = @transform_2, window_bounds = array<i64: 1, 16, 64>}, {transform_indices = @transform_3, window_bounds = array<i64: 1, 8, 256>}, {transform_indices = @transform_4, window_bounds = array<i64: 1, 6, 1024>}, {pipeline_mode = #tpu.pipeline_mode<synchronous>, transform_indices = @transform_5, window_bounds = array<i64: 340, 1024>}, {pipeline_mode = #tpu.pipeline_mode<synchronous>, transform_indices = @transform_6, window_bounds = array<i64: 176, 640>}, {transform_indices = @transform_7, window_bounds = array<i64: 1, 1, 1024>}]} {
    %0 = tpu.iota {dimensions = array<i32: 1>} : vector<1x4xi32>
    %c1_i32 = arith.constant 1 : i32
    %1 = vector.broadcast %c1_i32 : i32 to vector<1x4xi32>
    %2 = arith.andi %0, %1 : vector<1x4xi32>
    %c0_i32 = arith.constant 0 : i32
    %3 = vector.broadcast %c0_i32 : i32 to vector<1x4xi32>
    %4 = arith.cmpi ne, %2, %3 : vector<1x4xi32>
    %cst = arith.constant 1.000000e+00 : f32
    %cst_0 = arith.constant 0.000000e+00 : f32
    %5 = vector.broadcast %cst : f32 to vector<1x4xf32>
    %6 = vector.broadcast %cst_0 : f32 to vector<1x4xf32>
    %7 = arith.select %4, %5, %6 : vector<1x4xi1>, vector<1x4xf32>
    %c1_i32_1 = arith.constant 1 : i32
    %8 = vector.broadcast %c1_i32_1 : i32 to vector<1x4xi32>
    %9 = arith.cmpi ne, %2, %8 : vector<1x4xi32>
    %cst_2 = arith.constant 1.000000e+00 : f32
    %cst_3 = arith.constant 0.000000e+00 : f32
    %10 = vector.broadcast %cst_2 : f32 to vector<1x4xf32>
    %11 = vector.broadcast %cst_3 : f32 to vector<1x4xf32>
    %12 = arith.select %9, %10, %11 : vector<1x4xi1>, vector<1x4xf32>
    %c2_i32 = arith.constant 2 : i32
    %13 = vector.broadcast %c2_i32 : i32 to vector<1x4xi32>
    %14 = arith.cmpi sge, %0, %13 : vector<1x4xi32>
    %cst_4 = arith.constant 1.000000e+00 : f32
    %cst_5 = arith.constant 0.000000e+00 : f32
    %15 = vector.broadcast %cst_4 : f32 to vector<1x4xf32>
    %16 = vector.broadcast %cst_5 : f32 to vector<1x4xf32>
    %17 = arith.select %14, %15, %16 : vector<1x4xi1>, vector<1x4xf32>
    %c2_i32_6 = arith.constant 2 : i32
    %18 = vector.broadcast %c2_i32_6 : i32 to vector<1x4xi32>
    %19 = arith.cmpi slt, %0, %18 : vector<1x4xi32>
    %cst_7 = arith.constant 1.000000e+00 : f32
    %cst_8 = arith.constant 0.000000e+00 : f32
    %20 = vector.broadcast %cst_7 : f32 to vector<1x4xf32>
    %21 = vector.broadcast %cst_8 : f32 to vector<1x4xf32>
    %22 = arith.select %19, %20, %21 : vector<1x4xi1>, vector<1x4xf32>
    %23 = arith.mulf %17, %7 : vector<1x4xf32>
    %24 = arith.mulf %17, %12 : vector<1x4xf32>
    %25 = arith.mulf %22, %7 : vector<1x4xf32>
    %26 = arith.mulf %22, %12 : vector<1x4xf32>
    %cst_9 = arith.constant 1.000000e+00 : f32
    %27 = vector.broadcast %cst_9 : f32 to vector<1x4xf32>
    %28 = tpu.iota {dimensions = array<i32: 1>} : vector<1x16xi32>
    %c3_i32 = arith.constant 3 : i32
    %29 = vector.broadcast %c3_i32 : i32 to vector<1x16xi32>
    %30 = arith.andi %28, %29 : vector<1x16xi32>
    %c0_i32_10 = arith.constant 0 : i32
    %31 = vector.broadcast %c0_i32_10 : i32 to vector<1x16xi32>
    %32 = arith.cmpi ne, %30, %31 : vector<1x16xi32>
    %cst_11 = arith.constant 1.000000e+00 : f32
    %cst_12 = arith.constant 0.000000e+00 : f32
    %33 = vector.broadcast %cst_11 : f32 to vector<1x16xf32>
    %34 = vector.broadcast %cst_12 : f32 to vector<1x16xf32>
    %35 = arith.select %32, %33, %34 : vector<1x16xi1>, vector<1x16xf32>
    %c3_i32_13 = arith.constant 3 : i32
    %36 = vector.broadcast %c3_i32_13 : i32 to vector<1x16xi32>
    %37 = arith.cmpi ne, %30, %36 : vector<1x16xi32>
    %cst_14 = arith.constant 1.000000e+00 : f32
    %cst_15 = arith.constant 0.000000e+00 : f32
    %38 = vector.broadcast %cst_14 : f32 to vector<1x16xf32>
    %39 = vector.broadcast %cst_15 : f32 to vector<1x16xf32>
    %40 = arith.select %37, %38, %39 : vector<1x16xi1>, vector<1x16xf32>
    %c4_i32 = arith.constant 4 : i32
    %41 = vector.broadcast %c4_i32 : i32 to vector<1x16xi32>
    %42 = arith.cmpi sge, %28, %41 : vector<1x16xi32>
    %cst_16 = arith.constant 1.000000e+00 : f32
    %cst_17 = arith.constant 0.000000e+00 : f32
    %43 = vector.broadcast %cst_16 : f32 to vector<1x16xf32>
    %44 = vector.broadcast %cst_17 : f32 to vector<1x16xf32>
    %45 = arith.select %42, %43, %44 : vector<1x16xi1>, vector<1x16xf32>
    %c12_i32 = arith.constant 12 : i32
    %46 = vector.broadcast %c12_i32 : i32 to vector<1x16xi32>
    %47 = arith.cmpi slt, %28, %46 : vector<1x16xi32>
    %cst_18 = arith.constant 1.000000e+00 : f32
    %cst_19 = arith.constant 0.000000e+00 : f32
    %48 = vector.broadcast %cst_18 : f32 to vector<1x16xf32>
    %49 = vector.broadcast %cst_19 : f32 to vector<1x16xf32>
    %50 = arith.select %47, %48, %49 : vector<1x16xi1>, vector<1x16xf32>
    %51 = arith.mulf %45, %35 : vector<1x16xf32>
    %52 = arith.mulf %45, %40 : vector<1x16xf32>
    %53 = arith.mulf %50, %35 : vector<1x16xf32>
    %54 = arith.mulf %50, %40 : vector<1x16xf32>
    %cst_20 = arith.constant 1.000000e+00 : f32
    %55 = vector.broadcast %cst_20 : f32 to vector<1x16xf32>
    %56 = tpu.iota {dimensions = array<i32: 1>} : vector<1x64xi32>
    %c7_i32 = arith.constant 7 : i32
    %57 = vector.broadcast %c7_i32 : i32 to vector<1x64xi32>
    %58 = arith.andi %56, %57 : vector<1x64xi32>
    %c0_i32_21 = arith.constant 0 : i32
    %59 = vector.broadcast %c0_i32_21 : i32 to vector<1x64xi32>
    %60 = arith.cmpi ne, %58, %59 : vector<1x64xi32>
    %cst_22 = arith.constant 1.000000e+00 : f32
    %cst_23 = arith.constant 0.000000e+00 : f32
    %61 = vector.broadcast %cst_22 : f32 to vector<1x64xf32>
    %62 = vector.broadcast %cst_23 : f32 to vector<1x64xf32>
    %63 = arith.select %60, %61, %62 : vector<1x64xi1>, vector<1x64xf32>
    %c7_i32_24 = arith.constant 7 : i32
    %64 = vector.broadcast %c7_i32_24 : i32 to vector<1x64xi32>
    %65 = arith.cmpi ne, %58, %64 : vector<1x64xi32>
    %cst_25 = arith.constant 1.000000e+00 : f32
    %cst_26 = arith.constant 0.000000e+00 : f32
    %66 = vector.broadcast %cst_25 : f32 to vector<1x64xf32>
    %67 = vector.broadcast %cst_26 : f32 to vector<1x64xf32>
    %68 = arith.select %65, %66, %67 : vector<1x64xi1>, vector<1x64xf32>
    %c8_i32 = arith.constant 8 : i32
    %69 = vector.broadcast %c8_i32 : i32 to vector<1x64xi32>
    %70 = arith.cmpi sge, %56, %69 : vector<1x64xi32>
    %cst_27 = arith.constant 1.000000e+00 : f32
    %cst_28 = arith.constant 0.000000e+00 : f32
    %71 = vector.broadcast %cst_27 : f32 to vector<1x64xf32>
    %72 = vector.broadcast %cst_28 : f32 to vector<1x64xf32>
    %73 = arith.select %70, %71, %72 : vector<1x64xi1>, vector<1x64xf32>
    %c56_i32 = arith.constant 56 : i32
    %74 = vector.broadcast %c56_i32 : i32 to vector<1x64xi32>
    %75 = arith.cmpi slt, %56, %74 : vector<1x64xi32>
    %cst_29 = arith.constant 1.000000e+00 : f32
    %cst_30 = arith.constant 0.000000e+00 : f32
    %76 = vector.broadcast %cst_29 : f32 to vector<1x64xf32>
    %77 = vector.broadcast %cst_30 : f32 to vector<1x64xf32>
    %78 = arith.select %75, %76, %77 : vector<1x64xi1>, vector<1x64xf32>
    %79 = arith.mulf %73, %63 : vector<1x64xf32>
    %80 = arith.mulf %73, %68 : vector<1x64xf32>
    %81 = arith.mulf %78, %63 : vector<1x64xf32>
    %82 = arith.mulf %78, %68 : vector<1x64xf32>
    %cst_31 = arith.constant 1.000000e+00 : f32
    %83 = vector.broadcast %cst_31 : f32 to vector<1x64xf32>
    %84 = tpu.iota {dimensions = array<i32: 1>} : vector<1x256xi32>
    %c15_i32 = arith.constant 15 : i32
    %85 = vector.broadcast %c15_i32 : i32 to vector<1x256xi32>
    %86 = arith.andi %84, %85 : vector<1x256xi32>
    %c0_i32_32 = arith.constant 0 : i32
    %87 = vector.broadcast %c0_i32_32 : i32 to vector<1x256xi32>
    %88 = arith.cmpi ne, %86, %87 : vector<1x256xi32>
    %cst_33 = arith.constant 1.000000e+00 : f32
    %cst_34 = arith.constant 0.000000e+00 : f32
    %89 = vector.broadcast %cst_33 : f32 to vector<1x256xf32>
    %90 = vector.broadcast %cst_34 : f32 to vector<1x256xf32>
    %91 = arith.select %88, %89, %90 : vector<1x256xi1>, vector<1x256xf32>
    %c15_i32_35 = arith.constant 15 : i32
    %92 = vector.broadcast %c15_i32_35 : i32 to vector<1x256xi32>
    %93 = arith.cmpi ne, %86, %92 : vector<1x256xi32>
    %cst_36 = arith.constant 1.000000e+00 : f32
    %cst_37 = arith.constant 0.000000e+00 : f32
    %94 = vector.broadcast %cst_36 : f32 to vector<1x256xf32>
    %95 = vector.broadcast %cst_37 : f32 to vector<1x256xf32>
    %96 = arith.select %93, %94, %95 : vector<1x256xi1>, vector<1x256xf32>
    %c16_i32 = arith.constant 16 : i32
    %97 = vector.broadcast %c16_i32 : i32 to vector<1x256xi32>
    %98 = arith.cmpi sge, %84, %97 : vector<1x256xi32>
    %cst_38 = arith.constant 1.000000e+00 : f32
    %cst_39 = arith.constant 0.000000e+00 : f32
    %99 = vector.broadcast %cst_38 : f32 to vector<1x256xf32>
    %100 = vector.broadcast %cst_39 : f32 to vector<1x256xf32>
    %101 = arith.select %98, %99, %100 : vector<1x256xi1>, vector<1x256xf32>
    %c240_i32 = arith.constant 240 : i32
    %102 = vector.broadcast %c240_i32 : i32 to vector<1x256xi32>
    %103 = arith.cmpi slt, %84, %102 : vector<1x256xi32>
    %cst_40 = arith.constant 1.000000e+00 : f32
    %cst_41 = arith.constant 0.000000e+00 : f32
    %104 = vector.broadcast %cst_40 : f32 to vector<1x256xf32>
    %105 = vector.broadcast %cst_41 : f32 to vector<1x256xf32>
    %106 = arith.select %103, %104, %105 : vector<1x256xi1>, vector<1x256xf32>
    %107 = arith.mulf %101, %91 : vector<1x256xf32>
    %108 = arith.mulf %101, %96 : vector<1x256xf32>
    %109 = arith.mulf %106, %91 : vector<1x256xf32>
    %110 = arith.mulf %106, %96 : vector<1x256xf32>
    %cst_42 = arith.constant 1.000000e+00 : f32
    %111 = vector.broadcast %cst_42 : f32 to vector<1x256xf32>
    %112 = tpu.iota {dimensions = array<i32: 1>} : vector<1x1024xi32>
    %c31_i32 = arith.constant 31 : i32
    %113 = vector.broadcast %c31_i32 : i32 to vector<1x1024xi32>
    %114 = arith.andi %112, %113 : vector<1x1024xi32>
    %c0_i32_43 = arith.constant 0 : i32
    %115 = vector.broadcast %c0_i32_43 : i32 to vector<1x1024xi32>
    %116 = arith.cmpi ne, %114, %115 : vector<1x1024xi32>
    %cst_44 = arith.constant 1.000000e+00 : f32
    %cst_45 = arith.constant 0.000000e+00 : f32
    %117 = vector.broadcast %cst_44 : f32 to vector<1x1024xf32>
    %118 = vector.broadcast %cst_45 : f32 to vector<1x1024xf32>
    %119 = arith.select %116, %117, %118 : vector<1x1024xi1>, vector<1x1024xf32>
    %c31_i32_46 = arith.constant 31 : i32
    %120 = vector.broadcast %c31_i32_46 : i32 to vector<1x1024xi32>
    %121 = arith.cmpi ne, %114, %120 : vector<1x1024xi32>
    %cst_47 = arith.constant 1.000000e+00 : f32
    %cst_48 = arith.constant 0.000000e+00 : f32
    %122 = vector.broadcast %cst_47 : f32 to vector<1x1024xf32>
    %123 = vector.broadcast %cst_48 : f32 to vector<1x1024xf32>
    %124 = arith.select %121, %122, %123 : vector<1x1024xi1>, vector<1x1024xf32>
    %c32_i32 = arith.constant 32 : i32
    %125 = vector.broadcast %c32_i32 : i32 to vector<1x1024xi32>
    %126 = arith.cmpi sge, %112, %125 : vector<1x1024xi32>
    %cst_49 = arith.constant 1.000000e+00 : f32
    %cst_50 = arith.constant 0.000000e+00 : f32
    %127 = vector.broadcast %cst_49 : f32 to vector<1x1024xf32>
    %128 = vector.broadcast %cst_50 : f32 to vector<1x1024xf32>
    %129 = arith.select %126, %127, %128 : vector<1x1024xi1>, vector<1x1024xf32>
    %c992_i32 = arith.constant 992 : i32
    %130 = vector.broadcast %c992_i32 : i32 to vector<1x1024xi32>
    %131 = arith.cmpi slt, %112, %130 : vector<1x1024xi32>
    %cst_51 = arith.constant 1.000000e+00 : f32
    %cst_52 = arith.constant 0.000000e+00 : f32
    %132 = vector.broadcast %cst_51 : f32 to vector<1x1024xf32>
    %133 = vector.broadcast %cst_52 : f32 to vector<1x1024xf32>
    %134 = arith.select %131, %132, %133 : vector<1x1024xi1>, vector<1x1024xf32>
    %135 = arith.mulf %129, %119 : vector<1x1024xf32>
    %136 = arith.mulf %129, %124 : vector<1x1024xf32>
    %137 = arith.mulf %134, %119 : vector<1x1024xf32>
    %138 = arith.mulf %134, %124 : vector<1x1024xf32>
    %cst_53 = arith.constant 1.000000e+00 : f32
    %139 = vector.broadcast %cst_53 : f32 to vector<1x1024xf32>
    %c0 = arith.constant 0 : index
    %c0_54 = arith.constant 0 : index
    %c0_55 = arith.constant 0 : index
    %140 = vector.load %arg1[%c0, %c0_54, %c0_55] : memref<1x64x4xf32, #tpu.memory_space<vmem>>, vector<1x64x4xf32>
    %141 = vector.shape_cast %140 : vector<1x64x4xf32> to vector<64x4xf32>
    %c0_56 = arith.constant 0 : index
    %c0_57 = arith.constant 0 : index
    %142 = vector.load %arg7[%c0_56, %c0_57] : memref<176x640xf32, #tpu.memory_space<vmem>>, vector<16x577xf32>
    %cst_58 = arith.constant 0.000000e+00 : f32
    %143 = vector.broadcast %cst_58 : f32 to vector<64x3xf32>
    %144 = vector.extract_strided_slice %141 {offsets = [0, 0], sizes = [64, 1], strides = [1, 1]} : vector<64x4xf32> to vector<64x1xf32>
    %145 = tpu.concatenate %143, %144 in 1 : vector<64x3xf32>, vector<64x1xf32> -> vector<64x4xf32>
    %146 = vector.broadcast %23 : vector<1x4xf32> to vector<64x4xf32>
    %147 = arith.mulf %145, %146 : vector<64x4xf32>
    %cst_59 = arith.constant 0.000000e+00 : f32
    %148 = vector.broadcast %cst_59 : f32 to vector<64x2xf32>
    %149 = vector.extract_strided_slice %141 {offsets = [0, 0], sizes = [64, 2], strides = [1, 1]} : vector<64x4xf32> to vector<64x2xf32>
    %150 = tpu.concatenate %148, %149 in 1 : vector<64x2xf32>, vector<64x2xf32> -> vector<64x4xf32>
    %151 = vector.broadcast %17 : vector<1x4xf32> to vector<64x4xf32>
    %152 = arith.mulf %150, %151 : vector<64x4xf32>
    %cst_60 = arith.constant 0.000000e+00 : f32
    %153 = vector.broadcast %cst_60 : f32 to vector<64x1xf32>
    %154 = vector.extract_strided_slice %141 {offsets = [0, 0], sizes = [64, 3], strides = [1, 1]} : vector<64x4xf32> to vector<64x3xf32>
    %155 = tpu.concatenate %153, %154 in 1 : vector<64x1xf32>, vector<64x3xf32> -> vector<64x4xf32>
    %156 = vector.broadcast %24 : vector<1x4xf32> to vector<64x4xf32>
    %157 = arith.mulf %155, %156 : vector<64x4xf32>
    %cst_61 = arith.constant 0.000000e+00 : f32
    %158 = vector.broadcast %cst_61 : f32 to vector<64x1xf32>
    %159 = vector.extract_strided_slice %141 {offsets = [0, 0], sizes = [64, 3], strides = [1, 1]} : vector<64x4xf32> to vector<64x3xf32>
    %160 = tpu.concatenate %158, %159 in 1 : vector<64x1xf32>, vector<64x3xf32> -> vector<64x4xf32>
    %161 = vector.broadcast %7 : vector<1x4xf32> to vector<64x4xf32>
    %162 = arith.mulf %160, %161 : vector<64x4xf32>
    %163 = vector.extract_strided_slice %141 {offsets = [0, 1], sizes = [64, 3], strides = [1, 1]} : vector<64x4xf32> to vector<64x3xf32>
    %cst_62 = arith.constant 0.000000e+00 : f32
    %164 = vector.broadcast %cst_62 : f32 to vector<64x1xf32>
    %165 = tpu.concatenate %163, %164 in 1 : vector<64x3xf32>, vector<64x1xf32> -> vector<64x4xf32>
    %166 = vector.broadcast %12 : vector<1x4xf32> to vector<64x4xf32>
    %167 = arith.mulf %165, %166 : vector<64x4xf32>
    %168 = vector.extract_strided_slice %141 {offsets = [0, 1], sizes = [64, 3], strides = [1, 1]} : vector<64x4xf32> to vector<64x3xf32>
    %cst_63 = arith.constant 0.000000e+00 : f32
    %169 = vector.broadcast %cst_63 : f32 to vector<64x1xf32>
    %170 = tpu.concatenate %168, %169 in 1 : vector<64x3xf32>, vector<64x1xf32> -> vector<64x4xf32>
    %171 = vector.broadcast %25 : vector<1x4xf32> to vector<64x4xf32>
    %172 = arith.mulf %170, %171 : vector<64x4xf32>
    %173 = vector.extract_strided_slice %141 {offsets = [0, 2], sizes = [64, 2], strides = [1, 1]} : vector<64x4xf32> to vector<64x2xf32>
    %cst_64 = arith.constant 0.000000e+00 : f32
    %174 = vector.broadcast %cst_64 : f32 to vector<64x2xf32>
    %175 = tpu.concatenate %173, %174 in 1 : vector<64x2xf32>, vector<64x2xf32> -> vector<64x4xf32>
    %176 = vector.broadcast %22 : vector<1x4xf32> to vector<64x4xf32>
    %177 = arith.mulf %175, %176 : vector<64x4xf32>
    %178 = vector.extract_strided_slice %141 {offsets = [0, 3], sizes = [64, 1], strides = [1, 1]} : vector<64x4xf32> to vector<64x1xf32>
    %cst_65 = arith.constant 0.000000e+00 : f32
    %179 = vector.broadcast %cst_65 : f32 to vector<64x3xf32>
    %180 = tpu.concatenate %178, %179 in 1 : vector<64x1xf32>, vector<64x3xf32> -> vector<64x4xf32>
    %181 = vector.broadcast %26 : vector<1x4xf32> to vector<64x4xf32>
    %182 = arith.mulf %180, %181 : vector<64x4xf32>
    %183 = tpu.concatenate %147, %152, %157, %162, %141, %167, %172, %177, %182, %27 in 0 : vector<64x4xf32>, vector<64x4xf32>, vector<64x4xf32>, vector<64x4xf32>, vector<64x4xf32>, vector<64x4xf32>, vector<64x4xf32>, vector<64x4xf32>, vector<64x4xf32>, vector<1x4xf32> -> vector<577x4xf32>
    %cst_66 = arith.constant dense<0.000000e+00> : vector<16x4xf32>
    %184 = tpu.matmul %142, %183, %cst_66 {dimension_numbers = #tpu.dot_dimension_numbers<[1], [0], [0], [1], [0, 0, 1, 1], [], []>} : vector<16x577xf32>, vector<577x4xf32>, vector<16x4xf32> -> vector<16x4xf32>
    %cst_67 = arith.constant 5.000000e-01 : f32
    %185 = vector.broadcast %cst_67 : f32 to vector<16x4xf32>
    %186 = arith.mulf %185, %184 : vector<16x4xf32>
    %cst_68 = arith.constant 0.707106769 : f32
    %187 = vector.broadcast %cst_68 : f32 to vector<16x4xf32>
    %188 = arith.mulf %184, %187 : vector<16x4xf32>
    %cst_69 = arith.constant 0.000000e+00 : f32
    %189 = vector.broadcast %cst_69 : f32 to vector<16x4xf32>
    %190 = arith.cmpf oge, %188, %189 : vector<16x4xf32>
    %cst_70 = arith.constant 1.000000e+00 : f32
    %cst_71 = arith.constant -1.000000e+00 : f32
    %191 = vector.broadcast %cst_70 : f32 to vector<16x4xf32>
    %192 = vector.broadcast %cst_71 : f32 to vector<16x4xf32>
    %193 = arith.select %190, %191, %192 : vector<16x4xi1>, vector<16x4xf32>
    %194 = math.absf %188 : vector<16x4xf32>
    %cst_72 = arith.constant 0.327591091 : f32
    %195 = vector.broadcast %cst_72 : f32 to vector<16x4xf32>
    %196 = arith.mulf %195, %194 : vector<16x4xf32>
    %cst_73 = arith.constant 1.000000e+00 : f32
    %197 = vector.broadcast %cst_73 : f32 to vector<16x4xf32>
    %198 = arith.addf %197, %196 : vector<16x4xf32>
    %cst_74 = arith.constant 1.000000e+00 : f32
    %199 = vector.broadcast %cst_74 : f32 to vector<16x4xf32>
    %200 = arith.divf %199, %198 : vector<16x4xf32>
    %cst_75 = arith.constant 1.06140542 : f32
    %201 = vector.broadcast %cst_75 : f32 to vector<16x4xf32>
    %202 = arith.mulf %201, %200 : vector<16x4xf32>
    %cst_76 = arith.constant -1.45315206 : f32
    %203 = vector.broadcast %cst_76 : f32 to vector<16x4xf32>
    %204 = arith.addf %202, %203 : vector<16x4xf32>
    %205 = arith.mulf %204, %200 : vector<16x4xf32>
    %cst_77 = arith.constant 1.42141378 : f32
    %206 = vector.broadcast %cst_77 : f32 to vector<16x4xf32>
    %207 = arith.addf %205, %206 : vector<16x4xf32>
    %208 = arith.mulf %207, %200 : vector<16x4xf32>
    %cst_78 = arith.constant -0.284496725 : f32
    %209 = vector.broadcast %cst_78 : f32 to vector<16x4xf32>
    %210 = arith.addf %208, %209 : vector<16x4xf32>
    %211 = arith.mulf %210, %200 : vector<16x4xf32>
    %cst_79 = arith.constant 0.254829586 : f32
    %212 = vector.broadcast %cst_79 : f32 to vector<16x4xf32>
    %213 = arith.addf %211, %212 : vector<16x4xf32>
    %214 = arith.mulf %213, %200 : vector<16x4xf32>
    %cst_80 = arith.constant 0.000000e+00 : f32
    %215 = vector.broadcast %cst_80 : f32 to vector<16x4xf32>
    %216 = arith.subf %215, %194 : vector<16x4xf32>
    %217 = arith.mulf %216, %194 : vector<16x4xf32>
    %218 = math.exp %217 : vector<16x4xf32>
    %219 = arith.mulf %214, %218 : vector<16x4xf32>
    %cst_81 = arith.constant 1.000000e+00 : f32
    %220 = vector.broadcast %cst_81 : f32 to vector<16x4xf32>
    %221 = arith.subf %220, %219 : vector<16x4xf32>
    %222 = arith.mulf %193, %221 : vector<16x4xf32>
    %cst_82 = arith.constant 1.000000e+00 : f32
    %223 = vector.broadcast %cst_82 : f32 to vector<16x4xf32>
    %224 = arith.addf %223, %222 : vector<16x4xf32>
    %225 = arith.mulf %186, %224 : vector<16x4xf32>
    %c16 = arith.constant 16 : index
    %c0_83 = arith.constant 0 : index
    %226 = vector.load %arg7[%c16, %c0_83] : memref<176x640xf32, #tpu.memory_space<vmem>>, vector<6x145xf32>
    %cst_84 = arith.constant 0.000000e+00 : f32
    %227 = vector.broadcast %cst_84 : f32 to vector<16x3xf32>
    %228 = vector.extract_strided_slice %225 {offsets = [0, 0], sizes = [16, 1], strides = [1, 1]} : vector<16x4xf32> to vector<16x1xf32>
    %229 = tpu.concatenate %227, %228 in 1 : vector<16x3xf32>, vector<16x1xf32> -> vector<16x4xf32>
    %230 = vector.broadcast %23 : vector<1x4xf32> to vector<16x4xf32>
    %231 = arith.mulf %229, %230 : vector<16x4xf32>
    %cst_85 = arith.constant 0.000000e+00 : f32
    %232 = vector.broadcast %cst_85 : f32 to vector<16x2xf32>
    %233 = vector.extract_strided_slice %225 {offsets = [0, 0], sizes = [16, 2], strides = [1, 1]} : vector<16x4xf32> to vector<16x2xf32>
    %234 = tpu.concatenate %232, %233 in 1 : vector<16x2xf32>, vector<16x2xf32> -> vector<16x4xf32>
    %235 = vector.broadcast %17 : vector<1x4xf32> to vector<16x4xf32>
    %236 = arith.mulf %234, %235 : vector<16x4xf32>
    %cst_86 = arith.constant 0.000000e+00 : f32
    %237 = vector.broadcast %cst_86 : f32 to vector<16x1xf32>
    %238 = vector.extract_strided_slice %225 {offsets = [0, 0], sizes = [16, 3], strides = [1, 1]} : vector<16x4xf32> to vector<16x3xf32>
    %239 = tpu.concatenate %237, %238 in 1 : vector<16x1xf32>, vector<16x3xf32> -> vector<16x4xf32>
    %240 = vector.broadcast %24 : vector<1x4xf32> to vector<16x4xf32>
    %241 = arith.mulf %239, %240 : vector<16x4xf32>
    %cst_87 = arith.constant 0.000000e+00 : f32
    %242 = vector.broadcast %cst_87 : f32 to vector<16x1xf32>
    %243 = vector.extract_strided_slice %225 {offsets = [0, 0], sizes = [16, 3], strides = [1, 1]} : vector<16x4xf32> to vector<16x3xf32>
    %244 = tpu.concatenate %242, %243 in 1 : vector<16x1xf32>, vector<16x3xf32> -> vector<16x4xf32>
    %245 = vector.broadcast %7 : vector<1x4xf32> to vector<16x4xf32>
    %246 = arith.mulf %244, %245 : vector<16x4xf32>
    %247 = vector.extract_strided_slice %225 {offsets = [0, 1], sizes = [16, 3], strides = [1, 1]} : vector<16x4xf32> to vector<16x3xf32>
    %cst_88 = arith.constant 0.000000e+00 : f32
    %248 = vector.broadcast %cst_88 : f32 to vector<16x1xf32>
    %249 = tpu.concatenate %247, %248 in 1 : vector<16x3xf32>, vector<16x1xf32> -> vector<16x4xf32>
    %250 = vector.broadcast %12 : vector<1x4xf32> to vector<16x4xf32>
    %251 = arith.mulf %249, %250 : vector<16x4xf32>
    %252 = vector.extract_strided_slice %225 {offsets = [0, 1], sizes = [16, 3], strides = [1, 1]} : vector<16x4xf32> to vector<16x3xf32>
    %cst_89 = arith.constant 0.000000e+00 : f32
    %253 = vector.broadcast %cst_89 : f32 to vector<16x1xf32>
    %254 = tpu.concatenate %252, %253 in 1 : vector<16x3xf32>, vector<16x1xf32> -> vector<16x4xf32>
    %255 = vector.broadcast %25 : vector<1x4xf32> to vector<16x4xf32>
    %256 = arith.mulf %254, %255 : vector<16x4xf32>
    %257 = vector.extract_strided_slice %225 {offsets = [0, 2], sizes = [16, 2], strides = [1, 1]} : vector<16x4xf32> to vector<16x2xf32>
    %cst_90 = arith.constant 0.000000e+00 : f32
    %258 = vector.broadcast %cst_90 : f32 to vector<16x2xf32>
    %259 = tpu.concatenate %257, %258 in 1 : vector<16x2xf32>, vector<16x2xf32> -> vector<16x4xf32>
    %260 = vector.broadcast %22 : vector<1x4xf32> to vector<16x4xf32>
    %261 = arith.mulf %259, %260 : vector<16x4xf32>
    %262 = vector.extract_strided_slice %225 {offsets = [0, 3], sizes = [16, 1], strides = [1, 1]} : vector<16x4xf32> to vector<16x1xf32>
    %cst_91 = arith.constant 0.000000e+00 : f32
    %263 = vector.broadcast %cst_91 : f32 to vector<16x3xf32>
    %264 = tpu.concatenate %262, %263 in 1 : vector<16x1xf32>, vector<16x3xf32> -> vector<16x4xf32>
    %265 = vector.broadcast %26 : vector<1x4xf32> to vector<16x4xf32>
    %266 = arith.mulf %264, %265 : vector<16x4xf32>
    %267 = tpu.concatenate %231, %236, %241, %246, %225, %251, %256, %261, %266, %27 in 0 : vector<16x4xf32>, vector<16x4xf32>, vector<16x4xf32>, vector<16x4xf32>, vector<16x4xf32>, vector<16x4xf32>, vector<16x4xf32>, vector<16x4xf32>, vector<16x4xf32>, vector<1x4xf32> -> vector<145x4xf32>
    %cst_92 = arith.constant dense<0.000000e+00> : vector<6x4xf32>
    %268 = tpu.matmul %226, %267, %cst_92 {dimension_numbers = #tpu.dot_dimension_numbers<[1], [0], [0], [1], [0, 0, 1, 1], [], []>} : vector<6x145xf32>, vector<145x4xf32>, vector<6x4xf32> -> vector<6x4xf32>
    %c24 = arith.constant 24 : index
    %c0_93 = arith.constant 0 : index
    %269 = vector.load %arg7[%c24, %c0_93] : memref<176x640xf32, #tpu.memory_space<vmem>>, vector<2x55xf32>
    %cst_94 = arith.constant 0.000000e+00 : f32
    %270 = vector.broadcast %cst_94 : f32 to vector<6x3xf32>
    %271 = vector.extract_strided_slice %268 {offsets = [0, 0], sizes = [6, 1], strides = [1, 1]} : vector<6x4xf32> to vector<6x1xf32>
    %272 = tpu.concatenate %270, %271 in 1 : vector<6x3xf32>, vector<6x1xf32> -> vector<6x4xf32>
    %273 = vector.broadcast %23 : vector<1x4xf32> to vector<6x4xf32>
    %274 = arith.mulf %272, %273 : vector<6x4xf32>
    %cst_95 = arith.constant 0.000000e+00 : f32
    %275 = vector.broadcast %cst_95 : f32 to vector<6x2xf32>
    %276 = vector.extract_strided_slice %268 {offsets = [0, 0], sizes = [6, 2], strides = [1, 1]} : vector<6x4xf32> to vector<6x2xf32>
    %277 = tpu.concatenate %275, %276 in 1 : vector<6x2xf32>, vector<6x2xf32> -> vector<6x4xf32>
    %278 = vector.broadcast %17 : vector<1x4xf32> to vector<6x4xf32>
    %279 = arith.mulf %277, %278 : vector<6x4xf32>
    %cst_96 = arith.constant 0.000000e+00 : f32
    %280 = vector.broadcast %cst_96 : f32 to vector<6x1xf32>
    %281 = vector.extract_strided_slice %268 {offsets = [0, 0], sizes = [6, 3], strides = [1, 1]} : vector<6x4xf32> to vector<6x3xf32>
    %282 = tpu.concatenate %280, %281 in 1 : vector<6x1xf32>, vector<6x3xf32> -> vector<6x4xf32>
    %283 = vector.broadcast %24 : vector<1x4xf32> to vector<6x4xf32>
    %284 = arith.mulf %282, %283 : vector<6x4xf32>
    %cst_97 = arith.constant 0.000000e+00 : f32
    %285 = vector.broadcast %cst_97 : f32 to vector<6x1xf32>
    %286 = vector.extract_strided_slice %268 {offsets = [0, 0], sizes = [6, 3], strides = [1, 1]} : vector<6x4xf32> to vector<6x3xf32>
    %287 = tpu.concatenate %285, %286 in 1 : vector<6x1xf32>, vector<6x3xf32> -> vector<6x4xf32>
    %288 = vector.broadcast %7 : vector<1x4xf32> to vector<6x4xf32>
    %289 = arith.mulf %287, %288 : vector<6x4xf32>
    %290 = vector.extract_strided_slice %268 {offsets = [0, 1], sizes = [6, 3], strides = [1, 1]} : vector<6x4xf32> to vector<6x3xf32>
    %cst_98 = arith.constant 0.000000e+00 : f32
    %291 = vector.broadcast %cst_98 : f32 to vector<6x1xf32>
    %292 = tpu.concatenate %290, %291 in 1 : vector<6x3xf32>, vector<6x1xf32> -> vector<6x4xf32>
    %293 = vector.broadcast %12 : vector<1x4xf32> to vector<6x4xf32>
    %294 = arith.mulf %292, %293 : vector<6x4xf32>
    %295 = vector.extract_strided_slice %268 {offsets = [0, 1], sizes = [6, 3], strides = [1, 1]} : vector<6x4xf32> to vector<6x3xf32>
    %cst_99 = arith.constant 0.000000e+00 : f32
    %296 = vector.broadcast %cst_99 : f32 to vector<6x1xf32>
    %297 = tpu.concatenate %295, %296 in 1 : vector<6x3xf32>, vector<6x1xf32> -> vector<6x4xf32>
    %298 = vector.broadcast %25 : vector<1x4xf32> to vector<6x4xf32>
    %299 = arith.mulf %297, %298 : vector<6x4xf32>
    %300 = vector.extract_strided_slice %268 {offsets = [0, 2], sizes = [6, 2], strides = [1, 1]} : vector<6x4xf32> to vector<6x2xf32>
    %cst_100 = arith.constant 0.000000e+00 : f32
    %301 = vector.broadcast %cst_100 : f32 to vector<6x2xf32>
    %302 = tpu.concatenate %300, %301 in 1 : vector<6x2xf32>, vector<6x2xf32> -> vector<6x4xf32>
    %303 = vector.broadcast %22 : vector<1x4xf32> to vector<6x4xf32>
    %304 = arith.mulf %302, %303 : vector<6x4xf32>
    %305 = vector.extract_strided_slice %268 {offsets = [0, 3], sizes = [6, 1], strides = [1, 1]} : vector<6x4xf32> to vector<6x1xf32>
    %cst_101 = arith.constant 0.000000e+00 : f32
    %306 = vector.broadcast %cst_101 : f32 to vector<6x3xf32>
    %307 = tpu.concatenate %305, %306 in 1 : vector<6x1xf32>, vector<6x3xf32> -> vector<6x4xf32>
    %308 = vector.broadcast %26 : vector<1x4xf32> to vector<6x4xf32>
    %309 = arith.mulf %307, %308 : vector<6x4xf32>
    %310 = tpu.concatenate %274, %279, %284, %289, %268, %294, %299, %304, %309, %27 in 0 : vector<6x4xf32>, vector<6x4xf32>, vector<6x4xf32>, vector<6x4xf32>, vector<6x4xf32>, vector<6x4xf32>, vector<6x4xf32>, vector<6x4xf32>, vector<6x4xf32>, vector<1x4xf32> -> vector<55x4xf32>
    %cst_102 = arith.constant dense<0.000000e+00> : vector<2x4xf32>
    %311 = tpu.matmul %269, %310, %cst_102 {dimension_numbers = #tpu.dot_dimension_numbers<[1], [0], [0], [1], [0, 0, 1, 1], [], []>} : vector<2x55xf32>, vector<55x4xf32>, vector<2x4xf32> -> vector<2x4xf32>
    %c0_103 = arith.constant 0 : index
    %c0_104 = arith.constant 0 : index
    %c0_105 = arith.constant 0 : index
    %312 = vector.load %arg2[%c0_103, %c0_104, %c0_105] : memref<1x32x16xf32, #tpu.memory_space<vmem>>, vector<1x32x16xf32>
    %313 = vector.shape_cast %312 : vector<1x32x16xf32> to vector<32x16xf32>
    %c32 = arith.constant 32 : index
    %c0_106 = arith.constant 0 : index
    %314 = vector.load %arg7[%c32, %c0_106] : memref<176x640xf32, #tpu.memory_space<vmem>>, vector<16x289xf32>
    %cst_107 = arith.constant 0.000000e+00 : f32
    %315 = vector.broadcast %cst_107 : f32 to vector<32x5xf32>
    %316 = vector.extract_strided_slice %313 {offsets = [0, 0], sizes = [32, 11], strides = [1, 1]} : vector<32x16xf32> to vector<32x11xf32>
    %317 = tpu.concatenate %315, %316 in 1 : vector<32x5xf32>, vector<32x11xf32> -> vector<32x16xf32>
    %318 = vector.broadcast %51 : vector<1x16xf32> to vector<32x16xf32>
    %319 = arith.mulf %317, %318 : vector<32x16xf32>
    %cst_108 = arith.constant 0.000000e+00 : f32
    %320 = vector.broadcast %cst_108 : f32 to vector<32x4xf32>
    %321 = vector.extract_strided_slice %313 {offsets = [0, 0], sizes = [32, 12], strides = [1, 1]} : vector<32x16xf32> to vector<32x12xf32>
    %322 = tpu.concatenate %320, %321 in 1 : vector<32x4xf32>, vector<32x12xf32> -> vector<32x16xf32>
    %323 = vector.broadcast %45 : vector<1x16xf32> to vector<32x16xf32>
    %324 = arith.mulf %322, %323 : vector<32x16xf32>
    %cst_109 = arith.constant 0.000000e+00 : f32
    %325 = vector.broadcast %cst_109 : f32 to vector<32x3xf32>
    %326 = vector.extract_strided_slice %313 {offsets = [0, 0], sizes = [32, 13], strides = [1, 1]} : vector<32x16xf32> to vector<32x13xf32>
    %327 = tpu.concatenate %325, %326 in 1 : vector<32x3xf32>, vector<32x13xf32> -> vector<32x16xf32>
    %328 = vector.broadcast %52 : vector<1x16xf32> to vector<32x16xf32>
    %329 = arith.mulf %327, %328 : vector<32x16xf32>
    %cst_110 = arith.constant 0.000000e+00 : f32
    %330 = vector.broadcast %cst_110 : f32 to vector<32x1xf32>
    %331 = vector.extract_strided_slice %313 {offsets = [0, 0], sizes = [32, 15], strides = [1, 1]} : vector<32x16xf32> to vector<32x15xf32>
    %332 = tpu.concatenate %330, %331 in 1 : vector<32x1xf32>, vector<32x15xf32> -> vector<32x16xf32>
    %333 = vector.broadcast %35 : vector<1x16xf32> to vector<32x16xf32>
    %334 = arith.mulf %332, %333 : vector<32x16xf32>
    %335 = vector.extract_strided_slice %313 {offsets = [0, 1], sizes = [32, 15], strides = [1, 1]} : vector<32x16xf32> to vector<32x15xf32>
    %cst_111 = arith.constant 0.000000e+00 : f32
    %336 = vector.broadcast %cst_111 : f32 to vector<32x1xf32>
    %337 = tpu.concatenate %335, %336 in 1 : vector<32x15xf32>, vector<32x1xf32> -> vector<32x16xf32>
    %338 = vector.broadcast %40 : vector<1x16xf32> to vector<32x16xf32>
    %339 = arith.mulf %337, %338 : vector<32x16xf32>
    %340 = vector.extract_strided_slice %313 {offsets = [0, 3], sizes = [32, 13], strides = [1, 1]} : vector<32x16xf32> to vector<32x13xf32>
    %cst_112 = arith.constant 0.000000e+00 : f32
    %341 = vector.broadcast %cst_112 : f32 to vector<32x3xf32>
    %342 = tpu.concatenate %340, %341 in 1 : vector<32x13xf32>, vector<32x3xf32> -> vector<32x16xf32>
    %343 = vector.broadcast %53 : vector<1x16xf32> to vector<32x16xf32>
    %344 = arith.mulf %342, %343 : vector<32x16xf32>
    %345 = vector.extract_strided_slice %313 {offsets = [0, 4], sizes = [32, 12], strides = [1, 1]} : vector<32x16xf32> to vector<32x12xf32>
    %cst_113 = arith.constant 0.000000e+00 : f32
    %346 = vector.broadcast %cst_113 : f32 to vector<32x4xf32>
    %347 = tpu.concatenate %345, %346 in 1 : vector<32x12xf32>, vector<32x4xf32> -> vector<32x16xf32>
    %348 = vector.broadcast %50 : vector<1x16xf32> to vector<32x16xf32>
    %349 = arith.mulf %347, %348 : vector<32x16xf32>
    %350 = vector.extract_strided_slice %313 {offsets = [0, 5], sizes = [32, 11], strides = [1, 1]} : vector<32x16xf32> to vector<32x11xf32>
    %cst_114 = arith.constant 0.000000e+00 : f32
    %351 = vector.broadcast %cst_114 : f32 to vector<32x5xf32>
    %352 = tpu.concatenate %350, %351 in 1 : vector<32x11xf32>, vector<32x5xf32> -> vector<32x16xf32>
    %353 = vector.broadcast %54 : vector<1x16xf32> to vector<32x16xf32>
    %354 = arith.mulf %352, %353 : vector<32x16xf32>
    %355 = tpu.concatenate %319, %324, %329, %334, %313, %339, %344, %349, %354, %55 in 0 : vector<32x16xf32>, vector<32x16xf32>, vector<32x16xf32>, vector<32x16xf32>, vector<32x16xf32>, vector<32x16xf32>, vector<32x16xf32>, vector<32x16xf32>, vector<32x16xf32>, vector<1x16xf32> -> vector<289x16xf32>
    %cst_115 = arith.constant dense<0.000000e+00> : vector<16x16xf32>
    %356 = tpu.matmul %314, %355, %cst_115 {dimension_numbers = #tpu.dot_dimension_numbers<[1], [0], [0], [1], [0, 0, 1, 1], [], []>} : vector<16x289xf32>, vector<289x16xf32>, vector<16x16xf32> -> vector<16x16xf32>
    %cst_116 = arith.constant 5.000000e-01 : f32
    %357 = vector.broadcast %cst_116 : f32 to vector<16x16xf32>
    %358 = arith.mulf %357, %356 : vector<16x16xf32>
    %cst_117 = arith.constant 0.707106769 : f32
    %359 = vector.broadcast %cst_117 : f32 to vector<16x16xf32>
    %360 = arith.mulf %356, %359 : vector<16x16xf32>
    %cst_118 = arith.constant 0.000000e+00 : f32
    %361 = vector.broadcast %cst_118 : f32 to vector<16x16xf32>
    %362 = arith.cmpf oge, %360, %361 : vector<16x16xf32>
    %cst_119 = arith.constant 1.000000e+00 : f32
    %cst_120 = arith.constant -1.000000e+00 : f32
    %363 = vector.broadcast %cst_119 : f32 to vector<16x16xf32>
    %364 = vector.broadcast %cst_120 : f32 to vector<16x16xf32>
    %365 = arith.select %362, %363, %364 : vector<16x16xi1>, vector<16x16xf32>
    %366 = math.absf %360 : vector<16x16xf32>
    %cst_121 = arith.constant 0.327591091 : f32
    %367 = vector.broadcast %cst_121 : f32 to vector<16x16xf32>
    %368 = arith.mulf %367, %366 : vector<16x16xf32>
    %cst_122 = arith.constant 1.000000e+00 : f32
    %369 = vector.broadcast %cst_122 : f32 to vector<16x16xf32>
    %370 = arith.addf %369, %368 : vector<16x16xf32>
    %cst_123 = arith.constant 1.000000e+00 : f32
    %371 = vector.broadcast %cst_123 : f32 to vector<16x16xf32>
    %372 = arith.divf %371, %370 : vector<16x16xf32>
    %cst_124 = arith.constant 1.06140542 : f32
    %373 = vector.broadcast %cst_124 : f32 to vector<16x16xf32>
    %374 = arith.mulf %373, %372 : vector<16x16xf32>
    %cst_125 = arith.constant -1.45315206 : f32
    %375 = vector.broadcast %cst_125 : f32 to vector<16x16xf32>
    %376 = arith.addf %374, %375 : vector<16x16xf32>
    %377 = arith.mulf %376, %372 : vector<16x16xf32>
    %cst_126 = arith.constant 1.42141378 : f32
    %378 = vector.broadcast %cst_126 : f32 to vector<16x16xf32>
    %379 = arith.addf %377, %378 : vector<16x16xf32>
    %380 = arith.mulf %379, %372 : vector<16x16xf32>
    %cst_127 = arith.constant -0.284496725 : f32
    %381 = vector.broadcast %cst_127 : f32 to vector<16x16xf32>
    %382 = arith.addf %380, %381 : vector<16x16xf32>
    %383 = arith.mulf %382, %372 : vector<16x16xf32>
    %cst_128 = arith.constant 0.254829586 : f32
    %384 = vector.broadcast %cst_128 : f32 to vector<16x16xf32>
    %385 = arith.addf %383, %384 : vector<16x16xf32>
    %386 = arith.mulf %385, %372 : vector<16x16xf32>
    %cst_129 = arith.constant 0.000000e+00 : f32
    %387 = vector.broadcast %cst_129 : f32 to vector<16x16xf32>
    %388 = arith.subf %387, %366 : vector<16x16xf32>
    %389 = arith.mulf %388, %366 : vector<16x16xf32>
    %390 = math.exp %389 : vector<16x16xf32>
    %391 = arith.mulf %386, %390 : vector<16x16xf32>
    %cst_130 = arith.constant 1.000000e+00 : f32
    %392 = vector.broadcast %cst_130 : f32 to vector<16x16xf32>
    %393 = arith.subf %392, %391 : vector<16x16xf32>
    %394 = arith.mulf %365, %393 : vector<16x16xf32>
    %cst_131 = arith.constant 1.000000e+00 : f32
    %395 = vector.broadcast %cst_131 : f32 to vector<16x16xf32>
    %396 = arith.addf %395, %394 : vector<16x16xf32>
    %397 = arith.mulf %358, %396 : vector<16x16xf32>
    %c48 = arith.constant 48 : index
    %c0_132 = arith.constant 0 : index
    %398 = vector.load %arg7[%c48, %c0_132] : memref<176x640xf32, #tpu.memory_space<vmem>>, vector<6x145xf32>
    %cst_133 = arith.constant 0.000000e+00 : f32
    %399 = vector.broadcast %cst_133 : f32 to vector<16x5xf32>
    %400 = vector.extract_strided_slice %397 {offsets = [0, 0], sizes = [16, 11], strides = [1, 1]} : vector<16x16xf32> to vector<16x11xf32>
    %401 = tpu.concatenate %399, %400 in 1 : vector<16x5xf32>, vector<16x11xf32> -> vector<16x16xf32>
    %402 = vector.broadcast %51 : vector<1x16xf32> to vector<16x16xf32>
    %403 = arith.mulf %401, %402 : vector<16x16xf32>
    %cst_134 = arith.constant 0.000000e+00 : f32
    %404 = vector.broadcast %cst_134 : f32 to vector<16x4xf32>
    %405 = vector.extract_strided_slice %397 {offsets = [0, 0], sizes = [16, 12], strides = [1, 1]} : vector<16x16xf32> to vector<16x12xf32>
    %406 = tpu.concatenate %404, %405 in 1 : vector<16x4xf32>, vector<16x12xf32> -> vector<16x16xf32>
    %407 = vector.broadcast %45 : vector<1x16xf32> to vector<16x16xf32>
    %408 = arith.mulf %406, %407 : vector<16x16xf32>
    %cst_135 = arith.constant 0.000000e+00 : f32
    %409 = vector.broadcast %cst_135 : f32 to vector<16x3xf32>
    %410 = vector.extract_strided_slice %397 {offsets = [0, 0], sizes = [16, 13], strides = [1, 1]} : vector<16x16xf32> to vector<16x13xf32>
    %411 = tpu.concatenate %409, %410 in 1 : vector<16x3xf32>, vector<16x13xf32> -> vector<16x16xf32>
    %412 = vector.broadcast %52 : vector<1x16xf32> to vector<16x16xf32>
    %413 = arith.mulf %411, %412 : vector<16x16xf32>
    %cst_136 = arith.constant 0.000000e+00 : f32
    %414 = vector.broadcast %cst_136 : f32 to vector<16x1xf32>
    %415 = vector.extract_strided_slice %397 {offsets = [0, 0], sizes = [16, 15], strides = [1, 1]} : vector<16x16xf32> to vector<16x15xf32>
    %416 = tpu.concatenate %414, %415 in 1 : vector<16x1xf32>, vector<16x15xf32> -> vector<16x16xf32>
    %417 = vector.broadcast %35 : vector<1x16xf32> to vector<16x16xf32>
    %418 = arith.mulf %416, %417 : vector<16x16xf32>
    %419 = vector.extract_strided_slice %397 {offsets = [0, 1], sizes = [16, 15], strides = [1, 1]} : vector<16x16xf32> to vector<16x15xf32>
    %cst_137 = arith.constant 0.000000e+00 : f32
    %420 = vector.broadcast %cst_137 : f32 to vector<16x1xf32>
    %421 = tpu.concatenate %419, %420 in 1 : vector<16x15xf32>, vector<16x1xf32> -> vector<16x16xf32>
    %422 = vector.broadcast %40 : vector<1x16xf32> to vector<16x16xf32>
    %423 = arith.mulf %421, %422 : vector<16x16xf32>
    %424 = vector.extract_strided_slice %397 {offsets = [0, 3], sizes = [16, 13], strides = [1, 1]} : vector<16x16xf32> to vector<16x13xf32>
    %cst_138 = arith.constant 0.000000e+00 : f32
    %425 = vector.broadcast %cst_138 : f32 to vector<16x3xf32>
    %426 = tpu.concatenate %424, %425 in 1 : vector<16x13xf32>, vector<16x3xf32> -> vector<16x16xf32>
    %427 = vector.broadcast %53 : vector<1x16xf32> to vector<16x16xf32>
    %428 = arith.mulf %426, %427 : vector<16x16xf32>
    %429 = vector.extract_strided_slice %397 {offsets = [0, 4], sizes = [16, 12], strides = [1, 1]} : vector<16x16xf32> to vector<16x12xf32>
    %cst_139 = arith.constant 0.000000e+00 : f32
    %430 = vector.broadcast %cst_139 : f32 to vector<16x4xf32>
    %431 = tpu.concatenate %429, %430 in 1 : vector<16x12xf32>, vector<16x4xf32> -> vector<16x16xf32>
    %432 = vector.broadcast %50 : vector<1x16xf32> to vector<16x16xf32>
    %433 = arith.mulf %431, %432 : vector<16x16xf32>
    %434 = vector.extract_strided_slice %397 {offsets = [0, 5], sizes = [16, 11], strides = [1, 1]} : vector<16x16xf32> to vector<16x11xf32>
    %cst_140 = arith.constant 0.000000e+00 : f32
    %435 = vector.broadcast %cst_140 : f32 to vector<16x5xf32>
    %436 = tpu.concatenate %434, %435 in 1 : vector<16x11xf32>, vector<16x5xf32> -> vector<16x16xf32>
    %437 = vector.broadcast %54 : vector<1x16xf32> to vector<16x16xf32>
    %438 = arith.mulf %436, %437 : vector<16x16xf32>
    %439 = tpu.concatenate %403, %408, %413, %418, %397, %423, %428, %433, %438, %55 in 0 : vector<16x16xf32>, vector<16x16xf32>, vector<16x16xf32>, vector<16x16xf32>, vector<16x16xf32>, vector<16x16xf32>, vector<16x16xf32>, vector<16x16xf32>, vector<16x16xf32>, vector<1x16xf32> -> vector<145x16xf32>
    %cst_141 = arith.constant dense<0.000000e+00> : vector<6x16xf32>
    %440 = tpu.matmul %398, %439, %cst_141 {dimension_numbers = #tpu.dot_dimension_numbers<[1], [0], [0], [1], [0, 0, 1, 1], [], []>} : vector<6x145xf32>, vector<145x16xf32>, vector<6x16xf32> -> vector<6x16xf32>
    %c56 = arith.constant 56 : index
    %c0_142 = arith.constant 0 : index
    %441 = vector.load %arg7[%c56, %c0_142] : memref<176x640xf32, #tpu.memory_space<vmem>>, vector<2x55xf32>
    %cst_143 = arith.constant 0.000000e+00 : f32
    %442 = vector.broadcast %cst_143 : f32 to vector<6x5xf32>
    %443 = vector.extract_strided_slice %440 {offsets = [0, 0], sizes = [6, 11], strides = [1, 1]} : vector<6x16xf32> to vector<6x11xf32>
    %444 = tpu.concatenate %442, %443 in 1 : vector<6x5xf32>, vector<6x11xf32> -> vector<6x16xf32>
    %445 = vector.broadcast %51 : vector<1x16xf32> to vector<6x16xf32>
    %446 = arith.mulf %444, %445 : vector<6x16xf32>
    %cst_144 = arith.constant 0.000000e+00 : f32
    %447 = vector.broadcast %cst_144 : f32 to vector<6x4xf32>
    %448 = vector.extract_strided_slice %440 {offsets = [0, 0], sizes = [6, 12], strides = [1, 1]} : vector<6x16xf32> to vector<6x12xf32>
    %449 = tpu.concatenate %447, %448 in 1 : vector<6x4xf32>, vector<6x12xf32> -> vector<6x16xf32>
    %450 = vector.broadcast %45 : vector<1x16xf32> to vector<6x16xf32>
    %451 = arith.mulf %449, %450 : vector<6x16xf32>
    %cst_145 = arith.constant 0.000000e+00 : f32
    %452 = vector.broadcast %cst_145 : f32 to vector<6x3xf32>
    %453 = vector.extract_strided_slice %440 {offsets = [0, 0], sizes = [6, 13], strides = [1, 1]} : vector<6x16xf32> to vector<6x13xf32>
    %454 = tpu.concatenate %452, %453 in 1 : vector<6x3xf32>, vector<6x13xf32> -> vector<6x16xf32>
    %455 = vector.broadcast %52 : vector<1x16xf32> to vector<6x16xf32>
    %456 = arith.mulf %454, %455 : vector<6x16xf32>
    %cst_146 = arith.constant 0.000000e+00 : f32
    %457 = vector.broadcast %cst_146 : f32 to vector<6x1xf32>
    %458 = vector.extract_strided_slice %440 {offsets = [0, 0], sizes = [6, 15], strides = [1, 1]} : vector<6x16xf32> to vector<6x15xf32>
    %459 = tpu.concatenate %457, %458 in 1 : vector<6x1xf32>, vector<6x15xf32> -> vector<6x16xf32>
    %460 = vector.broadcast %35 : vector<1x16xf32> to vector<6x16xf32>
    %461 = arith.mulf %459, %460 : vector<6x16xf32>
    %462 = vector.extract_strided_slice %440 {offsets = [0, 1], sizes = [6, 15], strides = [1, 1]} : vector<6x16xf32> to vector<6x15xf32>
    %cst_147 = arith.constant 0.000000e+00 : f32
    %463 = vector.broadcast %cst_147 : f32 to vector<6x1xf32>
    %464 = tpu.concatenate %462, %463 in 1 : vector<6x15xf32>, vector<6x1xf32> -> vector<6x16xf32>
    %465 = vector.broadcast %40 : vector<1x16xf32> to vector<6x16xf32>
    %466 = arith.mulf %464, %465 : vector<6x16xf32>
    %467 = vector.extract_strided_slice %440 {offsets = [0, 3], sizes = [6, 13], strides = [1, 1]} : vector<6x16xf32> to vector<6x13xf32>
    %cst_148 = arith.constant 0.000000e+00 : f32
    %468 = vector.broadcast %cst_148 : f32 to vector<6x3xf32>
    %469 = tpu.concatenate %467, %468 in 1 : vector<6x13xf32>, vector<6x3xf32> -> vector<6x16xf32>
    %470 = vector.broadcast %53 : vector<1x16xf32> to vector<6x16xf32>
    %471 = arith.mulf %469, %470 : vector<6x16xf32>
    %472 = vector.extract_strided_slice %440 {offsets = [0, 4], sizes = [6, 12], strides = [1, 1]} : vector<6x16xf32> to vector<6x12xf32>
    %cst_149 = arith.constant 0.000000e+00 : f32
    %473 = vector.broadcast %cst_149 : f32 to vector<6x4xf32>
    %474 = tpu.concatenate %472, %473 in 1 : vector<6x12xf32>, vector<6x4xf32> -> vector<6x16xf32>
    %475 = vector.broadcast %50 : vector<1x16xf32> to vector<6x16xf32>
    %476 = arith.mulf %474, %475 : vector<6x16xf32>
    %477 = vector.extract_strided_slice %440 {offsets = [0, 5], sizes = [6, 11], strides = [1, 1]} : vector<6x16xf32> to vector<6x11xf32>
    %cst_150 = arith.constant 0.000000e+00 : f32
    %478 = vector.broadcast %cst_150 : f32 to vector<6x5xf32>
    %479 = tpu.concatenate %477, %478 in 1 : vector<6x11xf32>, vector<6x5xf32> -> vector<6x16xf32>
    %480 = vector.broadcast %54 : vector<1x16xf32> to vector<6x16xf32>
    %481 = arith.mulf %479, %480 : vector<6x16xf32>
    %482 = tpu.concatenate %446, %451, %456, %461, %440, %466, %471, %476, %481, %55 in 0 : vector<6x16xf32>, vector<6x16xf32>, vector<6x16xf32>, vector<6x16xf32>, vector<6x16xf32>, vector<6x16xf32>, vector<6x16xf32>, vector<6x16xf32>, vector<6x16xf32>, vector<1x16xf32> -> vector<55x16xf32>
    %cst_151 = arith.constant dense<0.000000e+00> : vector<2x16xf32>
    %483 = tpu.matmul %441, %482, %cst_151 {dimension_numbers = #tpu.dot_dimension_numbers<[1], [0], [0], [1], [0, 0, 1, 1], [], []>} : vector<2x55xf32>, vector<55x16xf32>, vector<2x16xf32> -> vector<2x16xf32>
    %c0_152 = arith.constant 0 : index
    %c0_153 = arith.constant 0 : index
    %c0_154 = arith.constant 0 : index
    %484 = vector.load %arg3[%c0_152, %c0_153, %c0_154] : memref<1x16x64xf32, #tpu.memory_space<vmem>>, vector<1x16x64xf32>
    %485 = vector.shape_cast %484 : vector<1x16x64xf32> to vector<16x64xf32>
    %c64 = arith.constant 64 : index
    %c0_155 = arith.constant 0 : index
    %486 = vector.load %arg7[%c64, %c0_155] : memref<176x640xf32, #tpu.memory_space<vmem>>, vector<8x145xf32>
    %cst_156 = arith.constant 0.000000e+00 : f32
    %487 = vector.broadcast %cst_156 : f32 to vector<16x9xf32>
    %488 = vector.extract_strided_slice %485 {offsets = [0, 0], sizes = [16, 55], strides = [1, 1]} : vector<16x64xf32> to vector<16x55xf32>
    %489 = tpu.concatenate %487, %488 in 1 : vector<16x9xf32>, vector<16x55xf32> -> vector<16x64xf32>
    %490 = vector.broadcast %79 : vector<1x64xf32> to vector<16x64xf32>
    %491 = arith.mulf %489, %490 : vector<16x64xf32>
    %cst_157 = arith.constant 0.000000e+00 : f32
    %492 = vector.broadcast %cst_157 : f32 to vector<16x8xf32>
    %493 = vector.extract_strided_slice %485 {offsets = [0, 0], sizes = [16, 56], strides = [1, 1]} : vector<16x64xf32> to vector<16x56xf32>
    %494 = tpu.concatenate %492, %493 in 1 : vector<16x8xf32>, vector<16x56xf32> -> vector<16x64xf32>
    %495 = vector.broadcast %73 : vector<1x64xf32> to vector<16x64xf32>
    %496 = arith.mulf %494, %495 : vector<16x64xf32>
    %cst_158 = arith.constant 0.000000e+00 : f32
    %497 = vector.broadcast %cst_158 : f32 to vector<16x7xf32>
    %498 = vector.extract_strided_slice %485 {offsets = [0, 0], sizes = [16, 57], strides = [1, 1]} : vector<16x64xf32> to vector<16x57xf32>
    %499 = tpu.concatenate %497, %498 in 1 : vector<16x7xf32>, vector<16x57xf32> -> vector<16x64xf32>
    %500 = vector.broadcast %80 : vector<1x64xf32> to vector<16x64xf32>
    %501 = arith.mulf %499, %500 : vector<16x64xf32>
    %cst_159 = arith.constant 0.000000e+00 : f32
    %502 = vector.broadcast %cst_159 : f32 to vector<16x1xf32>
    %503 = vector.extract_strided_slice %485 {offsets = [0, 0], sizes = [16, 63], strides = [1, 1]} : vector<16x64xf32> to vector<16x63xf32>
    %504 = tpu.concatenate %502, %503 in 1 : vector<16x1xf32>, vector<16x63xf32> -> vector<16x64xf32>
    %505 = vector.broadcast %63 : vector<1x64xf32> to vector<16x64xf32>
    %506 = arith.mulf %504, %505 : vector<16x64xf32>
    %507 = vector.extract_strided_slice %485 {offsets = [0, 1], sizes = [16, 63], strides = [1, 1]} : vector<16x64xf32> to vector<16x63xf32>
    %cst_160 = arith.constant 0.000000e+00 : f32
    %508 = vector.broadcast %cst_160 : f32 to vector<16x1xf32>
    %509 = tpu.concatenate %507, %508 in 1 : vector<16x63xf32>, vector<16x1xf32> -> vector<16x64xf32>
    %510 = vector.broadcast %68 : vector<1x64xf32> to vector<16x64xf32>
    %511 = arith.mulf %509, %510 : vector<16x64xf32>
    %512 = vector.extract_strided_slice %485 {offsets = [0, 7], sizes = [16, 57], strides = [1, 1]} : vector<16x64xf32> to vector<16x57xf32>
    %cst_161 = arith.constant 0.000000e+00 : f32
    %513 = vector.broadcast %cst_161 : f32 to vector<16x7xf32>
    %514 = tpu.concatenate %512, %513 in 1 : vector<16x57xf32>, vector<16x7xf32> -> vector<16x64xf32>
    %515 = vector.broadcast %81 : vector<1x64xf32> to vector<16x64xf32>
    %516 = arith.mulf %514, %515 : vector<16x64xf32>
    %517 = vector.extract_strided_slice %485 {offsets = [0, 8], sizes = [16, 56], strides = [1, 1]} : vector<16x64xf32> to vector<16x56xf32>
    %cst_162 = arith.constant 0.000000e+00 : f32
    %518 = vector.broadcast %cst_162 : f32 to vector<16x8xf32>
    %519 = tpu.concatenate %517, %518 in 1 : vector<16x56xf32>, vector<16x8xf32> -> vector<16x64xf32>
    %520 = vector.broadcast %78 : vector<1x64xf32> to vector<16x64xf32>
    %521 = arith.mulf %519, %520 : vector<16x64xf32>
    %522 = vector.extract_strided_slice %485 {offsets = [0, 9], sizes = [16, 55], strides = [1, 1]} : vector<16x64xf32> to vector<16x55xf32>
    %cst_163 = arith.constant 0.000000e+00 : f32
    %523 = vector.broadcast %cst_163 : f32 to vector<16x9xf32>
    %524 = tpu.concatenate %522, %523 in 1 : vector<16x55xf32>, vector<16x9xf32> -> vector<16x64xf32>
    %525 = vector.broadcast %82 : vector<1x64xf32> to vector<16x64xf32>
    %526 = arith.mulf %524, %525 : vector<16x64xf32>
    %527 = tpu.concatenate %491, %496, %501, %506, %485, %511, %516, %521, %526, %83 in 0 : vector<16x64xf32>, vector<16x64xf32>, vector<16x64xf32>, vector<16x64xf32>, vector<16x64xf32>, vector<16x64xf32>, vector<16x64xf32>, vector<16x64xf32>, vector<16x64xf32>, vector<1x64xf32> -> vector<145x64xf32>
    %cst_164 = arith.constant dense<0.000000e+00> : vector<8x64xf32>
    %528 = tpu.matmul %486, %527, %cst_164 {dimension_numbers = #tpu.dot_dimension_numbers<[1], [0], [0], [1], [0, 0, 1, 1], [], []>} : vector<8x145xf32>, vector<145x64xf32>, vector<8x64xf32> -> vector<8x64xf32>
    %cst_165 = arith.constant 5.000000e-01 : f32
    %529 = vector.broadcast %cst_165 : f32 to vector<8x64xf32>
    %530 = arith.mulf %529, %528 : vector<8x64xf32>
    %cst_166 = arith.constant 0.707106769 : f32
    %531 = vector.broadcast %cst_166 : f32 to vector<8x64xf32>
    %532 = arith.mulf %528, %531 : vector<8x64xf32>
    %cst_167 = arith.constant 0.000000e+00 : f32
    %533 = vector.broadcast %cst_167 : f32 to vector<8x64xf32>
    %534 = arith.cmpf oge, %532, %533 : vector<8x64xf32>
    %cst_168 = arith.constant 1.000000e+00 : f32
    %cst_169 = arith.constant -1.000000e+00 : f32
    %535 = vector.broadcast %cst_168 : f32 to vector<8x64xf32>
    %536 = vector.broadcast %cst_169 : f32 to vector<8x64xf32>
    %537 = arith.select %534, %535, %536 : vector<8x64xi1>, vector<8x64xf32>
    %538 = math.absf %532 : vector<8x64xf32>
    %cst_170 = arith.constant 0.327591091 : f32
    %539 = vector.broadcast %cst_170 : f32 to vector<8x64xf32>
    %540 = arith.mulf %539, %538 : vector<8x64xf32>
    %cst_171 = arith.constant 1.000000e+00 : f32
    %541 = vector.broadcast %cst_171 : f32 to vector<8x64xf32>
    %542 = arith.addf %541, %540 : vector<8x64xf32>
    %cst_172 = arith.constant 1.000000e+00 : f32
    %543 = vector.broadcast %cst_172 : f32 to vector<8x64xf32>
    %544 = arith.divf %543, %542 : vector<8x64xf32>
    %cst_173 = arith.constant 1.06140542 : f32
    %545 = vector.broadcast %cst_173 : f32 to vector<8x64xf32>
    %546 = arith.mulf %545, %544 : vector<8x64xf32>
    %cst_174 = arith.constant -1.45315206 : f32
    %547 = vector.broadcast %cst_174 : f32 to vector<8x64xf32>
    %548 = arith.addf %546, %547 : vector<8x64xf32>
    %549 = arith.mulf %548, %544 : vector<8x64xf32>
    %cst_175 = arith.constant 1.42141378 : f32
    %550 = vector.broadcast %cst_175 : f32 to vector<8x64xf32>
    %551 = arith.addf %549, %550 : vector<8x64xf32>
    %552 = arith.mulf %551, %544 : vector<8x64xf32>
    %cst_176 = arith.constant -0.284496725 : f32
    %553 = vector.broadcast %cst_176 : f32 to vector<8x64xf32>
    %554 = arith.addf %552, %553 : vector<8x64xf32>
    %555 = arith.mulf %554, %544 : vector<8x64xf32>
    %cst_177 = arith.constant 0.254829586 : f32
    %556 = vector.broadcast %cst_177 : f32 to vector<8x64xf32>
    %557 = arith.addf %555, %556 : vector<8x64xf32>
    %558 = arith.mulf %557, %544 : vector<8x64xf32>
    %cst_178 = arith.constant 0.000000e+00 : f32
    %559 = vector.broadcast %cst_178 : f32 to vector<8x64xf32>
    %560 = arith.subf %559, %538 : vector<8x64xf32>
    %561 = arith.mulf %560, %538 : vector<8x64xf32>
    %562 = math.exp %561 : vector<8x64xf32>
    %563 = arith.mulf %558, %562 : vector<8x64xf32>
    %cst_179 = arith.constant 1.000000e+00 : f32
    %564 = vector.broadcast %cst_179 : f32 to vector<8x64xf32>
    %565 = arith.subf %564, %563 : vector<8x64xf32>
    %566 = arith.mulf %537, %565 : vector<8x64xf32>
    %cst_180 = arith.constant 1.000000e+00 : f32
    %567 = vector.broadcast %cst_180 : f32 to vector<8x64xf32>
    %568 = arith.addf %567, %566 : vector<8x64xf32>
    %569 = arith.mulf %530, %568 : vector<8x64xf32>
    %c72 = arith.constant 72 : index
    %c0_181 = arith.constant 0 : index
    %570 = vector.load %arg7[%c72, %c0_181] : memref<176x640xf32, #tpu.memory_space<vmem>>, vector<6x73xf32>
    %cst_182 = arith.constant 0.000000e+00 : f32
    %571 = vector.broadcast %cst_182 : f32 to vector<8x9xf32>
    %572 = vector.extract_strided_slice %569 {offsets = [0, 0], sizes = [8, 55], strides = [1, 1]} : vector<8x64xf32> to vector<8x55xf32>
    %573 = tpu.concatenate %571, %572 in 1 : vector<8x9xf32>, vector<8x55xf32> -> vector<8x64xf32>
    %574 = vector.broadcast %79 : vector<1x64xf32> to vector<8x64xf32>
    %575 = arith.mulf %573, %574 : vector<8x64xf32>
    %cst_183 = arith.constant 0.000000e+00 : f32
    %576 = vector.broadcast %cst_183 : f32 to vector<8x8xf32>
    %577 = vector.extract_strided_slice %569 {offsets = [0, 0], sizes = [8, 56], strides = [1, 1]} : vector<8x64xf32> to vector<8x56xf32>
    %578 = tpu.concatenate %576, %577 in 1 : vector<8x8xf32>, vector<8x56xf32> -> vector<8x64xf32>
    %579 = vector.broadcast %73 : vector<1x64xf32> to vector<8x64xf32>
    %580 = arith.mulf %578, %579 : vector<8x64xf32>
    %cst_184 = arith.constant 0.000000e+00 : f32
    %581 = vector.broadcast %cst_184 : f32 to vector<8x7xf32>
    %582 = vector.extract_strided_slice %569 {offsets = [0, 0], sizes = [8, 57], strides = [1, 1]} : vector<8x64xf32> to vector<8x57xf32>
    %583 = tpu.concatenate %581, %582 in 1 : vector<8x7xf32>, vector<8x57xf32> -> vector<8x64xf32>
    %584 = vector.broadcast %80 : vector<1x64xf32> to vector<8x64xf32>
    %585 = arith.mulf %583, %584 : vector<8x64xf32>
    %cst_185 = arith.constant 0.000000e+00 : f32
    %586 = vector.broadcast %cst_185 : f32 to vector<8x1xf32>
    %587 = vector.extract_strided_slice %569 {offsets = [0, 0], sizes = [8, 63], strides = [1, 1]} : vector<8x64xf32> to vector<8x63xf32>
    %588 = tpu.concatenate %586, %587 in 1 : vector<8x1xf32>, vector<8x63xf32> -> vector<8x64xf32>
    %589 = vector.broadcast %63 : vector<1x64xf32> to vector<8x64xf32>
    %590 = arith.mulf %588, %589 : vector<8x64xf32>
    %591 = vector.extract_strided_slice %569 {offsets = [0, 1], sizes = [8, 63], strides = [1, 1]} : vector<8x64xf32> to vector<8x63xf32>
    %cst_186 = arith.constant 0.000000e+00 : f32
    %592 = vector.broadcast %cst_186 : f32 to vector<8x1xf32>
    %593 = tpu.concatenate %591, %592 in 1 : vector<8x63xf32>, vector<8x1xf32> -> vector<8x64xf32>
    %594 = vector.broadcast %68 : vector<1x64xf32> to vector<8x64xf32>
    %595 = arith.mulf %593, %594 : vector<8x64xf32>
    %596 = vector.extract_strided_slice %569 {offsets = [0, 7], sizes = [8, 57], strides = [1, 1]} : vector<8x64xf32> to vector<8x57xf32>
    %cst_187 = arith.constant 0.000000e+00 : f32
    %597 = vector.broadcast %cst_187 : f32 to vector<8x7xf32>
    %598 = tpu.concatenate %596, %597 in 1 : vector<8x57xf32>, vector<8x7xf32> -> vector<8x64xf32>
    %599 = vector.broadcast %81 : vector<1x64xf32> to vector<8x64xf32>
    %600 = arith.mulf %598, %599 : vector<8x64xf32>
    %601 = vector.extract_strided_slice %569 {offsets = [0, 8], sizes = [8, 56], strides = [1, 1]} : vector<8x64xf32> to vector<8x56xf32>
    %cst_188 = arith.constant 0.000000e+00 : f32
    %602 = vector.broadcast %cst_188 : f32 to vector<8x8xf32>
    %603 = tpu.concatenate %601, %602 in 1 : vector<8x56xf32>, vector<8x8xf32> -> vector<8x64xf32>
    %604 = vector.broadcast %78 : vector<1x64xf32> to vector<8x64xf32>
    %605 = arith.mulf %603, %604 : vector<8x64xf32>
    %606 = vector.extract_strided_slice %569 {offsets = [0, 9], sizes = [8, 55], strides = [1, 1]} : vector<8x64xf32> to vector<8x55xf32>
    %cst_189 = arith.constant 0.000000e+00 : f32
    %607 = vector.broadcast %cst_189 : f32 to vector<8x9xf32>
    %608 = tpu.concatenate %606, %607 in 1 : vector<8x55xf32>, vector<8x9xf32> -> vector<8x64xf32>
    %609 = vector.broadcast %82 : vector<1x64xf32> to vector<8x64xf32>
    %610 = arith.mulf %608, %609 : vector<8x64xf32>
    %611 = tpu.concatenate %575, %580, %585, %590, %569, %595, %600, %605, %610, %83 in 0 : vector<8x64xf32>, vector<8x64xf32>, vector<8x64xf32>, vector<8x64xf32>, vector<8x64xf32>, vector<8x64xf32>, vector<8x64xf32>, vector<8x64xf32>, vector<8x64xf32>, vector<1x64xf32> -> vector<73x64xf32>
    %cst_190 = arith.constant dense<0.000000e+00> : vector<6x64xf32>
    %612 = tpu.matmul %570, %611, %cst_190 {dimension_numbers = #tpu.dot_dimension_numbers<[1], [0], [0], [1], [0, 0, 1, 1], [], []>} : vector<6x73xf32>, vector<73x64xf32>, vector<6x64xf32> -> vector<6x64xf32>
    %c80 = arith.constant 80 : index
    %c0_191 = arith.constant 0 : index
    %613 = vector.load %arg7[%c80, %c0_191] : memref<176x640xf32, #tpu.memory_space<vmem>>, vector<2x55xf32>
    %cst_192 = arith.constant 0.000000e+00 : f32
    %614 = vector.broadcast %cst_192 : f32 to vector<6x9xf32>
    %615 = vector.extract_strided_slice %612 {offsets = [0, 0], sizes = [6, 55], strides = [1, 1]} : vector<6x64xf32> to vector<6x55xf32>
    %616 = tpu.concatenate %614, %615 in 1 : vector<6x9xf32>, vector<6x55xf32> -> vector<6x64xf32>
    %617 = vector.broadcast %79 : vector<1x64xf32> to vector<6x64xf32>
    %618 = arith.mulf %616, %617 : vector<6x64xf32>
    %cst_193 = arith.constant 0.000000e+00 : f32
    %619 = vector.broadcast %cst_193 : f32 to vector<6x8xf32>
    %620 = vector.extract_strided_slice %612 {offsets = [0, 0], sizes = [6, 56], strides = [1, 1]} : vector<6x64xf32> to vector<6x56xf32>
    %621 = tpu.concatenate %619, %620 in 1 : vector<6x8xf32>, vector<6x56xf32> -> vector<6x64xf32>
    %622 = vector.broadcast %73 : vector<1x64xf32> to vector<6x64xf32>
    %623 = arith.mulf %621, %622 : vector<6x64xf32>
    %cst_194 = arith.constant 0.000000e+00 : f32
    %624 = vector.broadcast %cst_194 : f32 to vector<6x7xf32>
    %625 = vector.extract_strided_slice %612 {offsets = [0, 0], sizes = [6, 57], strides = [1, 1]} : vector<6x64xf32> to vector<6x57xf32>
    %626 = tpu.concatenate %624, %625 in 1 : vector<6x7xf32>, vector<6x57xf32> -> vector<6x64xf32>
    %627 = vector.broadcast %80 : vector<1x64xf32> to vector<6x64xf32>
    %628 = arith.mulf %626, %627 : vector<6x64xf32>
    %cst_195 = arith.constant 0.000000e+00 : f32
    %629 = vector.broadcast %cst_195 : f32 to vector<6x1xf32>
    %630 = vector.extract_strided_slice %612 {offsets = [0, 0], sizes = [6, 63], strides = [1, 1]} : vector<6x64xf32> to vector<6x63xf32>
    %631 = tpu.concatenate %629, %630 in 1 : vector<6x1xf32>, vector<6x63xf32> -> vector<6x64xf32>
    %632 = vector.broadcast %63 : vector<1x64xf32> to vector<6x64xf32>
    %633 = arith.mulf %631, %632 : vector<6x64xf32>
    %634 = vector.extract_strided_slice %612 {offsets = [0, 1], sizes = [6, 63], strides = [1, 1]} : vector<6x64xf32> to vector<6x63xf32>
    %cst_196 = arith.constant 0.000000e+00 : f32
    %635 = vector.broadcast %cst_196 : f32 to vector<6x1xf32>
    %636 = tpu.concatenate %634, %635 in 1 : vector<6x63xf32>, vector<6x1xf32> -> vector<6x64xf32>
    %637 = vector.broadcast %68 : vector<1x64xf32> to vector<6x64xf32>
    %638 = arith.mulf %636, %637 : vector<6x64xf32>
    %639 = vector.extract_strided_slice %612 {offsets = [0, 7], sizes = [6, 57], strides = [1, 1]} : vector<6x64xf32> to vector<6x57xf32>
    %cst_197 = arith.constant 0.000000e+00 : f32
    %640 = vector.broadcast %cst_197 : f32 to vector<6x7xf32>
    %641 = tpu.concatenate %639, %640 in 1 : vector<6x57xf32>, vector<6x7xf32> -> vector<6x64xf32>
    %642 = vector.broadcast %81 : vector<1x64xf32> to vector<6x64xf32>
    %643 = arith.mulf %641, %642 : vector<6x64xf32>
    %644 = vector.extract_strided_slice %612 {offsets = [0, 8], sizes = [6, 56], strides = [1, 1]} : vector<6x64xf32> to vector<6x56xf32>
    %cst_198 = arith.constant 0.000000e+00 : f32
    %645 = vector.broadcast %cst_198 : f32 to vector<6x8xf32>
    %646 = tpu.concatenate %644, %645 in 1 : vector<6x56xf32>, vector<6x8xf32> -> vector<6x64xf32>
    %647 = vector.broadcast %78 : vector<1x64xf32> to vector<6x64xf32>
    %648 = arith.mulf %646, %647 : vector<6x64xf32>
    %649 = vector.extract_strided_slice %612 {offsets = [0, 9], sizes = [6, 55], strides = [1, 1]} : vector<6x64xf32> to vector<6x55xf32>
    %cst_199 = arith.constant 0.000000e+00 : f32
    %650 = vector.broadcast %cst_199 : f32 to vector<6x9xf32>
    %651 = tpu.concatenate %649, %650 in 1 : vector<6x55xf32>, vector<6x9xf32> -> vector<6x64xf32>
    %652 = vector.broadcast %82 : vector<1x64xf32> to vector<6x64xf32>
    %653 = arith.mulf %651, %652 : vector<6x64xf32>
    %654 = tpu.concatenate %618, %623, %628, %633, %612, %638, %643, %648, %653, %83 in 0 : vector<6x64xf32>, vector<6x64xf32>, vector<6x64xf32>, vector<6x64xf32>, vector<6x64xf32>, vector<6x64xf32>, vector<6x64xf32>, vector<6x64xf32>, vector<6x64xf32>, vector<1x64xf32> -> vector<55x64xf32>
    %cst_200 = arith.constant dense<0.000000e+00> : vector<2x64xf32>
    %655 = tpu.matmul %613, %654, %cst_200 {dimension_numbers = #tpu.dot_dimension_numbers<[1], [0], [0], [1], [0, 0, 1, 1], [], []>} : vector<2x55xf32>, vector<55x64xf32>, vector<2x64xf32> -> vector<2x64xf32>
    %c0_201 = arith.constant 0 : index
    %c0_202 = arith.constant 0 : index
    %c0_203 = arith.constant 0 : index
    %656 = vector.load %arg4[%c0_201, %c0_202, %c0_203] : memref<1x8x256xf32, #tpu.memory_space<vmem>>, vector<1x8x256xf32>
    %657 = vector.shape_cast %656 : vector<1x8x256xf32> to vector<8x256xf32>
    %c88 = arith.constant 88 : index
    %c0_204 = arith.constant 0 : index
    %658 = vector.load %arg7[%c88, %c0_204] : memref<176x640xf32, #tpu.memory_space<vmem>>, vector<4x73xf32>
    %c17_i32 = arith.constant 17 : i32
    %659 = tpu.dynamic_rotate %657 by %c17_i32 dim 1 : vector<8x256xf32>, i32 -> vector<8x256xf32>
    %660 = vector.broadcast %107 : vector<1x256xf32> to vector<8x256xf32>
    %661 = arith.mulf %659, %660 : vector<8x256xf32>
    %c16_i32_205 = arith.constant 16 : i32
    %662 = tpu.dynamic_rotate %657 by %c16_i32_205 dim 1 : vector<8x256xf32>, i32 -> vector<8x256xf32>
    %663 = vector.broadcast %101 : vector<1x256xf32> to vector<8x256xf32>
    %664 = arith.mulf %662, %663 : vector<8x256xf32>
    %c15_i32_206 = arith.constant 15 : i32
    %665 = tpu.dynamic_rotate %657 by %c15_i32_206 dim 1 : vector<8x256xf32>, i32 -> vector<8x256xf32>
    %666 = vector.broadcast %108 : vector<1x256xf32> to vector<8x256xf32>
    %667 = arith.mulf %665, %666 : vector<8x256xf32>
    %c1_i32_207 = arith.constant 1 : i32
    %668 = tpu.dynamic_rotate %657 by %c1_i32_207 dim 1 : vector<8x256xf32>, i32 -> vector<8x256xf32>
    %669 = vector.broadcast %91 : vector<1x256xf32> to vector<8x256xf32>
    %670 = arith.mulf %668, %669 : vector<8x256xf32>
    %c255_i32 = arith.constant 255 : i32
    %671 = tpu.dynamic_rotate %657 by %c255_i32 dim 1 : vector<8x256xf32>, i32 -> vector<8x256xf32>
    %672 = vector.broadcast %96 : vector<1x256xf32> to vector<8x256xf32>
    %673 = arith.mulf %671, %672 : vector<8x256xf32>
    %c241_i32 = arith.constant 241 : i32
    %674 = tpu.dynamic_rotate %657 by %c241_i32 dim 1 : vector<8x256xf32>, i32 -> vector<8x256xf32>
    %675 = vector.broadcast %109 : vector<1x256xf32> to vector<8x256xf32>
    %676 = arith.mulf %674, %675 : vector<8x256xf32>
    %c240_i32_208 = arith.constant 240 : i32
    %677 = tpu.dynamic_rotate %657 by %c240_i32_208 dim 1 : vector<8x256xf32>, i32 -> vector<8x256xf32>
    %678 = vector.broadcast %106 : vector<1x256xf32> to vector<8x256xf32>
    %679 = arith.mulf %677, %678 : vector<8x256xf32>
    %c239_i32 = arith.constant 239 : i32
    %680 = tpu.dynamic_rotate %657 by %c239_i32 dim 1 : vector<8x256xf32>, i32 -> vector<8x256xf32>
    %681 = vector.broadcast %110 : vector<1x256xf32> to vector<8x256xf32>
    %682 = arith.mulf %680, %681 : vector<8x256xf32>
    %683 = tpu.concatenate %661, %664, %667, %670, %657, %673, %676, %679, %682, %111 in 0 : vector<8x256xf32>, vector<8x256xf32>, vector<8x256xf32>, vector<8x256xf32>, vector<8x256xf32>, vector<8x256xf32>, vector<8x256xf32>, vector<8x256xf32>, vector<8x256xf32>, vector<1x256xf32> -> vector<73x256xf32>
    %cst_209 = arith.constant dense<0.000000e+00> : vector<4x256xf32>
    %684 = tpu.matmul %658, %683, %cst_209 {dimension_numbers = #tpu.dot_dimension_numbers<[1], [0], [0], [1], [0, 0, 1, 1], [], []>} : vector<4x73xf32>, vector<73x256xf32>, vector<4x256xf32> -> vector<4x256xf32>
    %cst_210 = arith.constant 5.000000e-01 : f32
    %685 = vector.broadcast %cst_210 : f32 to vector<4x256xf32>
    %686 = arith.mulf %685, %684 : vector<4x256xf32>
    %cst_211 = arith.constant 0.707106769 : f32
    %687 = vector.broadcast %cst_211 : f32 to vector<4x256xf32>
    %688 = arith.mulf %684, %687 : vector<4x256xf32>
    %cst_212 = arith.constant 0.000000e+00 : f32
    %689 = vector.broadcast %cst_212 : f32 to vector<4x256xf32>
    %690 = arith.cmpf oge, %688, %689 : vector<4x256xf32>
    %cst_213 = arith.constant 1.000000e+00 : f32
    %cst_214 = arith.constant -1.000000e+00 : f32
    %691 = vector.broadcast %cst_213 : f32 to vector<4x256xf32>
    %692 = vector.broadcast %cst_214 : f32 to vector<4x256xf32>
    %693 = arith.select %690, %691, %692 : vector<4x256xi1>, vector<4x256xf32>
    %694 = math.absf %688 : vector<4x256xf32>
    %cst_215 = arith.constant 0.327591091 : f32
    %695 = vector.broadcast %cst_215 : f32 to vector<4x256xf32>
    %696 = arith.mulf %695, %694 : vector<4x256xf32>
    %cst_216 = arith.constant 1.000000e+00 : f32
    %697 = vector.broadcast %cst_216 : f32 to vector<4x256xf32>
    %698 = arith.addf %697, %696 : vector<4x256xf32>
    %cst_217 = arith.constant 1.000000e+00 : f32
    %699 = vector.broadcast %cst_217 : f32 to vector<4x256xf32>
    %700 = arith.divf %699, %698 : vector<4x256xf32>
    %cst_218 = arith.constant 1.06140542 : f32
    %701 = vector.broadcast %cst_218 : f32 to vector<4x256xf32>
    %702 = arith.mulf %701, %700 : vector<4x256xf32>
    %cst_219 = arith.constant -1.45315206 : f32
    %703 = vector.broadcast %cst_219 : f32 to vector<4x256xf32>
    %704 = arith.addf %702, %703 : vector<4x256xf32>
    %705 = arith.mulf %704, %700 : vector<4x256xf32>
    %cst_220 = arith.constant 1.42141378 : f32
    %706 = vector.broadcast %cst_220 : f32 to vector<4x256xf32>
    %707 = arith.addf %705, %706 : vector<4x256xf32>
    %708 = arith.mulf %707, %700 : vector<4x256xf32>
    %cst_221 = arith.constant -0.284496725 : f32
    %709 = vector.broadcast %cst_221 : f32 to vector<4x256xf32>
    %710 = arith.addf %708, %709 : vector<4x256xf32>
    %711 = arith.mulf %710, %700 : vector<4x256xf32>
    %cst_222 = arith.constant 0.254829586 : f32
    %712 = vector.broadcast %cst_222 : f32 to vector<4x256xf32>
    %713 = arith.addf %711, %712 : vector<4x256xf32>
    %714 = arith.mulf %713, %700 : vector<4x256xf32>
    %cst_223 = arith.constant 0.000000e+00 : f32
    %715 = vector.broadcast %cst_223 : f32 to vector<4x256xf32>
    %716 = arith.subf %715, %694 : vector<4x256xf32>
    %717 = arith.mulf %716, %694 : vector<4x256xf32>
    %718 = math.exp %717 : vector<4x256xf32>
    %719 = arith.mulf %714, %718 : vector<4x256xf32>
    %cst_224 = arith.constant 1.000000e+00 : f32
    %720 = vector.broadcast %cst_224 : f32 to vector<4x256xf32>
    %721 = arith.subf %720, %719 : vector<4x256xf32>
    %722 = arith.mulf %693, %721 : vector<4x256xf32>
    %cst_225 = arith.constant 1.000000e+00 : f32
    %723 = vector.broadcast %cst_225 : f32 to vector<4x256xf32>
    %724 = arith.addf %723, %722 : vector<4x256xf32>
    %725 = arith.mulf %686, %724 : vector<4x256xf32>
    %c96 = arith.constant 96 : index
    %c0_226 = arith.constant 0 : index
    %726 = vector.load %arg7[%c96, %c0_226] : memref<176x640xf32, #tpu.memory_space<vmem>>, vector<6x37xf32>
    %c17_i32_227 = arith.constant 17 : i32
    %727 = tpu.dynamic_rotate %725 by %c17_i32_227 dim 1 : vector<4x256xf32>, i32 -> vector<4x256xf32>
    %728 = vector.broadcast %107 : vector<1x256xf32> to vector<4x256xf32>
    %729 = arith.mulf %727, %728 : vector<4x256xf32>
    %c16_i32_228 = arith.constant 16 : i32
    %730 = tpu.dynamic_rotate %725 by %c16_i32_228 dim 1 : vector<4x256xf32>, i32 -> vector<4x256xf32>
    %731 = vector.broadcast %101 : vector<1x256xf32> to vector<4x256xf32>
    %732 = arith.mulf %730, %731 : vector<4x256xf32>
    %c15_i32_229 = arith.constant 15 : i32
    %733 = tpu.dynamic_rotate %725 by %c15_i32_229 dim 1 : vector<4x256xf32>, i32 -> vector<4x256xf32>
    %734 = vector.broadcast %108 : vector<1x256xf32> to vector<4x256xf32>
    %735 = arith.mulf %733, %734 : vector<4x256xf32>
    %c1_i32_230 = arith.constant 1 : i32
    %736 = tpu.dynamic_rotate %725 by %c1_i32_230 dim 1 : vector<4x256xf32>, i32 -> vector<4x256xf32>
    %737 = vector.broadcast %91 : vector<1x256xf32> to vector<4x256xf32>
    %738 = arith.mulf %736, %737 : vector<4x256xf32>
    %c255_i32_231 = arith.constant 255 : i32
    %739 = tpu.dynamic_rotate %725 by %c255_i32_231 dim 1 : vector<4x256xf32>, i32 -> vector<4x256xf32>
    %740 = vector.broadcast %96 : vector<1x256xf32> to vector<4x256xf32>
    %741 = arith.mulf %739, %740 : vector<4x256xf32>
    %c241_i32_232 = arith.constant 241 : i32
    %742 = tpu.dynamic_rotate %725 by %c241_i32_232 dim 1 : vector<4x256xf32>, i32 -> vector<4x256xf32>
    %743 = vector.broadcast %109 : vector<1x256xf32> to vector<4x256xf32>
    %744 = arith.mulf %742, %743 : vector<4x256xf32>
    %c240_i32_233 = arith.constant 240 : i32
    %745 = tpu.dynamic_rotate %725 by %c240_i32_233 dim 1 : vector<4x256xf32>, i32 -> vector<4x256xf32>
    %746 = vector.broadcast %106 : vector<1x256xf32> to vector<4x256xf32>
    %747 = arith.mulf %745, %746 : vector<4x256xf32>
    %c239_i32_234 = arith.constant 239 : i32
    %748 = tpu.dynamic_rotate %725 by %c239_i32_234 dim 1 : vector<4x256xf32>, i32 -> vector<4x256xf32>
    %749 = vector.broadcast %110 : vector<1x256xf32> to vector<4x256xf32>
    %750 = arith.mulf %748, %749 : vector<4x256xf32>
    %751 = tpu.concatenate %729, %732, %735, %738, %725, %741, %744, %747, %750, %111 in 0 : vector<4x256xf32>, vector<4x256xf32>, vector<4x256xf32>, vector<4x256xf32>, vector<4x256xf32>, vector<4x256xf32>, vector<4x256xf32>, vector<4x256xf32>, vector<4x256xf32>, vector<1x256xf32> -> vector<37x256xf32>
    %cst_235 = arith.constant dense<0.000000e+00> : vector<6x256xf32>
    %752 = tpu.matmul %726, %751, %cst_235 {dimension_numbers = #tpu.dot_dimension_numbers<[1], [0], [0], [1], [0, 0, 1, 1], [], []>} : vector<6x37xf32>, vector<37x256xf32>, vector<6x256xf32> -> vector<6x256xf32>
    %c104 = arith.constant 104 : index
    %c0_236 = arith.constant 0 : index
    %753 = vector.load %arg7[%c104, %c0_236] : memref<176x640xf32, #tpu.memory_space<vmem>>, vector<2x55xf32>
    %c17_i32_237 = arith.constant 17 : i32
    %754 = tpu.dynamic_rotate %752 by %c17_i32_237 dim 1 : vector<6x256xf32>, i32 -> vector<6x256xf32>
    %755 = vector.broadcast %107 : vector<1x256xf32> to vector<6x256xf32>
    %756 = arith.mulf %754, %755 : vector<6x256xf32>
    %c16_i32_238 = arith.constant 16 : i32
    %757 = tpu.dynamic_rotate %752 by %c16_i32_238 dim 1 : vector<6x256xf32>, i32 -> vector<6x256xf32>
    %758 = vector.broadcast %101 : vector<1x256xf32> to vector<6x256xf32>
    %759 = arith.mulf %757, %758 : vector<6x256xf32>
    %c15_i32_239 = arith.constant 15 : i32
    %760 = tpu.dynamic_rotate %752 by %c15_i32_239 dim 1 : vector<6x256xf32>, i32 -> vector<6x256xf32>
    %761 = vector.broadcast %108 : vector<1x256xf32> to vector<6x256xf32>
    %762 = arith.mulf %760, %761 : vector<6x256xf32>
    %c1_i32_240 = arith.constant 1 : i32
    %763 = tpu.dynamic_rotate %752 by %c1_i32_240 dim 1 : vector<6x256xf32>, i32 -> vector<6x256xf32>
    %764 = vector.broadcast %91 : vector<1x256xf32> to vector<6x256xf32>
    %765 = arith.mulf %763, %764 : vector<6x256xf32>
    %c255_i32_241 = arith.constant 255 : i32
    %766 = tpu.dynamic_rotate %752 by %c255_i32_241 dim 1 : vector<6x256xf32>, i32 -> vector<6x256xf32>
    %767 = vector.broadcast %96 : vector<1x256xf32> to vector<6x256xf32>
    %768 = arith.mulf %766, %767 : vector<6x256xf32>
    %c241_i32_242 = arith.constant 241 : i32
    %769 = tpu.dynamic_rotate %752 by %c241_i32_242 dim 1 : vector<6x256xf32>, i32 -> vector<6x256xf32>
    %770 = vector.broadcast %109 : vector<1x256xf32> to vector<6x256xf32>
    %771 = arith.mulf %769, %770 : vector<6x256xf32>
    %c240_i32_243 = arith.constant 240 : i32
    %772 = tpu.dynamic_rotate %752 by %c240_i32_243 dim 1 : vector<6x256xf32>, i32 -> vector<6x256xf32>
    %773 = vector.broadcast %106 : vector<1x256xf32> to vector<6x256xf32>
    %774 = arith.mulf %772, %773 : vector<6x256xf32>
    %c239_i32_244 = arith.constant 239 : i32
    %775 = tpu.dynamic_rotate %752 by %c239_i32_244 dim 1 : vector<6x256xf32>, i32 -> vector<6x256xf32>
    %776 = vector.broadcast %110 : vector<1x256xf32> to vector<6x256xf32>
    %777 = arith.mulf %775, %776 : vector<6x256xf32>
    %778 = tpu.concatenate %756, %759, %762, %765, %752, %768, %771, %774, %777, %111 in 0 : vector<6x256xf32>, vector<6x256xf32>, vector<6x256xf32>, vector<6x256xf32>, vector<6x256xf32>, vector<6x256xf32>, vector<6x256xf32>, vector<6x256xf32>, vector<6x256xf32>, vector<1x256xf32> -> vector<55x256xf32>
    %cst_245 = arith.constant dense<0.000000e+00> : vector<2x256xf32>
    %779 = tpu.matmul %753, %778, %cst_245 {dimension_numbers = #tpu.dot_dimension_numbers<[1], [0], [0], [1], [0, 0, 1, 1], [], []>} : vector<2x55xf32>, vector<55x256xf32>, vector<2x256xf32> -> vector<2x256xf32>
    %cst_246 = arith.constant 0.000000e+00 : f32
    %780 = vector.broadcast %cst_246 : f32 to vector<2x336xf32>
    %781 = tpu.concatenate %311, %780 in 1 : vector<2x4xf32>, vector<2x336xf32> -> vector<2x340xf32>
    %cst_247 = arith.constant 0.000000e+00 : f32
    %782 = vector.broadcast %cst_247 : f32 to vector<2x4xf32>
    %cst_248 = arith.constant 0.000000e+00 : f32
    %783 = vector.broadcast %cst_248 : f32 to vector<2x320xf32>
    %784 = tpu.concatenate %782, %483, %783 in 1 : vector<2x4xf32>, vector<2x16xf32>, vector<2x320xf32> -> vector<2x340xf32>
    %cst_249 = arith.constant 0.000000e+00 : f32
    %785 = vector.broadcast %cst_249 : f32 to vector<2x20xf32>
    %cst_250 = arith.constant 0.000000e+00 : f32
    %786 = vector.broadcast %cst_250 : f32 to vector<2x256xf32>
    %787 = tpu.concatenate %785, %655, %786 in 1 : vector<2x20xf32>, vector<2x64xf32>, vector<2x256xf32> -> vector<2x340xf32>
    %cst_251 = arith.constant 0.000000e+00 : f32
    %788 = vector.broadcast %cst_251 : f32 to vector<2x84xf32>
    %789 = tpu.concatenate %788, %779 in 1 : vector<2x84xf32>, vector<2x256xf32> -> vector<2x340xf32>
    %790 = tpu.concatenate %781, %784, %787, %789 in 0 : vector<2x340xf32>, vector<2x340xf32>, vector<2x340xf32>, vector<2x340xf32> -> vector<8x340xf32>
    %c0_252 = arith.constant 0 : index
    %c0_253 = arith.constant 0 : index
    %791 = vector.load %arg6[%c0_252, %c0_253] : memref<340x1024xf32, #tpu.memory_space<vmem>>, vector<340x1024xf32>
    %cst_254 = arith.constant dense<0.000000e+00> : vector<8x1024xf32>
    %792 = tpu.matmul %790, %791, %cst_254 {dimension_numbers = #tpu.dot_dimension_numbers<[1], [0], [0], [1], [0, 0, 1, 1], [], []>} : vector<8x340xf32>, vector<340x1024xf32>, vector<8x1024xf32> -> vector<8x1024xf32>
    %c112 = arith.constant 112 : index
    %c0_255 = arith.constant 0 : index
    %793 = vector.load %arg7[%c112, %c0_255] : memref<176x640xf32, #tpu.memory_space<vmem>>, vector<8x73xf32>
    %c33_i32 = arith.constant 33 : i32
    %794 = tpu.dynamic_rotate %792 by %c33_i32 dim 1 : vector<8x1024xf32>, i32 -> vector<8x1024xf32>
    %795 = vector.broadcast %135 : vector<1x1024xf32> to vector<8x1024xf32>
    %796 = arith.mulf %794, %795 : vector<8x1024xf32>
    %c32_i32_256 = arith.constant 32 : i32
    %797 = tpu.dynamic_rotate %792 by %c32_i32_256 dim 1 : vector<8x1024xf32>, i32 -> vector<8x1024xf32>
    %798 = vector.broadcast %129 : vector<1x1024xf32> to vector<8x1024xf32>
    %799 = arith.mulf %797, %798 : vector<8x1024xf32>
    %c31_i32_257 = arith.constant 31 : i32
    %800 = tpu.dynamic_rotate %792 by %c31_i32_257 dim 1 : vector<8x1024xf32>, i32 -> vector<8x1024xf32>
    %801 = vector.broadcast %136 : vector<1x1024xf32> to vector<8x1024xf32>
    %802 = arith.mulf %800, %801 : vector<8x1024xf32>
    %c1_i32_258 = arith.constant 1 : i32
    %803 = tpu.dynamic_rotate %792 by %c1_i32_258 dim 1 : vector<8x1024xf32>, i32 -> vector<8x1024xf32>
    %804 = vector.broadcast %119 : vector<1x1024xf32> to vector<8x1024xf32>
    %805 = arith.mulf %803, %804 : vector<8x1024xf32>
    %c1023_i32 = arith.constant 1023 : i32
    %806 = tpu.dynamic_rotate %792 by %c1023_i32 dim 1 : vector<8x1024xf32>, i32 -> vector<8x1024xf32>
    %807 = vector.broadcast %124 : vector<1x1024xf32> to vector<8x1024xf32>
    %808 = arith.mulf %806, %807 : vector<8x1024xf32>
    %c993_i32 = arith.constant 993 : i32
    %809 = tpu.dynamic_rotate %792 by %c993_i32 dim 1 : vector<8x1024xf32>, i32 -> vector<8x1024xf32>
    %810 = vector.broadcast %137 : vector<1x1024xf32> to vector<8x1024xf32>
    %811 = arith.mulf %809, %810 : vector<8x1024xf32>
    %c992_i32_259 = arith.constant 992 : i32
    %812 = tpu.dynamic_rotate %792 by %c992_i32_259 dim 1 : vector<8x1024xf32>, i32 -> vector<8x1024xf32>
    %813 = vector.broadcast %134 : vector<1x1024xf32> to vector<8x1024xf32>
    %814 = arith.mulf %812, %813 : vector<8x1024xf32>
    %c991_i32 = arith.constant 991 : i32
    %815 = tpu.dynamic_rotate %792 by %c991_i32 dim 1 : vector<8x1024xf32>, i32 -> vector<8x1024xf32>
    %816 = vector.broadcast %138 : vector<1x1024xf32> to vector<8x1024xf32>
    %817 = arith.mulf %815, %816 : vector<8x1024xf32>
    %818 = tpu.concatenate %796, %799, %802, %805, %792, %808, %811, %814, %817, %139 in 0 : vector<8x1024xf32>, vector<8x1024xf32>, vector<8x1024xf32>, vector<8x1024xf32>, vector<8x1024xf32>, vector<8x1024xf32>, vector<8x1024xf32>, vector<8x1024xf32>, vector<8x1024xf32>, vector<1x1024xf32> -> vector<73x1024xf32>
    %cst_260 = arith.constant dense<0.000000e+00> : vector<8x1024xf32>
    %819 = tpu.matmul %793, %818, %cst_260 {dimension_numbers = #tpu.dot_dimension_numbers<[1], [0], [0], [1], [0, 0, 1, 1], [], []>} : vector<8x73xf32>, vector<73x1024xf32>, vector<8x1024xf32> -> vector<8x1024xf32>
    %c120 = arith.constant 120 : index
    %c0_261 = arith.constant 0 : index
    %820 = vector.load %arg7[%c120, %c0_261] : memref<176x640xf32, #tpu.memory_space<vmem>>, vector<8x73xf32>
    %c33_i32_262 = arith.constant 33 : i32
    %821 = tpu.dynamic_rotate %819 by %c33_i32_262 dim 1 : vector<8x1024xf32>, i32 -> vector<8x1024xf32>
    %822 = vector.broadcast %135 : vector<1x1024xf32> to vector<8x1024xf32>
    %823 = arith.mulf %821, %822 : vector<8x1024xf32>
    %c32_i32_263 = arith.constant 32 : i32
    %824 = tpu.dynamic_rotate %819 by %c32_i32_263 dim 1 : vector<8x1024xf32>, i32 -> vector<8x1024xf32>
    %825 = vector.broadcast %129 : vector<1x1024xf32> to vector<8x1024xf32>
    %826 = arith.mulf %824, %825 : vector<8x1024xf32>
    %c31_i32_264 = arith.constant 31 : i32
    %827 = tpu.dynamic_rotate %819 by %c31_i32_264 dim 1 : vector<8x1024xf32>, i32 -> vector<8x1024xf32>
    %828 = vector.broadcast %136 : vector<1x1024xf32> to vector<8x1024xf32>
    %829 = arith.mulf %827, %828 : vector<8x1024xf32>
    %c1_i32_265 = arith.constant 1 : i32
    %830 = tpu.dynamic_rotate %819 by %c1_i32_265 dim 1 : vector<8x1024xf32>, i32 -> vector<8x1024xf32>
    %831 = vector.broadcast %119 : vector<1x1024xf32> to vector<8x1024xf32>
    %832 = arith.mulf %830, %831 : vector<8x1024xf32>
    %c1023_i32_266 = arith.constant 1023 : i32
    %833 = tpu.dynamic_rotate %819 by %c1023_i32_266 dim 1 : vector<8x1024xf32>, i32 -> vector<8x1024xf32>
    %834 = vector.broadcast %124 : vector<1x1024xf32> to vector<8x1024xf32>
    %835 = arith.mulf %833, %834 : vector<8x1024xf32>
    %c993_i32_267 = arith.constant 993 : i32
    %836 = tpu.dynamic_rotate %819 by %c993_i32_267 dim 1 : vector<8x1024xf32>, i32 -> vector<8x1024xf32>
    %837 = vector.broadcast %137 : vector<1x1024xf32> to vector<8x1024xf32>
    %838 = arith.mulf %836, %837 : vector<8x1024xf32>
    %c992_i32_268 = arith.constant 992 : i32
    %839 = tpu.dynamic_rotate %819 by %c992_i32_268 dim 1 : vector<8x1024xf32>, i32 -> vector<8x1024xf32>
    %840 = vector.broadcast %134 : vector<1x1024xf32> to vector<8x1024xf32>
    %841 = arith.mulf %839, %840 : vector<8x1024xf32>
    %c991_i32_269 = arith.constant 991 : i32
    %842 = tpu.dynamic_rotate %819 by %c991_i32_269 dim 1 : vector<8x1024xf32>, i32 -> vector<8x1024xf32>
    %843 = vector.broadcast %138 : vector<1x1024xf32> to vector<8x1024xf32>
    %844 = arith.mulf %842, %843 : vector<8x1024xf32>
    %845 = tpu.concatenate %823, %826, %829, %832, %819, %835, %838, %841, %844, %139 in 0 : vector<8x1024xf32>, vector<8x1024xf32>, vector<8x1024xf32>, vector<8x1024xf32>, vector<8x1024xf32>, vector<8x1024xf32>, vector<8x1024xf32>, vector<8x1024xf32>, vector<8x1024xf32>, vector<1x1024xf32> -> vector<73x1024xf32>
    %cst_270 = arith.constant dense<0.000000e+00> : vector<8x1024xf32>
    %846 = tpu.matmul %820, %845, %cst_270 {dimension_numbers = #tpu.dot_dimension_numbers<[1], [0], [0], [1], [0, 0, 1, 1], [], []>} : vector<8x73xf32>, vector<73x1024xf32>, vector<8x1024xf32> -> vector<8x1024xf32>
    %c128 = arith.constant 128 : index
    %c0_271 = arith.constant 0 : index
    %847 = vector.load %arg7[%c128, %c0_271] : memref<176x640xf32, #tpu.memory_space<vmem>>, vector<4x9xf32>
    %848 = tpu.concatenate %846, %139 in 0 : vector<8x1024xf32>, vector<1x1024xf32> -> vector<9x1024xf32>
    %cst_272 = arith.constant dense<0.000000e+00> : vector<4x1024xf32>
    %849 = tpu.matmul %847, %848, %cst_272 {dimension_numbers = #tpu.dot_dimension_numbers<[1], [0], [0], [1], [0, 0, 1, 1], [], []>} : vector<4x9xf32>, vector<9x1024xf32>, vector<4x1024xf32> -> vector<4x1024xf32>
    %c0_273 = arith.constant 0 : index
    %c0_274 = arith.constant 0 : index
    %c0_275 = arith.constant 0 : index
    %850 = vector.load %arg5[%c0_273, %c0_274, %c0_275] : memref<1x6x1024xf32, #tpu.memory_space<vmem>>, vector<1x6x1024xf32>
    %851 = vector.shape_cast %850 : vector<1x6x1024xf32> to vector<6x1024xf32>
    %c136 = arith.constant 136 : index
    %c0_276 = arith.constant 0 : index
    %852 = vector.load %arg7[%c136, %c0_276] : memref<176x640xf32, #tpu.memory_space<vmem>>, vector<8x55xf32>
    %c33_i32_277 = arith.constant 33 : i32
    %853 = tpu.dynamic_rotate %851 by %c33_i32_277 dim 1 : vector<6x1024xf32>, i32 -> vector<6x1024xf32>
    %854 = vector.broadcast %135 : vector<1x1024xf32> to vector<6x1024xf32>
    %855 = arith.mulf %853, %854 : vector<6x1024xf32>
    %c32_i32_278 = arith.constant 32 : i32
    %856 = tpu.dynamic_rotate %851 by %c32_i32_278 dim 1 : vector<6x1024xf32>, i32 -> vector<6x1024xf32>
    %857 = vector.broadcast %129 : vector<1x1024xf32> to vector<6x1024xf32>
    %858 = arith.mulf %856, %857 : vector<6x1024xf32>
    %c31_i32_279 = arith.constant 31 : i32
    %859 = tpu.dynamic_rotate %851 by %c31_i32_279 dim 1 : vector<6x1024xf32>, i32 -> vector<6x1024xf32>
    %860 = vector.broadcast %136 : vector<1x1024xf32> to vector<6x1024xf32>
    %861 = arith.mulf %859, %860 : vector<6x1024xf32>
    %c1_i32_280 = arith.constant 1 : i32
    %862 = tpu.dynamic_rotate %851 by %c1_i32_280 dim 1 : vector<6x1024xf32>, i32 -> vector<6x1024xf32>
    %863 = vector.broadcast %119 : vector<1x1024xf32> to vector<6x1024xf32>
    %864 = arith.mulf %862, %863 : vector<6x1024xf32>
    %c1023_i32_281 = arith.constant 1023 : i32
    %865 = tpu.dynamic_rotate %851 by %c1023_i32_281 dim 1 : vector<6x1024xf32>, i32 -> vector<6x1024xf32>
    %866 = vector.broadcast %124 : vector<1x1024xf32> to vector<6x1024xf32>
    %867 = arith.mulf %865, %866 : vector<6x1024xf32>
    %c993_i32_282 = arith.constant 993 : i32
    %868 = tpu.dynamic_rotate %851 by %c993_i32_282 dim 1 : vector<6x1024xf32>, i32 -> vector<6x1024xf32>
    %869 = vector.broadcast %137 : vector<1x1024xf32> to vector<6x1024xf32>
    %870 = arith.mulf %868, %869 : vector<6x1024xf32>
    %c992_i32_283 = arith.constant 992 : i32
    %871 = tpu.dynamic_rotate %851 by %c992_i32_283 dim 1 : vector<6x1024xf32>, i32 -> vector<6x1024xf32>
    %872 = vector.broadcast %134 : vector<1x1024xf32> to vector<6x1024xf32>
    %873 = arith.mulf %871, %872 : vector<6x1024xf32>
    %c991_i32_284 = arith.constant 991 : i32
    %874 = tpu.dynamic_rotate %851 by %c991_i32_284 dim 1 : vector<6x1024xf32>, i32 -> vector<6x1024xf32>
    %875 = vector.broadcast %138 : vector<1x1024xf32> to vector<6x1024xf32>
    %876 = arith.mulf %874, %875 : vector<6x1024xf32>
    %877 = tpu.concatenate %855, %858, %861, %864, %851, %867, %870, %873, %876, %139 in 0 : vector<6x1024xf32>, vector<6x1024xf32>, vector<6x1024xf32>, vector<6x1024xf32>, vector<6x1024xf32>, vector<6x1024xf32>, vector<6x1024xf32>, vector<6x1024xf32>, vector<6x1024xf32>, vector<1x1024xf32> -> vector<55x1024xf32>
    %cst_285 = arith.constant dense<0.000000e+00> : vector<8x1024xf32>
    %878 = tpu.matmul %852, %877, %cst_285 {dimension_numbers = #tpu.dot_dimension_numbers<[1], [0], [0], [1], [0, 0, 1, 1], [], []>} : vector<8x55xf32>, vector<55x1024xf32>, vector<8x1024xf32> -> vector<8x1024xf32>
    %c144 = arith.constant 144 : index
    %c0_286 = arith.constant 0 : index
    %879 = vector.load %arg7[%c144, %c0_286] : memref<176x640xf32, #tpu.memory_space<vmem>>, vector<8x73xf32>
    %c33_i32_287 = arith.constant 33 : i32
    %880 = tpu.dynamic_rotate %878 by %c33_i32_287 dim 1 : vector<8x1024xf32>, i32 -> vector<8x1024xf32>
    %881 = vector.broadcast %135 : vector<1x1024xf32> to vector<8x1024xf32>
    %882 = arith.mulf %880, %881 : vector<8x1024xf32>
    %c32_i32_288 = arith.constant 32 : i32
    %883 = tpu.dynamic_rotate %878 by %c32_i32_288 dim 1 : vector<8x1024xf32>, i32 -> vector<8x1024xf32>
    %884 = vector.broadcast %129 : vector<1x1024xf32> to vector<8x1024xf32>
    %885 = arith.mulf %883, %884 : vector<8x1024xf32>
    %c31_i32_289 = arith.constant 31 : i32
    %886 = tpu.dynamic_rotate %878 by %c31_i32_289 dim 1 : vector<8x1024xf32>, i32 -> vector<8x1024xf32>
    %887 = vector.broadcast %136 : vector<1x1024xf32> to vector<8x1024xf32>
    %888 = arith.mulf %886, %887 : vector<8x1024xf32>
    %c1_i32_290 = arith.constant 1 : i32
    %889 = tpu.dynamic_rotate %878 by %c1_i32_290 dim 1 : vector<8x1024xf32>, i32 -> vector<8x1024xf32>
    %890 = vector.broadcast %119 : vector<1x1024xf32> to vector<8x1024xf32>
    %891 = arith.mulf %889, %890 : vector<8x1024xf32>
    %c1023_i32_291 = arith.constant 1023 : i32
    %892 = tpu.dynamic_rotate %878 by %c1023_i32_291 dim 1 : vector<8x1024xf32>, i32 -> vector<8x1024xf32>
    %893 = vector.broadcast %124 : vector<1x1024xf32> to vector<8x1024xf32>
    %894 = arith.mulf %892, %893 : vector<8x1024xf32>
    %c993_i32_292 = arith.constant 993 : i32
    %895 = tpu.dynamic_rotate %878 by %c993_i32_292 dim 1 : vector<8x1024xf32>, i32 -> vector<8x1024xf32>
    %896 = vector.broadcast %137 : vector<1x1024xf32> to vector<8x1024xf32>
    %897 = arith.mulf %895, %896 : vector<8x1024xf32>
    %c992_i32_293 = arith.constant 992 : i32
    %898 = tpu.dynamic_rotate %878 by %c992_i32_293 dim 1 : vector<8x1024xf32>, i32 -> vector<8x1024xf32>
    %899 = vector.broadcast %134 : vector<1x1024xf32> to vector<8x1024xf32>
    %900 = arith.mulf %898, %899 : vector<8x1024xf32>
    %c991_i32_294 = arith.constant 991 : i32
    %901 = tpu.dynamic_rotate %878 by %c991_i32_294 dim 1 : vector<8x1024xf32>, i32 -> vector<8x1024xf32>
    %902 = vector.broadcast %138 : vector<1x1024xf32> to vector<8x1024xf32>
    %903 = arith.mulf %901, %902 : vector<8x1024xf32>
    %904 = tpu.concatenate %882, %885, %888, %891, %878, %894, %897, %900, %903, %139 in 0 : vector<8x1024xf32>, vector<8x1024xf32>, vector<8x1024xf32>, vector<8x1024xf32>, vector<8x1024xf32>, vector<8x1024xf32>, vector<8x1024xf32>, vector<8x1024xf32>, vector<8x1024xf32>, vector<1x1024xf32> -> vector<73x1024xf32>
    %cst_295 = arith.constant dense<0.000000e+00> : vector<8x1024xf32>
    %905 = tpu.matmul %879, %904, %cst_295 {dimension_numbers = #tpu.dot_dimension_numbers<[1], [0], [0], [1], [0, 0, 1, 1], [], []>} : vector<8x73xf32>, vector<73x1024xf32>, vector<8x1024xf32> -> vector<8x1024xf32>
    %c152 = arith.constant 152 : index
    %c0_296 = arith.constant 0 : index
    %906 = vector.load %arg7[%c152, %c0_296] : memref<176x640xf32, #tpu.memory_space<vmem>>, vector<4x9xf32>
    %907 = tpu.concatenate %905, %139 in 0 : vector<8x1024xf32>, vector<1x1024xf32> -> vector<9x1024xf32>
    %cst_297 = arith.constant dense<0.000000e+00> : vector<4x1024xf32>
    %908 = tpu.matmul %906, %907, %cst_297 {dimension_numbers = #tpu.dot_dimension_numbers<[1], [0], [0], [1], [0, 0, 1, 1], [], []>} : vector<4x9xf32>, vector<9x1024xf32>, vector<4x1024xf32> -> vector<4x1024xf32>
    %909 = arith.addf %849, %908 : vector<4x1024xf32>
    %c160 = arith.constant 160 : index
    %c0_298 = arith.constant 0 : index
    %910 = vector.load %arg7[%c160, %c0_298] : memref<176x640xf32, #tpu.memory_space<vmem>>, vector<4x37xf32>
    %c33_i32_299 = arith.constant 33 : i32
    %911 = tpu.dynamic_rotate %909 by %c33_i32_299 dim 1 : vector<4x1024xf32>, i32 -> vector<4x1024xf32>
    %912 = vector.broadcast %135 : vector<1x1024xf32> to vector<4x1024xf32>
    %913 = arith.mulf %911, %912 : vector<4x1024xf32>
    %c32_i32_300 = arith.constant 32 : i32
    %914 = tpu.dynamic_rotate %909 by %c32_i32_300 dim 1 : vector<4x1024xf32>, i32 -> vector<4x1024xf32>
    %915 = vector.broadcast %129 : vector<1x1024xf32> to vector<4x1024xf32>
    %916 = arith.mulf %914, %915 : vector<4x1024xf32>
    %c31_i32_301 = arith.constant 31 : i32
    %917 = tpu.dynamic_rotate %909 by %c31_i32_301 dim 1 : vector<4x1024xf32>, i32 -> vector<4x1024xf32>
    %918 = vector.broadcast %136 : vector<1x1024xf32> to vector<4x1024xf32>
    %919 = arith.mulf %917, %918 : vector<4x1024xf32>
    %c1_i32_302 = arith.constant 1 : i32
    %920 = tpu.dynamic_rotate %909 by %c1_i32_302 dim 1 : vector<4x1024xf32>, i32 -> vector<4x1024xf32>
    %921 = vector.broadcast %119 : vector<1x1024xf32> to vector<4x1024xf32>
    %922 = arith.mulf %920, %921 : vector<4x1024xf32>
    %c1023_i32_303 = arith.constant 1023 : i32
    %923 = tpu.dynamic_rotate %909 by %c1023_i32_303 dim 1 : vector<4x1024xf32>, i32 -> vector<4x1024xf32>
    %924 = vector.broadcast %124 : vector<1x1024xf32> to vector<4x1024xf32>
    %925 = arith.mulf %923, %924 : vector<4x1024xf32>
    %c993_i32_304 = arith.constant 993 : i32
    %926 = tpu.dynamic_rotate %909 by %c993_i32_304 dim 1 : vector<4x1024xf32>, i32 -> vector<4x1024xf32>
    %927 = vector.broadcast %137 : vector<1x1024xf32> to vector<4x1024xf32>
    %928 = arith.mulf %926, %927 : vector<4x1024xf32>
    %c992_i32_305 = arith.constant 992 : i32
    %929 = tpu.dynamic_rotate %909 by %c992_i32_305 dim 1 : vector<4x1024xf32>, i32 -> vector<4x1024xf32>
    %930 = vector.broadcast %134 : vector<1x1024xf32> to vector<4x1024xf32>
    %931 = arith.mulf %929, %930 : vector<4x1024xf32>
    %c991_i32_306 = arith.constant 991 : i32
    %932 = tpu.dynamic_rotate %909 by %c991_i32_306 dim 1 : vector<4x1024xf32>, i32 -> vector<4x1024xf32>
    %933 = vector.broadcast %138 : vector<1x1024xf32> to vector<4x1024xf32>
    %934 = arith.mulf %932, %933 : vector<4x1024xf32>
    %935 = tpu.concatenate %913, %916, %919, %922, %909, %925, %928, %931, %934, %139 in 0 : vector<4x1024xf32>, vector<4x1024xf32>, vector<4x1024xf32>, vector<4x1024xf32>, vector<4x1024xf32>, vector<4x1024xf32>, vector<4x1024xf32>, vector<4x1024xf32>, vector<4x1024xf32>, vector<1x1024xf32> -> vector<37x1024xf32>
    %cst_307 = arith.constant dense<0.000000e+00> : vector<4x1024xf32>
    %936 = tpu.matmul %910, %935, %cst_307 {dimension_numbers = #tpu.dot_dimension_numbers<[1], [0], [0], [1], [0, 0, 1, 1], [], []>} : vector<4x37xf32>, vector<37x1024xf32>, vector<4x1024xf32> -> vector<4x1024xf32>
    %c168 = arith.constant 168 : index
    %c0_308 = arith.constant 0 : index
    %937 = vector.load %arg7[%c168, %c0_308] : memref<176x640xf32, #tpu.memory_space<vmem>>, vector<1x37xf32>
    %c33_i32_309 = arith.constant 33 : i32
    %938 = tpu.dynamic_rotate %936 by %c33_i32_309 dim 1 : vector<4x1024xf32>, i32 -> vector<4x1024xf32>
    %939 = vector.broadcast %135 : vector<1x1024xf32> to vector<4x1024xf32>
    %940 = arith.mulf %938, %939 : vector<4x1024xf32>
    %c32_i32_310 = arith.constant 32 : i32
    %941 = tpu.dynamic_rotate %936 by %c32_i32_310 dim 1 : vector<4x1024xf32>, i32 -> vector<4x1024xf32>
    %942 = vector.broadcast %129 : vector<1x1024xf32> to vector<4x1024xf32>
    %943 = arith.mulf %941, %942 : vector<4x1024xf32>
    %c31_i32_311 = arith.constant 31 : i32
    %944 = tpu.dynamic_rotate %936 by %c31_i32_311 dim 1 : vector<4x1024xf32>, i32 -> vector<4x1024xf32>
    %945 = vector.broadcast %136 : vector<1x1024xf32> to vector<4x1024xf32>
    %946 = arith.mulf %944, %945 : vector<4x1024xf32>
    %c1_i32_312 = arith.constant 1 : i32
    %947 = tpu.dynamic_rotate %936 by %c1_i32_312 dim 1 : vector<4x1024xf32>, i32 -> vector<4x1024xf32>
    %948 = vector.broadcast %119 : vector<1x1024xf32> to vector<4x1024xf32>
    %949 = arith.mulf %947, %948 : vector<4x1024xf32>
    %c1023_i32_313 = arith.constant 1023 : i32
    %950 = tpu.dynamic_rotate %936 by %c1023_i32_313 dim 1 : vector<4x1024xf32>, i32 -> vector<4x1024xf32>
    %951 = vector.broadcast %124 : vector<1x1024xf32> to vector<4x1024xf32>
    %952 = arith.mulf %950, %951 : vector<4x1024xf32>
    %c993_i32_314 = arith.constant 993 : i32
    %953 = tpu.dynamic_rotate %936 by %c993_i32_314 dim 1 : vector<4x1024xf32>, i32 -> vector<4x1024xf32>
    %954 = vector.broadcast %137 : vector<1x1024xf32> to vector<4x1024xf32>
    %955 = arith.mulf %953, %954 : vector<4x1024xf32>
    %c992_i32_315 = arith.constant 992 : i32
    %956 = tpu.dynamic_rotate %936 by %c992_i32_315 dim 1 : vector<4x1024xf32>, i32 -> vector<4x1024xf32>
    %957 = vector.broadcast %134 : vector<1x1024xf32> to vector<4x1024xf32>
    %958 = arith.mulf %956, %957 : vector<4x1024xf32>
    %c991_i32_316 = arith.constant 991 : i32
    %959 = tpu.dynamic_rotate %936 by %c991_i32_316 dim 1 : vector<4x1024xf32>, i32 -> vector<4x1024xf32>
    %960 = vector.broadcast %138 : vector<1x1024xf32> to vector<4x1024xf32>
    %961 = arith.mulf %959, %960 : vector<4x1024xf32>
    %962 = tpu.concatenate %940, %943, %946, %949, %936, %952, %955, %958, %961, %139 in 0 : vector<4x1024xf32>, vector<4x1024xf32>, vector<4x1024xf32>, vector<4x1024xf32>, vector<4x1024xf32>, vector<4x1024xf32>, vector<4x1024xf32>, vector<4x1024xf32>, vector<4x1024xf32>, vector<1x1024xf32> -> vector<37x1024xf32>
    %cst_317 = arith.constant dense<0.000000e+00> : vector<1x1024xf32>
    %963 = tpu.matmul %937, %962, %cst_317 {dimension_numbers = #tpu.dot_dimension_numbers<[1], [0], [0], [1], [0, 0, 1, 1], [], []>} : vector<1x37xf32>, vector<37x1024xf32>, vector<1x1024xf32> -> vector<1x1024xf32>
    %964 = math.absf %963 : vector<1x1024xf32>
    %cst_318 = arith.constant 0.000000e+00 : f32
    %965 = vector.broadcast %cst_318 : f32 to vector<1x1024xf32>
    %966 = arith.subf %965, %964 : vector<1x1024xf32>
    %967 = math.exp %966 : vector<1x1024xf32>
    %cst_319 = arith.constant 1.000000e+00 : f32
    %968 = vector.broadcast %cst_319 : f32 to vector<1x1024xf32>
    %969 = arith.addf %968, %967 : vector<1x1024xf32>
    %970 = tpu.reciprocal %969 {approx = true} : vector<1x1024xf32> -> vector<1x1024xf32>
    %cst_320 = arith.constant 0.000000e+00 : f32
    %971 = vector.broadcast %cst_320 : f32 to vector<1x1024xf32>
    %972 = arith.cmpf oge, %963, %971 : vector<1x1024xf32>
    %973 = arith.mulf %967, %970 : vector<1x1024xf32>
    %974 = arith.select %972, %970, %973 : vector<1x1024xi1>, vector<1x1024xf32>
    %cst_321 = arith.constant 0.000000e+00 : f32
    %cst_322 = arith.constant 1.000000e+00 : f32
    %975 = vector.broadcast %cst_321 : f32 to vector<1x1024xf32>
    %976 = arith.maximumf %975, %974 : vector<1x1024xf32>
    %977 = vector.broadcast %cst_322 : f32 to vector<1x1024xf32>
    %978 = arith.minimumf %977, %976 : vector<1x1024xf32>
    %c0_323 = arith.constant 0 : index
    %c0_324 = arith.constant 0 : index
    %c0_325 = arith.constant 0 : index
    %979 = vector.load %arg8[%c0_323, %c0_324, %c0_325] : memref<1x1x1024xf32, #tpu.memory_space<vmem>>, vector<1x1x1024xf32>
    %980 = vector.shape_cast %979 : vector<1x1x1024xf32> to vector<1x1024xf32>
    %981 = vector.shape_cast %978 : vector<1x1024xf32> to vector<1x1x1024xf32>
    tpu.vector_store %arg8[%c0_323, %c0_324, %c0_325], %981 {strides = array<i32>} : memref<1x1x1024xf32, #tpu.memory_space<vmem>>, vector<1x1x1024xf32>,
    return
  }
  func.func @transform_0(%arg0: i32) -> (i32, i32, i32) {
    %c0_i32 = arith.constant 0 : i32
    %c0_i32_0 = arith.constant 0 : i32
    %c0_i32_1 = arith.constant 0 : i32
    return %arg0, %c0_i32, %c0_i32_0 : i32, i32, i32
  }
  func.func @transform_1(%arg0: i32) -> (i32, i32, i32) {
    %c0_i32 = arith.constant 0 : i32
    %c0_i32_0 = arith.constant 0 : i32
    %c0_i32_1 = arith.constant 0 : i32
    return %arg0, %c0_i32, %c0_i32_0 : i32, i32, i32
  }
  func.func @transform_2(%arg0: i32) -> (i32, i32, i32) {
    %c0_i32 = arith.constant 0 : i32
    %c0_i32_0 = arith.constant 0 : i32
    %c0_i32_1 = arith.constant 0 : i32
    return %arg0, %c0_i32, %c0_i32_0 : i32, i32, i32
  }
  func.func @transform_3(%arg0: i32) -> (i32, i32, i32) {
    %c0_i32 = arith.constant 0 : i32
    %c0_i32_0 = arith.constant 0 : i32
    %c0_i32_1 = arith.constant 0 : i32
    return %arg0, %c0_i32, %c0_i32_0 : i32, i32, i32
  }
  func.func @transform_4(%arg0: i32) -> (i32, i32, i32) {
    %c0_i32 = arith.constant 0 : i32
    %c0_i32_0 = arith.constant 0 : i32
    %c0_i32_1 = arith.constant 0 : i32
    return %arg0, %c0_i32, %c0_i32_0 : i32, i32, i32
  }
  func.func @transform_5(%arg0: i32) -> (i32, i32) {
    %c0_i32 = arith.constant 0 : i32
    %c0_i32_0 = arith.constant 0 : i32
    %c0_i32_1 = arith.constant 0 : i32
    return %c0_i32, %c0_i32_0 : i32, i32
  }
  func.func @transform_6(%arg0: i32) -> (i32, i32) {
    %c0_i32 = arith.constant 0 : i32
    %c0_i32_0 = arith.constant 0 : i32
    %c0_i32_1 = arith.constant 0 : i32
    return %c0_i32, %c0_i32_0 : i32, i32
  }
  func.func @transform_7(%arg0: i32) -> (i32, i32, i32) {
    %c0_i32 = arith.constant 0 : i32
    %c0_i32_0 = arith.constant 0 : i32
    %c0_i32_1 = arith.constant 0 : i32
    return %arg0, %c0_i32, %c0_i32_0 : i32, i32, i32
  }
}

</mosaic_0001>

<llo_original>
// kernel: uncertainty_network_forward.1
$region0: #{uncertainty_network_forward.1}
  #allocation0 [shape = 'u32[]', space=smem, size = 0x4, offset = 0x4, fixed_abs, tag = 'smem constant byte address 0x4 - core index']
  #allocation1 [shape = 'u32[144,128]{1,0:T(1,128)}', space=vmem, size = 0x12000, scoped, tag = 'internal scratch']
  %s0 = inlined_call_operand.vmem [shape: f32[2,64,4], index: 0, kind: input, shape index: {}]
  %s1 = inlined_call_operand.vmem [shape: f32[2,32,16], index: 1, kind: input, shape index: {}]
  %s2 = inlined_call_operand.vmem [shape: f32[2,16,64], index: 2, kind: input, shape index: {}]
  %s3 = inlined_call_operand.vmem [shape: f32[2,8,256], index: 3, kind: input, shape index: {}]
  %s4 = inlined_call_operand.vmem [shape: f32[2,6,1024], index: 4, kind: input, shape index: {}]
  %s5 = inlined_call_operand.vmem [shape: f32[340,1024], index: 5, kind: input, shape index: {}]
  %s6 = inlined_call_operand.vmem [shape: f32[176,640], index: 6, kind: input, shape index: {}]
  %s7 = inlined_call_operand.vmem [shape: f32[2,1,1024], index: 7, kind: output, shape index: {}]
  %s8 = sld [smem:[#allocation0]]
  $region61: #{uncertainty_network_forward.1} parent=0
    _
  %s10 = ssub.s32 1, %s8
  %s11 = scalar_select 0, %s10, %s8
  loop: start=0, step=1, limit=4
  $region2: #{uncertainty_network_forward.1} parent=0 // loop_pre_header
    _
  $region3: #{uncertainty_network_forward.1} parent=0 // loop_header
    %s13 = sphi 0, %s17
    %p14 = scmp.ge.s32.totalorder %s13, 4
    %s23 = sphi 0, %s25
    %s26 = sphi 0, %s23
    %s27 = sphi 0, %s26
    %s43 = sphi 0, %s27
    %s49 = sphi 0, %s51
    %s52 = sphi 0, %s49
    %s53 = sphi 0, %s52
    %s69 = sphi 0, %s53
    %s75 = sphi 0, %s77
    %s78 = sphi 0, %s75
    %s79 = sphi 0, %s78
    %s95 = sphi 0, %s79
    %s101 = sphi 0, %s103
    %s104 = sphi 0, %s101
    %s105 = sphi 0, %s104
    %s121 = sphi 0, %s105
    %s127 = sphi 0, %s129
    %s130 = sphi 0, %s127
    %s131 = sphi 0, %s130
    %s147 = sphi 0, %s131
    %s151 = sphi 0, %s151
    %s153 = sphi 0, %s151
    %s154 = sphi 0, %s153
    %s168 = sphi 0, %s154
    %s172 = sphi 0, %s172
    %s174 = sphi 0, %s172
    %s175 = sphi 0, %s174
    %s189 = sphi 0, %s175
    %s195 = sphi 0, %s197
    %s198 = sphi 0, %s195
    %s199 = sphi 0, %s198
    %s215 = sphi 0, %s199
  $region4: #{uncertainty_network_forward.1} parent=0 // loop_header_branch
    %16 = sbr.rel (%p14) target = $region8
  $region5: #{uncertainty_network_forward.1} parent=0 // loop_body
    %s18 = ssub.s32 %s13, 1
    %s19 = ssub.s32 %s13, 2
    %s20 = sadd.s32 %s13, 1
    %s21 = ssub.s32 %s13, %s20
    %p22 = scmp.eq.s32.totalorder %s21, 0
    %s24 = sadd.s32 %s23, 1
    %s25 = scalar_select %p22, %s23, %s24
    %p28 = pneg %p22
    %p29 = scmp.eq.s32.totalorder %s13, 1
    %p30 = por %p28, %p29
    %p31 = scmp.ne.s32.totalorder %s23, %s26
    %p32 = scmp.eq.s32.totalorder %s13, 0
    %p33 = por %p31, %p32
    %p34 = scmp.ne.s32.totalorder %s23, %s26
    %p35 = scmp.eq.s32.totalorder %s18, 1
    %p36 = por %p34, %p35
    %p37 = scmp.ne.s32.totalorder %s26, %s27
    %p38 = scmp.eq.s32.totalorder %s18, 0
    %p39 = por %p37, %p38
    %p40 = scmp.ne.s32.totalorder %s26, %s27
    %p41 = scmp.eq.s32.totalorder %s19, 1
    %p42 = por %p40, %p41
    %p44 = scmp.ne.s32.totalorder %s27, %s43
    %p45 = scmp.eq.s32.totalorder %s19, 0
    %p46 = por %p44, %p45
    %s47 = ssub.s32 %s13, %s20
    %p48 = scmp.eq.s32.totalorder %s47, 0
    %s50 = sadd.s32 %s49, 1
    %s51 = scalar_select %p48, %s49, %s50
    %p54 = pneg %p48
    %p55 = scmp.eq.s32.totalorder %s13, 1
    %p56 = por %p54, %p55
    %p57 = scmp.ne.s32.totalorder %s49, %s52
    %p58 = scmp.eq.s32.totalorder %s13, 0
    %p59 = por %p57, %p58
    %p60 = scmp.ne.s32.totalorder %s49, %s52
    %p61 = scmp.eq.s32.totalorder %s18, 1
    %p62 = por %p60, %p61
    %p63 = scmp.ne.s32.totalorder %s52, %s53
    %p64 = scmp.eq.s32.totalorder %s18, 0
    %p65 = por %p63, %p64
    %p66 = scmp.ne.s32.totalorder %s52, %s53
    %p67 = scmp.eq.s32.totalorder %s19, 1
    %p68 = por %p66, %p67
    %p70 = scmp.ne.s32.totalorder %s53, %s69
    %p71 = scmp.eq.s32.totalorder %s19, 0
    %p72 = por %p70, %p71
    %s73 = ssub.s32 %s13, %s20
    %p74 = scmp.eq.s32.totalorder %s73, 0
    %s76 = sadd.s32 %s75, 1
    %s77 = scalar_select %p74, %s75, %s76
    %p80 = pneg %p74
    %p81 = scmp.eq.s32.totalorder %s13, 1
    %p82 = por %p80, %p81
    %p83 = scmp.ne.s32.totalorder %s75, %s78
    %p84 = scmp.eq.s32.totalorder %s13, 0
    %p85 = por %p83, %p84
    %p86 = scmp.ne.s32.totalorder %s75, %s78
    %p87 = scmp.eq.s32.totalorder %s18, 1
    %p88 = por %p86, %p87
    %p89 = scmp.ne.s32.totalorder %s78, %s79
    %p90 = scmp.eq.s32.totalorder %s18, 0
    %p91 = por %p89, %p90
    %p92 = scmp.ne.s32.totalorder %s78, %s79
    %p93 = scmp.eq.s32.totalorder %s19, 1
    %p94 = por %p92, %p93
    %p96 = scmp.ne.s32.totalorder %s79, %s95
    %p97 = scmp.eq.s32.totalorder %s19, 0
    %p98 = por %p96, %p97
    %s99 = ssub.s32 %s13, %s20
    %p100 = scmp.eq.s32.totalorder %s99, 0
    %s102 = sadd.s32 %s101, 1
    %s103 = scalar_select %p100, %s101, %s102
    %p106 = pneg %p100
    %p107 = scmp.eq.s32.totalorder %s13, 1
    %p108 = por %p106, %p107
    %p109 = scmp.ne.s32.totalorder %s101, %s104
    %p110 = scmp.eq.s32.totalorder %s13, 0
    %p111 = por %p109, %p110
    %p112 = scmp.ne.s32.totalorder %s101, %s104
    %p113 = scmp.eq.s32.totalorder %s18, 1
    %p114 = por %p112, %p113
    %p115 = scmp.ne.s32.totalorder %s104, %s105
    %p116 = scmp.eq.s32.totalorder %s18, 0
    %p117 = por %p115, %p116
    %p118 = scmp.ne.s32.totalorder %s104, %s105
    %p119 = scmp.eq.s32.totalorder %s19, 1
    %p120 = por %p118, %p119
    %p122 = scmp.ne.s32.totalorder %s105, %s121
    %p123 = scmp.eq.s32.totalorder %s19, 0
    %p124 = por %p122, %p123
    %s125 = ssub.s32 %s13, %s20
    %p126 = scmp.eq.s32.totalorder %s125, 0
    %s128 = sadd.s32 %s127, 1
    %s129 = scalar_select %p126, %s127, %s128
    %p132 = pneg %p126
    %p133 = scmp.eq.s32.totalorder %s13, 1
    %p134 = por %p132, %p133
    %p135 = scmp.ne.s32.totalorder %s127, %s130
    %p136 = scmp.eq.s32.totalorder %s13, 0
    %p137 = por %p135, %p136
    %p138 = scmp.ne.s32.totalorder %s127, %s130
    %p139 = scmp.eq.s32.totalorder %s18, 1
    %p140 = por %p138, %p139
    %p141 = scmp.ne.s32.totalorder %s130, %s131
    %p142 = scmp.eq.s32.totalorder %s18, 0
    %p143 = por %p141, %p142
    %p144 = scmp.ne.s32.totalorder %s130, %s131
    %p145 = scmp.eq.s32.totalorder %s19, 1
    %p146 = por %p144, %p145
    %p148 = scmp.ne.s32.totalorder %s131, %s147
    %p149 = scmp.eq.s32.totalorder %s19, 0
    %p150 = por %p148, %p149
    %s152 = sadd.s32 %s151, 1
    %p155 = scmp.eq.s32.totalorder %s13, 1
    %p156 = scmp.ne.s32.totalorder %s151, %s153
    %p157 = scmp.eq.s32.totalorder %s13, 0
    %p158 = por %p156, %p157
    %p159 = scmp.ne.s32.totalorder %s151, %s153
    %p160 = scmp.eq.s32.totalorder %s18, 1
    %p161 = por %p159, %p160
    %p162 = scmp.ne.s32.totalorder %s153, %s154
    %p163 = scmp.eq.s32.totalorder %s18, 0
    %p164 = por %p162, %p163
    %p165 = scmp.ne.s32.totalorder %s153, %s154
    %p166 = scmp.eq.s32.totalorder %s19, 1
    %p167 = por %p165, %p166
    %p169 = scmp.ne.s32.totalorder %s154, %s168
    %p170 = scmp.eq.s32.totalorder %s19, 0
    %p171 = por %p169, %p170
    %s173 = sadd.s32 %s172, 1
    %p176 = scmp.eq.s32.totalorder %s13, 1
    %p177 = scmp.ne.s32.totalorder %s172, %s174
    %p178 = scmp.eq.s32.totalorder %s13, 0
    %p179 = por %p177, %p178
    %p180 = scmp.ne.s32.totalorder %s172, %s174
    %p181 = scmp.eq.s32.totalorder %s18, 1
    %p182 = por %p180, %p181
    %p183 = scmp.ne.s32.totalorder %s174, %s175
    %p184 = scmp.eq.s32.totalorder %s18, 0
    %p185 = por %p183, %p184
    %p186 = scmp.ne.s32.totalorder %s174, %s175
    %p187 = scmp.eq.s32.totalorder %s19, 1
    %p188 = por %p186, %p187
    %p190 = scmp.ne.s32.totalorder %s175, %s189
    %p191 = scmp.eq.s32.totalorder %s19, 0
    %p192 = por %p190, %p191
    %s193 = ssub.s32 %s13, %s20
    %p194 = scmp.eq.s32.totalorder %s193, 0
    %s196 = sadd.s32 %s195, 1
    %s197 = scalar_select %p194, %s195, %s196
    %p200 = pneg %p194
    %p201 = scmp.eq.s32.totalorder %s13, 1
    %p202 = por %p200, %p201
    %p203 = scmp.ne.s32.totalorder %s195, %s198
    %p204 = scmp.eq.s32.totalorder %s13, 0
    %p205 = por %p203, %p204
    %p206 = scmp.ne.s32.totalorder %s195, %s198
    %p207 = scmp.eq.s32.totalorder %s18, 1
    %p208 = por %p206, %p207
    %p209 = scmp.ne.s32.totalorder %s198, %s199
    %p210 = scmp.eq.s32.totalorder %s18, 0
    %p211 = por %p209, %p210
    %p212 = scmp.ne.s32.totalorder %s198, %s199
    %p213 = scmp.eq.s32.totalorder %s19, 1
    %p214 = por %p212, %p213
    %p216 = scmp.ne.s32.totalorder %s199, %s215
    %p217 = scmp.eq.s32.totalorder %s19, 0
    %p218 = por %p216, %p217
    %p219 = scmp.le.s32.totalorder 1, %s13
    %p220 = scmp.lt.s32.totalorder %s13, 3
    %p221 = pnand %p219, %p220
    %p222 = pneg %p221
    // Predicated region
    $region9: #{uncertainty_network_forward.1} parent=5 // pred_check
      _
    $region10: #{uncertainty_network_forward.1} parent=5 // pred_check_branch
      %224 = sbr.rel (%p221) target = $region12
    $region11: #{uncertainty_network_forward.1} parent=5 // pred_region
      %s225 = ssub.s32 %s13, 1
      // Predicated region
      $region13: #{uncertainty_network_forward.1} parent=11 // pred_check
        %p226 = pneg %p164
      $region14: #{uncertainty_network_forward.1} parent=11 // pred_check_branch
        %228 = sbr.rel (%p226) target = $region16
      $region15: #{uncertainty_network_forward.1} parent=11 // pred_region
        _
      $region16: #{uncertainty_network_forward.1} parent=11 // pred_fallthru
        _
      // Predicated region
      $region17: #{uncertainty_network_forward.1} parent=11 // pred_check
        %p229 = pneg %p185
      $region18: #{uncertainty_network_forward.1} parent=11 // pred_check_branch
        %231 = sbr.rel (%p229) target = $region20
      $region19: #{uncertainty_network_forward.1} parent=11 // pred_region
        _
      $region20: #{uncertainty_network_forward.1} parent=11 // pred_fallthru
        _
    $region12: #{uncertainty_network_forward.1} parent=5 // pred_fallthru
      _
    %p232 = scmp.lt.s32.totalorder %s13, 2
    // Predicated region
    $region21: #{uncertainty_network_forward.1} parent=5 // pred_check
      %p233 = pneg %p232
    $region22: #{uncertainty_network_forward.1} parent=5 // pred_check_branch
      %235 = sbr.rel (%p233) target = $region24
    $region23: #{uncertainty_network_forward.1} parent=5 // pred_region
      // Predicated region
      $region25: #{uncertainty_network_forward.1} parent=23 // pred_check
        %p236 = pneg %p33
      $region26: #{uncertainty_network_forward.1} parent=23 // pred_check_branch
        %238 = sbr.rel (%p236) target = $region28
      $region27: #{uncertainty_network_forward.1} parent=23 // pred_region
        %p239 = scmp.lt.s32.totalorder %s13, 1
        %s240 = scalar_select %p239, %s13, 1
        %s241 = smul.addr %s240, 8
        %s242 = smul.addr %s241, 8
        %s243 = scalar_lea.vmem %s0, %s242
      $region28: #{uncertainty_network_forward.1} parent=23 // pred_fallthru
        _
      // Predicated region
      $region29: #{uncertainty_network_forward.1} parent=23 // pred_check
        %p244 = pneg %p59
      $region30: #{uncertainty_network_forward.1} parent=23 // pred_check_branch
        %246 = sbr.rel (%p244) target = $region32
      $region31: #{uncertainty_network_forward.1} parent=23 // pred_region
        %p247 = scmp.lt.s32.totalorder %s13, 1
        %s248 = scalar_select %p247, %s13, 1
        %s249 = smul.addr %s248, 4
        %s250 = smul.addr %s249, 8
        %s251 = scalar_lea.vmem %s1, %s250
      $region32: #{uncertainty_network_forward.1} parent=23 // pred_fallthru
        _
      // Predicated region
      $region33: #{uncertainty_network_forward.1} parent=23 // pred_check
        %p252 = pneg %p85
      $region34: #{uncertainty_network_forward.1} parent=23 // pred_check_branch
        %254 = sbr.rel (%p252) target = $region36
      $region35: #{uncertainty_network_forward.1} parent=23 // pred_region
        %p255 = scmp.lt.s32.totalorder %s13, 1
        %s256 = scalar_select %p255, %s13, 1
        %s257 = smul.addr %s256, 2
        %s258 = smul.addr %s257, 8
        %s259 = scalar_lea.vmem %s2, %s258
      $region36: #{uncertainty_network_forward.1} parent=23 // pred_fallthru
        _
      // Predicated region
      $region37: #{uncertainty_network_forward.1} parent=23 // pred_check
        %p260 = pneg %p111
      $region38: #{uncertainty_network_forward.1} parent=23 // pred_check_branch
        %262 = sbr.rel (%p260) target = $region40
      $region39: #{uncertainty_network_forward.1} parent=23 // pred_region
        %p263 = scmp.lt.s32.totalorder %s13, 1
        %s264 = scalar_select %p263, %s13, 1
        %s265 = smul.addr %s264, 2
        %s266 = smul.addr %s265, 8
        %s267 = scalar_lea.vmem %s3, %s266
      $region40: #{uncertainty_network_forward.1} parent=23 // pred_fallthru
        _
      // Predicated region
      $region41: #{uncertainty_network_forward.1} parent=23 // pred_check
        %p268 = pneg %p137
      $region42: #{uncertainty_network_forward.1} parent=23 // pred_check_branch
        %270 = sbr.rel (%p268) target = $region44
      $region43: #{uncertainty_network_forward.1} parent=23 // pred_region
        %p271 = scmp.lt.s32.totalorder %s13, 1
        %s272 = scalar_select %p271, %s13, 1
        %s273 = smul.addr %s272, 8
        %s274 = smul.addr %s273, 8
        %s275 = scalar_lea.vmem %s4, %s274
      $region44: #{uncertainty_network_forward.1} parent=23 // pred_fallthru
        _
    $region24: #{uncertainty_network_forward.1} parent=5 // pred_fallthru
      _
    %p276 = scmp.le.s32.totalorder 1, %s13
    %p277 = scmp.lt.s32.totalorder %s13, 3
    %p278 = pnand %p276, %p277
    %p279 = pneg %p278
    // Predicated region
    $region45: #{uncertainty_network_forward.1} parent=5 // pred_check
      _
    $region46: #{uncertainty_network_forward.1} parent=5 // pred_check_branch
      %281 = sbr.rel (%p278) target = $region48
    $region47: #{uncertainty_network_forward.1} parent=5 // pred_region
      %s282 = ssub.s32 %s13, 1
      %p283 = scmp.lt.s32.totalorder %s18, 1
      %s284 = scalar_select %p283, %s18, 1
      %s285 = smul.addr %s284, 8
      %s286 = smul.addr %s285, 8
      %s287 = scalar_lea.vmem %s0, %s286
      %p288 = pneg %p39
      %p289 = pneg %p36
      %p290 = scmp.lt.s32.totalorder %s18, 1
      %s291 = scalar_select %p290, %s18, 1
      %s292 = smul.addr %s291, 4
      %s293 = smul.addr %s292, 8
      %s294 = scalar_lea.vmem %s1, %s293
      %p295 = pneg %p65
      %p296 = pneg %p62
      %p297 = scmp.lt.s32.totalorder %s18, 1
      %s298 = scalar_select %p297, %s18, 1
      %s299 = smul.addr %s298, 2
      %s300 = smul.addr %s299, 8
      %s301 = scalar_lea.vmem %s2, %s300
      %p302 = pneg %p91
      %p303 = pneg %p88
      %p304 = scmp.lt.s32.totalorder %s18, 1
      %s305 = scalar_select %p304, %s18, 1
      %s306 = smul.addr %s305, 2
      %s307 = smul.addr %s306, 8
      %s308 = scalar_lea.vmem %s3, %s307
      %p309 = pneg %p117
      %p310 = pneg %p114
      %p311 = scmp.lt.s32.totalorder %s18, 1
      %s312 = scalar_select %p311, %s18, 1
      %s313 = smul.addr %s312, 8
      %s314 = smul.addr %s313, 8
      %s315 = scalar_lea.vmem %s4, %s314
      %p316 = pneg %p143
      %p317 = pneg %p140
      %p318 = pneg %p164
      %p319 = pneg %p161
      %p320 = pneg %p185
      %p321 = pneg %p182
      %p322 = pneg %p211
      %p323 = pneg %p208
      %p324 = scmp.lt.s32.totalorder %s18, 1
      %s325 = scalar_select %p324, %s18, 1
      %s326 = smul.addr %s325, 8
      %s327 = scalar_lea.vmem %s7, %s326
      %p328 = scmp.lt.s32.totalorder %s18, 1
      %s329 = scalar_select %p328, %s18, 1
      %s330 = smul.addr %s329, 8
      %s331 = smul.addr %s330, 8
      %s332 = scalar_lea.vmem %s0, %s331
      %p333 = scmp.lt.s32.totalorder %s18, 1
      %s334 = scalar_select %p333, %s18, 1
      %s335 = smul.addr %s334, 4
      %s336 = smul.addr %s335, 8
      %s337 = scalar_lea.vmem %s1, %s336
      %p338 = scmp.lt.s32.totalorder %s18, 1
      %s339 = scalar_select %p338, %s18, 1
      %s340 = smul.addr %s339, 2
      %s341 = smul.addr %s340, 8
      %s342 = scalar_lea.vmem %s2, %s341
      %p343 = scmp.lt.s32.totalorder %s18, 1
      %s344 = scalar_select %p343, %s18, 1
      %s345 = smul.addr %s344, 2
      %s346 = smul.addr %s345, 8
      %s347 = scalar_lea.vmem %s3, %s346
      %p348 = scmp.lt.s32.totalorder %s18, 1
      %s349 = scalar_select %p348, %s18, 1
      %s350 = smul.addr %s349, 8
      %s351 = smul.addr %s350, 8
      %s352 = scalar_lea.vmem %s4, %s351
      %p353 = scmp.lt.s32.totalorder %s18, 1
      %s354 = scalar_select %p353, %s18, 1
      %s355 = smul.addr %s354, 8
      %s356 = scalar_lea.vmem %s7, %s355
      %v357 = vlaneseq
      %v358 = vand.u32 %v357, 127
      %v359 = vand.u32 %v358, 1
      %vm360 = vcmp.ne.s32.totalorder %v359, 0
      %v361 = vsel %vm360, 1.0, 0.0
      %vm362 = vcmp.ne.s32.totalorder %v359, 1
      %v363 = vsel %vm362, 1.0, 0.0
      %vm364 = vcmp.ge.s32.totalorder %v358, 2
      %v365 = vsel %vm364, 1.0, 0.0
      %vm366 = vcmp.lt.s32.totalorder %v358, 2
      %v367 = vsel %vm366, 1.0, 0.0
      %v368 = vmul.f32 %v365, %v361
      %v369 = vmul.f32 %v365, %v363
      %v370 = vmul.f32 %v367, %v361
      %v371 = vmul.f32 %v367, %v363
      %v372 = vand.u32 %v358, 3
      %vm373 = vcmp.ne.s32.totalorder %v372, 0
      %v374 = vsel %vm373, 1.0, 0.0
      %vm375 = vcmp.ne.s32.totalorder %v372, 3
      %v376 = vsel %vm375, 1.0, 0.0
      %vm377 = vcmp.ge.s32.totalorder %v358, 4
      %v378 = vsel %vm377, 1.0, 0.0
      %vm379 = vcmp.lt.s32.totalorder %v358, 12
      %v380 = vsel %vm379, 1.0, 0.0
      %v381 = vmul.f32 %v378, %v374
      %v382 = vmul.f32 %v378, %v376
      %v383 = vmul.f32 %v380, %v374
      %v384 = vmul.f32 %v380, %v376
      %v385 = vand.u32 %v358, 7
      %vm386 = vcmp.ne.s32.totalorder %v385, 0
      %v387 = vsel %vm386, 1.0, 0.0
      %vm388 = vcmp.ne.s32.totalorder %v385, 7
      %v389 = vsel %vm388, 1.0, 0.0
      %vm390 = vcmp.ge.s32.totalorder %v358, 8
      %v391 = vsel %vm390, 1.0, 0.0
      %vm392 = vcmp.lt.s32.totalorder %v358, 56
      %v393 = vsel %vm392, 1.0, 0.0
      %v394 = vmul.f32 %v391, %v387
      %v395 = vmul.f32 %v391, %v389
      %v396 = vmul.f32 %v393, %v387
      %v397 = vmul.f32 %v393, %v389
      %v398 = vadd.s32 %v358, 128
      %v399 = vand.u32 %v358, 15
      %v400 = vand.u32 %v398, 15
      %vm401 = vcmp.ne.s32.totalorder %v399, 0
      %vm402 = vcmp.ne.s32.totalorder %v400, 0
      %v403 = vsel %vm401, 1.0, 0.0
      %v404 = vsel %vm402, 1.0, 0.0
      %vm405 = vcmp.ne.s32.totalorder %v399, 15
      %vm406 = vcmp.ne.s32.totalorder %v400, 15
      %v407 = vsel %vm405, 1.0, 0.0
      %v408 = vsel %vm406, 1.0, 0.0
      %vm409 = vcmp.ge.s32.totalorder %v358, 16
      %vm410 = vcmp.ge.s32.totalorder %v398, 16
      %v411 = vsel %vm409, 1.0, 0.0
      %v412 = vsel %vm410, 1.0, 0.0
      %vm413 = vcmp.lt.s32.totalorder %v358, 240
      %vm414 = vcmp.lt.s32.totalorder %v398, 240
      %v415 = vsel %vm413, 1.0, 0.0
      %v416 = vsel %vm414, 1.0, 0.0
      %v417 = vmul.f32 %v411, %v403
      %v418 = vmul.f32 %v412, %v404
      %v419 = vmul.f32 %v411, %v407
      %v420 = vmul.f32 %v412, %v408
      %v421 = vmul.f32 %v415, %v403
      %v422 = vmul.f32 %v416, %v404
      %v423 = vmul.f32 %v415, %v407
      %v424 = vmul.f32 %v416, %v408
      %v425 = vadd.s32 %v358, 256
      %v426 = vadd.s32 %v358, 384
      %v427 = vadd.s32 %v358, 512
      %v428 = vadd.s32 %v358, 640
      %v429 = vadd.s32 %v358, 768
      %v430 = vadd.s32 %v358, 896
      %v431 = vand.u32 %v358, 31
      %v432 = vand.u32 %v398, 31
      %v433 = vand.u32 %v425, 31
      %v434 = vand.u32 %v426, 31
      %v435 = vand.u32 %v427, 31
      %v436 = vand.u32 %v428, 31
      %v437 = vand.u32 %v429, 31
      %v438 = vand.u32 %v430, 31
      %vm439 = vcmp.ne.s32.totalorder %v431, 0
      %vm440 = vcmp.ne.s32.totalorder %v432, 0
      %vm441 = vcmp.ne.s32.totalorder %v433, 0
      %vm442 = vcmp.ne.s32.totalorder %v434, 0
      %vm443 = vcmp.ne.s32.totalorder %v435, 0
      %vm444 = vcmp.ne.s32.totalorder %v436, 0
      %vm445 = vcmp.ne.s32.totalorder %v437, 0
      %vm446 = vcmp.ne.s32.totalorder %v438, 0
      %v447 = vsel %vm439, 1.0, 0.0
      %v448 = vsel %vm440, 1.0, 0.0
      %v449 = vsel %vm441, 1.0, 0.0
      %v450 = vsel %vm442, 1.0, 0.0
      %v451 = vsel %vm443, 1.0, 0.0
      %v452 = vsel %vm444, 1.0, 0.0
      %v453 = vsel %vm445, 1.0, 0.0
      %v454 = vsel %vm446, 1.0, 0.0
      %vm455 = vcmp.ne.s32.totalorder %v431, 31
      %vm456 = vcmp.ne.s32.totalorder %v432, 31
      %vm457 = vcmp.ne.s32.totalorder %v433, 31
      %vm458 = vcmp.ne.s32.totalorder %v434, 31
      %vm459 = vcmp.ne.s32.totalorder %v435, 31
      %vm460 = vcmp.ne.s32.totalorder %v436, 31
      %vm461 = vcmp.ne.s32.totalorder %v437, 31
      %vm462 = vcmp.ne.s32.totalorder %v438, 31
      %v463 = vsel %vm455, 1.0, 0.0
      %v464 = vsel %vm456, 1.0, 0.0
      %v465 = vsel %vm457, 1.0, 0.0
      %v466 = vsel %vm458, 1.0, 0.0
      %v467 = vsel %vm459, 1.0, 0.0
      %v468 = vsel %vm460, 1.0, 0.0
      %v469 = vsel %vm461, 1.0, 0.0
      %v470 = vsel %vm462, 1.0, 0.0
      %vm471 = vcmp.ge.s32.totalorder %v358, 32
      %vm472 = vcmp.ge.s32.totalorder %v398, 32
      %vm473 = vcmp.ge.s32.totalorder %v425, 32
      %vm474 = vcmp.ge.s32.totalorder %v426, 32
      %vm475 = vcmp.ge.s32.totalorder %v427, 32
      %vm476 = vcmp.ge.s32.totalorder %v428, 32
      %vm477 = vcmp.ge.s32.totalorder %v429, 32
      %vm478 = vcmp.ge.s32.totalorder %v430, 32
      %v479 = vsel %vm471, 1.0, 0.0
      %v480 = vsel %vm472, 1.0, 0.0
      %v481 = vsel %vm473, 1.0, 0.0
      %v482 = vsel %vm474, 1.0, 0.0
      %v483 = vsel %vm475, 1.0, 0.0
      %v484 = vsel %vm476, 1.0, 0.0
      %v485 = vsel %vm477, 1.0, 0.0
      %v486 = vsel %vm478, 1.0, 0.0
      %vm487 = vcmp.lt.s32.totalorder %v358, 992
      %vm488 = vcmp.lt.s32.totalorder %v398, 992
      %vm489 = vcmp.lt.s32.totalorder %v425, 992
      %vm490 = vcmp.lt.s32.totalorder %v426, 992
      %vm491 = vcmp.lt.s32.totalorder %v427, 992
      %vm492 = vcmp.lt.s32.totalorder %v428, 992
      %vm493 = vcmp.lt.s32.totalorder %v429, 992
      %vm494 = vcmp.lt.s32.totalorder %v430, 992
      %v495 = vsel %vm487, 1.0, 0.0
      %v496 = vsel %vm488, 1.0, 0.0
      %v497 = vsel %vm489, 1.0, 0.0
      %v498 = vsel %vm490, 1.0, 0.0
      %v499 = vsel %vm491, 1.0, 0.0
      %v500 = vsel %vm492, 1.0, 0.0
      %v501 = vsel %vm493, 1.0, 0.0
      %v502 = vsel %vm494, 1.0, 0.0
      %v503 = vmul.f32 %v479, %v447
      %v504 = vmul.f32 %v480, %v448
      %v505 = vmul.f32 %v481, %v449
      %v506 = vmul.f32 %v482, %v450
      %v507 = vmul.f32 %v483, %v451
      %v508 = vmul.f32 %v484, %v452
      %v509 = vmul.f32 %v485, %v453
      %v510 = vmul.f32 %v486, %v454
      %v511 = vmul.f32 %v479, %v463
      %v512 = vmul.f32 %v480, %v464
      %v513 = vmul.f32 %v481, %v465
      %v514 = vmul.f32 %v482, %v466
      %v515 = vmul.f32 %v483, %v467
      %v516 = vmul.f32 %v484, %v468
      %v517 = vmul.f32 %v485, %v469
      %v518 = vmul.f32 %v486, %v470
      %v519 = vmul.f32 %v495, %v447
      %v520 = vmul.f32 %v496, %v448
      %v521 = vmul.f32 %v497, %v449
      %v522 = vmul.f32 %v498, %v450
      %v523 = vmul.f32 %v499, %v451
      %v524 = vmul.f32 %v500, %v452
      %v525 = vmul.f32 %v501, %v453
      %v526 = vmul.f32 %v502, %v454
      %v527 = vmul.f32 %v495, %v463
      %v528 = vmul.f32 %v496, %v464
      %v529 = vmul.f32 %v497, %v465
      %v530 = vmul.f32 %v498, %v466
      %v531 = vmul.f32 %v499, %v467
      %v532 = vmul.f32 %v500, %v468
      %v533 = vmul.f32 %v501, %v469
      %v534 = vmul.f32 %v502, %v470
      %v535 = vld [vmem:[%s332] sm:$0xff]
      %v536 = vld [vmem:[%s332 + $0x8] sm:$0xff]
      %v537 = vld [vmem:[%s332 + $0x10] sm:$0xff]
      %v538 = vld [vmem:[%s332 + $0x18] sm:$0xff]
      %v539 = vld [vmem:[%s332 + $0x20] sm:$0xff]
      %v540 = vld [vmem:[%s332 + $0x28] sm:$0xff]
      %v541 = vld [vmem:[%s332 + $0x30] sm:$0xff]
      %v542 = vld [vmem:[%s332 + $0x38] sm:$0xff]
      %v543 = vld [vmem:[%s6] sm:$0xff]
      %v544 = vld [vmem:[%s6 + $0x8] sm:$0xff]
      %v545 = vld [vmem:[%s6 + $0x10] sm:$0xff]
      %v546 = vld [vmem:[%s6 + $0x18] sm:$0xff]
      %v547 = vld [vmem:[%s6 + $0x20] sm:$0xff]
      %v548 = vld [vmem:[%s6 + $0x28] sm:$0xff]
      %v549 = vld [vmem:[%s6 + $0x30] sm:$0xff]
      %v550 = vld [vmem:[%s6 + $0x38] sm:$0xff]
      %v551 = vld [vmem:[%s6 + $0x40] sm:$0xff]
      %v552 = vld [vmem:[%s6 + $0x48] sm:$0xff]
      %561 = vrot.lane.b32.xlu0 %v535, 3
      %v562 = vpop.permute.xlu0 %561
      %563 = vrot.lane.b32.xlu0 %v536, 3
      %v564 = vpop.permute.xlu0 %563
      %565 = vrot.lane.b32.xlu0 %v537, 3
      %v566 = vpop.permute.xlu0 %565
      %567 = vrot.lane.b32.xlu0 %v538, 3
      %v568 = vpop.permute.xlu0 %567
      %569 = vrot.lane.b32.xlu0 %v539, 3
      %v570 = vpop.permute.xlu0 %569
      %571 = vrot.lane.b32.xlu0 %v540, 3
      %v572 = vpop.permute.xlu0 %571
      %573 = vrot.lane.b32.xlu0 %v541, 3
      %v574 = vpop.permute.xlu0 %573
      %575 = vrot.lane.b32.xlu0 %v542, 3
      %v576 = vpop.permute.xlu0 %575
      %vm585 = vcmask 23552
      %v586 = vsel %vm585, 0.0, %v562
      %v587 = vsel %vm585, 0.0, %v564
      %v588 = vsel %vm585, 0.0, %v566
      %v589 = vsel %vm585, 0.0, %v568
      %v590 = vsel %vm585, 0.0, %v570
      %v591 = vsel %vm585, 0.0, %v572
      %v592 = vsel %vm585, 0.0, %v574
      %v593 = vsel %vm585, 0.0, %v576
      %v594 = vmul.f32 %v586, %v368
      %v595 = vmul.f32 %v587, %v368
      %v596 = vmul.f32 %v588, %v368
      %v597 = vmul.f32 %v589, %v368
      %v598 = vmul.f32 %v590, %v368
      %v599 = vmul.f32 %v591, %v368
      %v600 = vmul.f32 %v592, %v368
      %v601 = vmul.f32 %v593, %v368
      %602 = vrot.lane.b32.xlu0 %v535, 2
      %v603 = vpop.permute.xlu0 %602
      %604 = vrot.lane.b32.xlu0 %v536, 2
      %v605 = vpop.permute.xlu0 %604
      %606 = vrot.lane.b32.xlu0 %v537, 2
      %v607 = vpop.permute.xlu0 %606
      %608 = vrot.lane.b32.xlu0 %v538, 2
      %v609 = vpop.permute.xlu0 %608
      %610 = vrot.lane.b32.xlu0 %v539, 2
      %v611 = vpop.permute.xlu0 %610
      %612 = vrot.lane.b32.xlu0 %v540, 2
      %v613 = vpop.permute.xlu0 %612
      %614 = vrot.lane.b32.xlu0 %v541, 2
      %v615 = vpop.permute.xlu0 %614
      %616 = vrot.lane.b32.xlu0 %v542, 2
      %v617 = vpop.permute.xlu0 %616
      %vm626 = vcmask 15360
      %v627 = vsel %vm626, 0.0, %v603
      %v628 = vsel %vm626, 0.0, %v605
      %v629 = vsel %vm626, 0.0, %v607
      %v630 = vsel %vm626, 0.0, %v609
      %v631 = vsel %vm626, 0.0, %v611
      %v632 = vsel %vm626, 0.0, %v613
      %v633 = vsel %vm626, 0.0, %v615
      %v634 = vsel %vm626, 0.0, %v617
      %v635 = vmul.f32 %v627, %v365
      %v636 = vmul.f32 %v628, %v365
      %v637 = vmul.f32 %v629, %v365
      %v638 = vmul.f32 %v630, %v365
      %v639 = vmul.f32 %v631, %v365
      %v640 = vmul.f32 %v632, %v365
      %v641 = vmul.f32 %v633, %v365
      %v642 = vmul.f32 %v634, %v365
      %643 = vrot.lane.b32.xlu0 %v535, 1
      %v644 = vpop.permute.xlu0 %643
      %645 = vrot.lane.b32.xlu0 %v536, 1
      %v646 = vpop.permute.xlu0 %645
      %647 = vrot.lane.b32.xlu0 %v537, 1
      %v648 = vpop.permute.xlu0 %647
      %649 = vrot.lane.b32.xlu0 %v538, 1
      %v650 = vpop.permute.xlu0 %649
      %651 = vrot.lane.b32.xlu0 %v539, 1
      %v652 = vpop.permute.xlu0 %651
      %653 = vrot.lane.b32.xlu0 %v540, 1
      %v654 = vpop.permute.xlu0 %653
      %655 = vrot.lane.b32.xlu0 %v541, 1
      %v656 = vpop.permute.xlu0 %655
      %657 = vrot.lane.b32.xlu0 %v542, 1
      %v658 = vpop.permute.xlu0 %657
      %vm667 = vcmask 7168
      %v668 = vsel %vm667, 0.0, %v644
      %v669 = vsel %vm667, 0.0, %v646
      %v670 = vsel %vm667, 0.0, %v648
      %v671 = vsel %vm667, 0.0, %v650
      %v672 = vsel %vm667, 0.0, %v652
      %v673 = vsel %vm667, 0.0, %v654
      %v674 = vsel %vm667, 0.0, %v656
      %v675 = vsel %vm667, 0.0, %v658
      %v676 = vmul.f32 %v668, %v369
      %v677 = vmul.f32 %v669, %v369
      %v678 = vmul.f32 %v670, %v369
      %v679 = vmul.f32 %v671, %v369
      %v680 = vmul.f32 %v672, %v369
      %v681 = vmul.f32 %v673, %v369
      %v682 = vmul.f32 %v674, %v369
      %v683 = vmul.f32 %v675, %v369
      %v684 = vmul.f32 %v668, %v361
      %v685 = vmul.f32 %v669, %v361
      %v686 = vmul.f32 %v670, %v361
      %v687 = vmul.f32 %v671, %v361
      %v688 = vmul.f32 %v672, %v361
      %v689 = vmul.f32 %v673, %v361
      %v690 = vmul.f32 %v674, %v361
      %v691 = vmul.f32 %v675, %v361
      %692 = vrot.lane.b32.xlu0 %v535, 127
      %v693 = vpop.permute.xlu0 %692
      %694 = vrot.lane.b32.xlu0 %v536, 127
      %v695 = vpop.permute.xlu0 %694
      %696 = vrot.lane.b32.xlu0 %v537, 127
      %v697 = vpop.permute.xlu0 %696
      %698 = vrot.lane.b32.xlu0 %v538, 127
      %v699 = vpop.permute.xlu0 %698
      %700 = vrot.lane.b32.xlu0 %v539, 127
      %v701 = vpop.permute.xlu0 %700
      %702 = vrot.lane.b32.xlu0 %v540, 127
      %v703 = vpop.permute.xlu0 %702
      %704 = vrot.lane.b32.xlu0 %v541, 127
      %v705 = vpop.permute.xlu0 %704
      %706 = vrot.lane.b32.xlu0 %v542, 127
      %v707 = vpop.permute.xlu0 %706
      %v716 = vsel %vm585, %v693, 0.0
      %v717 = vsel %vm585, %v695, 0.0
      %v718 = vsel %vm585, %v697, 0.0
      %v719 = vsel %vm585, %v699, 0.0
      %v720 = vsel %vm585, %v701, 0.0
      %v721 = vsel %vm585, %v703, 0.0
      %v722 = vsel %vm585, %v705, 0.0
      %v723 = vsel %vm585, %v707, 0.0
      %v724 = vmul.f32 %v716, %v363
      %v725 = vmul.f32 %v717, %v363
      %v726 = vmul.f32 %v718, %v363
      %v727 = vmul.f32 %v719, %v363
      %v728 = vmul.f32 %v720, %v363
      %v729 = vmul.f32 %v721, %v363
      %v730 = vmul.f32 %v722, %v363
      %v731 = vmul.f32 %v723, %v363
      %v732 = vmul.f32 %v716, %v370
      %v733 = vmul.f32 %v717, %v370
      %v734 = vmul.f32 %v718, %v370
      %v735 = vmul.f32 %v719, %v370
      %v736 = vmul.f32 %v720, %v370
      %v737 = vmul.f32 %v721, %v370
      %v738 = vmul.f32 %v722, %v370
      %v739 = vmul.f32 %v723, %v370
      %740 = vrot.lane.b32.xlu0 %v535, 126
      %v741 = vpop.permute.xlu0 %740
      %742 = vrot.lane.b32.xlu0 %v536, 126
      %v743 = vpop.permute.xlu0 %742
      %744 = vrot.lane.b32.xlu0 %v537, 126
      %v745 = vpop.permute.xlu0 %744
      %746 = vrot.lane.b32.xlu0 %v538, 126
      %v747 = vpop.permute.xlu0 %746
      %748 = vrot.lane.b32.xlu0 %v539, 126
      %v749 = vpop.permute.xlu0 %748
      %750 = vrot.lane.b32.xlu0 %v540, 126
      %v751 = vpop.permute.xlu0 %750
      %752 = vrot.lane.b32.xlu0 %v541, 126
      %v753 = vpop.permute.xlu0 %752
      %754 = vrot.lane.b32.xlu0 %v542, 126
      %v755 = vpop.permute.xlu0 %754
      %v764 = vsel %vm626, %v741, 0.0
      %v765 = vsel %vm626, %v743, 0.0
      %v766 = vsel %vm626, %v745, 0.0
      %v767 = vsel %vm626, %v747, 0.0
      %v768 = vsel %vm626, %v749, 0.0
      %v769 = vsel %vm626, %v751, 0.0
      %v770 = vsel %vm626, %v753, 0.0
      %v771 = vsel %vm626, %v755, 0.0
      %v772 = vmul.f32 %v764, %v367
      %v773 = vmul.f32 %v765, %v367
      %v774 = vmul.f32 %v766, %v367
      %v775 = vmul.f32 %v767, %v367
      %v776 = vmul.f32 %v768, %v367
      %v777 = vmul.f32 %v769, %v367
      %v778 = vmul.f32 %v770, %v367
      %v779 = vmul.f32 %v771, %v367
      %780 = vrot.lane.b32.xlu0 %v535, 125
      %v781 = vpop.permute.xlu0 %780
      %782 = vrot.lane.b32.xlu0 %v536, 125
      %v783 = vpop.permute.xlu0 %782
      %784 = vrot.lane.b32.xlu0 %v537, 125
      %v785 = vpop.permute.xlu0 %784
      %786 = vrot.lane.b32.xlu0 %v538, 125
      %v787 = vpop.permute.xlu0 %786
      %788 = vrot.lane.b32.xlu0 %v539, 125
      %v789 = vpop.permute.xlu0 %788
      %790 = vrot.lane.b32.xlu0 %v540, 125
      %v791 = vpop.permute.xlu0 %790
      %792 = vrot.lane.b32.xlu0 %v541, 125
      %v793 = vpop.permute.xlu0 %792
      %794 = vrot.lane.b32.xlu0 %v542, 125
      %v795 = vpop.permute.xlu0 %794
      %v804 = vsel %vm667, %v781, 0.0
      %v805 = vsel %vm667, %v783, 0.0
      %v806 = vsel %vm667, %v785, 0.0
      %v807 = vsel %vm667, %v787, 0.0
      %v808 = vsel %vm667, %v789, 0.0
      %v809 = vsel %vm667, %v791, 0.0
      %v810 = vsel %vm667, %v793, 0.0
      %v811 = vsel %vm667, %v795, 0.0
      %v812 = vmul.f32 %v804, %v371
      %v813 = vmul.f32 %v805, %v371
      %v814 = vmul.f32 %v806, %v371
      %v815 = vmul.f32 %v807, %v371
      %v816 = vmul.f32 %v808, %v371
      %v817 = vmul.f32 %v809, %v371
      %v818 = vmul.f32 %v810, %v371
      %v819 = vmul.f32 %v811, %v371
      %vm820 = vcmask 531456
      %v822 = vsel %vm820, %v547, 0
      %v825 = vsel %vm820, %v552, 0
      %vm827 = vcmask 1040384
      %v829 = vsel %vm827, 1.0, 0
      %831 = vmatprep.subr.mxu0 0.0
      %832 = vmatpush1.msra.mxu0 %v594
      %833 = vmatprep.subr.mxu0 0.0
      %834 = vmatpush1.msra.mxu0 %v595
      %835 = vmatprep.subr.mxu0 0.0
      %836 = vmatpush1.msra.mxu0 %v596
      %837 = vmatprep.subr.mxu0 0.0
      %838 = vmatpush1.msra.mxu0 %v597
      %839 = vmatprep.subr.mxu0 0.0
      %840 = vmatpush1.msra.mxu0 %v598
      %841 = vmatprep.subr.mxu0 0.0
      %842 = vmatpush1.msra.mxu0 %v599
      %843 = vmatprep.subr.mxu0 0.0
      %844 = vmatpush1.msra.mxu0 %v600
      %845 = vmatprep.subr.mxu0 0.0
      %846 = vmatpush1.msra.mxu0 %v601
      %847 = vmatprep.subr.mxu0 0.0
      %848 = vmatpush1.msra.mxu0 %v635
      %849 = vmatprep.subr.mxu0 0.0
      %850 = vmatpush1.msra.mxu0 %v636
      %851 = vmatprep.subr.mxu0 0.0
      %852 = vmatpush1.msra.mxu0 %v637
      %853 = vmatprep.subr.mxu0 0.0
      %854 = vmatpush1.msra.mxu0 %v638
      %855 = vmatprep.subr.mxu0 0.0
      %856 = vmatpush1.msra.mxu0 %v639
      %857 = vmatprep.subr.mxu0 0.0
      %858 = vmatpush1.msra.mxu0 %v640
      %859 = vmatprep.subr.mxu0 0.0
      %860 = vmatpush1.msra.mxu0 %v641
      %861 = vmatprep.subr.mxu0 0.0
      %862 = vmatpush1.msra.mxu0 %v642
      %863 = vmatprep.subr.mxu0 0.0
      %864 = vmatpush1.msra.mxu0 %v676
      %865 = vmatprep.subr.mxu0 0.0
      %866 = vmatpush1.msra.mxu0 %v677
      %867 = vmatprep.subr.mxu0 0.0
      %868 = vmatpush1.msra.mxu0 %v678
      %869 = vmatprep.subr.mxu0 0.0
      %870 = vmatpush1.msra.mxu0 %v679
      %871 = vmatprep.subr.mxu0 0.0
      %872 = vmatpush1.msra.mxu0 %v680
      %873 = vmatprep.subr.mxu0 0.0
      %874 = vmatpush1.msra.mxu0 %v681
      %875 = vmatprep.subr.mxu0 0.0
      %876 = vmatpush1.msra.mxu0 %v682
      %877 = vmatprep.subr.mxu0 0.0
      %878 = vmatpush1.msra.mxu0 %v683
      %879 = vmatprep.subr.mxu0 0.0
      %880 = vmatpush1.msra.mxu0 %v684
      %881 = vmatprep.subr.mxu0 0.0
      %882 = vmatpush1.msra.mxu0 %v685
      %883 = vmatprep.subr.mxu0 0.0
      %884 = vmatpush1.msra.mxu0 %v686
      %885 = vmatprep.subr.mxu0 0.0
      %886 = vmatpush1.msra.mxu0 %v687
      %887 = vmatprep.subr.mxu0 0.0
      %888 = vmatpush1.msra.mxu0 %v688
      %889 = vmatprep.subr.mxu0 0.0
      %890 = vmatpush1.msra.mxu0 %v689
      %891 = vmatprep.subr.mxu0 0.0
      %892 = vmatpush1.msra.mxu0 %v690
      %893 = vmatprep.subr.mxu0 0.0
      %894 = vmatpush1.msra.mxu0 %v691
      %895 = vmatprep.mubr.f32.mxu0 %v544
      %896 = vmatmul.mubr.f32.gmra.mrb[0].mxu0 %v543
      %v897 = vpop.f32.mrb[0].mxu0
      %v898 = vadd.f32 0.0, %v897
      %v899 = vpop.f32.mrb[0].mxu0
      %900 = vmatprep.mubr.f32.mxu0 %v549
      %901 = vmatmul.mubr.f32.gmra.mrb[0].mxu0 %v548
      %v902 = vpop.f32.mrb[0].mxu0
      %v903 = vadd.f32 0.0, %v902
      %v904 = vpop.f32.mrb[0].mxu0
      %905 = vdwg.mxu0
      %906 = vmatprep.subr.mxu0 0.0
      %907 = vmatpush1.msra.mxu0 %v535
      %908 = vmatprep.subr.mxu0 0.0
      %909 = vmatpush1.msra.mxu0 %v536
      %910 = vmatprep.subr.mxu0 0.0
      %911 = vmatpush1.msra.mxu0 %v537
      %912 = vmatprep.subr.mxu0 0.0
      %913 = vmatpush1.msra.mxu0 %v538
      %914 = vmatprep.subr.mxu0 0.0
      %915 = vmatpush1.msra.mxu0 %v539
      %916 = vmatprep.subr.mxu0 0.0
      %917 = vmatpush1.msra.mxu0 %v540
      %918 = vmatprep.subr.mxu0 0.0
      %919 = vmatpush1.msra.mxu0 %v541
      %920 = vmatprep.subr.mxu0 0.0
      %921 = vmatpush1.msra.mxu0 %v542
      %922 = vmatprep.subr.mxu0 0.0
      %923 = vmatpush1.msra.mxu0 %v724
      %924 = vmatprep.subr.mxu0 0.0
      %925 = vmatpush1.msra.mxu0 %v725
      %926 = vmatprep.subr.mxu0 0.0
      %927 = vmatpush1.msra.mxu0 %v726
      %928 = vmatprep.subr.mxu0 0.0
      %929 = vmatpush1.msra.mxu0 %v727
      %930 = vmatprep.subr.mxu0 0.0
      %931 = vmatpush1.msra.mxu0 %v728
      %932 = vmatprep.subr.mxu0 0.0
      %933 = vmatpush1.msra.mxu0 %v729
      %934 = vmatprep.subr.mxu0 0.0
      %935 = vmatpush1.msra.mxu0 %v730
      %936 = vmatprep.subr.mxu0 0.0
      %937 = vmatpush1.msra.mxu0 %v731
      %938 = vmatprep.subr.mxu0 0.0
      %939 = vmatpush1.msra.mxu0 %v732
      %940 = vmatprep.subr.mxu0 0.0
      %941 = vmatpush1.msra.mxu0 %v733
      %942 = vmatprep.subr.mxu0 0.0
      %943 = vmatpush1.msra.mxu0 %v734
      %944 = vmatprep.subr.mxu0 0.0
      %945 = vmatpush1.msra.mxu0 %v735
      %946 = vmatprep.subr.mxu0 0.0
      %947 = vmatpush1.msra.mxu0 %v736
      %948 = vmatprep.subr.mxu0 0.0
      %949 = vmatpush1.msra.mxu0 %v737
      %950 = vmatprep.subr.mxu0 0.0
      %951 = vmatpush1.msra.mxu0 %v738
      %952 = vmatprep.subr.mxu0 0.0
      %953 = vmatpush1.msra.mxu0 %v739
      %954 = vmatprep.subr.mxu0 0.0
      %955 = vmatpush1.msra.mxu0 %v772
      %956 = vmatprep.subr.mxu0 0.0
      %957 = vmatpush1.msra.mxu0 %v773
      %958 = vmatprep.subr.mxu0 0.0
      %959 = vmatpush1.msra.mxu0 %v774
      %960 = vmatprep.subr.mxu0 0.0
      %961 = vmatpush1.msra.mxu0 %v775
      %962 = vmatprep.subr.mxu0 0.0
      %963 = vmatpush1.msra.mxu0 %v776
      %964 = vmatprep.subr.mxu0 0.0
      %965 = vmatpush1.msra.mxu0 %v777
      %966 = vmatprep.subr.mxu0 0.0
      %967 = vmatpush1.msra.mxu0 %v778
      %968 = vmatprep.subr.mxu0 0.0
      %969 = vmatpush1.msra.mxu0 %v779
      %970 = vmatprep.mubr.f32.mxu0 %v546
      %971 = vmatmul.mubr.f32.gmra.mrb[0].mxu0 %v545
      %v972 = vpop.f32.mrb[0].mxu0
      %v973 = vadd.f32 %v898, %v972
      %v974 = vpop.f32.mrb[0].mxu0
      %975 = vmatprep.mubr.f32.mxu0 %v551
      %976 = vmatmul.mubr.f32.gmra.mrb[0].mxu0 %v550
      %v977 = vpop.f32.mrb[0].mxu0
      %v978 = vadd.f32 %v903, %v977
      %v979 = vpop.f32.mrb[0].mxu0
      %980 = vdwg.mxu0
      %981 = vmatprep.subr.mxu0 0.0
      %982 = vmatpush1.msra.mxu0 %v812
      %983 = vmatprep.subr.mxu0 0.0
      %984 = vmatpush1.msra.mxu0 %v813
      %985 = vmatprep.subr.mxu0 0.0
      %986 = vmatpush1.msra.mxu0 %v814
      %987 = vmatprep.subr.mxu0 0.0
      %988 = vmatpush1.msra.mxu0 %v815
      %989 = vmatprep.subr.mxu0 0.0
      %990 = vmatpush1.msra.mxu0 %v816
      %991 = vmatprep.subr.mxu0 0.0
      %992 = vmatpush1.msra.mxu0 %v817
      %993 = vmatprep.subr.mxu0 0.0
      %994 = vmatpush1.msra.mxu0 %v818
      %995 = vmatprep.subr.mxu0 0.0
      %996 = vmatpush1.msra.mxu0 %v819
      %997 = vmatprep.subr.mxu0 0.0
      %998 = vmatpush1.msra.mxu0 %v829
      %999 = vmatprep.subr.mxu0 0.0
      %1000 = vmatpush1.msra.mxu0 0.0
      %1001 = vmatprep.subr.mxu0 0.0
      %1002 = vmatpush1.msra.mxu0 0.0
      %1003 = vmatprep.subr.mxu0 0.0
      %1004 = vmatpush1.msra.mxu0 0.0
      %1005 = vmatprep.subr.mxu0 0.0
      %1006 = vmatpush1.msra.mxu0 0.0
      %1007 = vmatprep.subr.mxu0 0.0
      %1008 = vmatpush1.msra.mxu0 0.0
      %1009 = vmatprep.subr.mxu0 0.0
      %1010 = vmatpush1.msra.mxu0 0.0
      %1011 = vmatprep.subr.mxu0 0.0
      %1012 = vmatpush1.msra.mxu0 0.0
      %1013 = vmatprep.subr.mxu0 0.0
      %1014 = vmatpush1.msra.mxu0 0.0
      %1015 = vmatprep.subr.mxu0 0.0
      %1016 = vmatpush1.msra.mxu0 0.0
      %1017 = vmatprep.subr.mxu0 0.0
      %1018 = vmatpush1.msra.mxu0 0.0
      %1019 = vmatprep.subr.mxu0 0.0
      %1020 = vmatpush1.msra.mxu0 0.0
      %1021 = vmatprep.subr.mxu0 0.0
      %1022 = vmatpush1.msra.mxu0 0.0
      %1023 = vmatprep.subr.mxu0 0.0
      %1024 = vmatpush1.msra.mxu0 0.0
      %1025 = vmatprep.subr.mxu0 0.0
      %1026 = vmatpush1.msra.mxu0 0.0
      %1027 = vmatprep.subr.mxu0 0.0
      %1028 = vmatpush1.msra.mxu0 0.0
      %1029 = vmatprep.subr.mxu0 0.0
      %1030 = vmatpush1.msra.mxu0 0.0
      %1031 = vmatprep.subr.mxu0 0.0
      %1032 = vmatpush1.msra.mxu0 0.0
      %1033 = vmatprep.subr.mxu0 0.0
      %1034 = vmatpush1.msra.mxu0 0.0
      %1035 = vmatprep.subr.mxu0 0.0
      %1036 = vmatpush1.msra.mxu0 0.0
      %1037 = vmatprep.subr.mxu0 0.0
      %1038 = vmatpush1.msra.mxu0 0.0
      %1039 = vmatprep.subr.mxu0 0.0
      %1040 = vmatpush1.msra.mxu0 0.0
      %1041 = vmatprep.subr.mxu0 0.0
      %1042 = vmatpush1.msra.mxu0 0.0
      %1043 = vmatprep.subr.mxu0 0.0
      %1044 = vmatpush1.msra.mxu0 0.0
      %1045 = vmatprep.mubr.f32.mxu0 0.0
      %1046 = vmatmul.mubr.f32.gmra.mrb[0].mxu0 %v822
      %v1047 = vpop.f32.mrb[0].mxu0
      %v1048 = vadd.f32 %v973, %v1047
      %v1049 = vpop.f32.mrb[0].mxu0
      %1050 = vmatprep.mubr.f32.mxu0 0.0
      %1051 = vmatmul.mubr.f32.gmra.mrb[0].mxu0 %v825
      %v1052 = vpop.f32.mrb[0].mxu0
      %v1053 = vadd.f32 %v978, %v1052
      %v1054 = vpop.f32.mrb[0].mxu0
      %1055 = vdwg.mxu0
      %v1056 = vmul.f32 %v1048, 0.5
      %v1057 = vmul.f32 %v1053, 0.5
      %v1058 = vmul.f32 %v1048, 0.70710677
      %v1059 = vmul.f32 %v1053, 0.70710677
      %vm1060 = vcmp.ge.f32.partialorder %v1058, 0.0
      %vm1061 = vcmp.ge.f32.partialorder %v1059, 0.0
      %v1062 = vsel %vm1060, 1.0, -1.0
      %v1063 = vsel %vm1061, 1.0, -1.0
      %v1064 = vand.u32 2147483647, %v1058
      %v1065 = vand.u32 2147483647, %v1059
      %v1066 = vmul.f32 %v1064, 0.3275911
      %v1067 = vmul.f32 %v1065, 0.3275911
      %v1068 = vadd.f32 %v1066, 1.0
      %v1069 = vadd.f32 %v1067, 1.0
      %v1070 = vrcp.pop %v1068
      %v1071 = vmul.f32 1.0, %v1070
      %v1072 = vrcp.pop %v1069
      %v1073 = vmul.f32 1.0, %v1072
      %v1074 = vmul.f32 %v1071, 1.0614054
      %v1075 = vmul.f32 %v1073, 1.0614054
      %v1076 = vadd.f32 %v1074, -1.4531521
      %v1077 = vadd.f32 %v1075, -1.4531521
      %v1078 = vmul.f32 %v1076, %v1071
      %v1079 = vmul.f32 %v1077, %v1073
      %v1080 = vadd.f32 %v1078, 1.4214138
      %v1081 = vadd.f32 %v1079, 1.4214138
      %v1082 = vmul.f32 %v1080, %v1071
      %v1083 = vmul.f32 %v1081, %v1073
      %v1084 = vadd.f32 %v1082, -0.28449672
      %v1085 = vadd.f32 %v1083, -0.28449672
      %v1086 = vmul.f32 %v1084, %v1071
      %v1087 = vmul.f32 %v1085, %v1073
      %v1088 = vadd.f32 %v1086, 0.2548296
      %v1089 = vadd.f32 %v1087, 0.2548296
      %v1090 = vmul.f32 %v1088, %v1071
      %v1091 = vmul.f32 %v1089, %v1073
      %v1092 = vsub.f32 0.0, %v1064
      %v1093 = vsub.f32 0.0, %v1065
      %v1094 = vmul.f32 %v1092, %v1064
      %v1095 = vmul.f32 %v1093, %v1065
      %v1096 = vmul.f32 %v1094, 1.442695
      %v1097 = vpow.pop %v1096
      %v1098 = vmul.f32 %v1095, 1.442695
      %v1099 = vpow.pop %v1098
      %v1100 = vmul.f32 %v1090, %v1097
      %v1101 = vmul.f32 %v1091, %v1099
      %v1102 = vsub.f32 1.0, %v1100
      %v1103 = vsub.f32 1.0, %v1101
      %v1104 = vmul.f32 %v1062, %v1102
      %v1105 = vmul.f32 %v1063, %v1103
      %v1106 = vadd.f32 %v1104, 1.0
      %v1107 = vadd.f32 %v1105, 1.0
      %v1108 = vmul.f32 %v1056, %v1106
      %v1109 = vmul.f32 %v1057, %v1107
      %v1110 = vld [vmem:[%s6 + $0x50] sm:$0x3f]
      %v1111 = vld [vmem:[%s6 + $0x58] sm:$0x3f]
      %1114 = vrot.lane.b32.xlu0 %v1108, 3
      %v1115 = vpop.permute.xlu0 %1114
      %1116 = vrot.lane.b32.xlu0 %v1109, 3
      %v1117 = vpop.permute.xlu0 %1116
      %v1120 = vsel %vm585, 0.0, %v1115
      %v1121 = vsel %vm585, 0.0, %v1117
      %v1122 = vmul.f32 %v1120, %v368
      %v1123 = vmul.f32 %v1121, %v368
      %1124 = vrot.lane.b32.xlu0 %v1108, 2
      %v1125 = vpop.permute.xlu0 %1124
      %1126 = vrot.lane.b32.xlu0 %v1109, 2
      %v1127 = vpop.permute.xlu0 %1126
      %v1130 = vsel %vm626, 0.0, %v1125
      %v1131 = vsel %vm626, 0.0, %v1127
      %v1132 = vmul.f32 %v1130, %v365
      %v1133 = vmul.f32 %v1131, %v365
      %1134 = vrot.lane.b32.xlu0 %v1108, 1
      %v1135 = vpop.permute.xlu0 %1134
      %1136 = vrot.lane.b32.xlu0 %v1109, 1
      %v1137 = vpop.permute.xlu0 %1136
      %v1140 = vsel %vm667, 0.0, %v1135
      %v1141 = vsel %vm667, 0.0, %v1137
      %v1142 = vmul.f32 %v1140, %v369
      %v1143 = vmul.f32 %v1141, %v369
      %v1144 = vmul.f32 %v1140, %v361
      %v1145 = vmul.f32 %v1141, %v361
      %1146 = vrot.lane.b32.xlu0 %v1108, 127
      %v1147 = vpop.permute.xlu0 %1146
      %1148 = vrot.lane.b32.xlu0 %v1109, 127
      %v1149 = vpop.permute.xlu0 %1148
      %v1152 = vsel %vm585, %v1147, 0.0
      %v1153 = vsel %vm585, %v1149, 0.0
      %v1154 = vmul.f32 %v1152, %v363
      %v1155 = vmul.f32 %v1153, %v363
      %v1156 = vmul.f32 %v1152, %v370
      %v1157 = vmul.f32 %v1153, %v370
      %1158 = vrot.lane.b32.xlu0 %v1108, 126
      %v1159 = vpop.permute.xlu0 %1158
      %1160 = vrot.lane.b32.xlu0 %v1109, 126
      %v1161 = vpop.permute.xlu0 %1160
      %v1164 = vsel %vm626, %v1159, 0.0
      %v1165 = vsel %vm626, %v1161, 0.0
      %v1166 = vmul.f32 %v1164, %v367
      %v1167 = vmul.f32 %v1165, %v367
      %1168 = vrot.lane.b32.xlu0 %v1108, 125
      %v1169 = vpop.permute.xlu0 %1168
      %1170 = vrot.lane.b32.xlu0 %v1109, 125
      %v1171 = vpop.permute.xlu0 %1170
      %v1174 = vsel %vm667, %v1169, 0.0
      %v1175 = vsel %vm667, %v1171, 0.0
      %v1176 = vmul.f32 %v1174, %v371
      %v1177 = vmul.f32 %v1175, %v371
      %vm1178 = vcmask 138240
      %v1180 = vsel %vm1178, %v1111, 0
      %1182 = vmatprep.subr.mxu0 0.0
      %1183 = vmatpush1.msra.mxu0 %v1122
      %1184 = vmatprep.subr.mxu0 0.0
      %1185 = vmatpush1.msra.mxu0 %v1123
      %1186 = vmatprep.subr.mxu0 0.0
      %1187 = vmatpush1.msra.mxu0 %v1132
      %1188 = vmatprep.subr.mxu0 0.0
      %1189 = vmatpush1.msra.mxu0 %v1133
      %1190 = vmatprep.subr.mxu0 0.0
      %1191 = vmatpush1.msra.mxu0 %v1142
      %1192 = vmatprep.subr.mxu0 0.0
      %1193 = vmatpush1.msra.mxu0 %v1143
      %1194 = vmatprep.subr.mxu0 0.0
      %1195 = vmatpush1.msra.mxu0 %v1144
      %1196 = vmatprep.subr.mxu0 0.0
      %1197 = vmatpush1.msra.mxu0 %v1145
      %1198 = vmatprep.subr.mxu0 0.0
      %1199 = vmatpush1.msra.mxu0 %v1108
      %1200 = vmatprep.subr.mxu0 0.0
      %1201 = vmatpush1.msra.mxu0 %v1109
      %1202 = vmatprep.subr.mxu0 0.0
      %1203 = vmatpush1.msra.mxu0 %v1154
      %1204 = vmatprep.subr.mxu0 0.0
      %1205 = vmatpush1.msra.mxu0 %v1155
      %1206 = vmatprep.subr.mxu0 0.0
      %1207 = vmatpush1.msra.mxu0 %v1156
      %1208 = vmatprep.subr.mxu0 0.0
      %1209 = vmatpush1.msra.mxu0 %v1157
      %1210 = vmatprep.subr.mxu0 0.0
      %1211 = vmatpush1.msra.mxu0 %v1166
      %1212 = vmatprep.subr.mxu0 0.0
      %1213 = vmatpush1.msra.mxu0 %v1167
      %1214 = vmatprep.subr.mxu0 0.0
      %1215 = vmatpush1.msra.mxu0 %v1176
      %1216 = vmatprep.subr.mxu0 0.0
      %1217 = vmatpush1.msra.mxu0 %v1177
      %1218 = vmatprep.subr.mxu0 0.0
      %1219 = vmatpush1.msra.mxu0 %v829
      %1220 = vmatprep.subr.mxu0 0.0
      %1221 = vmatpush1.msra.mxu0 0.0
      %1222 = vmatprep.subr.mxu0 0.0
      %1223 = vmatpush1.msra.mxu0 0.0
      %1224 = vmatprep.subr.mxu0 0.0
      %1225 = vmatpush1.msra.mxu0 0.0
      %1226 = vmatprep.subr.mxu0 0.0
      %1227 = vmatpush1.msra.mxu0 0.0
      %1228 = vmatprep.subr.mxu0 0.0
      %1229 = vmatpush1.msra.mxu0 0.0
      %1230 = vmatprep.subr.mxu0 0.0
      %1231 = vmatpush1.msra.mxu0 0.0
      %1232 = vmatprep.subr.mxu0 0.0
      %1233 = vmatpush1.msra.mxu0 0.0
      %1234 = vmatprep.subr.mxu0 0.0
      %1235 = vmatpush1.msra.mxu0 0.0
      %1236 = vmatprep.subr.mxu0 0.0
      %1237 = vmatpush1.msra.mxu0 0.0
      %1238 = vmatprep.subr.mxu0 0.0
      %1239 = vmatpush1.msra.mxu0 0.0
      %1240 = vmatprep.subr.mxu0 0.0
      %1241 = vmatpush1.msra.mxu0 0.0
      %1242 = vmatprep.subr.mxu0 0.0
      %1243 = vmatpush1.msra.mxu0 0.0
      %1244 = vmatprep.subr.mxu0 0.0
      %1245 = vmatpush1.msra.mxu0 0.0
      %1246 = vmatprep.mubr.f32.mxu0 %v1180
      %1247 = vmatmul.mubr.f32.gmra.mrb[0].mxu0 %v1110
      %v1248 = vpop.f32.mrb[0].mxu0
      %v1249 = vadd.f32 0.0, %v1248
      %v1250 = vpop.f32.mrb[0].mxu0
      %1251 = vdwg.mxu0
      %v1252 = vld [vmem:[%s6 + $0x78] sm:$0x3]
      %1254 = vrot.lane.b32.xlu0 %v1249, 3
      %v1255 = vpop.permute.xlu0 %1254
      %v1257 = vsel %vm585, 0.0, %v1255
      %v1258 = vmul.f32 %v1257, %v368
      %1259 = vrot.lane.b32.xlu0 %v1249, 2
      %v1260 = vpop.permute.xlu0 %1259
      %v1262 = vsel %vm626, 0.0, %v1260
      %v1263 = vmul.f32 %v1262, %v365
      %1264 = vrot.lane.b32.xlu0 %v1249, 1
      %v1265 = vpop.permute.xlu0 %1264
      %v1267 = vsel %vm667, 0.0, %v1265
      %v1268 = vmul.f32 %v1267, %v369
      %v1269 = vmul.f32 %v1267, %v361
      %1270 = vrot.lane.b32.xlu0 %v1249, 127
      %v1271 = vpop.permute.xlu0 %1270
      %v1273 = vsel %vm585, %v1271, 0.0
      %v1274 = vmul.f32 %v1273, %v363
      %v1275 = vmul.f32 %v1273, %v370
      %1276 = vrot.lane.b32.xlu0 %v1249, 126
      %v1277 = vpop.permute.xlu0 %1276
      %v1279 = vsel %vm626, %v1277, 0.0
      %v1280 = vmul.f32 %v1279, %v367
      %1281 = vrot.lane.b32.xlu0 %v1249, 125
      %v1282 = vpop.permute.xlu0 %1281
      %v1284 = vsel %vm667, %v1282, 0.0
      %v1285 = vmul.f32 %v1284, %v371
      %v1287 = vrot.slane %v1263, 2
      %v1290 = vrot.slane %v1268, 4
      %v1293 = vrot.slane %v1269, 6
      %v1296 = vrot.slane %v1274, 2
      %v1299 = vrot.slane %v1275, 4
      %v1302 = vrot.slane %v1280, 6
      %vm1304 = vcmask 1045504
      %v1305 = vsel %vm1304, %v1258, %v1287
      %vm1306 = vcmask 1043456
      %v1307 = vsel %vm1306, %v1287, %v1290
      %vm1308 = vcmask 1041408
      %v1309 = vsel %vm1308, %v1290, %v1293
      %v1310 = vsel %vm1304, %v1249, %v1296
      %v1311 = vsel %vm1306, %v1296, %v1299
      %v1312 = vsel %vm1308, %v1299, %v1302
      %v1313 = vsel %vm1304, %v1285, 1.0
      %vm1314 = vcmask 449536
      %v1316 = vsel %vm1314, %v1252, 0
      %vm1318 = vcmask 1046528
      %v1320 = vsel %vm1318, %v1313, 0
      %1322 = vmatprep.subr.mxu0 0.0
      %1323 = vmatpush1.msra.mxu0 %v1305
      %1324 = vmatprep.subr.mxu0 0.0
      %1325 = vmatpush1.msra.mxu0 %v1307
      %1326 = vmatprep.subr.mxu0 0.0
      %1327 = vmatpush1.msra.mxu0 %v1309
      %1328 = vmatprep.subr.mxu0 0.0
      %1329 = vmatpush1.msra.mxu0 %v1310
      %1330 = vmatprep.subr.mxu0 0.0
      %1331 = vmatpush1.msra.mxu0 %v1311
      %1332 = vmatprep.subr.mxu0 0.0
      %1333 = vmatpush1.msra.mxu0 %v1312
      %1334 = vmatprep.subr.mxu0 0.0
      %1335 = vmatpush1.msra.mxu0 %v1320
      %1336 = vmatprep.subr.mxu0 0.0
      %1337 = vmatpush1.msra.mxu0 0.0
      %1338 = vmatprep.subr.mxu0 0.0
      %1339 = vmatpush1.msra.mxu0 0.0
      %1340 = vmatprep.subr.mxu0 0.0
      %1341 = vmatpush1.msra.mxu0 0.0
      %1342 = vmatprep.subr.mxu0 0.0
      %1343 = vmatpush1.msra.mxu0 0.0
      %1344 = vmatprep.subr.mxu0 0.0
      %1345 = vmatpush1.msra.mxu0 0.0
      %1346 = vmatprep.subr.mxu0 0.0
      %1347 = vmatpush1.msra.mxu0 0.0
      %1348 = vmatprep.subr.mxu0 0.0
      %1349 = vmatpush1.msra.mxu0 0.0
      %1350 = vmatprep.subr.mxu0 0.0
      %1351 = vmatpush1.msra.mxu0 0.0
      %1352 = vmatprep.subr.mxu0 0.0
      %1353 = vmatpush1.msra.mxu0 0.0
      %1354 = vmatprep.subr.mxu0 0.0
      %1355 = vmatpush1.msra.mxu0 0.0
      %1356 = vmatprep.subr.mxu0 0.0
      %1357 = vmatpush1.msra.mxu0 0.0
      %1358 = vmatprep.subr.mxu0 0.0
      %1359 = vmatpush1.msra.mxu0 0.0
      %1360 = vmatprep.subr.mxu0 0.0
      %1361 = vmatpush1.msra.mxu0 0.0
      %1362 = vmatprep.subr.mxu0 0.0
      %1363 = vmatpush1.msra.mxu0 0.0
      %1364 = vmatprep.subr.mxu0 0.0
      %1365 = vmatpush1.msra.mxu0 0.0
      %1366 = vmatprep.subr.mxu0 0.0
      %1367 = vmatpush1.msra.mxu0 0.0
      %1368 = vmatprep.subr.mxu0 0.0
      %1369 = vmatpush1.msra.mxu0 0.0
      %1370 = vmatprep.subr.mxu0 0.0
      %1371 = vmatpush1.msra.mxu0 0.0
      %1372 = vmatprep.subr.mxu0 0.0
      %1373 = vmatpush1.msra.mxu0 0.0
      %1374 = vmatprep.subr.mxu0 0.0
      %1375 = vmatpush1.msra.mxu0 0.0
      %1376 = vmatprep.subr.mxu0 0.0
      %1377 = vmatpush1.msra.mxu0 0.0
      %1378 = vmatprep.subr.mxu0 0.0
      %1379 = vmatpush1.msra.mxu0 0.0
      %1380 = vmatprep.subr.mxu0 0.0
      %1381 = vmatpush1.msra.mxu0 0.0
      %1382 = vmatprep.subr.mxu0 0.0
      %1383 = vmatpush1.msra.mxu0 0.0
      %1384 = vmatprep.subr.mxu0 0.0
      %1385 = vmatpush1.msra.mxu0 0.0
      %1386 = vmatprep.mubr.f32.mxu0 0.0
      %1387 = vmatmul.mubr.f32.gmra.mrb[0].mxu0 %v1316
      %v1388 = vpop.f32.mrb[0].mxu0
      %v1389 = vadd.f32 0.0, %v1388
      %v1390 = vpop.f32.mrb[0].mxu0
      %1391 = vdwg.mxu0
      %v1392 = vld [vmem:[%s337] sm:$0xff]
      %v1393 = vld [vmem:[%s337 + $0x8] sm:$0xff]
      %v1394 = vld [vmem:[%s337 + $0x10] sm:$0xff]
      %v1395 = vld [vmem:[%s337 + $0x18] sm:$0xff]
      %v1396 = vld [vmem:[%s6 + $0xa0] sm:$0xff]
      %v1397 = vld [vmem:[%s6 + $0xa8] sm:$0xff]
      %v1398 = vld [vmem:[%s6 + $0xb0] sm:$0xff]
      %v1399 = vld [vmem:[%s6 + $0xc8] sm:$0xff]
      %v1400 = vld [vmem:[%s6 + $0xd0] sm:$0xff]
      %v1401 = vld [vmem:[%s6 + $0xd8] sm:$0xff]
      %1406 = vrot.lane.b32.xlu0 %v1392, 5
      %v1407 = vpop.permute.xlu0 %1406
      %1408 = vrot.lane.b32.xlu0 %v1393, 5
      %v1409 = vpop.permute.xlu0 %1408
      %1410 = vrot.lane.b32.xlu0 %v1394, 5
      %v1411 = vpop.permute.xlu0 %1410
      %1412 = vrot.lane.b32.xlu0 %v1395, 5
      %v1413 = vpop.permute.xlu0 %1412
      %vm1418 = vcmask 39936
      %v1419 = vsel %vm1418, 0.0, %v1407
      %v1420 = vsel %vm1418, 0.0, %v1409
      %v1421 = vsel %vm1418, 0.0, %v1411
      %v1422 = vsel %vm1418, 0.0, %v1413
      %v1423 = vmul.f32 %v1419, %v381
      %v1424 = vmul.f32 %v1420, %v381
      %v1425 = vmul.f32 %v1421, %v381
      %v1426 = vmul.f32 %v1422, %v381
      %1427 = vrot.lane.b32.xlu0 %v1392, 4
      %v1428 = vpop.permute.xlu0 %1427
      %1429 = vrot.lane.b32.xlu0 %v1393, 4
      %v1430 = vpop.permute.xlu0 %1429
      %1431 = vrot.lane.b32.xlu0 %v1394, 4
      %v1432 = vpop.permute.xlu0 %1431
      %1433 = vrot.lane.b32.xlu0 %v1395, 4
      %v1434 = vpop.permute.xlu0 %1433
      %vm1439 = vcmask 31744
      %v1440 = vsel %vm1439, 0.0, %v1428
      %v1441 = vsel %vm1439, 0.0, %v1430
      %v1442 = vsel %vm1439, 0.0, %v1432
      %v1443 = vsel %vm1439, 0.0, %v1434
      %v1444 = vmul.f32 %v1440, %v378
      %v1445 = vmul.f32 %v1441, %v378
      %v1446 = vmul.f32 %v1442, %v378
      %v1447 = vmul.f32 %v1443, %v378
      %1448 = vrot.lane.b32.xlu0 %v1392, 3
      %v1449 = vpop.permute.xlu0 %1448
      %1450 = vrot.lane.b32.xlu0 %v1393, 3
      %v1451 = vpop.permute.xlu0 %1450
      %1452 = vrot.lane.b32.xlu0 %v1394, 3
      %v1453 = vpop.permute.xlu0 %1452
      %1454 = vrot.lane.b32.xlu0 %v1395, 3
      %v1455 = vpop.permute.xlu0 %1454
      %v1460 = vsel %vm585, 0.0, %v1449
      %v1461 = vsel %vm585, 0.0, %v1451
      %v1462 = vsel %vm585, 0.0, %v1453
      %v1463 = vsel %vm585, 0.0, %v1455
      %v1464 = vmul.f32 %v1460, %v382
      %v1465 = vmul.f32 %v1461, %v382
      %v1466 = vmul.f32 %v1462, %v382
      %v1467 = vmul.f32 %v1463, %v382
      %1468 = vrot.lane.b32.xlu0 %v1392, 1
      %v1469 = vpop.permute.xlu0 %1468
      %1470 = vrot.lane.b32.xlu0 %v1393, 1
      %v1471 = vpop.permute.xlu0 %1470
      %1472 = vrot.lane.b32.xlu0 %v1394, 1
      %v1473 = vpop.permute.xlu0 %1472
      %1474 = vrot.lane.b32.xlu0 %v1395, 1
      %v1475 = vpop.permute.xlu0 %1474
      %v1480 = vsel %vm667, 0.0, %v1469
      %v1481 = vsel %vm667, 0.0, %v1471
      %v1482 = vsel %vm667, 0.0, %v1473
      %v1483 = vsel %vm667, 0.0, %v1475
      %v1484 = vmul.f32 %v1480, %v374
      %v1485 = vmul.f32 %v1481, %v374
      %v1486 = vmul.f32 %v1482, %v374
      %v1487 = vmul.f32 %v1483, %v374
      %1488 = vrot.lane.b32.xlu0 %v1392, 127
      %v1489 = vpop.permute.xlu0 %1488
      %1490 = vrot.lane.b32.xlu0 %v1393, 127
      %v1491 = vpop.permute.xlu0 %1490
      %1492 = vrot.lane.b32.xlu0 %v1394, 127
      %v1493 = vpop.permute.xlu0 %1492
      %1494 = vrot.lane.b32.xlu0 %v1395, 127
      %v1495 = vpop.permute.xlu0 %1494
      %vm1500 = vcmask 121856
      %v1501 = vsel %vm1500, %v1489, 0.0
      %v1502 = vsel %vm1500, %v1491, 0.0
      %v1503 = vsel %vm1500, %v1493, 0.0
      %v1504 = vsel %vm1500, %v1495, 0.0
      %v1505 = vmul.f32 %v1501, %v376
      %v1506 = vmul.f32 %v1502, %v376
      %v1507 = vmul.f32 %v1503, %v376
      %v1508 = vmul.f32 %v1504, %v376
      %1509 = vrot.lane.b32.xlu0 %v1392, 125
      %v1510 = vpop.permute.xlu0 %1509
      %1511 = vrot.lane.b32.xlu0 %v1393, 125
      %v1512 = vpop.permute.xlu0 %1511
      %1513 = vrot.lane.b32.xlu0 %v1394, 125
      %v1514 = vpop.permute.xlu0 %1513
      %1515 = vrot.lane.b32.xlu0 %v1395, 125
      %v1516 = vpop.permute.xlu0 %1515
      %vm1521 = vcmask 105472
      %v1522 = vsel %vm1521, %v1510, 0.0
      %v1523 = vsel %vm1521, %v1512, 0.0
      %v1524 = vsel %vm1521, %v1514, 0.0
      %v1525 = vsel %vm1521, %v1516, 0.0
      %v1526 = vmul.f32 %v1522, %v383
      %v1527 = vmul.f32 %v1523, %v383
      %v1528 = vmul.f32 %v1524, %v383
      %v1529 = vmul.f32 %v1525, %v383
      %1530 = vrot.lane.b32.xlu0 %v1392, 124
      %v1531 = vpop.permute.xlu0 %1530
      %1532 = vrot.lane.b32.xlu0 %v1393, 124
      %v1533 = vpop.permute.xlu0 %1532
      %1534 = vrot.lane.b32.xlu0 %v1394, 124
      %v1535 = vpop.permute.xlu0 %1534
      %1536 = vrot.lane.b32.xlu0 %v1395, 124
      %v1537 = vpop.permute.xlu0 %1536
      %vm1542 = vcmask 97280
      %v1543 = vsel %vm1542, %v1531, 0.0
      %v1544 = vsel %vm1542, %v1533, 0.0
      %v1545 = vsel %vm1542, %v1535, 0.0
      %v1546 = vsel %vm1542, %v1537, 0.0
      %v1547 = vmul.f32 %v1543, %v380
      %v1548 = vmul.f32 %v1544, %v380
      %v1549 = vmul.f32 %v1545, %v380
      %v1550 = vmul.f32 %v1546, %v380
      %1551 = vrot.lane.b32.xlu0 %v1392, 123
      %v1552 = vpop.permute.xlu0 %1551
      %1553 = vrot.lane.b32.xlu0 %v1393, 123
      %v1554 = vpop.permute.xlu0 %1553
      %1555 = vrot.lane.b32.xlu0 %v1394, 123
      %v1556 = vpop.permute.xlu0 %1555
      %1557 = vrot.lane.b32.xlu0 %v1395, 123
      %v1558 = vpop.permute.xlu0 %1557
      %vm1563 = vcmask 89088
      %v1564 = vsel %vm1563, %v1552, 0.0
      %v1565 = vsel %vm1563, %v1554, 0.0
      %v1566 = vsel %vm1563, %v1556, 0.0
      %v1567 = vsel %vm1563, %v1558, 0.0
      %v1568 = vmul.f32 %v1564, %v384
      %v1569 = vmul.f32 %v1565, %v384
      %v1570 = vmul.f32 %v1566, %v384
      %v1571 = vmul.f32 %v1567, %v384
      %vm1572 = vcmask 269312
      %v1574 = vsel %vm1572, %v1398, 0
      %v1577 = vsel %vm1572, %v1401, 0
      %1579 = vmatprep.subr.mxu0 0.0
      %1580 = vmatpush1.msra.mxu0 %v1423
      %1581 = vmatprep.subr.mxu0 0.0
      %1582 = vmatpush1.msra.mxu0 %v1424
      %1583 = vmatprep.subr.mxu0 0.0
      %1584 = vmatpush1.msra.mxu0 %v1425
      %1585 = vmatprep.subr.mxu0 0.0
      %1586 = vmatpush1.msra.mxu0 %v1426
      %1587 = vmatprep.subr.mxu0 0.0
      %1588 = vmatpush1.msra.mxu0 %v1444
      %1589 = vmatprep.subr.mxu0 0.0
      %1590 = vmatpush1.msra.mxu0 %v1445
      %1591 = vmatprep.subr.mxu0 0.0
      %1592 = vmatpush1.msra.mxu0 %v1446
      %1593 = vmatprep.subr.mxu0 0.0
      %1594 = vmatpush1.msra.mxu0 %v1447
      %1595 = vmatprep.subr.mxu0 0.0
      %1596 = vmatpush1.msra.mxu0 %v1464
      %1597 = vmatprep.subr.mxu0 0.0
      %1598 = vmatpush1.msra.mxu0 %v1465
      %1599 = vmatprep.subr.mxu0 0.0
      %1600 = vmatpush1.msra.mxu0 %v1466
      %1601 = vmatprep.subr.mxu0 0.0
      %1602 = vmatpush1.msra.mxu0 %v1467
      %1603 = vmatprep.subr.mxu0 0.0
      %1604 = vmatpush1.msra.mxu0 %v1484
      %1605 = vmatprep.subr.mxu0 0.0
      %1606 = vmatpush1.msra.mxu0 %v1485
      %1607 = vmatprep.subr.mxu0 0.0
      %1608 = vmatpush1.msra.mxu0 %v1486
      %1609 = vmatprep.subr.mxu0 0.0
      %1610 = vmatpush1.msra.mxu0 %v1487
      %1611 = vmatprep.subr.mxu0 0.0
      %1612 = vmatpush1.msra.mxu0 %v1392
      %1613 = vmatprep.subr.mxu0 0.0
      %1614 = vmatpush1.msra.mxu0 %v1393
      %1615 = vmatprep.subr.mxu0 0.0
      %1616 = vmatpush1.msra.mxu0 %v1394
      %1617 = vmatprep.subr.mxu0 0.0
      %1618 = vmatpush1.msra.mxu0 %v1395
      %1619 = vmatprep.subr.mxu0 0.0
      %1620 = vmatpush1.msra.mxu0 %v1505
      %1621 = vmatprep.subr.mxu0 0.0
      %1622 = vmatpush1.msra.mxu0 %v1506
      %1623 = vmatprep.subr.mxu0 0.0
      %1624 = vmatpush1.msra.mxu0 %v1507
      %1625 = vmatprep.subr.mxu0 0.0
      %1626 = vmatpush1.msra.mxu0 %v1508
      %1627 = vmatprep.subr.mxu0 0.0
      %1628 = vmatpush1.msra.mxu0 %v1526
      %1629 = vmatprep.subr.mxu0 0.0
      %1630 = vmatpush1.msra.mxu0 %v1527
      %1631 = vmatprep.subr.mxu0 0.0
      %1632 = vmatpush1.msra.mxu0 %v1528
      %1633 = vmatprep.subr.mxu0 0.0
      %1634 = vmatpush1.msra.mxu0 %v1529
      %1635 = vmatprep.subr.mxu0 0.0
      %1636 = vmatpush1.msra.mxu0 %v1547
      %1637 = vmatprep.subr.mxu0 0.0
      %1638 = vmatpush1.msra.mxu0 %v1548
      %1639 = vmatprep.subr.mxu0 0.0
      %1640 = vmatpush1.msra.mxu0 %v1549
      %1641 = vmatprep.subr.mxu0 0.0
      %1642 = vmatpush1.msra.mxu0 %v1550
      %1643 = vmatprep.mubr.f32.mxu0 %v1397
      %1644 = vmatmul.mubr.f32.gmra.mrb[0].mxu0 %v1396
      %v1645 = vpop.f32.mrb[0].mxu0
      %v1646 = vadd.f32 0.0, %v1645
      %v1647 = vpop.f32.mrb[0].mxu0
      %1648 = vmatprep.mubr.f32.mxu0 %v1400
      %1649 = vmatmul.mubr.f32.gmra.mrb[0].mxu0 %v1399
      %v1650 = vpop.f32.mrb[0].mxu0
      %v1651 = vadd.f32 0.0, %v1650
      %v1652 = vpop.f32.mrb[0].mxu0
      %1653 = vdwg.mxu0
      %1654 = vmatprep.subr.mxu0 0.0
      %1655 = vmatpush1.msra.mxu0 %v1568
      %1656 = vmatprep.subr.mxu0 0.0
      %1657 = vmatpush1.msra.mxu0 %v1569
      %1658 = vmatprep.subr.mxu0 0.0
      %1659 = vmatpush1.msra.mxu0 %v1570
      %1660 = vmatprep.subr.mxu0 0.0
      %1661 = vmatpush1.msra.mxu0 %v1571
      %1662 = vmatprep.subr.mxu0 0.0
      %1663 = vmatpush1.msra.mxu0 %v829
      %1664 = vmatprep.subr.mxu0 0.0
      %1665 = vmatpush1.msra.mxu0 0.0
      %1666 = vmatprep.subr.mxu0 0.0
      %1667 = vmatpush1.msra.mxu0 0.0
      %1668 = vmatprep.subr.mxu0 0.0
      %1669 = vmatpush1.msra.mxu0 0.0
      %1670 = vmatprep.subr.mxu0 0.0
      %1671 = vmatpush1.msra.mxu0 0.0
      %1672 = vmatprep.subr.mxu0 0.0
      %1673 = vmatpush1.msra.mxu0 0.0
      %1674 = vmatprep.subr.mxu0 0.0
      %1675 = vmatpush1.msra.mxu0 0.0
      %1676 = vmatprep.subr.mxu0 0.0
      %1677 = vmatpush1.msra.mxu0 0.0
      %1678 = vmatprep.subr.mxu0 0.0
      %1679 = vmatpush1.msra.mxu0 0.0
      %1680 = vmatprep.subr.mxu0 0.0
      %1681 = vmatpush1.msra.mxu0 0.0
      %1682 = vmatprep.subr.mxu0 0.0
      %1683 = vmatpush1.msra.mxu0 0.0
      %1684 = vmatprep.subr.mxu0 0.0
      %1685 = vmatpush1.msra.mxu0 0.0
      %1686 = vmatprep.subr.mxu0 0.0
      %1687 = vmatpush1.msra.mxu0 0.0
      %1688 = vmatprep.subr.mxu0 0.0
      %1689 = vmatpush1.msra.mxu0 0.0
      %1690 = vmatprep.subr.mxu0 0.0
      %1691 = vmatpush1.msra.mxu0 0.0
      %1692 = vmatprep.subr.mxu0 0.0
      %1693 = vmatpush1.msra.mxu0 0.0
      %1694 = vmatprep.subr.mxu0 0.0
      %1695 = vmatpush1.msra.mxu0 0.0
      %1696 = vmatprep.subr.mxu0 0.0
      %1697 = vmatpush1.msra.mxu0 0.0
      %1698 = vmatprep.subr.mxu0 0.0
      %1699 = vmatpush1.msra.mxu0 0.0
      %1700 = vmatprep.subr.mxu0 0.0
      %1701 = vmatpush1.msra.mxu0 0.0
      %1702 = vmatprep.subr.mxu0 0.0
      %1703 = vmatpush1.msra.mxu0 0.0
      %1704 = vmatprep.subr.mxu0 0.0
      %1705 = vmatpush1.msra.mxu0 0.0
      %1706 = vmatprep.subr.mxu0 0.0
      %1707 = vmatpush1.msra.mxu0 0.0
      %1708 = vmatprep.subr.mxu0 0.0
      %1709 = vmatpush1.msra.mxu0 0.0
      %1710 = vmatprep.subr.mxu0 0.0
      %1711 = vmatpush1.msra.mxu0 0.0
      %1712 = vmatprep.subr.mxu0 0.0
      %1713 = vmatpush1.msra.mxu0 0.0
      %1714 = vmatprep.subr.mxu0 0.0
      %1715 = vmatpush1.msra.mxu0 0.0
      %1716 = vmatprep.subr.mxu0 0.0
      %1717 = vmatpush1.msra.mxu0 0.0
      %1718 = vmatprep.mubr.f32.mxu0 0.0
      %1719 = vmatmul.mubr.f32.gmra.mrb[0].mxu0 %v1574
      %v1720 = vpop.f32.mrb[0].mxu0
      %v1721 = vadd.f32 %v1646, %v1720
      %v1722 = vpop.f32.mrb[0].mxu0
      %1723 = vmatprep.mubr.f32.mxu0 0.0
      %1724 = vmatmul.mubr.f32.gmra.mrb[0].mxu0 %v1577
      %v1725 = vpop.f32.mrb[0].mxu0
      %v1726 = vadd.f32 %v1651, %v1725
      %v1727 = vpop.f32.mrb[0].mxu0
      %1728 = vdwg.mxu0
      %v1729 = vmul.f32 %v1721, 0.5
      %v1730 = vmul.f32 %v1726, 0.5
      %v1731 = vmul.f32 %v1721, 0.70710677
      %v1732 = vmul.f32 %v1726, 0.70710677
      %vm1733 = vcmp.ge.f32.partialorder %v1731, 0.0
      %vm1734 = vcmp.ge.f32.partialorder %v1732, 0.0
      %v1735 = vsel %vm1733, 1.0, -1.0
      %v1736 = vsel %vm1734, 1.0, -1.0
      %v1737 = vand.u32 2147483647, %v1731
      %v1738 = vand.u32 2147483647, %v1732
      %v1739 = vmul.f32 %v1737, 0.3275911
      %v1740 = vmul.f32 %v1738, 0.3275911
      %v1741 = vadd.f32 %v1739, 1.0
      %v1742 = vadd.f32 %v1740, 1.0
      %v1743 = vrcp.pop %v1741
      %v1744 = vmul.f32 1.0, %v1743
      %v1745 = vrcp.pop %v1742
      %v1746 = vmul.f32 1.0, %v1745
      %v1747 = vmul.f32 %v1744, 1.0614054
      %v1748 = vmul.f32 %v1746, 1.0614054
      %v1749 = vadd.f32 %v1747, -1.4531521
      %v1750 = vadd.f32 %v1748, -1.4531521
      %v1751 = vmul.f32 %v1749, %v1744
      %v1752 = vmul.f32 %v1750, %v1746
      %v1753 = vadd.f32 %v1751, 1.4214138
      %v1754 = vadd.f32 %v1752, 1.4214138
      %v1755 = vmul.f32 %v1753, %v1744
      %v1756 = vmul.f32 %v1754, %v1746
      %v1757 = vadd.f32 %v1755, -0.28449672
      %v1758 = vadd.f32 %v1756, -0.28449672
      %v1759 = vmul.f32 %v1757, %v1744
      %v1760 = vmul.f32 %v1758, %v1746
      %v1761 = vadd.f32 %v1759, 0.2548296
      %v1762 = vadd.f32 %v1760, 0.2548296
      %v1763 = vmul.f32 %v1761, %v1744
      %v1764 = vmul.f32 %v1762, %v1746
      %v1765 = vsub.f32 0.0, %v1737
      %v1766 = vsub.f32 0.0, %v1738
      %v1767 = vmul.f32 %v1765, %v1737
      %v1768 = vmul.f32 %v1766, %v1738
      %v1769 = vmul.f32 %v1767, 1.442695
      %v1770 = vpow.pop %v1769
      %v1771 = vmul.f32 %v1768, 1.442695
      %v1772 = vpow.pop %v1771
      %v1773 = vmul.f32 %v1763, %v1770
      %v1774 = vmul.f32 %v1764, %v1772
      %v1775 = vsub.f32 1.0, %v1773
      %v1776 = vsub.f32 1.0, %v1774
      %v1777 = vmul.f32 %v1735, %v1775
      %v1778 = vmul.f32 %v1736, %v1776
      %v1779 = vadd.f32 %v1777, 1.0
      %v1780 = vadd.f32 %v1778, 1.0
      %v1781 = vmul.f32 %v1729, %v1779
      %v1782 = vmul.f32 %v1730, %v1780
      %v1783 = vld [vmem:[%s6 + $0xf0] sm:$0x3f]
      %v1784 = vld [vmem:[%s6 + $0xf8] sm:$0x3f]
      %1787 = vrot.lane.b32.xlu0 %v1781, 5
      %v1788 = vpop.permute.xlu0 %1787
      %1789 = vrot.lane.b32.xlu0 %v1782, 5
      %v1790 = vpop.permute.xlu0 %1789
      %v1793 = vsel %vm1418, 0.0, %v1788
      %v1794 = vsel %vm1418, 0.0, %v1790
      %v1795 = vmul.f32 %v1793, %v381
      %v1796 = vmul.f32 %v1794, %v381
      %1797 = vrot.lane.b32.xlu0 %v1781, 4
      %v1798 = vpop.permute.xlu0 %1797
      %1799 = vrot.lane.b32.xlu0 %v1782, 4
      %v1800 = vpop.permute.xlu0 %1799
      %v1803 = vsel %vm1439, 0.0, %v1798
      %v1804 = vsel %vm1439, 0.0, %v1800
      %v1805 = vmul.f32 %v1803, %v378
      %v1806 = vmul.f32 %v1804, %v378
      %1807 = vrot.lane.b32.xlu0 %v1781, 3
      %v1808 = vpop.permute.xlu0 %1807
      %1809 = vrot.lane.b32.xlu0 %v1782, 3
      %v1810 = vpop.permute.xlu0 %1809
      %v1813 = vsel %vm585, 0.0, %v1808
      %v1814 = vsel %vm585, 0.0, %v1810
      %v1815 = vmul.f32 %v1813, %v382
      %v1816 = vmul.f32 %v1814, %v382
      %1817 = vrot.lane.b32.xlu0 %v1781, 1
      %v1818 = vpop.permute.xlu0 %1817
      %1819 = vrot.lane.b32.xlu0 %v1782, 1
      %v1820 = vpop.permute.xlu0 %1819
      %v1823 = vsel %vm667, 0.0, %v1818
      %v1824 = vsel %vm667, 0.0, %v1820
      %v1825 = vmul.f32 %v1823, %v374
      %v1826 = vmul.f32 %v1824, %v374
      %1827 = vrot.lane.b32.xlu0 %v1781, 127
      %v1828 = vpop.permute.xlu0 %1827
      %1829 = vrot.lane.b32.xlu0 %v1782, 127
      %v1830 = vpop.permute.xlu0 %1829
      %v1833 = vsel %vm1500, %v1828, 0.0
      %v1834 = vsel %vm1500, %v1830, 0.0
      %v1835 = vmul.f32 %v1833, %v376
      %v1836 = vmul.f32 %v1834, %v376
      %1837 = vrot.lane.b32.xlu0 %v1781, 125
      %v1838 = vpop.permute.xlu0 %1837
      %1839 = vrot.lane.b32.xlu0 %v1782, 125
      %v1840 = vpop.permute.xlu0 %1839
      %v1843 = vsel %vm1521, %v1838, 0.0
      %v1844 = vsel %vm1521, %v1840, 0.0
      %v1845 = vmul.f32 %v1843, %v383
      %v1846 = vmul.f32 %v1844, %v383
      %1847 = vrot.lane.b32.xlu0 %v1781, 124
      %v1848 = vpop.permute.xlu0 %1847
      %1849 = vrot.lane.b32.xlu0 %v1782, 124
      %v1850 = vpop.permute.xlu0 %1849
      %v1853 = vsel %vm1542, %v1848, 0.0
      %v1854 = vsel %vm1542, %v1850, 0.0
      %v1855 = vmul.f32 %v1853, %v380
      %v1856 = vmul.f32 %v1854, %v380
      %1857 = vrot.lane.b32.xlu0 %v1781, 123
      %v1858 = vpop.permute.xlu0 %1857
      %1859 = vrot.lane.b32.xlu0 %v1782, 123
      %v1860 = vpop.permute.xlu0 %1859
      %v1863 = vsel %vm1563, %v1858, 0.0
      %v1864 = vsel %vm1563, %v1860, 0.0
      %v1865 = vmul.f32 %v1863, %v384
      %v1866 = vmul.f32 %v1864, %v384
      %v1868 = vsel %vm1178, %v1784, 0
      %1870 = vmatprep.subr.mxu0 0.0
      %1871 = vmatpush1.msra.mxu0 %v1795
      %1872 = vmatprep.subr.mxu0 0.0
      %1873 = vmatpush1.msra.mxu0 %v1796
      %1874 = vmatprep.subr.mxu0 0.0
      %1875 = vmatpush1.msra.mxu0 %v1805
      %1876 = vmatprep.subr.mxu0 0.0
      %1877 = vmatpush1.msra.mxu0 %v1806
      %1878 = vmatprep.subr.mxu0 0.0
      %1879 = vmatpush1.msra.mxu0 %v1815
      %1880 = vmatprep.subr.mxu0 0.0
      %1881 = vmatpush1.msra.mxu0 %v1816
      %1882 = vmatprep.subr.mxu0 0.0
      %1883 = vmatpush1.msra.mxu0 %v1825
      %1884 = vmatprep.subr.mxu0 0.0
      %1885 = vmatpush1.msra.mxu0 %v1826
      %1886 = vmatprep.subr.mxu0 0.0
      %1887 = vmatpush1.msra.mxu0 %v1781
      %1888 = vmatprep.subr.mxu0 0.0
      %1889 = vmatpush1.msra.mxu0 %v1782
      %1890 = vmatprep.subr.mxu0 0.0
      %1891 = vmatpush1.msra.mxu0 %v1835
      %1892 = vmatprep.subr.mxu0 0.0
      %1893 = vmatpush1.msra.mxu0 %v1836
      %1894 = vmatprep.subr.mxu0 0.0
      %1895 = vmatpush1.msra.mxu0 %v1845
      %1896 = vmatprep.subr.mxu0 0.0
      %1897 = vmatpush1.msra.mxu0 %v1846
      %1898 = vmatprep.subr.mxu0 0.0
      %1899 = vmatpush1.msra.mxu0 %v1855
      %1900 = vmatprep.subr.mxu0 0.0
      %1901 = vmatpush1.msra.mxu0 %v1856
      %1902 = vmatprep.subr.mxu0 0.0
      %1903 = vmatpush1.msra.mxu0 %v1865
      %1904 = vmatprep.subr.mxu0 0.0
      %1905 = vmatpush1.msra.mxu0 %v1866
      %1906 = vmatprep.subr.mxu0 0.0
      %1907 = vmatpush1.msra.mxu0 %v829
      %1908 = vmatprep.subr.mxu0 0.0
      %1909 = vmatpush1.msra.mxu0 0.0
      %1910 = vmatprep.subr.mxu0 0.0
      %1911 = vmatpush1.msra.mxu0 0.0
      %1912 = vmatprep.subr.mxu0 0.0
      %1913 = vmatpush1.msra.mxu0 0.0
      %1914 = vmatprep.subr.mxu0 0.0
      %1915 = vmatpush1.msra.mxu0 0.0
      %1916 = vmatprep.subr.mxu0 0.0
      %1917 = vmatpush1.msra.mxu0 0.0
      %1918 = vmatprep.subr.mxu0 0.0
      %1919 = vmatpush1.msra.mxu0 0.0
      %1920 = vmatprep.subr.mxu0 0.0
      %1921 = vmatpush1.msra.mxu0 0.0
      %1922 = vmatprep.subr.mxu0 0.0
      %1923 = vmatpush1.msra.mxu0 0.0
      %1924 = vmatprep.subr.mxu0 0.0
      %1925 = vmatpush1.msra.mxu0 0.0
      %1926 = vmatprep.subr.mxu0 0.0
      %1927 = vmatpush1.msra.mxu0 0.0
      %1928 = vmatprep.subr.mxu0 0.0
      %1929 = vmatpush1.msra.mxu0 0.0
      %1930 = vmatprep.subr.mxu0 0.0
      %1931 = vmatpush1.msra.mxu0 0.0
      %1932 = vmatprep.subr.mxu0 0.0
      %1933 = vmatpush1.msra.mxu0 0.0
      %1934 = vmatprep.mubr.f32.mxu0 %v1868
      %1935 = vmatmul.mubr.f32.gmra.mrb[0].mxu0 %v1783
      %v1936 = vpop.f32.mrb[0].mxu0
      %v1937 = vadd.f32 0.0, %v1936
      %v1938 = vpop.f32.mrb[0].mxu0
      %1939 = vdwg.mxu0
      %v1940 = vld [vmem:[%s6 + $0x118] sm:$0x3]
      %1942 = vrot.lane.b32.xlu0 %v1937, 5
      %v1943 = vpop.permute.xlu0 %1942
      %v1945 = vsel %vm1418, 0.0, %v1943
      %v1946 = vmul.f32 %v1945, %v381
      %1947 = vrot.lane.b32.xlu0 %v1937, 4
      %v1948 = vpop.permute.xlu0 %1947
      %v1950 = vsel %vm1439, 0.0, %v1948
      %v1951 = vmul.f32 %v1950, %v378
      %1952 = vrot.lane.b32.xlu0 %v1937, 3
      %v1953 = vpop.permute.xlu0 %1952
      %v1955 = vsel %vm585, 0.0, %v1953
      %v1956 = vmul.f32 %v1955, %v382
      %1957 = vrot.lane.b32.xlu0 %v1937, 1
      %v1958 = vpop.permute.xlu0 %1957
      %v1960 = vsel %vm667, 0.0, %v1958
      %v1961 = vmul.f32 %v1960, %v374
      %1962 = vrot.lane.b32.xlu0 %v1937, 127
      %v1963 = vpop.permute.xlu0 %1962
      %v1965 = vsel %vm1500, %v1963, 0.0
      %v1966 = vmul.f32 %v1965, %v376
      %1967 = vrot.lane.b32.xlu0 %v1937, 125
      %v1968 = vpop.permute.xlu0 %1967
      %v1970 = vsel %vm1521, %v1968, 0.0
      %v1971 = vmul.f32 %v1970, %v383
      %1972 = vrot.lane.b32.xlu0 %v1937, 124
      %v1973 = vpop.permute.xlu0 %1972
      %v1975 = vsel %vm1542, %v1973, 0.0
      %v1976 = vmul.f32 %v1975, %v380
      %1977 = vrot.lane.b32.xlu0 %v1937, 123
      %v1978 = vpop.permute.xlu0 %1977
      %v1980 = vsel %vm1563, %v1978, 0.0
      %v1981 = vmul.f32 %v1980, %v384
      %v1983 = vrot.slane %v1951, 2
      %v1986 = vrot.slane %v1956, 4
      %v1989 = vrot.slane %v1961, 6
      %v1992 = vrot.slane %v1966, 2
      %v1995 = vrot.slane %v1971, 4
      %v1998 = vrot.slane %v1976, 6
      %v2000 = vsel %vm1304, %v1946, %v1983
      %v2001 = vsel %vm1306, %v1983, %v1986
      %v2002 = vsel %vm1308, %v1986, %v1989
      %v2003 = vsel %vm1304, %v1937, %v1992
      %v2004 = vsel %vm1306, %v1992, %v1995
      %v2005 = vsel %vm1308, %v1995, %v1998
      %v2006 = vsel %vm1304, %v1981, 1.0
      %v2008 = vsel %vm1314, %v1940, 0
      %v2011 = vsel %vm1318, %v2006, 0
      %2013 = vmatprep.subr.mxu0 0.0
      %2014 = vmatpush1.msra.mxu0 %v2000
      %2015 = vmatprep.subr.mxu0 0.0
      %2016 = vmatpush1.msra.mxu0 %v2001
      %2017 = vmatprep.subr.mxu0 0.0
      %2018 = vmatpush1.msra.mxu0 %v2002
      %2019 = vmatprep.subr.mxu0 0.0
      %2020 = vmatpush1.msra.mxu0 %v2003
      %2021 = vmatprep.subr.mxu0 0.0
      %2022 = vmatpush1.msra.mxu0 %v2004
      %2023 = vmatprep.subr.mxu0 0.0
      %2024 = vmatpush1.msra.mxu0 %v2005
      %2025 = vmatprep.subr.mxu0 0.0
      %2026 = vmatpush1.msra.mxu0 %v2011
      %2027 = vmatprep.subr.mxu0 0.0
      %2028 = vmatpush1.msra.mxu0 0.0
      %2029 = vmatprep.subr.mxu0 0.0
      %2030 = vmatpush1.msra.mxu0 0.0
      %2031 = vmatprep.subr.mxu0 0.0
      %2032 = vmatpush1.msra.mxu0 0.0
      %2033 = vmatprep.subr.mxu0 0.0
      %2034 = vmatpush1.msra.mxu0 0.0
      %2035 = vmatprep.subr.mxu0 0.0
      %2036 = vmatpush1.msra.mxu0 0.0
      %2037 = vmatprep.subr.mxu0 0.0
      %2038 = vmatpush1.msra.mxu0 0.0
      %2039 = vmatprep.subr.mxu0 0.0
      %2040 = vmatpush1.msra.mxu0 0.0
      %2041 = vmatprep.subr.mxu0 0.0
      %2042 = vmatpush1.msra.mxu0 0.0
      %2043 = vmatprep.subr.mxu0 0.0
      %2044 = vmatpush1.msra.mxu0 0.0
      %2045 = vmatprep.subr.mxu0 0.0
      %2046 = vmatpush1.msra.mxu0 0.0
      %2047 = vmatprep.subr.mxu0 0.0
      %2048 = vmatpush1.msra.mxu0 0.0
      %2049 = vmatprep.subr.mxu0 0.0
      %2050 = vmatpush1.msra.mxu0 0.0
      %2051 = vmatprep.subr.mxu0 0.0
      %2052 = vmatpush1.msra.mxu0 0.0
      %2053 = vmatprep.subr.mxu0 0.0
      %2054 = vmatpush1.msra.mxu0 0.0
      %2055 = vmatprep.subr.mxu0 0.0
      %2056 = vmatpush1.msra.mxu0 0.0
      %2057 = vmatprep.subr.mxu0 0.0
      %2058 = vmatpush1.msra.mxu0 0.0
      %2059 = vmatprep.subr.mxu0 0.0
      %2060 = vmatpush1.msra.mxu0 0.0
      %2061 = vmatprep.subr.mxu0 0.0
      %2062 = vmatpush1.msra.mxu0 0.0
      %2063 = vmatprep.subr.mxu0 0.0
      %2064 = vmatpush1.msra.mxu0 0.0
      %2065 = vmatprep.subr.mxu0 0.0
      %2066 = vmatpush1.msra.mxu0 0.0
      %2067 = vmatprep.subr.mxu0 0.0
      %2068 = vmatpush1.msra.mxu0 0.0
      %2069 = vmatprep.subr.mxu0 0.0
      %2070 = vmatpush1.msra.mxu0 0.0
      %2071 = vmatprep.subr.mxu0 0.0
      %2072 = vmatpush1.msra.mxu0 0.0
      %2073 = vmatprep.subr.mxu0 0.0
      %2074 = vmatpush1.msra.mxu0 0.0
      %2075 = vmatprep.subr.mxu0 0.0
      %2076 = vmatpush1.msra.mxu0 0.0
      %2077 = vmatprep.mubr.f32.mxu0 0.0
      %2078 = vmatmul.mubr.f32.gmra.mrb[0].mxu0 %v2008
      %v2079 = vpop.f32.mrb[0].mxu0
      %v2080 = vadd.f32 0.0, %v2079
      %v2081 = vpop.f32.mrb[0].mxu0
      %2082 = vdwg.mxu0
      %v2083 = vld [vmem:[%s342] sm:$0xff]
      %v2084 = vld [vmem:[%s342 + $0x8] sm:$0xff]
      %v2085 = vld [vmem:[%s6 + $0x140] sm:$0xff]
      %v2086 = vld [vmem:[%s6 + $0x148] sm:$0xff]
      %2089 = vrot.lane.b32.xlu0 %v2083, 9
      %v2090 = vpop.permute.xlu0 %2089
      %2091 = vrot.lane.b32.xlu0 %v2084, 9
      %v2092 = vpop.permute.xlu0 %2091
      %vm2095 = vcmask 72704
      %v2096 = vsel %vm2095, 0.0, %v2090
      %v2097 = vsel %vm2095, 0.0, %v2092
      %v2098 = vmul.f32 %v2096, %v394
      %v2099 = vmul.f32 %v2097, %v394
      %2100 = vrot.lane.b32.xlu0 %v2083, 8
      %v2101 = vpop.permute.xlu0 %2100
      %2102 = vrot.lane.b32.xlu0 %v2084, 8
      %v2103 = vpop.permute.xlu0 %2102
      %vm2106 = vcmask 64512
      %v2107 = vsel %vm2106, 0.0, %v2101
      %v2108 = vsel %vm2106, 0.0, %v2103
      %v2109 = vmul.f32 %v2107, %v391
      %v2110 = vmul.f32 %v2108, %v391
      %2111 = vrot.lane.b32.xlu0 %v2083, 7
      %v2112 = vpop.permute.xlu0 %2111
      %2113 = vrot.lane.b32.xlu0 %v2084, 7
      %v2114 = vpop.permute.xlu0 %2113
      %vm2117 = vcmask 56320
      %v2118 = vsel %vm2117, 0.0, %v2112
      %v2119 = vsel %vm2117, 0.0, %v2114
      %v2120 = vmul.f32 %v2118, %v395
      %v2121 = vmul.f32 %v2119, %v395
      %2122 = vrot.lane.b32.xlu0 %v2083, 1
      %v2123 = vpop.permute.xlu0 %2122
      %2124 = vrot.lane.b32.xlu0 %v2084, 1
      %v2125 = vpop.permute.xlu0 %2124
      %v2128 = vsel %vm667, 0.0, %v2123
      %v2129 = vsel %vm667, 0.0, %v2125
      %v2130 = vmul.f32 %v2128, %v387
      %v2131 = vmul.f32 %v2129, %v387
      %2132 = vrot.lane.b32.xlu0 %v2083, 127
      %v2133 = vpop.permute.xlu0 %2132
      %2134 = vrot.lane.b32.xlu0 %v2084, 127
      %v2135 = vpop.permute.xlu0 %2134
      %vm2138 = vcmask 515072
      %v2139 = vsel %vm2138, %v2133, 0.0
      %v2140 = vsel %vm2138, %v2135, 0.0
      %v2141 = vmul.f32 %v2139, %v389
      %v2142 = vmul.f32 %v2140, %v389
      %2143 = vrot.lane.b32.xlu0 %v2083, 121
      %v2144 = vpop.permute.xlu0 %2143
      %2145 = vrot.lane.b32.xlu0 %v2084, 121
      %v2146 = vpop.permute.xlu0 %2145
      %vm2149 = vcmask 465920
      %v2150 = vsel %vm2149, %v2144, 0.0
      %v2151 = vsel %vm2149, %v2146, 0.0
      %v2152 = vmul.f32 %v2150, %v396
      %v2153 = vmul.f32 %v2151, %v396
      %2154 = vrot.lane.b32.xlu0 %v2083, 120
      %v2155 = vpop.permute.xlu0 %2154
      %2156 = vrot.lane.b32.xlu0 %v2084, 120
      %v2157 = vpop.permute.xlu0 %2156
      %vm2160 = vcmask 457728
      %v2161 = vsel %vm2160, %v2155, 0.0
      %v2162 = vsel %vm2160, %v2157, 0.0
      %v2163 = vmul.f32 %v2161, %v393
      %v2164 = vmul.f32 %v2162, %v393
      %2165 = vrot.lane.b32.xlu0 %v2083, 119
      %v2166 = vpop.permute.xlu0 %2165
      %2167 = vrot.lane.b32.xlu0 %v2084, 119
      %v2168 = vpop.permute.xlu0 %2167
      %v2171 = vsel %vm1314, %v2166, 0.0
      %v2172 = vsel %vm1314, %v2168, 0.0
      %v2173 = vmul.f32 %v2171, %v397
      %v2174 = vmul.f32 %v2172, %v397
      %v2176 = vsel %vm1178, %v2086, 0
      %2178 = vmatprep.subr.mxu0 0.0
      %2179 = vmatpush1.msra.mxu0 %v2098
      %2180 = vmatprep.subr.mxu0 0.0
      %2181 = vmatpush1.msra.mxu0 %v2099
      %2182 = vmatprep.subr.mxu0 0.0
      %2183 = vmatpush1.msra.mxu0 %v2109
      %2184 = vmatprep.subr.mxu0 0.0
      %2185 = vmatpush1.msra.mxu0 %v2110
      %2186 = vmatprep.subr.mxu0 0.0
      %2187 = vmatpush1.msra.mxu0 %v2120
      %2188 = vmatprep.subr.mxu0 0.0
      %2189 = vmatpush1.msra.mxu0 %v2121
      %2190 = vmatprep.subr.mxu0 0.0
      %2191 = vmatpush1.msra.mxu0 %v2130
      %2192 = vmatprep.subr.mxu0 0.0
      %2193 = vmatpush1.msra.mxu0 %v2131
      %2194 = vmatprep.subr.mxu0 0.0
      %2195 = vmatpush1.msra.mxu0 %v2083
      %2196 = vmatprep.subr.mxu0 0.0
      %2197 = vmatpush1.msra.mxu0 %v2084
      %2198 = vmatprep.subr.mxu0 0.0
      %2199 = vmatpush1.msra.mxu0 %v2141
      %2200 = vmatprep.subr.mxu0 0.0
      %2201 = vmatpush1.msra.mxu0 %v2142
      %2202 = vmatprep.subr.mxu0 0.0
      %2203 = vmatpush1.msra.mxu0 %v2152
      %2204 = vmatprep.subr.mxu0 0.0
      %2205 = vmatpush1.msra.mxu0 %v2153
      %2206 = vmatprep.subr.mxu0 0.0
      %2207 = vmatpush1.msra.mxu0 %v2163
      %2208 = vmatprep.subr.mxu0 0.0
      %2209 = vmatpush1.msra.mxu0 %v2164
      %2210 = vmatprep.subr.mxu0 0.0
      %2211 = vmatpush1.msra.mxu0 %v2173
      %2212 = vmatprep.subr.mxu0 0.0
      %2213 = vmatpush1.msra.mxu0 %v2174
      %2214 = vmatprep.subr.mxu0 0.0
      %2215 = vmatpush1.msra.mxu0 %v829
      %2216 = vmatprep.subr.mxu0 0.0
      %2217 = vmatpush1.msra.mxu0 0.0
      %2218 = vmatprep.subr.mxu0 0.0
      %2219 = vmatpush1.msra.mxu0 0.0
      %2220 = vmatprep.subr.mxu0 0.0
      %2221 = vmatpush1.msra.mxu0 0.0
      %2222 = vmatprep.subr.mxu0 0.0
      %2223 = vmatpush1.msra.mxu0 0.0
      %2224 = vmatprep.subr.mxu0 0.0
      %2225 = vmatpush1.msra.mxu0 0.0
      %2226 = vmatprep.subr.mxu0 0.0
      %2227 = vmatpush1.msra.mxu0 0.0
      %2228 = vmatprep.subr.mxu0 0.0
      %2229 = vmatpush1.msra.mxu0 0.0
      %2230 = vmatprep.subr.mxu0 0.0
      %2231 = vmatpush1.msra.mxu0 0.0
      %2232 = vmatprep.subr.mxu0 0.0
      %2233 = vmatpush1.msra.mxu0 0.0
      %2234 = vmatprep.subr.mxu0 0.0
      %2235 = vmatpush1.msra.mxu0 0.0
      %2236 = vmatprep.subr.mxu0 0.0
      %2237 = vmatpush1.msra.mxu0 0.0
      %2238 = vmatprep.subr.mxu0 0.0
      %2239 = vmatpush1.msra.mxu0 0.0
      %2240 = vmatprep.subr.mxu0 0.0
      %2241 = vmatpush1.msra.mxu0 0.0
      %2242 = vmatprep.mubr.f32.mxu0 %v2176
      %2243 = vmatmul.mubr.f32.gmra.mrb[0].mxu0 %v2085
      %v2244 = vpop.f32.mrb[0].mxu0
      %v2245 = vadd.f32 0.0, %v2244
      %v2246 = vpop.f32.mrb[0].mxu0
      %2247 = vdwg.mxu0
      %v2248 = vmul.f32 %v2245, 0.5
      %v2249 = vmul.f32 %v2245, 0.70710677
      %vm2250 = vcmp.ge.f32.partialorder %v2249, 0.0
      %v2251 = vsel %vm2250, 1.0, -1.0
      %v2252 = vand.u32 2147483647, %v2249
      %v2253 = vmul.f32 %v2252, 0.3275911
      %v2254 = vadd.f32 %v2253, 1.0
      %v2255 = vrcp.pop %v2254
      %v2256 = vmul.f32 1.0, %v2255
      %v2257 = vmul.f32 %v2256, 1.0614054
      %v2258 = vadd.f32 %v2257, -1.4531521
      %v2259 = vmul.f32 %v2258, %v2256
      %v2260 = vadd.f32 %v2259, 1.4214138
      %v2261 = vmul.f32 %v2260, %v2256
      %v2262 = vadd.f32 %v2261, -0.28449672
      %v2263 = vmul.f32 %v2262, %v2256
      %v2264 = vadd.f32 %v2263, 0.2548296
      %v2265 = vmul.f32 %v2264, %v2256
      %v2266 = vsub.f32 0.0, %v2252
      %v2267 = vmul.f32 %v2266, %v2252
      %v2268 = vmul.f32 %v2267, 1.442695
      %v2269 = vpow.pop %v2268
      %v2270 = vmul.f32 %v2265, %v2269
      %v2271 = vsub.f32 1.0, %v2270
      %v2272 = vmul.f32 %v2251, %v2271
      %v2273 = vadd.f32 %v2272, 1.0
      %v2274 = vmul.f32 %v2248, %v2273
      %v2275 = vld [vmem:[%s6 + $0x168] sm:$0x3f]
      %2277 = vrot.lane.b32.xlu0 %v2274, 9
      %v2278 = vpop.permute.xlu0 %2277
      %v2280 = vsel %vm2095, 0.0, %v2278
      %v2281 = vmul.f32 %v2280, %v394
      %2282 = vrot.lane.b32.xlu0 %v2274, 8
      %v2283 = vpop.permute.xlu0 %2282
      %v2285 = vsel %vm2106, 0.0, %v2283
      %v2286 = vmul.f32 %v2285, %v391
      %2287 = vrot.lane.b32.xlu0 %v2274, 7
      %v2288 = vpop.permute.xlu0 %2287
      %v2290 = vsel %vm2117, 0.0, %v2288
      %v2291 = vmul.f32 %v2290, %v395
      %2292 = vrot.lane.b32.xlu0 %v2274, 1
      %v2293 = vpop.permute.xlu0 %2292
      %v2295 = vsel %vm667, 0.0, %v2293
      %v2296 = vmul.f32 %v2295, %v387
      %2297 = vrot.lane.b32.xlu0 %v2274, 127
      %v2298 = vpop.permute.xlu0 %2297
      %v2300 = vsel %vm2138, %v2298, 0.0
      %v2301 = vmul.f32 %v2300, %v389
      %2302 = vrot.lane.b32.xlu0 %v2274, 121
      %v2303 = vpop.permute.xlu0 %2302
      %v2305 = vsel %vm2149, %v2303, 0.0
      %v2306 = vmul.f32 %v2305, %v396
      %2307 = vrot.lane.b32.xlu0 %v2274, 120
      %v2308 = vpop.permute.xlu0 %2307
      %v2310 = vsel %vm2160, %v2308, 0.0
      %v2311 = vmul.f32 %v2310, %v393
      %2312 = vrot.lane.b32.xlu0 %v2274, 119
      %v2313 = vpop.permute.xlu0 %2312
      %v2315 = vsel %vm1314, %v2313, 0.0
      %v2316 = vmul.f32 %v2315, %v397
      %vm2317 = vcmask 596992
      %v2319 = vsel %vm2317, %v2275, 0
      %2321 = vmatprep.subr.mxu0 0.0
      %2322 = vmatpush1.msra.mxu0 %v2281
      %2323 = vmatprep.subr.mxu0 0.0
      %2324 = vmatpush1.msra.mxu0 %v2286
      %2325 = vmatprep.subr.mxu0 0.0
      %2326 = vmatpush1.msra.mxu0 %v2291
      %2327 = vmatprep.subr.mxu0 0.0
      %2328 = vmatpush1.msra.mxu0 %v2296
      %2329 = vmatprep.subr.mxu0 0.0
      %2330 = vmatpush1.msra.mxu0 %v2274
      %2331 = vmatprep.subr.mxu0 0.0
      %2332 = vmatpush1.msra.mxu0 %v2301
      %2333 = vmatprep.subr.mxu0 0.0
      %2334 = vmatpush1.msra.mxu0 %v2306
      %2335 = vmatprep.subr.mxu0 0.0
      %2336 = vmatpush1.msra.mxu0 %v2311
      %2337 = vmatprep.subr.mxu0 0.0
      %2338 = vmatpush1.msra.mxu0 %v2316
      %2339 = vmatprep.subr.mxu0 0.0
      %2340 = vmatpush1.msra.mxu0 %v829
      %2341 = vmatprep.subr.mxu0 0.0
      %2342 = vmatpush1.msra.mxu0 0.0
      %2343 = vmatprep.subr.mxu0 0.0
      %2344 = vmatpush1.msra.mxu0 0.0
      %2345 = vmatprep.subr.mxu0 0.0
      %2346 = vmatpush1.msra.mxu0 0.0
      %2347 = vmatprep.subr.mxu0 0.0
      %2348 = vmatpush1.msra.mxu0 0.0
      %2349 = vmatprep.subr.mxu0 0.0
      %2350 = vmatpush1.msra.mxu0 0.0
      %2351 = vmatprep.subr.mxu0 0.0
      %2352 = vmatpush1.msra.mxu0 0.0
      %2353 = vmatprep.subr.mxu0 0.0
      %2354 = vmatpush1.msra.mxu0 0.0
      %2355 = vmatprep.subr.mxu0 0.0
      %2356 = vmatpush1.msra.mxu0 0.0
      %2357 = vmatprep.subr.mxu0 0.0
      %2358 = vmatpush1.msra.mxu0 0.0
      %2359 = vmatprep.subr.mxu0 0.0
      %2360 = vmatpush1.msra.mxu0 0.0
      %2361 = vmatprep.subr.mxu0 0.0
      %2362 = vmatpush1.msra.mxu0 0.0
      %2363 = vmatprep.subr.mxu0 0.0
      %2364 = vmatpush1.msra.mxu0 0.0
      %2365 = vmatprep.subr.mxu0 0.0
      %2366 = vmatpush1.msra.mxu0 0.0
      %2367 = vmatprep.subr.mxu0 0.0
      %2368 = vmatpush1.msra.mxu0 0.0
      %2369 = vmatprep.subr.mxu0 0.0
      %2370 = vmatpush1.msra.mxu0 0.0
      %2371 = vmatprep.subr.mxu0 0.0
      %2372 = vmatpush1.msra.mxu0 0.0
      %2373 = vmatprep.subr.mxu0 0.0
      %2374 = vmatpush1.msra.mxu0 0.0
      %2375 = vmatprep.subr.mxu0 0.0
      %2376 = vmatpush1.msra.mxu0 0.0
      %2377 = vmatprep.subr.mxu0 0.0
      %2378 = vmatpush1.msra.mxu0 0.0
      %2379 = vmatprep.subr.mxu0 0.0
      %2380 = vmatpush1.msra.mxu0 0.0
      %2381 = vmatprep.subr.mxu0 0.0
      %2382 = vmatpush1.msra.mxu0 0.0
      %2383 = vmatprep.subr.mxu0 0.0
      %2384 = vmatpush1.msra.mxu0 0.0
      %2385 = vmatprep.mubr.f32.mxu0 0.0
      %2386 = vmatmul.mubr.f32.gmra.mrb[0].mxu0 %v2319
      %v2387 = vpop.f32.mrb[0].mxu0
      %v2388 = vadd.f32 0.0, %v2387
      %v2389 = vpop.f32.mrb[0].mxu0
      %2390 = vdwg.mxu0
      %v2391 = vld [vmem:[%s6 + $0x190] sm:$0x3]
      %2393 = vrot.lane.b32.xlu0 %v2388, 9
      %v2394 = vpop.permute.xlu0 %2393
      %v2396 = vsel %vm2095, 0.0, %v2394
      %v2397 = vmul.f32 %v2396, %v394
      %2398 = vrot.lane.b32.xlu0 %v2388, 8
      %v2399 = vpop.permute.xlu0 %2398
      %v2401 = vsel %vm2106, 0.0, %v2399
      %v2402 = vmul.f32 %v2401, %v391
      %2403 = vrot.lane.b32.xlu0 %v2388, 7
      %v2404 = vpop.permute.xlu0 %2403
      %v2406 = vsel %vm2117, 0.0, %v2404
      %v2407 = vmul.f32 %v2406, %v395
      %2408 = vrot.lane.b32.xlu0 %v2388, 1
      %v2409 = vpop.permute.xlu0 %2408
      %v2411 = vsel %vm667, 0.0, %v2409
      %v2412 = vmul.f32 %v2411, %v387
      %2413 = vrot.lane.b32.xlu0 %v2388, 127
      %v2414 = vpop.permute.xlu0 %2413
      %v2416 = vsel %vm2138, %v2414, 0.0
      %v2417 = vmul.f32 %v2416, %v389
      %2418 = vrot.lane.b32.xlu0 %v2388, 121
      %v2419 = vpop.permute.xlu0 %2418
      %v2421 = vsel %vm2149, %v2419, 0.0
      %v2422 = vmul.f32 %v2421, %v396
      %2423 = vrot.lane.b32.xlu0 %v2388, 120
      %v2424 = vpop.permute.xlu0 %2423
      %v2426 = vsel %vm2160, %v2424, 0.0
      %v2427 = vmul.f32 %v2426, %v393
      %2428 = vrot.lane.b32.xlu0 %v2388, 119
      %v2429 = vpop.permute.xlu0 %2428
      %v2431 = vsel %vm1314, %v2429, 0.0
      %v2432 = vmul.f32 %v2431, %v397
      %v2434 = vrot.slane %v2402, 2
      %v2437 = vrot.slane %v2407, 4
      %v2440 = vrot.slane %v2412, 6
      %v2443 = vrot.slane %v2417, 2
      %v2446 = vrot.slane %v2422, 4
      %v2449 = vrot.slane %v2427, 6
      %v2451 = vsel %vm1304, %v2397, %v2434
      %v2452 = vsel %vm1306, %v2434, %v2437
      %v2453 = vsel %vm1308, %v2437, %v2440
      %v2454 = vsel %vm1304, %v2388, %v2443
      %v2455 = vsel %vm1306, %v2443, %v2446
      %v2456 = vsel %vm1308, %v2446, %v2449
      %v2457 = vsel %vm1304, %v2432, 1.0
      %v2459 = vsel %vm1314, %v2391, 0
      %v2462 = vsel %vm1318, %v2457, 0
      %2464 = vmatprep.subr.mxu0 0.0
      %2465 = vmatpush1.msra.mxu0 %v2451
      %2466 = vmatprep.subr.mxu0 0.0
      %2467 = vmatpush1.msra.mxu0 %v2452
      %2468 = vmatprep.subr.mxu0 0.0
      %2469 = vmatpush1.msra.mxu0 %v2453
      %2470 = vmatprep.subr.mxu0 0.0
      %2471 = vmatpush1.msra.mxu0 %v2454
      %2472 = vmatprep.subr.mxu0 0.0
      %2473 = vmatpush1.msra.mxu0 %v2455
      %2474 = vmatprep.subr.mxu0 0.0
      %2475 = vmatpush1.msra.mxu0 %v2456
      %2476 = vmatprep.subr.mxu0 0.0
      %2477 = vmatpush1.msra.mxu0 %v2462
      %2478 = vmatprep.subr.mxu0 0.0
      %2479 = vmatpush1.msra.mxu0 0.0
      %2480 = vmatprep.subr.mxu0 0.0
      %2481 = vmatpush1.msra.mxu0 0.0
      %2482 = vmatprep.subr.mxu0 0.0
      %2483 = vmatpush1.msra.mxu0 0.0
      %2484 = vmatprep.subr.mxu0 0.0
      %2485 = vmatpush1.msra.mxu0 0.0
      %2486 = vmatprep.subr.mxu0 0.0
      %2487 = vmatpush1.msra.mxu0 0.0
      %2488 = vmatprep.subr.mxu0 0.0
      %2489 = vmatpush1.msra.mxu0 0.0
      %2490 = vmatprep.subr.mxu0 0.0
      %2491 = vmatpush1.msra.mxu0 0.0
      %2492 = vmatprep.subr.mxu0 0.0
      %2493 = vmatpush1.msra.mxu0 0.0
      %2494 = vmatprep.subr.mxu0 0.0
      %2495 = vmatpush1.msra.mxu0 0.0
      %2496 = vmatprep.subr.mxu0 0.0
      %2497 = vmatpush1.msra.mxu0 0.0
      %2498 = vmatprep.subr.mxu0 0.0
      %2499 = vmatpush1.msra.mxu0 0.0
      %2500 = vmatprep.subr.mxu0 0.0
      %2501 = vmatpush1.msra.mxu0 0.0
      %2502 = vmatprep.subr.mxu0 0.0
      %2503 = vmatpush1.msra.mxu0 0.0
      %2504 = vmatprep.subr.mxu0 0.0
      %2505 = vmatpush1.msra.mxu0 0.0
      %2506 = vmatprep.subr.mxu0 0.0
      %2507 = vmatpush1.msra.mxu0 0.0
      %2508 = vmatprep.subr.mxu0 0.0
      %2509 = vmatpush1.msra.mxu0 0.0
      %2510 = vmatprep.subr.mxu0 0.0
      %2511 = vmatpush1.msra.mxu0 0.0
      %2512 = vmatprep.subr.mxu0 0.0
      %2513 = vmatpush1.msra.mxu0 0.0
      %2514 = vmatprep.subr.mxu0 0.0
      %2515 = vmatpush1.msra.mxu0 0.0
      %2516 = vmatprep.subr.mxu0 0.0
      %2517 = vmatpush1.msra.mxu0 0.0
      %2518 = vmatprep.subr.mxu0 0.0
      %2519 = vmatpush1.msra.mxu0 0.0
      %2520 = vmatprep.subr.mxu0 0.0
      %2521 = vmatpush1.msra.mxu0 0.0
      %2522 = vmatprep.subr.mxu0 0.0
      %2523 = vmatpush1.msra.mxu0 0.0
      %2524 = vmatprep.subr.mxu0 0.0
      %2525 = vmatpush1.msra.mxu0 0.0
      %2526 = vmatprep.subr.mxu0 0.0
      %2527 = vmatpush1.msra.mxu0 0.0
      %2528 = vmatprep.mubr.f32.mxu0 0.0
      %2529 = vmatmul.mubr.f32.gmra.mrb[0].mxu0 %v2459
      %v2530 = vpop.f32.mrb[0].mxu0
      %v2531 = vadd.f32 0.0, %v2530
      %v2532 = vpop.f32.mrb[0].mxu0
      %2533 = vdwg.mxu0
      %v2534 = vld [vmem:[%s347] sm:$0xff]
      %v2535 = vld [vmem:[%s347 + $0x8] sm:$0xff]
      %v2536 = vld [vmem:[%s6 + $0x1b8] sm:$0xf]
      %2537 = vrot.lane.b32.xlu0 %v2534, 17
      %v2538 = vpop.permute.xlu0 %2537
      %2539 = vrot.lane.b32.xlu0 %v2535, 17
      %v2540 = vpop.permute.xlu0 %2539
      %vm2541 = vcmp.lt.s32.totalorder %v358, 17
      %v2542 = vsel %vm2541, %v2538, %v2540
      %v2543 = vsel %vm2541, %v2540, %v2538
      %v2544 = vmul.f32 %v2543, %v417
      %v2545 = vmul.f32 %v2542, %v418
      %2546 = vrot.lane.b32.xlu0 %v2534, 16
      %v2547 = vpop.permute.xlu0 %2546
      %2548 = vrot.lane.b32.xlu0 %v2535, 16
      %v2549 = vpop.permute.xlu0 %2548
      %vm2550 = vcmp.lt.s32.totalorder %v358, 16
      %v2551 = vsel %vm2550, %v2547, %v2549
      %v2552 = vsel %vm2550, %v2549, %v2547
      %v2553 = vmul.f32 %v2552, %v411
      %v2554 = vmul.f32 %v2551, %v412
      %2555 = vrot.lane.b32.xlu0 %v2534, 15
      %v2556 = vpop.permute.xlu0 %2555
      %2557 = vrot.lane.b32.xlu0 %v2535, 15
      %v2558 = vpop.permute.xlu0 %2557
      %vm2559 = vcmp.lt.s32.totalorder %v358, 15
      %v2560 = vsel %vm2559, %v2556, %v2558
      %v2561 = vsel %vm2559, %v2558, %v2556
      %v2562 = vmul.f32 %v2561, %v419
      %v2563 = vmul.f32 %v2560, %v420
      %2564 = vrot.lane.b32.xlu0 %v2534, 1
      %v2565 = vpop.permute.xlu0 %2564
      %2566 = vrot.lane.b32.xlu0 %v2535, 1
      %v2567 = vpop.permute.xlu0 %2566
      %vm2568 = vcmp.lt.s32.totalorder %v358, 1
      %v2569 = vsel %vm2568, %v2565, %v2567
      %v2570 = vsel %vm2568, %v2567, %v2565
      %v2571 = vmul.f32 %v2570, %v403
      %v2572 = vmul.f32 %v2569, %v404
      %2573 = vrot.lane.b32.xlu0 %v2534, 127
      %v2574 = vpop.permute.xlu0 %2573
      %2575 = vrot.lane.b32.xlu0 %v2535, 127
      %v2576 = vpop.permute.xlu0 %2575
      %vm2577 = vcmp.lt.s32.totalorder %v358, 127
      %v2578 = vsel %vm2577, %v2574, %v2576
      %v2579 = vsel %vm2577, %v2576, %v2574
      %v2580 = vmul.f32 %v2578, %v407
      %v2581 = vmul.f32 %v2579, %v408
      %2582 = vrot.lane.b32.xlu0 %v2534, 113
      %v2583 = vpop.permute.xlu0 %2582
      %2584 = vrot.lane.b32.xlu0 %v2535, 113
      %v2585 = vpop.permute.xlu0 %2584
      %vm2586 = vcmp.lt.s32.totalorder %v358, 113
      %v2587 = vsel %vm2586, %v2583, %v2585
      %v2588 = vsel %vm2586, %v2585, %v2583
      %v2589 = vmul.f32 %v2587, %v421
      %v2590 = vmul.f32 %v2588, %v422
      %2591 = vrot.lane.b32.xlu0 %v2534, 112
      %v2592 = vpop.permute.xlu0 %2591
      %2593 = vrot.lane.b32.xlu0 %v2535, 112
      %v2594 = vpop.permute.xlu0 %2593
      %vm2595 = vcmp.lt.s32.totalorder %v358, 112
      %v2596 = vsel %vm2595, %v2592, %v2594
      %v2597 = vsel %vm2595, %v2594, %v2592
      %v2598 = vmul.f32 %v2596, %v415
      %v2599 = vmul.f32 %v2597, %v416
      %2600 = vrot.lane.b32.xlu0 %v2534, 111
      %v2601 = vpop.permute.xlu0 %2600
      %2602 = vrot.lane.b32.xlu0 %v2535, 111
      %v2603 = vpop.permute.xlu0 %2602
      %vm2604 = vcmp.lt.s32.totalorder %v358, 111
      %v2605 = vsel %vm2604, %v2601, %v2603
      %v2606 = vsel %vm2604, %v2603, %v2601
      %v2607 = vmul.f32 %v2605, %v423
      %v2608 = vmul.f32 %v2606, %v424
      %v2610 = vsel %vm2317, %v2536, 0
      %2612 = vmatprep.subr.mxu0 %v2545
      %2613 = vmatpush1.msra.mxu0 %v2544
      %2614 = vmatprep.subr.mxu0 %v2554
      %2615 = vmatpush1.msra.mxu0 %v2553
      %2616 = vmatprep.subr.mxu0 %v2563
      %2617 = vmatpush1.msra.mxu0 %v2562
      %2618 = vmatprep.subr.mxu0 %v2572
      %2619 = vmatpush1.msra.mxu0 %v2571
      %2620 = vmatprep.subr.mxu0 %v2535
      %2621 = vmatpush1.msra.mxu0 %v2534
      %2622 = vmatprep.subr.mxu0 %v2581
      %2623 = vmatpush1.msra.mxu0 %v2580
      %2624 = vmatprep.subr.mxu0 %v2590
      %2625 = vmatpush1.msra.mxu0 %v2589
      %2626 = vmatprep.subr.mxu0 %v2599
      %2627 = vmatpush1.msra.mxu0 %v2598
      %2628 = vmatprep.subr.mxu0 %v2608
      %2629 = vmatpush1.msra.mxu0 %v2607
      %2630 = vmatprep.subr.mxu0 %v829
      %2631 = vmatpush1.msra.mxu0 %v829
      %2632 = vmatprep.subr.mxu0 0.0
      %2633 = vmatpush1.msra.mxu0 0.0
      %2634 = vmatprep.subr.mxu0 0.0
      %2635 = vmatpush1.msra.mxu0 0.0
      %2636 = vmatprep.subr.mxu0 0.0
      %2637 = vmatpush1.msra.mxu0 0.0
      %2638 = vmatprep.subr.mxu0 0.0
      %2639 = vmatpush1.msra.mxu0 0.0
      %2640 = vmatprep.subr.mxu0 0.0
      %2641 = vmatpush1.msra.mxu0 0.0
      %2642 = vmatprep.subr.mxu0 0.0
      %2643 = vmatpush1.msra.mxu0 0.0
      %2644 = vmatprep.subr.mxu0 0.0
      %2645 = vmatpush1.msra.mxu0 0.0
      %2646 = vmatprep.subr.mxu0 0.0
      %2647 = vmatpush1.msra.mxu0 0.0
      %2648 = vmatprep.subr.mxu0 0.0
      %2649 = vmatpush1.msra.mxu0 0.0
      %2650 = vmatprep.subr.mxu0 0.0
      %2651 = vmatpush1.msra.mxu0 0.0
      %2652 = vmatprep.subr.mxu0 0.0
      %2653 = vmatpush1.msra.mxu0 0.0
      %2654 = vmatprep.subr.mxu0 0.0
      %2655 = vmatpush1.msra.mxu0 0.0
      %2656 = vmatprep.subr.mxu0 0.0
      %2657 = vmatpush1.msra.mxu0 0.0
      %2658 = vmatprep.subr.mxu0 0.0
      %2659 = vmatpush1.msra.mxu0 0.0
      %2660 = vmatprep.subr.mxu0 0.0
      %2661 = vmatpush1.msra.mxu0 0.0
      %2662 = vmatprep.subr.mxu0 0.0
      %2663 = vmatpush1.msra.mxu0 0.0
      %2664 = vmatprep.subr.mxu0 0.0
      %2665 = vmatpush1.msra.mxu0 0.0
      %2666 = vmatprep.subr.mxu0 0.0
      %2667 = vmatpush1.msra.mxu0 0.0
      %2668 = vmatprep.subr.mxu0 0.0
      %2669 = vmatpush1.msra.mxu0 0.0
      %2670 = vmatprep.subr.mxu0 0.0
      %2671 = vmatpush1.msra.mxu0 0.0
      %2672 = vmatprep.subr.mxu0 0.0
      %2673 = vmatpush1.msra.mxu0 0.0
      %2674 = vmatprep.subr.mxu0 0.0
      %2675 = vmatpush1.msra.mxu0 0.0
      %2676 = vmatprep.mubr.f32.mxu0 0.0
      %2677 = vmatmul.mubr.f32.gmra.mrb[0].mxu0 %v2610
      %v2678 = vpop.f32.mrb[0].mxu0
      %v2679 = vadd.f32 0.0, %v2678
      %v2680 = vpop.f32.mrb[0].mxu0
      %v2681 = vadd.f32 0.0, %v2680
      %2682 = vdwg.mxu0
      %v2683 = vmul.f32 %v2679, 0.5
      %v2684 = vmul.f32 %v2681, 0.5
      %v2685 = vmul.f32 %v2679, 0.70710677
      %v2686 = vmul.f32 %v2681, 0.70710677
      %vm2687 = vcmp.ge.f32.partialorder %v2685, 0.0
      %vm2688 = vcmp.ge.f32.partialorder %v2686, 0.0
      %v2689 = vsel %vm2687, 1.0, -1.0
      %v2690 = vsel %vm2688, 1.0, -1.0
      %v2691 = vand.u32 2147483647, %v2685
      %v2692 = vand.u32 2147483647, %v2686
      %v2693 = vmul.f32 %v2691, 0.3275911
      %v2694 = vmul.f32 %v2692, 0.3275911
      %v2695 = vadd.f32 %v2693, 1.0
      %v2696 = vadd.f32 %v2694, 1.0
      %v2697 = vrcp.pop %v2695
      %v2698 = vmul.f32 1.0, %v2697
      %v2699 = vrcp.pop %v2696
      %v2700 = vmul.f32 1.0, %v2699
      %v2701 = vmul.f32 %v2698, 1.0614054
      %v2702 = vmul.f32 %v2700, 1.0614054
      %v2703 = vadd.f32 %v2701, -1.4531521
      %v2704 = vadd.f32 %v2702, -1.4531521
      %v2705 = vmul.f32 %v2703, %v2698
      %v2706 = vmul.f32 %v2704, %v2700
      %v2707 = vadd.f32 %v2705, 1.4214138
      %v2708 = vadd.f32 %v2706, 1.4214138
      %v2709 = vmul.f32 %v2707, %v2698
      %v2710 = vmul.f32 %v2708, %v2700
      %v2711 = vadd.f32 %v2709, -0.28449672
      %v2712 = vadd.f32 %v2710, -0.28449672
      %v2713 = vmul.f32 %v2711, %v2698
      %v2714 = vmul.f32 %v2712, %v2700
      %v2715 = vadd.f32 %v2713, 0.2548296
      %v2716 = vadd.f32 %v2714, 0.2548296
      %v2717 = vmul.f32 %v2715, %v2698
      %v2718 = vmul.f32 %v2716, %v2700
      %v2719 = vsub.f32 0.0, %v2691
      %v2720 = vsub.f32 0.0, %v2692
      %v2721 = vmul.f32 %v2719, %v2691
      %v2722 = vmul.f32 %v2720, %v2692
      %v2723 = vmul.f32 %v2721, 1.442695
      %v2724 = vpow.pop %v2723
      %v2725 = vmul.f32 %v2722, 1.442695
      %v2726 = vpow.pop %v2725
      %v2727 = vmul.f32 %v2717, %v2724
      %v2728 = vmul.f32 %v2718, %v2726
      %v2729 = vsub.f32 1.0, %v2727
      %v2730 = vsub.f32 1.0, %v2728
      %v2731 = vmul.f32 %v2689, %v2729
      %v2732 = vmul.f32 %v2690, %v2730
      %v2733 = vadd.f32 %v2731, 1.0
      %v2734 = vadd.f32 %v2732, 1.0
      %v2735 = vmul.f32 %v2683, %v2733
      %v2736 = vmul.f32 %v2684, %v2734
      %v2737 = vld [vmem:[%s6 + $0x1e0] sm:$0x3f]
      %2738 = vrot.lane.b32.xlu0 %v2735, 17
      %v2739 = vpop.permute.xlu0 %2738
      %2740 = vrot.lane.b32.xlu0 %v2736, 17
      %v2741 = vpop.permute.xlu0 %2740
      %v2742 = vsel %vm2541, %v2739, %v2741
      %v2743 = vsel %vm2541, %v2741, %v2739
      %v2744 = vmul.f32 %v2743, %v417
      %v2745 = vmul.f32 %v2742, %v418
      %2746 = vrot.lane.b32.xlu0 %v2735, 16
      %v2747 = vpop.permute.xlu0 %2746
      %2748 = vrot.lane.b32.xlu0 %v2736, 16
      %v2749 = vpop.permute.xlu0 %2748
      %v2750 = vsel %vm2550, %v2747, %v2749
      %v2751 = vsel %vm2550, %v2749, %v2747
      %v2752 = vmul.f32 %v2751, %v411
      %v2753 = vmul.f32 %v2750, %v412
      %2754 = vrot.lane.b32.xlu0 %v2735, 15
      %v2755 = vpop.permute.xlu0 %2754
      %2756 = vrot.lane.b32.xlu0 %v2736, 15
      %v2757 = vpop.permute.xlu0 %2756
      %v2758 = vsel %vm2559, %v2755, %v2757
      %v2759 = vsel %vm2559, %v2757, %v2755
      %v2760 = vmul.f32 %v2759, %v419
      %v2761 = vmul.f32 %v2758, %v420
      %2762 = vrot.lane.b32.xlu0 %v2735, 1
      %v2763 = vpop.permute.xlu0 %2762
      %2764 = vrot.lane.b32.xlu0 %v2736, 1
      %v2765 = vpop.permute.xlu0 %2764
      %v2766 = vsel %vm2568, %v2763, %v2765
      %v2767 = vsel %vm2568, %v2765, %v2763
      %v2768 = vmul.f32 %v2767, %v403
      %v2769 = vmul.f32 %v2766, %v404
      %2770 = vrot.lane.b32.xlu0 %v2735, 127
      %v2771 = vpop.permute.xlu0 %2770
      %2772 = vrot.lane.b32.xlu0 %v2736, 127
      %v2773 = vpop.permute.xlu0 %2772
      %v2774 = vsel %vm2577, %v2771, %v2773
      %v2775 = vsel %vm2577, %v2773, %v2771
      %v2776 = vmul.f32 %v2774, %v407
      %v2777 = vmul.f32 %v2775, %v408
      %2778 = vrot.lane.b32.xlu0 %v2735, 113
      %v2779 = vpop.permute.xlu0 %2778
      %2780 = vrot.lane.b32.xlu0 %v2736, 113
      %v2781 = vpop.permute.xlu0 %2780
      %v2782 = vsel %vm2586, %v2779, %v2781
      %v2783 = vsel %vm2586, %v2781, %v2779
      %v2784 = vmul.f32 %v2782, %v421
      %v2785 = vmul.f32 %v2783, %v422
      %2786 = vrot.lane.b32.xlu0 %v2735, 112
      %v2787 = vpop.permute.xlu0 %2786
      %2788 = vrot.lane.b32.xlu0 %v2736, 112
      %v2789 = vpop.permute.xlu0 %2788
      %v2790 = vsel %vm2595, %v2787, %v2789
      %v2791 = vsel %vm2595, %v2789, %v2787
      %v2792 = vmul.f32 %v2790, %v415
      %v2793 = vmul.f32 %v2791, %v416
      %2794 = vrot.lane.b32.xlu0 %v2735, 111
      %v2795 = vpop.permute.xlu0 %2794
      %2796 = vrot.lane.b32.xlu0 %v2736, 111
      %v2797 = vpop.permute.xlu0 %2796
      %v2798 = vsel %vm2604, %v2795, %v2797
      %v2799 = vsel %vm2604, %v2797, %v2795
      %v2800 = vmul.f32 %v2798, %v423
      %v2801 = vmul.f32 %v2799, %v424
      %v2804 = vrot.slane %v2752, 4
      %v2805 = vrot.slane %v2753, 4
      %v2810 = vrot.slane %v2768, 4
      %v2811 = vrot.slane %v2769, 4
      %v2816 = vrot.slane %v2776, 4
      %v2817 = vrot.slane %v2777, 4
      %v2822 = vrot.slane %v2792, 4
      %v2823 = vrot.slane %v2793, 4
      %v2826 = vsel %vm1306, %v2744, %v2804
      %v2827 = vsel %vm1306, %v2745, %v2805
      %v2828 = vsel %vm1306, %v2760, %v2810
      %v2829 = vsel %vm1306, %v2761, %v2811
      %v2830 = vsel %vm1306, %v2735, %v2816
      %v2831 = vsel %vm1306, %v2736, %v2817
      %v2832 = vsel %vm1306, %v2784, %v2822
      %v2833 = vsel %vm1306, %v2785, %v2823
      %v2834 = vsel %vm1306, %v2800, 1.0
      %v2835 = vsel %vm1306, %v2801, 1.0
      %vm2836 = vcmask 302080
      %v2838 = vsel %vm2836, %v2737, 0
      %vm2840 = vcmask 1044480
      %v2842 = vsel %vm2840, %v2834, 0
      %v2845 = vsel %vm2840, %v2835, 0
      %2847 = vmatprep.subr.mxu0 %v2827
      %2848 = vmatpush1.msra.mxu0 %v2826
      %2849 = vmatprep.subr.mxu0 %v2829
      %2850 = vmatpush1.msra.mxu0 %v2828
      %2851 = vmatprep.subr.mxu0 %v2831
      %2852 = vmatpush1.msra.mxu0 %v2830
      %2853 = vmatprep.subr.mxu0 %v2833
      %2854 = vmatpush1.msra.mxu0 %v2832
      %2855 = vmatprep.subr.mxu0 %v2845
      %2856 = vmatpush1.msra.mxu0 %v2842
      %2857 = vmatprep.subr.mxu0 0.0
      %2858 = vmatpush1.msra.mxu0 0.0
      %2859 = vmatprep.subr.mxu0 0.0
      %2860 = vmatpush1.msra.mxu0 0.0
      %2861 = vmatprep.subr.mxu0 0.0
      %2862 = vmatpush1.msra.mxu0 0.0
      %2863 = vmatprep.subr.mxu0 0.0
      %2864 = vmatpush1.msra.mxu0 0.0
      %2865 = vmatprep.subr.mxu0 0.0
      %2866 = vmatpush1.msra.mxu0 0.0
      %2867 = vmatprep.subr.mxu0 0.0
      %2868 = vmatpush1.msra.mxu0 0.0
      %2869 = vmatprep.subr.mxu0 0.0
      %2870 = vmatpush1.msra.mxu0 0.0
      %2871 = vmatprep.subr.mxu0 0.0
      %2872 = vmatpush1.msra.mxu0 0.0
      %2873 = vmatprep.subr.mxu0 0.0
      %2874 = vmatpush1.msra.mxu0 0.0
      %2875 = vmatprep.subr.mxu0 0.0
      %2876 = vmatpush1.msra.mxu0 0.0
      %2877 = vmatprep.subr.mxu0 0.0
      %2878 = vmatpush1.msra.mxu0 0.0
      %2879 = vmatprep.subr.mxu0 0.0
      %2880 = vmatpush1.msra.mxu0 0.0
      %2881 = vmatprep.subr.mxu0 0.0
      %2882 = vmatpush1.msra.mxu0 0.0
      %2883 = vmatprep.subr.mxu0 0.0
      %2884 = vmatpush1.msra.mxu0 0.0
      %2885 = vmatprep.subr.mxu0 0.0
      %2886 = vmatpush1.msra.mxu0 0.0
      %2887 = vmatprep.subr.mxu0 0.0
      %2888 = vmatpush1.msra.mxu0 0.0
      %2889 = vmatprep.subr.mxu0 0.0
      %2890 = vmatpush1.msra.mxu0 0.0
      %2891 = vmatprep.subr.mxu0 0.0
      %2892 = vmatpush1.msra.mxu0 0.0
      %2893 = vmatprep.subr.mxu0 0.0
      %2894 = vmatpush1.msra.mxu0 0.0
      %2895 = vmatprep.subr.mxu0 0.0
      %2896 = vmatpush1.msra.mxu0 0.0
      %2897 = vmatprep.subr.mxu0 0.0
      %2898 = vmatpush1.msra.mxu0 0.0
      %2899 = vmatprep.subr.mxu0 0.0
      %2900 = vmatpush1.msra.mxu0 0.0
      %2901 = vmatprep.subr.mxu0 0.0
      %2902 = vmatpush1.msra.mxu0 0.0
      %2903 = vmatprep.subr.mxu0 0.0
      %2904 = vmatpush1.msra.mxu0 0.0
      %2905 = vmatprep.subr.mxu0 0.0
      %2906 = vmatpush1.msra.mxu0 0.0
      %2907 = vmatprep.subr.mxu0 0.0
      %2908 = vmatpush1.msra.mxu0 0.0
      %2909 = vmatprep.subr.mxu0 0.0
      %2910 = vmatpush1.msra.mxu0 0.0
      %2911 = vmatprep.mubr.f32.mxu0 0.0
      %2912 = vmatmul.mubr.f32.gmra.mrb[0].mxu0 %v2838
      %v2913 = vpop.f32.mrb[0].mxu0
      %v2914 = vadd.f32 0.0, %v2913
      %v2915 = vpop.f32.mrb[0].mxu0
      %v2916 = vadd.f32 0.0, %v2915
      %2917 = vdwg.mxu0
      %v2918 = vld [vmem:[%s6 + $0x208] sm:$0x3]
      %2919 = vrot.lane.b32.xlu0 %v2914, 17
      %v2920 = vpop.permute.xlu0 %2919
      %2921 = vrot.lane.b32.xlu0 %v2916, 17
      %v2922 = vpop.permute.xlu0 %2921
      %v2923 = vsel %vm2541, %v2920, %v2922
      %v2924 = vsel %vm2541, %v2922, %v2920
      %v2925 = vmul.f32 %v2924, %v417
      %v2926 = vmul.f32 %v2923, %v418
      %2927 = vrot.lane.b32.xlu0 %v2914, 16
      %v2928 = vpop.permute.xlu0 %2927
      %2929 = vrot.lane.b32.xlu0 %v2916, 16
      %v2930 = vpop.permute.xlu0 %2929
      %v2931 = vsel %vm2550, %v2928, %v2930
      %v2932 = vsel %vm2550, %v2930, %v2928
      %v2933 = vmul.f32 %v2932, %v411
      %v2934 = vmul.f32 %v2931, %v412
      %2935 = vrot.lane.b32.xlu0 %v2914, 15
      %v2936 = vpop.permute.xlu0 %2935
      %2937 = vrot.lane.b32.xlu0 %v2916, 15
      %v2938 = vpop.permute.xlu0 %2937
      %v2939 = vsel %vm2559, %v2936, %v2938
      %v2940 = vsel %vm2559, %v2938, %v2936
      %v2941 = vmul.f32 %v2940, %v419
      %v2942 = vmul.f32 %v2939, %v420
      %2943 = vrot.lane.b32.xlu0 %v2914, 1
      %v2944 = vpop.permute.xlu0 %2943
      %2945 = vrot.lane.b32.xlu0 %v2916, 1
      %v2946 = vpop.permute.xlu0 %2945
      %v2947 = vsel %vm2568, %v2944, %v2946
      %v2948 = vsel %vm2568, %v2946, %v2944
      %v2949 = vmul.f32 %v2948, %v403
      %v2950 = vmul.f32 %v2947, %v404
      %2951 = vrot.lane.b32.xlu0 %v2914, 127
      %v2952 = vpop.permute.xlu0 %2951
      %2953 = vrot.lane.b32.xlu0 %v2916, 127
      %v2954 = vpop.permute.xlu0 %2953
      %v2955 = vsel %vm2577, %v2952, %v2954
      %v2956 = vsel %vm2577, %v2954, %v2952
      %v2957 = vmul.f32 %v2955, %v407
      %v2958 = vmul.f32 %v2956, %v408
      %2959 = vrot.lane.b32.xlu0 %v2914, 113
      %v2960 = vpop.permute.xlu0 %2959
      %2961 = vrot.lane.b32.xlu0 %v2916, 113
      %v2962 = vpop.permute.xlu0 %2961
      %v2963 = vsel %vm2586, %v2960, %v2962
      %v2964 = vsel %vm2586, %v2962, %v2960
      %v2965 = vmul.f32 %v2963, %v421
      %v2966 = vmul.f32 %v2964, %v422
      %2967 = vrot.lane.b32.xlu0 %v2914, 112
      %v2968 = vpop.permute.xlu0 %2967
      %2969 = vrot.lane.b32.xlu0 %v2916, 112
      %v2970 = vpop.permute.xlu0 %2969
      %v2971 = vsel %vm2595, %v2968, %v2970
      %v2972 = vsel %vm2595, %v2970, %v2968
      %v2973 = vmul.f32 %v2971, %v415
      %v2974 = vmul.f32 %v2972, %v416
      %2975 = vrot.lane.b32.xlu0 %v2914, 111
      %v2976 = vpop.permute.xlu0 %2975
      %2977 = vrot.lane.b32.xlu0 %v2916, 111
      %v2978 = vpop.permute.xlu0 %2977
      %v2979 = vsel %vm2604, %v2976, %v2978
      %v2980 = vsel %vm2604, %v2978, %v2976
      %v2981 = vmul.f32 %v2979, %v423
      %v2982 = vmul.f32 %v2980, %v424
      %v2985 = vrot.slane %v2933, 2
      %v2986 = vrot.slane %v2934, 2
      %v2991 = vrot.slane %v2941, 4
      %v2992 = vrot.slane %v2942, 4
      %v2997 = vrot.slane %v2949, 6
      %v2998 = vrot.slane %v2950, 6
      %v3003 = vrot.slane %v2957, 2
      %v3004 = vrot.slane %v2958, 2
      %v3009 = vrot.slane %v2965, 4
      %v3010 = vrot.slane %v2966, 4
      %v3015 = vrot.slane %v2973, 6
      %v3016 = vrot.slane %v2974, 6
      %v3019 = vsel %vm1304, %v2925, %v2985
      %v3020 = vsel %vm1304, %v2926, %v2986
      %v3021 = vsel %vm1306, %v2985, %v2991
      %v3022 = vsel %vm1306, %v2986, %v2992
      %v3023 = vsel %vm1308, %v2991, %v2997
      %v3024 = vsel %vm1308, %v2992, %v2998
      %v3025 = vsel %vm1304, %v2914, %v3003
      %v3026 = vsel %vm1304, %v2916, %v3004
      %v3027 = vsel %vm1306, %v3003, %v3009
      %v3028 = vsel %vm1306, %v3004, %v3010
      %v3029 = vsel %vm1308, %v3009, %v3015
      %v3030 = vsel %vm1308, %v3010, %v3016
      %v3031 = vsel %vm1304, %v2981, 1.0
      %v3032 = vsel %vm1304, %v2982, 1.0
      %v3034 = vsel %vm1314, %v2918, 0
      %v3037 = vsel %vm1318, %v3031, 0
      %v3040 = vsel %vm1318, %v3032, 0
      %3042 = vmatprep.subr.mxu0 %v3020
      %3043 = vmatpush1.msra.mxu0 %v3019
      %3044 = vmatprep.subr.mxu0 %v3022
      %3045 = vmatpush1.msra.mxu0 %v3021
      %3046 = vmatprep.subr.mxu0 %v3024
      %3047 = vmatpush1.msra.mxu0 %v3023
      %3048 = vmatprep.subr.mxu0 %v3026
      %3049 = vmatpush1.msra.mxu0 %v3025
      %3050 = vmatprep.subr.mxu0 %v3028
      %3051 = vmatpush1.msra.mxu0 %v3027
      %3052 = vmatprep.subr.mxu0 %v3030
      %3053 = vmatpush1.msra.mxu0 %v3029
      %3054 = vmatprep.subr.mxu0 %v3040
      %3055 = vmatpush1.msra.mxu0 %v3037
      %3056 = vmatprep.subr.mxu0 0.0
      %3057 = vmatpush1.msra.mxu0 0.0
      %3058 = vmatprep.subr.mxu0 0.0
      %3059 = vmatpush1.msra.mxu0 0.0
      %3060 = vmatprep.subr.mxu0 0.0
      %3061 = vmatpush1.msra.mxu0 0.0
      %3062 = vmatprep.subr.mxu0 0.0
      %3063 = vmatpush1.msra.mxu0 0.0
      %3064 = vmatprep.subr.mxu0 0.0
      %3065 = vmatpush1.msra.mxu0 0.0
      %3066 = vmatprep.subr.mxu0 0.0
      %3067 = vmatpush1.msra.mxu0 0.0
      %3068 = vmatprep.subr.mxu0 0.0
      %3069 = vmatpush1.msra.mxu0 0.0
      %3070 = vmatprep.subr.mxu0 0.0
      %3071 = vmatpush1.msra.mxu0 0.0
      %3072 = vmatprep.subr.mxu0 0.0
      %3073 = vmatpush1.msra.mxu0 0.0
      %3074 = vmatprep.subr.mxu0 0.0
      %3075 = vmatpush1.msra.mxu0 0.0
      %3076 = vmatprep.subr.mxu0 0.0
      %3077 = vmatpush1.msra.mxu0 0.0
      %3078 = vmatprep.subr.mxu0 0.0
      %3079 = vmatpush1.msra.mxu0 0.0
      %3080 = vmatprep.subr.mxu0 0.0
      %3081 = vmatpush1.msra.mxu0 0.0
      %3082 = vmatprep.subr.mxu0 0.0
      %3083 = vmatpush1.msra.mxu0 0.0
      %3084 = vmatprep.subr.mxu0 0.0
      %3085 = vmatpush1.msra.mxu0 0.0
      %3086 = vmatprep.subr.mxu0 0.0
      %3087 = vmatpush1.msra.mxu0 0.0
      %3088 = vmatprep.subr.mxu0 0.0
      %3089 = vmatpush1.msra.mxu0 0.0
      %3090 = vmatprep.subr.mxu0 0.0
      %3091 = vmatpush1.msra.mxu0 0.0
      %3092 = vmatprep.subr.mxu0 0.0
      %3093 = vmatpush1.msra.mxu0 0.0
      %3094 = vmatprep.subr.mxu0 0.0
      %3095 = vmatpush1.msra.mxu0 0.0
      %3096 = vmatprep.subr.mxu0 0.0
      %3097 = vmatpush1.msra.mxu0 0.0
      %3098 = vmatprep.subr.mxu0 0.0
      %3099 = vmatpush1.msra.mxu0 0.0
      %3100 = vmatprep.subr.mxu0 0.0
      %3101 = vmatpush1.msra.mxu0 0.0
      %3102 = vmatprep.subr.mxu0 0.0
      %3103 = vmatpush1.msra.mxu0 0.0
      %3104 = vmatprep.subr.mxu0 0.0
      %3105 = vmatpush1.msra.mxu0 0.0
      %3106 = vmatprep.mubr.f32.mxu0 0.0
      %3107 = vmatmul.mubr.f32.gmra.mrb[0].mxu0 %v3034
      %v3108 = vpop.f32.mrb[0].mxu0
      %v3109 = vadd.f32 0.0, %v3108
      %v3110 = vpop.f32.mrb[0].mxu0
      %v3111 = vadd.f32 0.0, %v3110
      %3112 = vdwg.mxu0
      %v3113 = vsel %vm1439, %v1389, 0.0
      %3115 = vrot.lane.b32.xlu0 %v2080, 4
      %v3116 = vpop.permute.xlu0 %3115
      %v3118 = vsel %vm1439, 0.0, %v3116
      %vm3119 = vcmask 162816
      %v3120 = vsel %vm3119, %v3118, 0.0
      %3122 = vrot.lane.b32.xlu0 %v2531, 20
      %v3123 = vpop.permute.xlu0 %3122
      %v3125 = vsel %vm3119, 0.0, %v3123
      %vm3126 = vcmask 687104
      %v3127 = vsel %vm3126, %v3125, 0.0
      %3130 = vrot.lane.b32.xlu0 %v3109, 84
      %v3131 = vpop.permute.xlu0 %3130
      %3132 = vrot.lane.b32.xlu0 %v3111, 84
      %v3133 = vpop.permute.xlu0 %3132
      %v3134 = vsel %vm3126, %v3131, %v3133
      %v3136 = vsel %vm3126, 0.0, %v3131
      %v3139 = vrot.slane %v3120, 6
      %v3140 = vrot.slane 0.0, 6
      %v3144 = vrot.slane %v3127, 4
      %v3145 = vrot.slane 0.0, 4
      %v3149 = vrot.slane %v3136, 2
      %v3150 = vrot.slane %v3134, 2
      %v3151 = vrot.slane %v3133, 2
      %v3155 = vsel %vm1308, %v3113, %v3139
      %v3156 = vsel %vm1308, 0.0, %v3140
      %v3157 = vsel %vm1306, %v3155, %v3144
      %v3158 = vsel %vm1306, %v3156, %v3145
      %v3159 = vsel %vm1304, %v3157, %v3149
      %v3160 = vsel %vm1304, %v3158, %v3150
      %v3161 = vsel %vm1304, %v3158, %v3151
      %v3162 = vld [vmem:[%s5] sm:$0xff]
      %v3163 = vld [vmem:[%s5 + $0x8] sm:$0xff]
      %v3164 = vld [vmem:[%s5 + $0x10] sm:$0xff]
      %v3165 = vld [vmem:[%s5 + $0x18] sm:$0xff]
      %v3166 = vld [vmem:[%s5 + $0x20] sm:$0xff]
      %v3167 = vld [vmem:[%s5 + $0x28] sm:$0xff]
      %v3168 = vld [vmem:[%s5 + $0x30] sm:$0xff]
      %v3169 = vld [vmem:[%s5 + $0x38] sm:$0xff]
      %v3170 = vld [vmem:[%s5 + $0x40] sm:$0xff]
      %v3171 = vld [vmem:[%s5 + $0x48] sm:$0xff]
      %v3172 = vld [vmem:[%s5 + $0x50] sm:$0xff]
      %v3173 = vld [vmem:[%s5 + $0x58] sm:$0xff]
      %v3174 = vld [vmem:[%s5 + $0x60] sm:$0xff]
      %v3175 = vld [vmem:[%s5 + $0x68] sm:$0xff]
      %v3176 = vld [vmem:[%s5 + $0x70] sm:$0xff]
      %v3177 = vld [vmem:[%s5 + $0x78] sm:$0xff]
      %v3178 = vld [vmem:[%s5 + $0x80] sm:$0xff]
      %v3179 = vld [vmem:[%s5 + $0x88] sm:$0xff]
      %v3180 = vld [vmem:[%s5 + $0x90] sm:$0xff]
      %v3181 = vld [vmem:[%s5 + $0x98] sm:$0xff]
      %v3182 = vld [vmem:[%s5 + $0xa0] sm:$0xff]
      %v3183 = vld [vmem:[%s5 + $0xa8] sm:$0xff]
      %v3184 = vld [vmem:[%s5 + $0xb0] sm:$0xff]
      %v3185 = vld [vmem:[%s5 + $0xb8] sm:$0xff]
      %v3186 = vld [vmem:[%s5 + $0xc0] sm:$0xff]
      %v3187 = vld [vmem:[%s5 + $0xc8] sm:$0xff]
      %v3188 = vld [vmem:[%s5 + $0xd0] sm:$0xff]
      %v3189 = vld [vmem:[%s5 + $0xd8] sm:$0xff]
      %v3190 = vld [vmem:[%s5 + $0xe0] sm:$0xff]
      %v3191 = vld [vmem:[%s5 + $0xe8] sm:$0xff]
      %v3192 = vld [vmem:[%s5 + $0xf0] sm:$0xff]
      %v3193 = vld [vmem:[%s5 + $0xf8] sm:$0xff]
      %v3194 = vld [vmem:[%s5 + $0x100] sm:$0xff]
      %v3195 = vld [vmem:[%s5 + $0x108] sm:$0xff]
      %v3196 = vld [vmem:[%s5 + $0x110] sm:$0xff]
      %v3197 = vld [vmem:[%s5 + $0x118] sm:$0xff]
      %v3198 = vld [vmem:[%s5 + $0x120] sm:$0xff]
      %v3199 = vld [vmem:[%s5 + $0x128] sm:$0xff]
      %v3200 = vld [vmem:[%s5 + $0x130] sm:$0xff]
      %v3201 = vld [vmem:[%s5 + $0x138] sm:$0xff]
      %v3202 = vld [vmem:[%s5 + $0x140] sm:$0xff]
      %v3203 = vld [vmem:[%s5 + $0x148] sm:$0xff]
      %v3204 = vld [vmem:[%s5 + $0x150] sm:$0xff]
      %v3205 = vld [vmem:[%s5 + $0x158] sm:$0xff]
      %v3206 = vld [vmem:[%s5 + $0x160] sm:$0xff]
      %v3207 = vld [vmem:[%s5 + $0x168] sm:$0xff]
      %v3208 = vld [vmem:[%s5 + $0x170] sm:$0xff]
      %v3209 = vld [vmem:[%s5 + $0x178] sm:$0xff]
      %v3210 = vld [vmem:[%s5 + $0x180] sm:$0xff]
      %v3211 = vld [vmem:[%s5 + $0x188] sm:$0xff]
      %v3212 = vld [vmem:[%s5 + $0x190] sm:$0xff]
      %v3213 = vld [vmem:[%s5 + $0x198] sm:$0xff]
      %v3214 = vld [vmem:[%s5 + $0x1a0] sm:$0xff]
      %v3215 = vld [vmem:[%s5 + $0x1a8] sm:$0xff]
      %v3216 = vld [vmem:[%s5 + $0x1b0] sm:$0xff]
      %v3217 = vld [vmem:[%s5 + $0x1b8] sm:$0xff]
      %v3218 = vld [vmem:[%s5 + $0x1c0] sm:$0xff]
      %v3219 = vld [vmem:[%s5 + $0x1c8] sm:$0xff]
      %v3220 = vld [vmem:[%s5 + $0x1d0] sm:$0xff]
      %v3221 = vld [vmem:[%s5 + $0x1d8] sm:$0xff]
      %v3222 = vld [vmem:[%s5 + $0x1e0] sm:$0xff]
      %v3223 = vld [vmem:[%s5 + $0x1e8] sm:$0xff]
      %v3224 = vld [vmem:[%s5 + $0x1f0] sm:$0xff]
      %v3225 = vld [vmem:[%s5 + $0x1f8] sm:$0xff]
      %v3226 = vld [vmem:[%s5 + $0x200] sm:$0xff]
      %v3227 = vld [vmem:[%s5 + $0x208] sm:$0xff]
      %v3228 = vld [vmem:[%s5 + $0x210] sm:$0xff]
      %v3229 = vld [vmem:[%s5 + $0x218] sm:$0xff]
      %v3230 = vld [vmem:[%s5 + $0x220] sm:$0xff]
      %v3231 = vld [vmem:[%s5 + $0x228] sm:$0xff]
      %v3232 = vld [vmem:[%s5 + $0x230] sm:$0xff]
      %v3233 = vld [vmem:[%s5 + $0x238] sm:$0xff]
      %v3234 = vld [vmem:[%s5 + $0x240] sm:$0xff]
      %v3235 = vld [vmem:[%s5 + $0x248] sm:$0xff]
      %v3236 = vld [vmem:[%s5 + $0x250] sm:$0xff]
      %v3237 = vld [vmem:[%s5 + $0x258] sm:$0xff]
      %v3238 = vld [vmem:[%s5 + $0x260] sm:$0xff]
      %v3239 = vld [vmem:[%s5 + $0x268] sm:$0xff]
      %v3240 = vld [vmem:[%s5 + $0x270] sm:$0xff]
      %v3241 = vld [vmem:[%s5 + $0x278] sm:$0xff]
      %v3242 = vld [vmem:[%s5 + $0x280] sm:$0xff]
      %v3243 = vld [vmem:[%s5 + $0x288] sm:$0xff]
      %v3244 = vld [vmem:[%s5 + $0x290] sm:$0xff]
      %v3245 = vld [vmem:[%s5 + $0x298] sm:$0xff]
      %v3246 = vld [vmem:[%s5 + $0x2a0] sm:$0xff]
      %v3247 = vld [vmem:[%s5 + $0x2a8] sm:$0xff]
      %v3248 = vld [vmem:[%s5 + $0x2b0] sm:$0xff]
      %v3249 = vld [vmem:[%s5 + $0x2b8] sm:$0xff]
      %v3250 = vld [vmem:[%s5 + $0x2c0] sm:$0xff]
      %v3251 = vld [vmem:[%s5 + $0x2c8] sm:$0xff]
      %v3252 = vld [vmem:[%s5 + $0x2d0] sm:$0xff]
      %v3253 = vld [vmem:[%s5 + $0x2d8] sm:$0xff]
      %v3254 = vld [vmem:[%s5 + $0x2e0] sm:$0xff]
      %v3255 = vld [vmem:[%s5 + $0x2e8] sm:$0xff]
      %v3256 = vld [vmem:[%s5 + $0x2f0] sm:$0xff]
      %v3257 = vld [vmem:[%s5 + $0x2f8] sm:$0xff]
      %v3258 = vld [vmem:[%s5 + $0x300] sm:$0xff]
      %v3259 = vld [vmem:[%s5 + $0x308] sm:$0xff]
      %v3260 = vld [vmem:[%s5 + $0x310] sm:$0xff]
      %v3261 = vld [vmem:[%s5 + $0x318] sm:$0xff]
      %v3262 = vld [vmem:[%s5 + $0x320] sm:$0xff]
      %v3263 = vld [vmem:[%s5 + $0x328] sm:$0xff]
      %v3264 = vld [vmem:[%s5 + $0x330] sm:$0xff]
      %v3265 = vld [vmem:[%s5 + $0x338] sm:$0xff]
      %v3266 = vld [vmem:[%s5 + $0x340] sm:$0xff]
      %v3267 = vld [vmem:[%s5 + $0x348] sm:$0xff]
      %v3268 = vld [vmem:[%s5 + $0x350] sm:$0xff]
      %v3269 = vld [vmem:[%s5 + $0x358] sm:$0xff]
      %v3270 = vld [vmem:[%s5 + $0x360] sm:$0xff]
      %v3271 = vld [vmem:[%s5 + $0x368] sm:$0xff]
      %v3272 = vld [vmem:[%s5 + $0x370] sm:$0xff]
      %v3273 = vld [vmem:[%s5 + $0x378] sm:$0xff]
      %v3274 = vld [vmem:[%s5 + $0x380] sm:$0xff]
      %v3275 = vld [vmem:[%s5 + $0x388] sm:$0xff]
      %v3276 = vld [vmem:[%s5 + $0x390] sm:$0xff]
      %v3277 = vld [vmem:[%s5 + $0x398] sm:$0xff]
      %v3278 = vld [vmem:[%s5 + $0x3a0] sm:$0xff]
      %v3279 = vld [vmem:[%s5 + $0x3a8] sm:$0xff]
      %v3280 = vld [vmem:[%s5 + $0x3b0] sm:$0xff]
      %v3281 = vld [vmem:[%s5 + $0x3b8] sm:$0xff]
      %v3282 = vld [vmem:[%s5 + $0x3c0] sm:$0xff]
      %v3283 = vld [vmem:[%s5 + $0x3c8] sm:$0xff]
      %v3284 = vld [vmem:[%s5 + $0x3d0] sm:$0xff]
      %v3285 = vld [vmem:[%s5 + $0x3d8] sm:$0xff]
      %v3286 = vld [vmem:[%s5 + $0x3e0] sm:$0xff]
      %v3287 = vld [vmem:[%s5 + $0x3e8] sm:$0xff]
      %v3288 = vld [vmem:[%s5 + $0x3f0] sm:$0xff]
      %v3289 = vld [vmem:[%s5 + $0x3f8] sm:$0xff]
      %v3290 = vld [vmem:[%s5 + $0x400] sm:$0xff]
      %v3291 = vld [vmem:[%s5 + $0x408] sm:$0xff]
      %v3292 = vld [vmem:[%s5 + $0x410] sm:$0xff]
      %v3293 = vld [vmem:[%s5 + $0x418] sm:$0xff]
      %v3294 = vld [vmem:[%s5 + $0x420] sm:$0xff]
      %v3295 = vld [vmem:[%s5 + $0x428] sm:$0xff]
      %v3296 = vld [vmem:[%s5 + $0x430] sm:$0xff]
      %v3297 = vld [vmem:[%s5 + $0x438] sm:$0xff]
      %v3298 = vld [vmem:[%s5 + $0x440] sm:$0xff]
      %v3299 = vld [vmem:[%s5 + $0x448] sm:$0xff]
      %v3300 = vld [vmem:[%s5 + $0x450] sm:$0xff]
      %v3301 = vld [vmem:[%s5 + $0x458] sm:$0xff]
      %v3302 = vld [vmem:[%s5 + $0x460] sm:$0xff]
      %v3303 = vld [vmem:[%s5 + $0x468] sm:$0xff]
      %v3304 = vld [vmem:[%s5 + $0x470] sm:$0xff]
      %v3305 = vld [vmem:[%s5 + $0x478] sm:$0xff]
      %v3306 = vld [vmem:[%s5 + $0x480] sm:$0xff]
      %v3307 = vld [vmem:[%s5 + $0x488] sm:$0xff]
      %v3308 = vld [vmem:[%s5 + $0x490] sm:$0xff]
      %v3309 = vld [vmem:[%s5 + $0x498] sm:$0xff]
      %v3310 = vld [vmem:[%s5 + $0x4a0] sm:$0xff]
      %v3311 = vld [vmem:[%s5 + $0x4a8] sm:$0xff]
      %v3312 = vld [vmem:[%s5 + $0x4b0] sm:$0xff]
      %v3313 = vld [vmem:[%s5 + $0x4b8] sm:$0xff]
      %v3314 = vld [vmem:[%s5 + $0x4c0] sm:$0xff]
      %v3315 = vld [vmem:[%s5 + $0x4c8] sm:$0xff]
      %v3316 = vld [vmem:[%s5 + $0x4d0] sm:$0xff]
      %v3317 = vld [vmem:[%s5 + $0x4d8] sm:$0xff]
      %v3318 = vld [vmem:[%s5 + $0x4e0] sm:$0xff]
      %v3319 = vld [vmem:[%s5 + $0x4e8] sm:$0xff]
      %v3320 = vld [vmem:[%s5 + $0x4f0] sm:$0xff]
      %v3321 = vld [vmem:[%s5 + $0x4f8] sm:$0xff]
      %v3322 = vld [vmem:[%s5 + $0x500] sm:$0xff]
      %v3323 = vld [vmem:[%s5 + $0x508] sm:$0xff]
      %v3324 = vld [vmem:[%s5 + $0x510] sm:$0xff]
      %v3325 = vld [vmem:[%s5 + $0x518] sm:$0xff]
      %v3326 = vld [vmem:[%s5 + $0x520] sm:$0xff]
      %v3327 = vld [vmem:[%s5 + $0x528] sm:$0xff]
      %v3328 = vld [vmem:[%s5 + $0x530] sm:$0xff]
      %v3329 = vld [vmem:[%s5 + $0x538] sm:$0xff]
      %v3330 = vld [vmem:[%s5 + $0x540] sm:$0xff]
      %v3331 = vld [vmem:[%s5 + $0x548] sm:$0xff]
      %v3332 = vld [vmem:[%s5 + $0x550] sm:$0xff]
      %v3333 = vld [vmem:[%s5 + $0x558] sm:$0xff]
      %v3334 = vld [vmem:[%s5 + $0x560] sm:$0xff]
      %v3335 = vld [vmem:[%s5 + $0x568] sm:$0xff]
      %v3336 = vld [vmem:[%s5 + $0x570] sm:$0xff]
      %v3337 = vld [vmem:[%s5 + $0x578] sm:$0xff]
      %v3338 = vld [vmem:[%s5 + $0x580] sm:$0xff]
      %v3339 = vld [vmem:[%s5 + $0x588] sm:$0xff]
      %v3340 = vld [vmem:[%s5 + $0x590] sm:$0xff]
      %v3341 = vld [vmem:[%s5 + $0x598] sm:$0xff]
      %v3342 = vld [vmem:[%s5 + $0x5a0] sm:$0xff]
      %v3343 = vld [vmem:[%s5 + $0x5a8] sm:$0xff]
      %v3344 = vld [vmem:[%s5 + $0x5b0] sm:$0xff]
      %v3345 = vld [vmem:[%s5 + $0x5b8] sm:$0xff]
      %v3346 = vld [vmem:[%s5 + $0x5c0] sm:$0xff]
      %v3347 = vld [vmem:[%s5 + $0x5c8] sm:$0xff]
      %v3348 = vld [vmem:[%s5 + $0x5d0] sm:$0xff]
      %v3349 = vld [vmem:[%s5 + $0x5d8] sm:$0xff]
      %v3350 = vld [vmem:[%s5 + $0x5e0] sm:$0xff]
      %v3351 = vld [vmem:[%s5 + $0x5e8] sm:$0xff]
      %v3352 = vld [vmem:[%s5 + $0x5f0] sm:$0xff]
      %v3353 = vld [vmem:[%s5 + $0x5f8] sm:$0xff]
      %v3354 = vld [vmem:[%s5 + $0x600] sm:$0xff]
      %v3355 = vld [vmem:[%s5 + $0x608] sm:$0xff]
      %v3356 = vld [vmem:[%s5 + $0x610] sm:$0xff]
      %v3357 = vld [vmem:[%s5 + $0x618] sm:$0xff]
      %v3358 = vld [vmem:[%s5 + $0x620] sm:$0xff]
      %v3359 = vld [vmem:[%s5 + $0x628] sm:$0xff]
      %v3360 = vld [vmem:[%s5 + $0x630] sm:$0xff]
      %v3361 = vld [vmem:[%s5 + $0x638] sm:$0xff]
      %v3362 = vld [vmem:[%s5 + $0x640] sm:$0xff]
      %v3363 = vld [vmem:[%s5 + $0x648] sm:$0xff]
      %v3364 = vld [vmem:[%s5 + $0x650] sm:$0xff]
      %v3365 = vld [vmem:[%s5 + $0x658] sm:$0xff]
      %v3366 = vld [vmem:[%s5 + $0x660] sm:$0xff]
      %v3367 = vld [vmem:[%s5 + $0x668] sm:$0xff]
      %v3368 = vld [vmem:[%s5 + $0x670] sm:$0xff]
      %v3369 = vld [vmem:[%s5 + $0x678] sm:$0xff]
      %v3370 = vld [vmem:[%s5 + $0x680] sm:$0xff]
      %v3371 = vld [vmem:[%s5 + $0x688] sm:$0xff]
      %v3372 = vld [vmem:[%s5 + $0x690] sm:$0xff]
      %v3373 = vld [vmem:[%s5 + $0x698] sm:$0xff]
      %v3374 = vld [vmem:[%s5 + $0x6a0] sm:$0xff]
      %v3375 = vld [vmem:[%s5 + $0x6a8] sm:$0xff]
      %v3376 = vld [vmem:[%s5 + $0x6b0] sm:$0xff]
      %v3377 = vld [vmem:[%s5 + $0x6b8] sm:$0xff]
      %v3378 = vld [vmem:[%s5 + $0x6c0] sm:$0xff]
      %v3379 = vld [vmem:[%s5 + $0x6c8] sm:$0xff]
      %v3380 = vld [vmem:[%s5 + $0x6d0] sm:$0xff]
      %v3381 = vld [vmem:[%s5 + $0x6d8] sm:$0xff]
      %v3382 = vld [vmem:[%s5 + $0x6e0] sm:$0xff]
      %v3383 = vld [vmem:[%s5 + $0x6e8] sm:$0xff]
      %v3384 = vld [vmem:[%s5 + $0x6f0] sm:$0xff]
      %v3385 = vld [vmem:[%s5 + $0x6f8] sm:$0xff]
      %v3386 = vld [vmem:[%s5 + $0x700] sm:$0xff]
      %v3387 = vld [vmem:[%s5 + $0x708] sm:$0xff]
      %v3388 = vld [vmem:[%s5 + $0x710] sm:$0xff]
      %v3389 = vld [vmem:[%s5 + $0x718] sm:$0xff]
      %v3390 = vld [vmem:[%s5 + $0x720] sm:$0xff]
      %v3391 = vld [vmem:[%s5 + $0x728] sm:$0xff]
      %v3392 = vld [vmem:[%s5 + $0x730] sm:$0xff]
      %v3393 = vld [vmem:[%s5 + $0x738] sm:$0xff]
      %v3394 = vld [vmem:[%s5 + $0x740] sm:$0xff]
      %v3395 = vld [vmem:[%s5 + $0x748] sm:$0xff]
      %v3396 = vld [vmem:[%s5 + $0x750] sm:$0xff]
      %v3397 = vld [vmem:[%s5 + $0x758] sm:$0xff]
      %v3398 = vld [vmem:[%s5 + $0x760] sm:$0xff]
      %v3399 = vld [vmem:[%s5 + $0x768] sm:$0xff]
      %v3400 = vld [vmem:[%s5 + $0x770] sm:$0xff]
      %v3401 = vld [vmem:[%s5 + $0x778] sm:$0xff]
      %v3402 = vld [vmem:[%s5 + $0x780] sm:$0xff]
      %v3403 = vld [vmem:[%s5 + $0x788] sm:$0xff]
      %v3404 = vld [vmem:[%s5 + $0x790] sm:$0xff]
      %v3405 = vld [vmem:[%s5 + $0x798] sm:$0xff]
      %v3406 = vld [vmem:[%s5 + $0x7a0] sm:$0xff]
      %v3407 = vld [vmem:[%s5 + $0x7a8] sm:$0xff]
      %v3408 = vld [vmem:[%s5 + $0x7b0] sm:$0xff]
      %v3409 = vld [vmem:[%s5 + $0x7b8] sm:$0xff]
      %v3410 = vld [vmem:[%s5 + $0x7c0] sm:$0xff]
      %v3411 = vld [vmem:[%s5 + $0x7c8] sm:$0xff]
      %v3412 = vld [vmem:[%s5 + $0x7d0] sm:$0xff]
      %v3413 = vld [vmem:[%s5 + $0x7d8] sm:$0xff]
      %v3414 = vld [vmem:[%s5 + $0x7e0] sm:$0xff]
      %v3415 = vld [vmem:[%s5 + $0x7e8] sm:$0xff]
      %v3416 = vld [vmem:[%s5 + $0x7f0] sm:$0xff]
      %v3417 = vld [vmem:[%s5 + $0x7f8] sm:$0xff]
      %v3418 = vld [vmem:[%s5 + $0x800] sm:$0xff]
      %v3419 = vld [vmem:[%s5 + $0x808] sm:$0xff]
      %v3420 = vld [vmem:[%s5 + $0x810] sm:$0xff]
      %v3421 = vld [vmem:[%s5 + $0x818] sm:$0xff]
      %v3422 = vld [vmem:[%s5 + $0x820] sm:$0xff]
      %v3423 = vld [vmem:[%s5 + $0x828] sm:$0xff]
      %v3424 = vld [vmem:[%s5 + $0x830] sm:$0xff]
      %v3425 = vld [vmem:[%s5 + $0x838] sm:$0xff]
      %v3426 = vld [vmem:[%s5 + $0x840] sm:$0xff]
      %v3427 = vld [vmem:[%s5 + $0x848] sm:$0xff]
      %v3428 = vld [vmem:[%s5 + $0x850] sm:$0xff]
      %v3429 = vld [vmem:[%s5 + $0x858] sm:$0xff]
      %v3430 = vld [vmem:[%s5 + $0x860] sm:$0xff]
      %v3431 = vld [vmem:[%s5 + $0x868] sm:$0xff]
      %v3432 = vld [vmem:[%s5 + $0x870] sm:$0xff]
      %v3433 = vld [vmem:[%s5 + $0x878] sm:$0xff]
      %v3434 = vld [vmem:[%s5 + $0x880] sm:$0xff]
      %v3435 = vld [vmem:[%s5 + $0x888] sm:$0xff]
      %v3436 = vld [vmem:[%s5 + $0x890] sm:$0xff]
      %v3437 = vld [vmem:[%s5 + $0x898] sm:$0xff]
      %v3438 = vld [vmem:[%s5 + $0x8a0] sm:$0xff]
      %v3439 = vld [vmem:[%s5 + $0x8a8] sm:$0xff]
      %v3440 = vld [vmem:[%s5 + $0x8b0] sm:$0xff]
      %v3441 = vld [vmem:[%s5 + $0x8b8] sm:$0xff]
      %v3442 = vld [vmem:[%s5 + $0x8c0] sm:$0xff]
      %v3443 = vld [vmem:[%s5 + $0x8c8] sm:$0xff]
      %v3444 = vld [vmem:[%s5 + $0x8d0] sm:$0xff]
      %v3445 = vld [vmem:[%s5 + $0x8d8] sm:$0xff]
      %v3446 = vld [vmem:[%s5 + $0x8e0] sm:$0xff]
      %v3447 = vld [vmem:[%s5 + $0x8e8] sm:$0xff]
      %v3448 = vld [vmem:[%s5 + $0x8f0] sm:$0xff]
      %v3449 = vld [vmem:[%s5 + $0x8f8] sm:$0xff]
      %v3450 = vld [vmem:[%s5 + $0x900] sm:$0xff]
      %v3451 = vld [vmem:[%s5 + $0x908] sm:$0xff]
      %v3452 = vld [vmem:[%s5 + $0x910] sm:$0xff]
      %v3453 = vld [vmem:[%s5 + $0x918] sm:$0xff]
      %v3454 = vld [vmem:[%s5 + $0x920] sm:$0xff]
      %v3455 = vld [vmem:[%s5 + $0x928] sm:$0xff]
      %v3456 = vld [vmem:[%s5 + $0x930] sm:$0xff]
      %v3457 = vld [vmem:[%s5 + $0x938] sm:$0xff]
      %v3458 = vld [vmem:[%s5 + $0x940] sm:$0xff]
      %v3459 = vld [vmem:[%s5 + $0x948] sm:$0xff]
      %v3460 = vld [vmem:[%s5 + $0x950] sm:$0xff]
      %v3461 = vld [vmem:[%s5 + $0x958] sm:$0xff]
      %v3462 = vld [vmem:[%s5 + $0x960] sm:$0xff]
      %v3463 = vld [vmem:[%s5 + $0x968] sm:$0xff]
      %v3464 = vld [vmem:[%s5 + $0x970] sm:$0xff]
      %v3465 = vld [vmem:[%s5 + $0x978] sm:$0xff]
      %v3466 = vld [vmem:[%s5 + $0x980] sm:$0xff]
      %v3467 = vld [vmem:[%s5 + $0x988] sm:$0xff]
      %v3468 = vld [vmem:[%s5 + $0x990] sm:$0xff]
      %v3469 = vld [vmem:[%s5 + $0x998] sm:$0xff]
      %v3470 = vld [vmem:[%s5 + $0x9a0] sm:$0xff]
      %v3471 = vld [vmem:[%s5 + $0x9a8] sm:$0xff]
      %v3472 = vld [vmem:[%s5 + $0x9b0] sm:$0xff]
      %v3473 = vld [vmem:[%s5 + $0x9b8] sm:$0xff]
      %v3474 = vld [vmem:[%s5 + $0x9c0] sm:$0xff]
      %v3475 = vld [vmem:[%s5 + $0x9c8] sm:$0xff]
      %v3476 = vld [vmem:[%s5 + $0x9d0] sm:$0xff]
      %v3477 = vld [vmem:[%s5 + $0x9d8] sm:$0xff]
      %v3478 = vld [vmem:[%s5 + $0x9e0] sm:$0xff]
      %v3479 = vld [vmem:[%s5 + $0x9e8] sm:$0xff]
      %v3480 = vld [vmem:[%s5 + $0x9f0] sm:$0xff]
      %v3481 = vld [vmem:[%s5 + $0x9f8] sm:$0xff]
      %v3482 = vld [vmem:[%s5 + $0xa00] sm:$0xff]
      %v3483 = vld [vmem:[%s5 + $0xa08] sm:$0xff]
      %v3484 = vld [vmem:[%s5 + $0xa10] sm:$0xff]
      %v3485 = vld [vmem:[%s5 + $0xa18] sm:$0xff]
      %v3486 = vld [vmem:[%s5 + $0xa20] sm:$0xff]
      %v3487 = vld [vmem:[%s5 + $0xa28] sm:$0xff]
      %v3488 = vld [vmem:[%s5 + $0xa30] sm:$0xff]
      %v3489 = vld [vmem:[%s5 + $0xa38] sm:$0xff]
      %v3490 = vld [vmem:[%s5 + $0xa40] sm:$0xff]
      %v3491 = vld [vmem:[%s5 + $0xa48] sm:$0xff]
      %v3492 = vld [vmem:[%s5 + $0xa50] sm:$0xff]
      %v3493 = vld [vmem:[%s5 + $0xa58] sm:$0xff]
      %v3494 = vld [vmem:[%s5 + $0xa60] sm:$0xff]
      %v3495 = vld [vmem:[%s5 + $0xa68] sm:$0xff]
      %v3496 = vld [vmem:[%s5 + $0xa70] sm:$0xff]
      %v3497 = vld [vmem:[%s5 + $0xa78] sm:$0xff]
      %v3498 = vld [vmem:[%s5 + $0xa80] sm:$0xf]
      %v3499 = vld [vmem:[%s5 + $0xa88] sm:$0xf]
      %v3500 = vld [vmem:[%s5 + $0xa90] sm:$0xf]
      %v3501 = vld [vmem:[%s5 + $0xa98] sm:$0xf]
      %v3502 = vld [vmem:[%s5 + $0xaa0] sm:$0xf]
      %v3503 = vld [vmem:[%s5 + $0xaa8] sm:$0xf]
      %v3504 = vld [vmem:[%s5 + $0xab0] sm:$0xf]
      %v3505 = vld [vmem:[%s5 + $0xab8] sm:$0xf]
      %v3507 = vsel %vm3126, %v3161, 0
      %v3510 = vsel %vm1306, %v3498, 0
      %v3513 = vsel %vm1306, %v3499, 0
      %v3516 = vsel %vm1306, %v3500, 0
      %v3519 = vsel %vm1306, %v3501, 0
      %v3522 = vsel %vm1306, %v3502, 0
      %v3525 = vsel %vm1306, %v3503, 0
      %v3528 = vsel %vm1306, %v3504, 0
      %v3531 = vsel %vm1306, %v3505, 0
      %3533 = vmatprep.subr.mxu0 %v3163
      %3534 = vmatpush1.msra.mxu0 %v3162
      %3535 = vmatprep.subr.mxu0 %v3171
      %3536 = vmatpush1.msra.mxu0 %v3170
      %3537 = vmatprep.subr.mxu0 %v3179
      %3538 = vmatpush1.msra.mxu0 %v3178
      %3539 = vmatprep.subr.mxu0 %v3187
      %3540 = vmatpush1.msra.mxu0 %v3186
      %3541 = vmatprep.subr.mxu0 %v3195
      %3542 = vmatpush1.msra.mxu0 %v3194
      %3543 = vmatprep.subr.mxu0 %v3203
      %3544 = vmatpush1.msra.mxu0 %v3202
      %3545 = vmatprep.subr.mxu0 %v3211
      %3546 = vmatpush1.msra.mxu0 %v3210
      %3547 = vmatprep.subr.mxu0 %v3219
      %3548 = vmatpush1.msra.mxu0 %v3218
      %3549 = vmatprep.subr.mxu0 %v3227
      %3550 = vmatpush1.msra.mxu0 %v3226
      %3551 = vmatprep.subr.mxu0 %v3235
      %3552 = vmatpush1.msra.mxu0 %v3234
      %3553 = vmatprep.subr.mxu0 %v3243
      %3554 = vmatpush1.msra.mxu0 %v3242
      %3555 = vmatprep.subr.mxu0 %v3251
      %3556 = vmatpush1.msra.mxu0 %v3250
      %3557 = vmatprep.subr.mxu0 %v3259
      %3558 = vmatpush1.msra.mxu0 %v3258
      %3559 = vmatprep.subr.mxu0 %v3267
      %3560 = vmatpush1.msra.mxu0 %v3266
      %3561 = vmatprep.subr.mxu0 %v3275
      %3562 = vmatpush1.msra.mxu0 %v3274
      %3563 = vmatprep.subr.mxu0 %v3283
      %3564 = vmatpush1.msra.mxu0 %v3282
      %3565 = vmatprep.subr.mxu0 %v3291
      %3566 = vmatpush1.msra.mxu0 %v3290
      %3567 = vmatprep.subr.mxu0 %v3299
      %3568 = vmatpush1.msra.mxu0 %v3298
      %3569 = vmatprep.subr.mxu0 %v3307
      %3570 = vmatpush1.msra.mxu0 %v3306
      %3571 = vmatprep.subr.mxu0 %v3315
      %3572 = vmatpush1.msra.mxu0 %v3314
      %3573 = vmatprep.subr.mxu0 %v3323
      %3574 = vmatpush1.msra.mxu0 %v3322
      %3575 = vmatprep.subr.mxu0 %v3331
      %3576 = vmatpush1.msra.mxu0 %v3330
      %3577 = vmatprep.subr.mxu0 %v3339
      %3578 = vmatpush1.msra.mxu0 %v3338
      %3579 = vmatprep.subr.mxu0 %v3347
      %3580 = vmatpush1.msra.mxu0 %v3346
      %3581 = vmatprep.subr.mxu0 %v3355
      %3582 = vmatpush1.msra.mxu0 %v3354
      %3583 = vmatprep.subr.mxu0 %v3363
      %3584 = vmatpush1.msra.mxu0 %v3362
      %3585 = vmatprep.subr.mxu0 %v3371
      %3586 = vmatpush1.msra.mxu0 %v3370
      %3587 = vmatprep.subr.mxu0 %v3379
      %3588 = vmatpush1.msra.mxu0 %v3378
      %3589 = vmatprep.subr.mxu0 %v3387
      %3590 = vmatpush1.msra.mxu0 %v3386
      %3591 = vmatprep.subr.mxu0 %v3395
      %3592 = vmatpush1.msra.mxu0 %v3394
      %3593 = vmatprep.subr.mxu0 %v3403
      %3594 = vmatpush1.msra.mxu0 %v3402
      %3595 = vmatprep.subr.mxu0 %v3411
      %3596 = vmatpush1.msra.mxu0 %v3410
      %3597 = vmatprep.mubr.f32.mxu0 %v3160
      %3598 = vmatmul.mubr.f32.gmra.mrb[0].mxu0 %v3159
      %v3599 = vpop.f32.mrb[0].mxu0
      %v3600 = vadd.f32 0.0, %v3599
      %v3601 = vpop.f32.mrb[0].mxu0
      %v3602 = vadd.f32 0.0, %v3601
      %3603 = vdwg.mxu0
      %3604 = vmatprep.subr.mxu0 %v3419
      %3605 = vmatpush1.msra.mxu0 %v3418
      %3606 = vmatprep.subr.mxu0 %v3427
      %3607 = vmatpush1.msra.mxu0 %v3426
      %3608 = vmatprep.subr.mxu0 %v3435
      %3609 = vmatpush1.msra.mxu0 %v3434
      %3610 = vmatprep.subr.mxu0 %v3443
      %3611 = vmatpush1.msra.mxu0 %v3442
      %3612 = vmatprep.subr.mxu0 %v3451
      %3613 = vmatpush1.msra.mxu0 %v3450
      %3614 = vmatprep.subr.mxu0 %v3459
      %3615 = vmatpush1.msra.mxu0 %v3458
      %3616 = vmatprep.subr.mxu0 %v3467
      %3617 = vmatpush1.msra.mxu0 %v3466
      %3618 = vmatprep.subr.mxu0 %v3475
      %3619 = vmatpush1.msra.mxu0 %v3474
      %3620 = vmatprep.subr.mxu0 %v3483
      %3621 = vmatpush1.msra.mxu0 %v3482
      %3622 = vmatprep.subr.mxu0 %v3491
      %3623 = vmatpush1.msra.mxu0 %v3490
      %3624 = vmatprep.subr.mxu0 %v3513
      %3625 = vmatpush1.msra.mxu0 %v3510
      %3626 = vmatprep.subr.mxu0 0.0
      %3627 = vmatpush1.msra.mxu0 0.0
      %3628 = vmatprep.subr.mxu0 0.0
      %3629 = vmatpush1.msra.mxu0 0.0
      %3630 = vmatprep.subr.mxu0 0.0
      %3631 = vmatpush1.msra.mxu0 0.0
      %3632 = vmatprep.subr.mxu0 0.0
      %3633 = vmatpush1.msra.mxu0 0.0
      %3634 = vmatprep.subr.mxu0 0.0
      %3635 = vmatpush1.msra.mxu0 0.0
      %3636 = vmatprep.subr.mxu0 0.0
      %3637 = vmatpush1.msra.mxu0 0.0
      %3638 = vmatprep.subr.mxu0 0.0
      %3639 = vmatpush1.msra.mxu0 0.0
      %3640 = vmatprep.subr.mxu0 0.0
      %3641 = vmatpush1.msra.mxu0 0.0
      %3642 = vmatprep.subr.mxu0 0.0
      %3643 = vmatpush1.msra.mxu0 0.0
      %3644 = vmatprep.subr.mxu0 0.0
      %3645 = vmatpush1.msra.mxu0 0.0
      %3646 = vmatprep.subr.mxu0 0.0
      %3647 = vmatpush1.msra.mxu0 0.0
      %3648 = vmatprep.subr.mxu0 0.0
      %3649 = vmatpush1.msra.mxu0 0.0
      %3650 = vmatprep.subr.mxu0 0.0
      %3651 = vmatpush1.msra.mxu0 0.0
      %3652 = vmatprep.subr.mxu0 0.0
      %3653 = vmatpush1.msra.mxu0 0.0
      %3654 = vmatprep.subr.mxu0 0.0
      %3655 = vmatpush1.msra.mxu0 0.0
      %3656 = vmatprep.subr.mxu0 0.0
      %3657 = vmatpush1.msra.mxu0 0.0
      %3658 = vmatprep.subr.mxu0 0.0
      %3659 = vmatpush1.msra.mxu0 0.0
      %3660 = vmatprep.subr.mxu0 0.0
      %3661 = vmatpush1.msra.mxu0 0.0
      %3662 = vmatprep.subr.mxu0 0.0
      %3663 = vmatpush1.msra.mxu0 0.0
      %3664 = vmatprep.subr.mxu0 0.0
      %3665 = vmatpush1.msra.mxu0 0.0
      %3666 = vmatprep.subr.mxu0 0.0
      %3667 = vmatpush1.msra.mxu0 0.0
      %3668 = vmatprep.mubr.f32.mxu0 0.0
      %3669 = vmatmul.mubr.f32.gmra.mrb[0].mxu0 %v3507
      %v3670 = vpop.f32.mrb[0].mxu0
      %v3671 = vadd.f32 %v3600, %v3670
      %v3672 = vpop.f32.mrb[0].mxu0
      %v3673 = vadd.f32 %v3602, %v3672
      %3674 = vdwg.mxu0
      %3675 = vmatprep.subr.mxu0 %v3165
      %3676 = vmatpush1.msra.mxu0 %v3164
      %3677 = vmatprep.subr.mxu0 %v3173
      %3678 = vmatpush1.msra.mxu0 %v3172
      %3679 = vmatprep.subr.mxu0 %v3181
      %3680 = vmatpush1.msra.mxu0 %v3180
      %3681 = vmatprep.subr.mxu0 %v3189
      %3682 = vmatpush1.msra.mxu0 %v3188
      %3683 = vmatprep.subr.mxu0 %v3197
      %3684 = vmatpush1.msra.mxu0 %v3196
      %3685 = vmatprep.subr.mxu0 %v3205
      %3686 = vmatpush1.msra.mxu0 %v3204
      %3687 = vmatprep.subr.mxu0 %v3213
      %3688 = vmatpush1.msra.mxu0 %v3212
      %3689 = vmatprep.subr.mxu0 %v3221
      %3690 = vmatpush1.msra.mxu0 %v3220
      %3691 = vmatprep.subr.mxu0 %v3229
      %3692 = vmatpush1.msra.mxu0 %v3228
      %3693 = vmatprep.subr.mxu0 %v3237
      %3694 = vmatpush1.msra.mxu0 %v3236
      %3695 = vmatprep.subr.mxu0 %v3245
      %3696 = vmatpush1.msra.mxu0 %v3244
      %3697 = vmatprep.subr.mxu0 %v3253
      %3698 = vmatpush1.msra.mxu0 %v3252
      %3699 = vmatprep.subr.mxu0 %v3261
      %3700 = vmatpush1.msra.mxu0 %v3260
      %3701 = vmatprep.subr.mxu0 %v3269
      %3702 = vmatpush1.msra.mxu0 %v3268
      %3703 = vmatprep.subr.mxu0 %v3277
      %3704 = vmatpush1.msra.mxu0 %v3276
      %3705 = vmatprep.subr.mxu0 %v3285
      %3706 = vmatpush1.msra.mxu0 %v3284
      %3707 = vmatprep.subr.mxu0 %v3293
      %3708 = vmatpush1.msra.mxu0 %v3292
      %3709 = vmatprep.subr.mxu0 %v3301
      %3710 = vmatpush1.msra.mxu0 %v3300
      %3711 = vmatprep.subr.mxu0 %v3309
      %3712 = vmatpush1.msra.mxu0 %v3308
      %3713 = vmatprep.subr.mxu0 %v3317
      %3714 = vmatpush1.msra.mxu0 %v3316
      %3715 = vmatprep.subr.mxu0 %v3325
      %3716 = vmatpush1.msra.mxu0 %v3324
      %3717 = vmatprep.subr.mxu0 %v3333
      %3718 = vmatpush1.msra.mxu0 %v3332
      %3719 = vmatprep.subr.mxu0 %v3341
      %3720 = vmatpush1.msra.mxu0 %v3340
      %3721 = vmatprep.subr.mxu0 %v3349
      %3722 = vmatpush1.msra.mxu0 %v3348
      %3723 = vmatprep.subr.mxu0 %v3357
      %3724 = vmatpush1.msra.mxu0 %v3356
      %3725 = vmatprep.subr.mxu0 %v3365
      %3726 = vmatpush1.msra.mxu0 %v3364
      %3727 = vmatprep.subr.mxu0 %v3373
      %3728 = vmatpush1.msra.mxu0 %v3372
      %3729 = vmatprep.subr.mxu0 %v3381
      %3730 = vmatpush1.msra.mxu0 %v3380
      %3731 = vmatprep.subr.mxu0 %v3389
      %3732 = vmatpush1.msra.mxu0 %v3388
      %3733 = vmatprep.subr.mxu0 %v3397
      %3734 = vmatpush1.msra.mxu0 %v3396
      %3735 = vmatprep.subr.mxu0 %v3405
      %3736 = vmatpush1.msra.mxu0 %v3404
      %3737 = vmatprep.subr.mxu0 %v3413
      %3738 = vmatpush1.msra.mxu0 %v3412
      %3739 = vmatprep.mubr.f32.mxu0 %v3160
      %3740 = vmatmul.mubr.f32.gmra.mrb[0].mxu0 %v3159
      %v3741 = vpop.f32.mrb[0].mxu0
      %v3742 = vadd.f32 0.0, %v3741
      %v3743 = vpop.f32.mrb[0].mxu0
      %v3744 = vadd.f32 0.0, %v3743
      %3745 = vdwg.mxu0
      %3746 = vmatprep.subr.mxu0 %v3421
      %3747 = vmatpush1.msra.mxu0 %v3420
      %3748 = vmatprep.subr.mxu0 %v3429
      %3749 = vmatpush1.msra.mxu0 %v3428
      %3750 = vmatprep.subr.mxu0 %v3437
      %3751 = vmatpush1.msra.mxu0 %v3436
      %3752 = vmatprep.subr.mxu0 %v3445
      %3753 = vmatpush1.msra.mxu0 %v3444
      %3754 = vmatprep.subr.mxu0 %v3453
      %3755 = vmatpush1.msra.mxu0 %v3452
      %3756 = vmatprep.subr.mxu0 %v3461
      %3757 = vmatpush1.msra.mxu0 %v3460
      %3758 = vmatprep.subr.mxu0 %v3469
      %3759 = vmatpush1.msra.mxu0 %v3468
      %3760 = vmatprep.subr.mxu0 %v3477
      %3761 = vmatpush1.msra.mxu0 %v3476
      %3762 = vmatprep.subr.mxu0 %v3485
      %3763 = vmatpush1.msra.mxu0 %v3484
      %3764 = vmatprep.subr.mxu0 %v3493
      %3765 = vmatpush1.msra.mxu0 %v3492
      %3766 = vmatprep.subr.mxu0 %v3519
      %3767 = vmatpush1.msra.mxu0 %v3516
      %3768 = vmatprep.subr.mxu0 0.0
      %3769 = vmatpush1.msra.mxu0 0.0
      %3770 = vmatprep.subr.mxu0 0.0
      %3771 = vmatpush1.msra.mxu0 0.0
      %3772 = vmatprep.subr.mxu0 0.0
      %3773 = vmatpush1.msra.mxu0 0.0
      %3774 = vmatprep.subr.mxu0 0.0
      %3775 = vmatpush1.msra.mxu0 0.0
      %3776 = vmatprep.subr.mxu0 0.0
      %3777 = vmatpush1.msra.mxu0 0.0
      %3778 = vmatprep.subr.mxu0 0.0
      %3779 = vmatpush1.msra.mxu0 0.0
      %3780 = vmatprep.subr.mxu0 0.0
      %3781 = vmatpush1.msra.mxu0 0.0
      %3782 = vmatprep.subr.mxu0 0.0
      %3783 = vmatpush1.msra.mxu0 0.0
      %3784 = vmatprep.subr.mxu0 0.0
      %3785 = vmatpush1.msra.mxu0 0.0
      %3786 = vmatprep.subr.mxu0 0.0
      %3787 = vmatpush1.msra.mxu0 0.0
      %3788 = vmatprep.subr.mxu0 0.0
      %3789 = vmatpush1.msra.mxu0 0.0
      %3790 = vmatprep.subr.mxu0 0.0
      %3791 = vmatpush1.msra.mxu0 0.0
      %3792 = vmatprep.subr.mxu0 0.0
      %3793 = vmatpush1.msra.mxu0 0.0
      %3794 = vmatprep.subr.mxu0 0.0
      %3795 = vmatpush1.msra.mxu0 0.0
      %3796 = vmatprep.subr.mxu0 0.0
      %3797 = vmatpush1.msra.mxu0 0.0
      %3798 = vmatprep.subr.mxu0 0.0
      %3799 = vmatpush1.msra.mxu0 0.0
      %3800 = vmatprep.subr.mxu0 0.0
      %3801 = vmatpush1.msra.mxu0 0.0
      %3802 = vmatprep.subr.mxu0 0.0
      %3803 = vmatpush1.msra.mxu0 0.0
      %3804 = vmatprep.subr.mxu0 0.0
      %3805 = vmatpush1.msra.mxu0 0.0
      %3806 = vmatprep.subr.mxu0 0.0
      %3807 = vmatpush1.msra.mxu0 0.0
      %3808 = vmatprep.subr.mxu0 0.0
      %3809 = vmatpush1.msra.mxu0 0.0
      %3810 = vmatprep.mubr.f32.mxu0 0.0
      %3811 = vmatmul.mubr.f32.gmra.mrb[0].mxu0 %v3507
      %v3812 = vpop.f32.mrb[0].mxu0
      %v3813 = vadd.f32 %v3742, %v3812
      %v3814 = vpop.f32.mrb[0].mxu0
      %v3815 = vadd.f32 %v3744, %v3814
      %3816 = vdwg.mxu0
      %3817 = vmatprep.subr.mxu0 %v3167
      %3818 = vmatpush1.msra.mxu0 %v3166
      %3819 = vmatprep.subr.mxu0 %v3175
      %3820 = vmatpush1.msra.mxu0 %v3174
      %3821 = vmatprep.subr.mxu0 %v3183
      %3822 = vmatpush1.msra.mxu0 %v3182
      %3823 = vmatprep.subr.mxu0 %v3191
      %3824 = vmatpush1.msra.mxu0 %v3190
      %3825 = vmatprep.subr.mxu0 %v3199
      %3826 = vmatpush1.msra.mxu0 %v3198
      %3827 = vmatprep.subr.mxu0 %v3207
      %3828 = vmatpush1.msra.mxu0 %v3206
      %3829 = vmatprep.subr.mxu0 %v3215
      %3830 = vmatpush1.msra.mxu0 %v3214
      %3831 = vmatprep.subr.mxu0 %v3223
      %3832 = vmatpush1.msra.mxu0 %v3222
      %3833 = vmatprep.subr.mxu0 %v3231
      %3834 = vmatpush1.msra.mxu0 %v3230
      %3835 = vmatprep.subr.mxu0 %v3239
      %3836 = vmatpush1.msra.mxu0 %v3238
      %3837 = vmatprep.subr.mxu0 %v3247
      %3838 = vmatpush1.msra.mxu0 %v3246
      %3839 = vmatprep.subr.mxu0 %v3255
      %3840 = vmatpush1.msra.mxu0 %v3254
      %3841 = vmatprep.subr.mxu0 %v3263
      %3842 = vmatpush1.msra.mxu0 %v3262
      %3843 = vmatprep.subr.mxu0 %v3271
      %3844 = vmatpush1.msra.mxu0 %v3270
      %3845 = vmatprep.subr.mxu0 %v3279
      %3846 = vmatpush1.msra.mxu0 %v3278
      %3847 = vmatprep.subr.mxu0 %v3287
      %3848 = vmatpush1.msra.mxu0 %v3286
      %3849 = vmatprep.subr.mxu0 %v3295
      %3850 = vmatpush1.msra.mxu0 %v3294
      %3851 = vmatprep.subr.mxu0 %v3303
      %3852 = vmatpush1.msra.mxu0 %v3302
      %3853 = vmatprep.subr.mxu0 %v3311
      %3854 = vmatpush1.msra.mxu0 %v3310
      %3855 = vmatprep.subr.mxu0 %v3319
      %3856 = vmatpush1.msra.mxu0 %v3318
      %3857 = vmatprep.subr.mxu0 %v3327
      %3858 = vmatpush1.msra.mxu0 %v3326
      %3859 = vmatprep.subr.mxu0 %v3335
      %3860 = vmatpush1.msra.mxu0 %v3334
      %3861 = vmatprep.subr.mxu0 %v3343
      %3862 = vmatpush1.msra.mxu0 %v3342
      %3863 = vmatprep.subr.mxu0 %v3351
      %3864 = vmatpush1.msra.mxu0 %v3350
      %3865 = vmatprep.subr.mxu0 %v3359
      %3866 = vmatpush1.msra.mxu0 %v3358
      %3867 = vmatprep.subr.mxu0 %v3367
      %3868 = vmatpush1.msra.mxu0 %v3366
      %3869 = vmatprep.subr.mxu0 %v3375
      %3870 = vmatpush1.msra.mxu0 %v3374
      %3871 = vmatprep.subr.mxu0 %v3383
      %3872 = vmatpush1.msra.mxu0 %v3382
      %3873 = vmatprep.subr.mxu0 %v3391
      %3874 = vmatpush1.msra.mxu0 %v3390
      %3875 = vmatprep.subr.mxu0 %v3399
      %3876 = vmatpush1.msra.mxu0 %v3398
      %3877 = vmatprep.subr.mxu0 %v3407
      %3878 = vmatpush1.msra.mxu0 %v3406
      %3879 = vmatprep.subr.mxu0 %v3415
      %3880 = vmatpush1.msra.mxu0 %v3414
      %3881 = vmatprep.mubr.f32.mxu0 %v3160
      %3882 = vmatmul.mubr.f32.gmra.mrb[0].mxu0 %v3159
      %v3883 = vpop.f32.mrb[0].mxu0
      %v3884 = vadd.f32 0.0, %v3883
      %v3885 = vpop.f32.mrb[0].mxu0
      %v3886 = vadd.f32 0.0, %v3885
      %3887 = vdwg.mxu0
      %3888 = vmatprep.subr.mxu0 %v3423
      %3889 = vmatpush1.msra.mxu0 %v3422
      %3890 = vmatprep.subr.mxu0 %v3431
      %3891 = vmatpush1.msra.mxu0 %v3430
      %3892 = vmatprep.subr.mxu0 %v3439
      %3893 = vmatpush1.msra.mxu0 %v3438
      %3894 = vmatprep.subr.mxu0 %v3447
      %3895 = vmatpush1.msra.mxu0 %v3446
      %3896 = vmatprep.subr.mxu0 %v3455
      %3897 = vmatpush1.msra.mxu0 %v3454
      %3898 = vmatprep.subr.mxu0 %v3463
      %3899 = vmatpush1.msra.mxu0 %v3462
      %3900 = vmatprep.subr.mxu0 %v3471
      %3901 = vmatpush1.msra.mxu0 %v3470
      %3902 = vmatprep.subr.mxu0 %v3479
      %3903 = vmatpush1.msra.mxu0 %v3478
      %3904 = vmatprep.subr.mxu0 %v3487
      %3905 = vmatpush1.msra.mxu0 %v3486
      %3906 = vmatprep.subr.mxu0 %v3495
      %3907 = vmatpush1.msra.mxu0 %v3494
      %3908 = vmatprep.subr.mxu0 %v3525
      %3909 = vmatpush1.msra.mxu0 %v3522
      %3910 = vmatprep.subr.mxu0 0.0
      %3911 = vmatpush1.msra.mxu0 0.0
      %3912 = vmatprep.subr.mxu0 0.0
      %3913 = vmatpush1.msra.mxu0 0.0
      %3914 = vmatprep.subr.mxu0 0.0
      %3915 = vmatpush1.msra.mxu0 0.0
      %3916 = vmatprep.subr.mxu0 0.0
      %3917 = vmatpush1.msra.mxu0 0.0
      %3918 = vmatprep.subr.mxu0 0.0
      %3919 = vmatpush1.msra.mxu0 0.0
      %3920 = vmatprep.subr.mxu0 0.0
      %3921 = vmatpush1.msra.mxu0 0.0
      %3922 = vmatprep.subr.mxu0 0.0
      %3923 = vmatpush1.msra.mxu0 0.0
      %3924 = vmatprep.subr.mxu0 0.0
      %3925 = vmatpush1.msra.mxu0 0.0
      %3926 = vmatprep.subr.mxu0 0.0
      %3927 = vmatpush1.msra.mxu0 0.0
      %3928 = vmatprep.subr.mxu0 0.0
      %3929 = vmatpush1.msra.mxu0 0.0
      %3930 = vmatprep.subr.mxu0 0.0
      %3931 = vmatpush1.msra.mxu0 0.0
      %3932 = vmatprep.subr.mxu0 0.0
      %3933 = vmatpush1.msra.mxu0 0.0
      %3934 = vmatprep.subr.mxu0 0.0
      %3935 = vmatpush1.msra.mxu0 0.0
      %3936 = vmatprep.subr.mxu0 0.0
      %3937 = vmatpush1.msra.mxu0 0.0
      %3938 = vmatprep.subr.mxu0 0.0
      %3939 = vmatpush1.msra.mxu0 0.0
      %3940 = vmatprep.subr.mxu0 0.0
      %3941 = vmatpush1.msra.mxu0 0.0
      %3942 = vmatprep.subr.mxu0 0.0
      %3943 = vmatpush1.msra.mxu0 0.0
      %3944 = vmatprep.subr.mxu0 0.0
      %3945 = vmatpush1.msra.mxu0 0.0
      %3946 = vmatprep.subr.mxu0 0.0
      %3947 = vmatpush1.msra.mxu0 0.0
      %3948 = vmatprep.subr.mxu0 0.0
      %3949 = vmatpush1.msra.mxu0 0.0
      %3950 = vmatprep.subr.mxu0 0.0
      %3951 = vmatpush1.msra.mxu0 0.0
      %3952 = vmatprep.mubr.f32.mxu0 0.0
      %3953 = vmatmul.mubr.f32.gmra.mrb[0].mxu0 %v3507
      %v3954 = vpop.f32.mrb[0].mxu0
      %v3955 = vadd.f32 %v3884, %v3954
      %v3956 = vpop.f32.mrb[0].mxu0
      %v3957 = vadd.f32 %v3886, %v3956
      %3958 = vdwg.mxu0
      %3959 = vmatprep.subr.mxu0 %v3169
      %3960 = vmatpush1.msra.mxu0 %v3168
      %3961 = vmatprep.subr.mxu0 %v3177
      %3962 = vmatpush1.msra.mxu0 %v3176
      %3963 = vmatprep.subr.mxu0 %v3185
      %3964 = vmatpush1.msra.mxu0 %v3184
      %3965 = vmatprep.subr.mxu0 %v3193
      %3966 = vmatpush1.msra.mxu0 %v3192
      %3967 = vmatprep.subr.mxu0 %v3201
      %3968 = vmatpush1.msra.mxu0 %v3200
      %3969 = vmatprep.subr.mxu0 %v3209
      %3970 = vmatpush1.msra.mxu0 %v3208
      %3971 = vmatprep.subr.mxu0 %v3217
      %3972 = vmatpush1.msra.mxu0 %v3216
      %3973 = vmatprep.subr.mxu0 %v3225
      %3974 = vmatpush1.msra.mxu0 %v3224
      %3975 = vmatprep.subr.mxu0 %v3233
      %3976 = vmatpush1.msra.mxu0 %v3232
      %3977 = vmatprep.subr.mxu0 %v3241
      %3978 = vmatpush1.msra.mxu0 %v3240
      %3979 = vmatprep.subr.mxu0 %v3249
      %3980 = vmatpush1.msra.mxu0 %v3248
      %3981 = vmatprep.subr.mxu0 %v3257
      %3982 = vmatpush1.msra.mxu0 %v3256
      %3983 = vmatprep.subr.mxu0 %v3265
      %3984 = vmatpush1.msra.mxu0 %v3264
      %3985 = vmatprep.subr.mxu0 %v3273
      %3986 = vmatpush1.msra.mxu0 %v3272
      %3987 = vmatprep.subr.mxu0 %v3281
      %3988 = vmatpush1.msra.mxu0 %v3280
      %3989 = vmatprep.subr.mxu0 %v3289
      %3990 = vmatpush1.msra.mxu0 %v3288
      %3991 = vmatprep.subr.mxu0 %v3297
      %3992 = vmatpush1.msra.mxu0 %v3296
      %3993 = vmatprep.subr.mxu0 %v3305
      %3994 = vmatpush1.msra.mxu0 %v3304
      %3995 = vmatprep.subr.mxu0 %v3313
      %3996 = vmatpush1.msra.mxu0 %v3312
      %3997 = vmatprep.subr.mxu0 %v3321
      %3998 = vmatpush1.msra.mxu0 %v3320
      %3999 = vmatprep.subr.mxu0 %v3329
      %4000 = vmatpush1.msra.mxu0 %v3328
      %4001 = vmatprep.subr.mxu0 %v3337
      %4002 = vmatpush1.msra.mxu0 %v3336
      %4003 = vmatprep.subr.mxu0 %v3345
      %4004 = vmatpush1.msra.mxu0 %v3344
      %4005 = vmatprep.subr.mxu0 %v3353
      %4006 = vmatpush1.msra.mxu0 %v3352
      %4007 = vmatprep.subr.mxu0 %v3361
      %4008 = vmatpush1.msra.mxu0 %v3360
      %4009 = vmatprep.subr.mxu0 %v3369
      %4010 = vmatpush1.msra.mxu0 %v3368
      %4011 = vmatprep.subr.mxu0 %v3377
      %4012 = vmatpush1.msra.mxu0 %v3376
      %4013 = vmatprep.subr.mxu0 %v3385
      %4014 = vmatpush1.msra.mxu0 %v3384
      %4015 = vmatprep.subr.mxu0 %v3393
      %4016 = vmatpush1.msra.mxu0 %v3392
      %4017 = vmatprep.subr.mxu0 %v3401
      %4018 = vmatpush1.msra.mxu0 %v3400
      %4019 = vmatprep.subr.mxu0 %v3409
      %4020 = vmatpush1.msra.mxu0 %v3408
      %4021 = vmatprep.subr.mxu0 %v3417
      %4022 = vmatpush1.msra.mxu0 %v3416
      %4023 = vmatprep.mubr.f32.mxu0 %v3160
      %4024 = vmatmul.mubr.f32.gmra.mrb[0].mxu0 %v3159
      %v4025 = vpop.f32.mrb[0].mxu0
      %v4026 = vadd.f32 0.0, %v4025
      %v4027 = vpop.f32.mrb[0].mxu0
      %v4028 = vadd.f32 0.0, %v4027
      %4029 = vdwg.mxu0
      %4030 = vmatprep.subr.mxu0 %v3425
      %4031 = vmatpush1.msra.mxu0 %v3424
      %4032 = vmatprep.subr.mxu0 %v3433
      %4033 = vmatpush1.msra.mxu0 %v3432
      %4034 = vmatprep.subr.mxu0 %v3441
      %4035 = vmatpush1.msra.mxu0 %v3440
      %4036 = vmatprep.subr.mxu0 %v3449
      %4037 = vmatpush1.msra.mxu0 %v3448
      %4038 = vmatprep.subr.mxu0 %v3457
      %4039 = vmatpush1.msra.mxu0 %v3456
      %4040 = vmatprep.subr.mxu0 %v3465
      %4041 = vmatpush1.msra.mxu0 %v3464
      %4042 = vmatprep.subr.mxu0 %v3473
      %4043 = vmatpush1.msra.mxu0 %v3472
      %4044 = vmatprep.subr.mxu0 %v3481
      %4045 = vmatpush1.msra.mxu0 %v3480
      %4046 = vmatprep.subr.mxu0 %v3489
      %4047 = vmatpush1.msra.mxu0 %v3488
      %4048 = vmatprep.subr.mxu0 %v3497
      %4049 = vmatpush1.msra.mxu0 %v3496
      %4050 = vmatprep.subr.mxu0 %v3531
      %4051 = vmatpush1.msra.mxu0 %v3528
      %4052 = vmatprep.subr.mxu0 0.0
      %4053 = vmatpush1.msra.mxu0 0.0
      %4054 = vmatprep.subr.mxu0 0.0
      %4055 = vmatpush1.msra.mxu0 0.0
      %4056 = vmatprep.subr.mxu0 0.0
      %4057 = vmatpush1.msra.mxu0 0.0
      %4058 = vmatprep.subr.mxu0 0.0
      %4059 = vmatpush1.msra.mxu0 0.0
      %4060 = vmatprep.subr.mxu0 0.0
      %4061 = vmatpush1.msra.mxu0 0.0
      %4062 = vmatprep.subr.mxu0 0.0
      %4063 = vmatpush1.msra.mxu0 0.0
      %4064 = vmatprep.subr.mxu0 0.0
      %4065 = vmatpush1.msra.mxu0 0.0
      %4066 = vmatprep.subr.mxu0 0.0
      %4067 = vmatpush1.msra.mxu0 0.0
      %4068 = vmatprep.subr.mxu0 0.0
      %4069 = vmatpush1.msra.mxu0 0.0
      %4070 = vmatprep.subr.mxu0 0.0
      %4071 = vmatpush1.msra.mxu0 0.0
      %4072 = vmatprep.subr.mxu0 0.0
      %4073 = vmatpush1.msra.mxu0 0.0
      %4074 = vmatprep.subr.mxu0 0.0
      %4075 = vmatpush1.msra.mxu0 0.0
      %4076 = vmatprep.subr.mxu0 0.0
      %4077 = vmatpush1.msra.mxu0 0.0
      %4078 = vmatprep.subr.mxu0 0.0
      %4079 = vmatpush1.msra.mxu0 0.0
      %4080 = vmatprep.subr.mxu0 0.0
      %4081 = vmatpush1.msra.mxu0 0.0
      %4082 = vmatprep.subr.mxu0 0.0
      %4083 = vmatpush1.msra.mxu0 0.0
      %4084 = vmatprep.subr.mxu0 0.0
      %4085 = vmatpush1.msra.mxu0 0.0
      %4086 = vmatprep.subr.mxu0 0.0
      %4087 = vmatpush1.msra.mxu0 0.0
      %4088 = vmatprep.subr.mxu0 0.0
      %4089 = vmatpush1.msra.mxu0 0.0
      %4090 = vmatprep.subr.mxu0 0.0
      %4091 = vmatpush1.msra.mxu0 0.0
      %4092 = vmatprep.subr.mxu0 0.0
      %4093 = vmatpush1.msra.mxu0 0.0
      %4094 = vmatprep.mubr.f32.mxu0 0.0
      %4095 = vmatmul.mubr.f32.gmra.mrb[0].mxu0 %v3507
      %v4096 = vpop.f32.mrb[0].mxu0
      %v4097 = vadd.f32 %v4026, %v4096
      %v4098 = vpop.f32.mrb[0].mxu0
      %v4099 = vadd.f32 %v4028, %v4098
      %4100 = vdwg.mxu0
      %v4101 = vld [vmem:[%s6 + $0x230] sm:$0xff]
      %4102 = vrot.lane.b32.xlu0 %v3671, 33
      %v4103 = vpop.permute.xlu0 %4102
      %4104 = vrot.lane.b32.xlu0 %v3673, 33
      %v4105 = vpop.permute.xlu0 %4104
      %4106 = vrot.lane.b32.xlu0 %v3813, 33
      %v4107 = vpop.permute.xlu0 %4106
      %4108 = vrot.lane.b32.xlu0 %v3815, 33
      %v4109 = vpop.permute.xlu0 %4108
      %4110 = vrot.lane.b32.xlu0 %v3955, 33
      %v4111 = vpop.permute.xlu0 %4110
      %4112 = vrot.lane.b32.xlu0 %v3957, 33
      %v4113 = vpop.permute.xlu0 %4112
      %4114 = vrot.lane.b32.xlu0 %v4097, 33
      %v4115 = vpop.permute.xlu0 %4114
      %4116 = vrot.lane.b32.xlu0 %v4099, 33
      %v4117 = vpop.permute.xlu0 %4116
      %vm4118 = vcmp.lt.s32.totalorder %v358, 33
      %v4119 = vsel %vm4118, %v4115, %v4117
      %v4120 = vsel %vm4118, %v4113, %v4115
      %v4121 = vsel %vm4118, %v4111, %v4113
      %v4122 = vsel %vm4118, %v4109, %v4111
      %v4123 = vsel %vm4118, %v4107, %v4109
      %v4124 = vsel %vm4118, %v4105, %v4107
      %v4125 = vsel %vm4118, %v4103, %v4105
      %v4126 = vsel %vm4118, %v4117, %v4103
      %v4127 = vmul.f32 %v4126, %v503
      %v4128 = vmul.f32 %v4125, %v504
      %v4129 = vmul.f32 %v4124, %v505
      %v4130 = vmul.f32 %v4123, %v506
      %v4131 = vmul.f32 %v4122, %v507
      %v4132 = vmul.f32 %v4121, %v508
      %v4133 = vmul.f32 %v4120, %v509
      %v4134 = vmul.f32 %v4119, %v510
      %4135 = vrot.lane.b32.xlu0 %v3671, 32
      %v4136 = vpop.permute.xlu0 %4135
      %4137 = vrot.lane.b32.xlu0 %v3673, 32
      %v4138 = vpop.permute.xlu0 %4137
      %4139 = vrot.lane.b32.xlu0 %v3813, 32
      %v4140 = vpop.permute.xlu0 %4139
      %4141 = vrot.lane.b32.xlu0 %v3815, 32
      %v4142 = vpop.permute.xlu0 %4141
      %4143 = vrot.lane.b32.xlu0 %v3955, 32
      %v4144 = vpop.permute.xlu0 %4143
      %4145 = vrot.lane.b32.xlu0 %v3957, 32
      %v4146 = vpop.permute.xlu0 %4145
      %4147 = vrot.lane.b32.xlu0 %v4097, 32
      %v4148 = vpop.permute.xlu0 %4147
      %4149 = vrot.lane.b32.xlu0 %v4099, 32
      %v4150 = vpop.permute.xlu0 %4149
      %vm4151 = vcmp.lt.s32.totalorder %v358, 32
      %v4152 = vsel %vm4151, %v4148, %v4150
      %v4153 = vsel %vm4151, %v4146, %v4148
      %v4154 = vsel %vm4151, %v4144, %v4146
      %v4155 = vsel %vm4151, %v4142, %v4144
      %v4156 = vsel %vm4151, %v4140, %v4142
      %v4157 = vsel %vm4151, %v4138, %v4140
      %v4158 = vsel %vm4151, %v4136, %v4138
      %v4159 = vsel %vm4151, %v4150, %v4136
      %v4160 = vmul.f32 %v4159, %v479
      %v4161 = vmul.f32 %v4158, %v480
      %v4162 = vmul.f32 %v4157, %v481
      %v4163 = vmul.f32 %v4156, %v482
      %v4164 = vmul.f32 %v4155, %v483
      %v4165 = vmul.f32 %v4154, %v484
      %v4166 = vmul.f32 %v4153, %v485
      %v4167 = vmul.f32 %v4152, %v486
      %4168 = vrot.lane.b32.xlu0 %v3671, 31
      %v4169 = vpop.permute.xlu0 %4168
      %4170 = vrot.lane.b32.xlu0 %v3673, 31
      %v4171 = vpop.permute.xlu0 %4170
      %4172 = vrot.lane.b32.xlu0 %v3813, 31
      %v4173 = vpop.permute.xlu0 %4172
      %4174 = vrot.lane.b32.xlu0 %v3815, 31
      %v4175 = vpop.permute.xlu0 %4174
      %4176 = vrot.lane.b32.xlu0 %v3955, 31
      %v4177 = vpop.permute.xlu0 %4176
      %4178 = vrot.lane.b32.xlu0 %v3957, 31
      %v4179 = vpop.permute.xlu0 %4178
      %4180 = vrot.lane.b32.xlu0 %v4097, 31
      %v4181 = vpop.permute.xlu0 %4180
      %4182 = vrot.lane.b32.xlu0 %v4099, 31
      %v4183 = vpop.permute.xlu0 %4182
      %vm4184 = vcmp.lt.s32.totalorder %v358, 31
      %v4185 = vsel %vm4184, %v4181, %v4183
      %v4186 = vsel %vm4184, %v4179, %v4181
      %v4187 = vsel %vm4184, %v4177, %v4179
      %v4188 = vsel %vm4184, %v4175, %v4177
      %v4189 = vsel %vm4184, %v4173, %v4175
      %v4190 = vsel %vm4184, %v4171, %v4173
      %v4191 = vsel %vm4184, %v4169, %v4171
      %v4192 = vsel %vm4184, %v4183, %v4169
      %v4193 = vmul.f32 %v4192, %v511
      %v4194 = vmul.f32 %v4191, %v512
      %v4195 = vmul.f32 %v4190, %v513
      %v4196 = vmul.f32 %v4189, %v514
      %v4197 = vmul.f32 %v4188, %v515
      %v4198 = vmul.f32 %v4187, %v516
      %v4199 = vmul.f32 %v4186, %v517
      %v4200 = vmul.f32 %v4185, %v518
      %4201 = vrot.lane.b32.xlu0 %v3671, 1
      %v4202 = vpop.permute.xlu0 %4201
      %4203 = vrot.lane.b32.xlu0 %v3673, 1
      %v4204 = vpop.permute.xlu0 %4203
      %4205 = vrot.lane.b32.xlu0 %v3813, 1
      %v4206 = vpop.permute.xlu0 %4205
      %4207 = vrot.lane.b32.xlu0 %v3815, 1
      %v4208 = vpop.permute.xlu0 %4207
      %4209 = vrot.lane.b32.xlu0 %v3955, 1
      %v4210 = vpop.permute.xlu0 %4209
      %4211 = vrot.lane.b32.xlu0 %v3957, 1
      %v4212 = vpop.permute.xlu0 %4211
      %4213 = vrot.lane.b32.xlu0 %v4097, 1
      %v4214 = vpop.permute.xlu0 %4213
      %4215 = vrot.lane.b32.xlu0 %v4099, 1
      %v4216 = vpop.permute.xlu0 %4215
      %v4217 = vsel %vm2568, %v4214, %v4216
      %v4218 = vsel %vm2568, %v4212, %v4214
      %v4219 = vsel %vm2568, %v4210, %v4212
      %v4220 = vsel %vm2568, %v4208, %v4210
      %v4221 = vsel %vm2568, %v4206, %v4208
      %v4222 = vsel %vm2568, %v4204, %v4206
      %v4223 = vsel %vm2568, %v4202, %v4204
      %v4224 = vsel %vm2568, %v4216, %v4202
      %v4225 = vmul.f32 %v4224, %v447
      %v4226 = vmul.f32 %v4223, %v448
      %v4227 = vmul.f32 %v4222, %v449
      %v4228 = vmul.f32 %v4221, %v450
      %v4229 = vmul.f32 %v4220, %v451
      %v4230 = vmul.f32 %v4219, %v452
      %v4231 = vmul.f32 %v4218, %v453
      %v4232 = vmul.f32 %v4217, %v454
      %4233 = vrot.lane.b32.xlu0 %v3671, 127
      %v4234 = vpop.permute.xlu0 %4233
      %4235 = vrot.lane.b32.xlu0 %v3673, 127
      %v4236 = vpop.permute.xlu0 %4235
      %4237 = vrot.lane.b32.xlu0 %v3813, 127
      %v4238 = vpop.permute.xlu0 %4237
      %4239 = vrot.lane.b32.xlu0 %v3815, 127
      %v4240 = vpop.permute.xlu0 %4239
      %4241 = vrot.lane.b32.xlu0 %v3955, 127
      %v4242 = vpop.permute.xlu0 %4241
      %4243 = vrot.lane.b32.xlu0 %v3957, 127
      %v4244 = vpop.permute.xlu0 %4243
      %4245 = vrot.lane.b32.xlu0 %v4097, 127
      %v4246 = vpop.permute.xlu0 %4245
      %4247 = vrot.lane.b32.xlu0 %v4099, 127
      %v4248 = vpop.permute.xlu0 %4247
      %v4249 = vsel %vm2577, %v4246, %v4248
      %v4250 = vsel %vm2577, %v4244, %v4246
      %v4251 = vsel %vm2577, %v4242, %v4244
      %v4252 = vsel %vm2577, %v4240, %v4242
      %v4253 = vsel %vm2577, %v4238, %v4240
      %v4254 = vsel %vm2577, %v4236, %v4238
      %v4255 = vsel %vm2577, %v4234, %v4236
      %v4256 = vsel %vm2577, %v4248, %v4234
      %v4257 = vmul.f32 %v4255, %v463
      %v4258 = vmul.f32 %v4254, %v464
      %v4259 = vmul.f32 %v4253, %v465
      %v4260 = vmul.f32 %v4252, %v466
      %v4261 = vmul.f32 %v4251, %v467
      %v4262 = vmul.f32 %v4250, %v468
      %v4263 = vmul.f32 %v4249, %v469
      %v4264 = vmul.f32 %v4256, %v470
      %4265 = vrot.lane.b32.xlu0 %v3671, 97
      %v4266 = vpop.permute.xlu0 %4265
      %4267 = vrot.lane.b32.xlu0 %v3673, 97
      %v4268 = vpop.permute.xlu0 %4267
      %4269 = vrot.lane.b32.xlu0 %v3813, 97
      %v4270 = vpop.permute.xlu0 %4269
      %4271 = vrot.lane.b32.xlu0 %v3815, 97
      %v4272 = vpop.permute.xlu0 %4271
      %4273 = vrot.lane.b32.xlu0 %v3955, 97
      %v4274 = vpop.permute.xlu0 %4273
      %4275 = vrot.lane.b32.xlu0 %v3957, 97
      %v4276 = vpop.permute.xlu0 %4275
      %4277 = vrot.lane.b32.xlu0 %v4097, 97
      %v4278 = vpop.permute.xlu0 %4277
      %4279 = vrot.lane.b32.xlu0 %v4099, 97
      %v4280 = vpop.permute.xlu0 %4279
      %vm4281 = vcmp.lt.s32.totalorder %v358, 97
      %v4282 = vsel %vm4281, %v4278, %v4280
      %v4283 = vsel %vm4281, %v4276, %v4278
      %v4284 = vsel %vm4281, %v4274, %v4276
      %v4285 = vsel %vm4281, %v4272, %v4274
      %v4286 = vsel %vm4281, %v4270, %v4272
      %v4287 = vsel %vm4281, %v4268, %v4270
      %v4288 = vsel %vm4281, %v4266, %v4268
      %v4289 = vsel %vm4281, %v4280, %v4266
      %v4290 = vmul.f32 %v4288, %v519
      %v4291 = vmul.f32 %v4287, %v520
      %v4292 = vmul.f32 %v4286, %v521
      %v4293 = vmul.f32 %v4285, %v522
      %v4294 = vmul.f32 %v4284, %v523
      %v4295 = vmul.f32 %v4283, %v524
      %v4296 = vmul.f32 %v4282, %v525
      %v4297 = vmul.f32 %v4289, %v526
      %4298 = vrot.lane.b32.xlu0 %v3671, 96
      %v4299 = vpop.permute.xlu0 %4298
      %4300 = vrot.lane.b32.xlu0 %v3673, 96
      %v4301 = vpop.permute.xlu0 %4300
      %4302 = vrot.lane.b32.xlu0 %v3813, 96
      %v4303 = vpop.permute.xlu0 %4302
      %4304 = vrot.lane.b32.xlu0 %v3815, 96
      %v4305 = vpop.permute.xlu0 %4304
      %4306 = vrot.lane.b32.xlu0 %v3955, 96
      %v4307 = vpop.permute.xlu0 %4306
      %4308 = vrot.lane.b32.xlu0 %v3957, 96
      %v4309 = vpop.permute.xlu0 %4308
      %4310 = vrot.lane.b32.xlu0 %v4097, 96
      %v4311 = vpop.permute.xlu0 %4310
      %4312 = vrot.lane.b32.xlu0 %v4099, 96
      %v4313 = vpop.permute.xlu0 %4312
      %vm4314 = vcmp.lt.s32.totalorder %v358, 96
      %v4315 = vsel %vm4314, %v4311, %v4313
      %v4316 = vsel %vm4314, %v4309, %v4311
      %v4317 = vsel %vm4314, %v4307, %v4309
      %v4318 = vsel %vm4314, %v4305, %v4307
      %v4319 = vsel %vm4314, %v4303, %v4305
      %v4320 = vsel %vm4314, %v4301, %v4303
      %v4321 = vsel %vm4314, %v4299, %v4301
      %v4322 = vsel %vm4314, %v4313, %v4299
      %v4323 = vmul.f32 %v4321, %v495
      %v4324 = vmul.f32 %v4320, %v496
      %v4325 = vmul.f32 %v4319, %v497
      %v4326 = vmul.f32 %v4318, %v498
      %v4327 = vmul.f32 %v4317, %v499
      %v4328 = vmul.f32 %v4316, %v500
      %v4329 = vmul.f32 %v4315, %v501
      %v4330 = vmul.f32 %v4322, %v502
      %4331 = vrot.lane.b32.xlu0 %v3671, 95
      %v4332 = vpop.permute.xlu0 %4331
      %4333 = vrot.lane.b32.xlu0 %v3673, 95
      %v4334 = vpop.permute.xlu0 %4333
      %4335 = vrot.lane.b32.xlu0 %v3813, 95
      %v4336 = vpop.permute.xlu0 %4335
      %4337 = vrot.lane.b32.xlu0 %v3815, 95
      %v4338 = vpop.permute.xlu0 %4337
      %4339 = vrot.lane.b32.xlu0 %v3955, 95
      %v4340 = vpop.permute.xlu0 %4339
      %4341 = vrot.lane.b32.xlu0 %v3957, 95
      %v4342 = vpop.permute.xlu0 %4341
      %4343 = vrot.lane.b32.xlu0 %v4097, 95
      %v4344 = vpop.permute.xlu0 %4343
      %4345 = vrot.lane.b32.xlu0 %v4099, 95
      %v4346 = vpop.permute.xlu0 %4345
      %vm4347 = vcmp.lt.s32.totalorder %v358, 95
      %v4348 = vsel %vm4347, %v4344, %v4346
      %v4349 = vsel %vm4347, %v4342, %v4344
      %v4350 = vsel %vm4347, %v4340, %v4342
      %v4351 = vsel %vm4347, %v4338, %v4340
      %v4352 = vsel %vm4347, %v4336, %v4338
      %v4353 = vsel %vm4347, %v4334, %v4336
      %v4354 = vsel %vm4347, %v4332, %v4334
      %v4355 = vsel %vm4347, %v4346, %v4332
      %v4356 = vmul.f32 %v4354, %v527
      %v4357 = vmul.f32 %v4353, %v528
      %v4358 = vmul.f32 %v4352, %v529
      %v4359 = vmul.f32 %v4351, %v530
      %v4360 = vmul.f32 %v4350, %v531
      %v4361 = vmul.f32 %v4349, %v532
      %v4362 = vmul.f32 %v4348, %v533
      %v4363 = vmul.f32 %v4355, %v534
      %v4365 = vsel %vm2317, %v4101, 0
      %4367 = vmatprep.subr.mxu0 %v4128
      %4368 = vmatpush1.msra.mxu0 %v4127
      %4369 = vmatprep.subr.mxu0 %v4161
      %4370 = vmatpush1.msra.mxu0 %v4160
      %4371 = vmatprep.subr.mxu0 %v4194
      %4372 = vmatpush1.msra.mxu0 %v4193
      %4373 = vmatprep.subr.mxu0 %v4226
      %4374 = vmatpush1.msra.mxu0 %v4225
      %4375 = vmatprep.subr.mxu0 %v3673
      %4376 = vmatpush1.msra.mxu0 %v3671
      %4377 = vmatprep.subr.mxu0 %v4258
      %4378 = vmatpush1.msra.mxu0 %v4257
      %4379 = vmatprep.subr.mxu0 %v4291
      %4380 = vmatpush1.msra.mxu0 %v4290
      %4381 = vmatprep.subr.mxu0 %v4324
      %4382 = vmatpush1.msra.mxu0 %v4323
      %4383 = vmatprep.subr.mxu0 %v4357
      %4384 = vmatpush1.msra.mxu0 %v4356
      %4385 = vmatprep.subr.mxu0 %v829
      %4386 = vmatpush1.msra.mxu0 %v829
      %4387 = vmatprep.subr.mxu0 0.0
      %4388 = vmatpush1.msra.mxu0 0.0
      %4389 = vmatprep.subr.mxu0 0.0
      %4390 = vmatpush1.msra.mxu0 0.0
      %4391 = vmatprep.subr.mxu0 0.0
      %4392 = vmatpush1.msra.mxu0 0.0
      %4393 = vmatprep.subr.mxu0 0.0
      %4394 = vmatpush1.msra.mxu0 0.0
      %4395 = vmatprep.subr.mxu0 0.0
      %4396 = vmatpush1.msra.mxu0 0.0
      %4397 = vmatprep.subr.mxu0 0.0
      %4398 = vmatpush1.msra.mxu0 0.0
      %4399 = vmatprep.subr.mxu0 0.0
      %4400 = vmatpush1.msra.mxu0 0.0
      %4401 = vmatprep.subr.mxu0 0.0
      %4402 = vmatpush1.msra.mxu0 0.0
      %4403 = vmatprep.subr.mxu0 0.0
      %4404 = vmatpush1.msra.mxu0 0.0
      %4405 = vmatprep.subr.mxu0 0.0
      %4406 = vmatpush1.msra.mxu0 0.0
      %4407 = vmatprep.subr.mxu0 0.0
      %4408 = vmatpush1.msra.mxu0 0.0
      %4409 = vmatprep.subr.mxu0 0.0
      %4410 = vmatpush1.msra.mxu0 0.0
      %4411 = vmatprep.subr.mxu0 0.0
      %4412 = vmatpush1.msra.mxu0 0.0
      %4413 = vmatprep.subr.mxu0 0.0
      %4414 = vmatpush1.msra.mxu0 0.0
      %4415 = vmatprep.subr.mxu0 0.0
      %4416 = vmatpush1.msra.mxu0 0.0
      %4417 = vmatprep.subr.mxu0 0.0
      %4418 = vmatpush1.msra.mxu0 0.0
      %4419 = vmatprep.subr.mxu0 0.0
      %4420 = vmatpush1.msra.mxu0 0.0
      %4421 = vmatprep.subr.mxu0 0.0
      %4422 = vmatpush1.msra.mxu0 0.0
      %4423 = vmatprep.subr.mxu0 0.0
      %4424 = vmatpush1.msra.mxu0 0.0
      %4425 = vmatprep.subr.mxu0 0.0
      %4426 = vmatpush1.msra.mxu0 0.0
      %4427 = vmatprep.subr.mxu0 0.0
      %4428 = vmatpush1.msra.mxu0 0.0
      %4429 = vmatprep.subr.mxu0 0.0
      %4430 = vmatpush1.msra.mxu0 0.0
      %4431 = vmatprep.mubr.f32.mxu0 0.0
      %4432 = vmatmul.mubr.f32.gmra.mrb[0].mxu0 %v4365
      %v4433 = vpop.f32.mrb[0].mxu0
      %v4434 = vadd.f32 0.0, %v4433
      %v4435 = vpop.f32.mrb[0].mxu0
      %v4436 = vadd.f32 0.0, %v4435
      %4437 = vdwg.mxu0
      %4438 = vmatprep.subr.mxu0 %v4130
      %4439 = vmatpush1.msra.mxu0 %v4129
      %4440 = vmatprep.subr.mxu0 %v4163
      %4441 = vmatpush1.msra.mxu0 %v4162
      %4442 = vmatprep.subr.mxu0 %v4196
      %4443 = vmatpush1.msra.mxu0 %v4195
      %4444 = vmatprep.subr.mxu0 %v4228
      %4445 = vmatpush1.msra.mxu0 %v4227
      %4446 = vmatprep.subr.mxu0 %v3815
      %4447 = vmatpush1.msra.mxu0 %v3813
      %4448 = vmatprep.subr.mxu0 %v4260
      %4449 = vmatpush1.msra.mxu0 %v4259
      %4450 = vmatprep.subr.mxu0 %v4293
      %4451 = vmatpush1.msra.mxu0 %v4292
      %4452 = vmatprep.subr.mxu0 %v4326
      %4453 = vmatpush1.msra.mxu0 %v4325
      %4454 = vmatprep.subr.mxu0 %v4359
      %4455 = vmatpush1.msra.mxu0 %v4358
      %4456 = vmatprep.subr.mxu0 %v829
      %4457 = vmatpush1.msra.mxu0 %v829
      %4458 = vmatprep.subr.mxu0 0.0
      %4459 = vmatpush1.msra.mxu0 0.0
      %4460 = vmatprep.subr.mxu0 0.0
      %4461 = vmatpush1.msra.mxu0 0.0
      %4462 = vmatprep.subr.mxu0 0.0
      %4463 = vmatpush1.msra.mxu0 0.0
      %4464 = vmatprep.subr.mxu0 0.0
      %4465 = vmatpush1.msra.mxu0 0.0
      %4466 = vmatprep.subr.mxu0 0.0
      %4467 = vmatpush1.msra.mxu0 0.0
      %4468 = vmatprep.subr.mxu0 0.0
      %4469 = vmatpush1.msra.mxu0 0.0
      %4470 = vmatprep.subr.mxu0 0.0
      %4471 = vmatpush1.msra.mxu0 0.0
      %4472 = vmatprep.subr.mxu0 0.0
      %4473 = vmatpush1.msra.mxu0 0.0
      %4474 = vmatprep.subr.mxu0 0.0
      %4475 = vmatpush1.msra.mxu0 0.0
      %4476 = vmatprep.subr.mxu0 0.0
      %4477 = vmatpush1.msra.mxu0 0.0
      %4478 = vmatprep.subr.mxu0 0.0
      %4479 = vmatpush1.msra.mxu0 0.0
      %4480 = vmatprep.subr.mxu0 0.0
      %4481 = vmatpush1.msra.mxu0 0.0
      %4482 = vmatprep.subr.mxu0 0.0
      %4483 = vmatpush1.msra.mxu0 0.0
      %4484 = vmatprep.subr.mxu0 0.0
      %4485 = vmatpush1.msra.mxu0 0.0
      %4486 = vmatprep.subr.mxu0 0.0
      %4487 = vmatpush1.msra.mxu0 0.0
      %4488 = vmatprep.subr.mxu0 0.0
      %4489 = vmatpush1.msra.mxu0 0.0
      %4490 = vmatprep.subr.mxu0 0.0
      %4491 = vmatpush1.msra.mxu0 0.0
      %4492 = vmatprep.subr.mxu0 0.0
      %4493 = vmatpush1.msra.mxu0 0.0
      %4494 = vmatprep.subr.mxu0 0.0
      %4495 = vmatpush1.msra.mxu0 0.0
      %4496 = vmatprep.subr.mxu0 0.0
      %4497 = vmatpush1.msra.mxu0 0.0
      %4498 = vmatprep.subr.mxu0 0.0
      %4499 = vmatpush1.msra.mxu0 0.0
      %4500 = vmatprep.subr.mxu0 0.0
      %4501 = vmatpush1.msra.mxu0 0.0
      %4502 = vmatprep.mubr.f32.mxu0 0.0
      %4503 = vmatmul.mubr.f32.gmra.mrb[0].mxu0 %v4365
      %v4504 = vpop.f32.mrb[0].mxu0
      %v4505 = vadd.f32 0.0, %v4504
      %v4506 = vpop.f32.mrb[0].mxu0
      %v4507 = vadd.f32 0.0, %v4506
      %4508 = vdwg.mxu0
      %4509 = vmatprep.subr.mxu0 %v4132
      %4510 = vmatpush1.msra.mxu0 %v4131
      %4511 = vmatprep.subr.mxu0 %v4165
      %4512 = vmatpush1.msra.mxu0 %v4164
      %4513 = vmatprep.subr.mxu0 %v4198
      %4514 = vmatpush1.msra.mxu0 %v4197
      %4515 = vmatprep.subr.mxu0 %v4230
      %4516 = vmatpush1.msra.mxu0 %v4229
      %4517 = vmatprep.subr.mxu0 %v3957
      %4518 = vmatpush1.msra.mxu0 %v3955
      %4519 = vmatprep.subr.mxu0 %v4262
      %4520 = vmatpush1.msra.mxu0 %v4261
      %4521 = vmatprep.subr.mxu0 %v4295
      %4522 = vmatpush1.msra.mxu0 %v4294
      %4523 = vmatprep.subr.mxu0 %v4328
      %4524 = vmatpush1.msra.mxu0 %v4327
      %4525 = vmatprep.subr.mxu0 %v4361
      %4526 = vmatpush1.msra.mxu0 %v4360
      %4527 = vmatprep.subr.mxu0 %v829
      %4528 = vmatpush1.msra.mxu0 %v829
      %4529 = vmatprep.subr.mxu0 0.0
      %4530 = vmatpush1.msra.mxu0 0.0
      %4531 = vmatprep.subr.mxu0 0.0
      %4532 = vmatpush1.msra.mxu0 0.0
      %4533 = vmatprep.subr.mxu0 0.0
      %4534 = vmatpush1.msra.mxu0 0.0
      %4535 = vmatprep.subr.mxu0 0.0
      %4536 = vmatpush1.msra.mxu0 0.0
      %4537 = vmatprep.subr.mxu0 0.0
      %4538 = vmatpush1.msra.mxu0 0.0
      %4539 = vmatprep.subr.mxu0 0.0
      %4540 = vmatpush1.msra.mxu0 0.0
      %4541 = vmatprep.subr.mxu0 0.0
      %4542 = vmatpush1.msra.mxu0 0.0
      %4543 = vmatprep.subr.mxu0 0.0
      %4544 = vmatpush1.msra.mxu0 0.0
      %4545 = vmatprep.subr.mxu0 0.0
      %4546 = vmatpush1.msra.mxu0 0.0
      %4547 = vmatprep.subr.mxu0 0.0
      %4548 = vmatpush1.msra.mxu0 0.0
      %4549 = vmatprep.subr.mxu0 0.0
      %4550 = vmatpush1.msra.mxu0 0.0
      %4551 = vmatprep.subr.mxu0 0.0
      %4552 = vmatpush1.msra.mxu0 0.0
      %4553 = vmatprep.subr.mxu0 0.0
      %4554 = vmatpush1.msra.mxu0 0.0
      %4555 = vmatprep.subr.mxu0 0.0
      %4556 = vmatpush1.msra.mxu0 0.0
      %4557 = vmatprep.subr.mxu0 0.0
      %4558 = vmatpush1.msra.mxu0 0.0
      %4559 = vmatprep.subr.mxu0 0.0
      %4560 = vmatpush1.msra.mxu0 0.0
      %4561 = vmatprep.subr.mxu0 0.0
      %4562 = vmatpush1.msra.mxu0 0.0
      %4563 = vmatprep.subr.mxu0 0.0
      %4564 = vmatpush1.msra.mxu0 0.0
      %4565 = vmatprep.subr.mxu0 0.0
      %4566 = vmatpush1.msra.mxu0 0.0
      %4567 = vmatprep.subr.mxu0 0.0
      %4568 = vmatpush1.msra.mxu0 0.0
      %4569 = vmatprep.subr.mxu0 0.0
      %4570 = vmatpush1.msra.mxu0 0.0
      %4571 = vmatprep.subr.mxu0 0.0
      %4572 = vmatpush1.msra.mxu0 0.0
      %4573 = vmatprep.mubr.f32.mxu0 0.0
      %4574 = vmatmul.mubr.f32.gmra.mrb[0].mxu0 %v4365
      %v4575 = vpop.f32.mrb[0].mxu0
      %v4576 = vadd.f32 0.0, %v4575
      %v4577 = vpop.f32.mrb[0].mxu0
      %v4578 = vadd.f32 0.0, %v4577
      %4579 = vdwg.mxu0
      %4580 = vmatprep.subr.mxu0 %v4134
      %4581 = vmatpush1.msra.mxu0 %v4133
      %4582 = vmatprep.subr.mxu0 %v4167
      %4583 = vmatpush1.msra.mxu0 %v4166
      %4584 = vmatprep.subr.mxu0 %v4200
      %4585 = vmatpush1.msra.mxu0 %v4199
      %4586 = vmatprep.subr.mxu0 %v4232
      %4587 = vmatpush1.msra.mxu0 %v4231
      %4588 = vmatprep.subr.mxu0 %v4099
      %4589 = vmatpush1.msra.mxu0 %v4097
      %4590 = vmatprep.subr.mxu0 %v4264
      %4591 = vmatpush1.msra.mxu0 %v4263
      %4592 = vmatprep.subr.mxu0 %v4297
      %4593 = vmatpush1.msra.mxu0 %v4296
      %4594 = vmatprep.subr.mxu0 %v4330
      %4595 = vmatpush1.msra.mxu0 %v4329
      %4596 = vmatprep.subr.mxu0 %v4363
      %4597 = vmatpush1.msra.mxu0 %v4362
      %4598 = vmatprep.subr.mxu0 %v829
      %4599 = vmatpush1.msra.mxu0 %v829
      %4600 = vmatprep.subr.mxu0 0.0
      %4601 = vmatpush1.msra.mxu0 0.0
      %4602 = vmatprep.subr.mxu0 0.0
      %4603 = vmatpush1.msra.mxu0 0.0
      %4604 = vmatprep.subr.mxu0 0.0
      %4605 = vmatpush1.msra.mxu0 0.0
      %4606 = vmatprep.subr.mxu0 0.0
      %4607 = vmatpush1.msra.mxu0 0.0
      %4608 = vmatprep.subr.mxu0 0.0
      %4609 = vmatpush1.msra.mxu0 0.0
      %4610 = vmatprep.subr.mxu0 0.0
      %4611 = vmatpush1.msra.mxu0 0.0
      %4612 = vmatprep.subr.mxu0 0.0
      %4613 = vmatpush1.msra.mxu0 0.0
      %4614 = vmatprep.subr.mxu0 0.0
      %4615 = vmatpush1.msra.mxu0 0.0
      %4616 = vmatprep.subr.mxu0 0.0
      %4617 = vmatpush1.msra.mxu0 0.0
      %4618 = vmatprep.subr.mxu0 0.0
      %4619 = vmatpush1.msra.mxu0 0.0
      %4620 = vmatprep.subr.mxu0 0.0
      %4621 = vmatpush1.msra.mxu0 0.0
      %4622 = vmatprep.subr.mxu0 0.0
      %4623 = vmatpush1.msra.mxu0 0.0
      %4624 = vmatprep.subr.mxu0 0.0
      %4625 = vmatpush1.msra.mxu0 0.0
      %4626 = vmatprep.subr.mxu0 0.0
      %4627 = vmatpush1.msra.mxu0 0.0
      %4628 = vmatprep.subr.mxu0 0.0
      %4629 = vmatpush1.msra.mxu0 0.0
      %4630 = vmatprep.subr.mxu0 0.0
      %4631 = vmatpush1.msra.mxu0 0.0
      %4632 = vmatprep.subr.mxu0 0.0
      %4633 = vmatpush1.msra.mxu0 0.0
      %4634 = vmatprep.subr.mxu0 0.0
      %4635 = vmatpush1.msra.mxu0 0.0
      %4636 = vmatprep.subr.mxu0 0.0
      %4637 = vmatpush1.msra.mxu0 0.0
      %4638 = vmatprep.subr.mxu0 0.0
      %4639 = vmatpush1.msra.mxu0 0.0
      %4640 = vmatprep.subr.mxu0 0.0
      %4641 = vmatpush1.msra.mxu0 0.0
      %4642 = vmatprep.subr.mxu0 0.0
      %4643 = vmatpush1.msra.mxu0 0.0
      %4644 = vmatprep.mubr.f32.mxu0 0.0
      %4645 = vmatmul.mubr.f32.gmra.mrb[0].mxu0 %v4365
      %v4646 = vpop.f32.mrb[0].mxu0
      %v4647 = vadd.f32 0.0, %v4646
      %v4648 = vpop.f32.mrb[0].mxu0
      %v4649 = vadd.f32 0.0, %v4648
      %4650 = vdwg.mxu0
      %v4651 = vld [vmem:[%s6 + $0x258] sm:$0xff]
      %4652 = vrot.lane.b32.xlu0 %v4434, 33
      %v4653 = vpop.permute.xlu0 %4652
      %4654 = vrot.lane.b32.xlu0 %v4436, 33
      %v4655 = vpop.permute.xlu0 %4654
      %4656 = vrot.lane.b32.xlu0 %v4505, 33
      %v4657 = vpop.permute.xlu0 %4656
      %4658 = vrot.lane.b32.xlu0 %v4507, 33
      %v4659 = vpop.permute.xlu0 %4658
      %4660 = vrot.lane.b32.xlu0 %v4576, 33
      %v4661 = vpop.permute.xlu0 %4660
      %4662 = vrot.lane.b32.xlu0 %v4578, 33
      %v4663 = vpop.permute.xlu0 %4662
      %4664 = vrot.lane.b32.xlu0 %v4647, 33
      %v4665 = vpop.permute.xlu0 %4664
      %4666 = vrot.lane.b32.xlu0 %v4649, 33
      %v4667 = vpop.permute.xlu0 %4666
      %v4668 = vsel %vm4118, %v4665, %v4667
      %v4669 = vsel %vm4118, %v4663, %v4665
      %v4670 = vsel %vm4118, %v4661, %v4663
      %v4671 = vsel %vm4118, %v4659, %v4661
      %v4672 = vsel %vm4118, %v4657, %v4659
      %v4673 = vsel %vm4118, %v4655, %v4657
      %v4674 = vsel %vm4118, %v4653, %v4655
      %v4675 = vsel %vm4118, %v4667, %v4653
      %v4676 = vmul.f32 %v4675, %v503
      %v4677 = vmul.f32 %v4674, %v504
      %v4678 = vmul.f32 %v4673, %v505
      %v4679 = vmul.f32 %v4672, %v506
      %v4680 = vmul.f32 %v4671, %v507
      %v4681 = vmul.f32 %v4670, %v508
      %v4682 = vmul.f32 %v4669, %v509
      %v4683 = vmul.f32 %v4668, %v510
      %4684 = vrot.lane.b32.xlu0 %v4434, 32
      %v4685 = vpop.permute.xlu0 %4684
      %4686 = vrot.lane.b32.xlu0 %v4436, 32
      %v4687 = vpop.permute.xlu0 %4686
      %4688 = vrot.lane.b32.xlu0 %v4505, 32
      %v4689 = vpop.permute.xlu0 %4688
      %4690 = vrot.lane.b32.xlu0 %v4507, 32
      %v4691 = vpop.permute.xlu0 %4690
      %4692 = vrot.lane.b32.xlu0 %v4576, 32
      %v4693 = vpop.permute.xlu0 %4692
      %4694 = vrot.lane.b32.xlu0 %v4578, 32
      %v4695 = vpop.permute.xlu0 %4694
      %4696 = vrot.lane.b32.xlu0 %v4647, 32
      %v4697 = vpop.permute.xlu0 %4696
      %4698 = vrot.lane.b32.xlu0 %v4649, 32
      %v4699 = vpop.permute.xlu0 %4698
      %v4700 = vsel %vm4151, %v4697, %v4699
      %v4701 = vsel %vm4151, %v4695, %v4697
      %v4702 = vsel %vm4151, %v4693, %v4695
      %v4703 = vsel %vm4151, %v4691, %v4693
      %v4704 = vsel %vm4151, %v4689, %v4691
      %v4705 = vsel %vm4151, %v4687, %v4689
      %v4706 = vsel %vm4151, %v4685, %v4687
      %v4707 = vsel %vm4151, %v4699, %v4685
      %v4708 = vmul.f32 %v4707, %v479
      %v4709 = vmul.f32 %v4706, %v480
      %v4710 = vmul.f32 %v4705, %v481
      %v4711 = vmul.f32 %v4704, %v482
      %v4712 = vmul.f32 %v4703, %v483
      %v4713 = vmul.f32 %v4702, %v484
      %v4714 = vmul.f32 %v4701, %v485
      %v4715 = vmul.f32 %v4700, %v486
      %4716 = vrot.lane.b32.xlu0 %v4434, 31
      %v4717 = vpop.permute.xlu0 %4716
      %4718 = vrot.lane.b32.xlu0 %v4436, 31
      %v4719 = vpop.permute.xlu0 %4718
      %4720 = vrot.lane.b32.xlu0 %v4505, 31
      %v4721 = vpop.permute.xlu0 %4720
      %4722 = vrot.lane.b32.xlu0 %v4507, 31
      %v4723 = vpop.permute.xlu0 %4722
      %4724 = vrot.lane.b32.xlu0 %v4576, 31
      %v4725 = vpop.permute.xlu0 %4724
      %4726 = vrot.lane.b32.xlu0 %v4578, 31
      %v4727 = vpop.permute.xlu0 %4726
      %4728 = vrot.lane.b32.xlu0 %v4647, 31
      %v4729 = vpop.permute.xlu0 %4728
      %4730 = vrot.lane.b32.xlu0 %v4649, 31
      %v4731 = vpop.permute.xlu0 %4730
      %v4732 = vsel %vm4184, %v4729, %v4731
      %v4733 = vsel %vm4184, %v4727, %v4729
      %v4734 = vsel %vm4184, %v4725, %v4727
      %v4735 = vsel %vm4184, %v4723, %v4725
      %v4736 = vsel %vm4184, %v4721, %v4723
      %v4737 = vsel %vm4184, %v4719, %v4721
      %v4738 = vsel %vm4184, %v4717, %v4719
      %v4739 = vsel %vm4184, %v4731, %v4717
      %v4740 = vmul.f32 %v4739, %v511
      %v4741 = vmul.f32 %v4738, %v512
      %v4742 = vmul.f32 %v4737, %v513
      %v4743 = vmul.f32 %v4736, %v514
      %v4744 = vmul.f32 %v4735, %v515
      %v4745 = vmul.f32 %v4734, %v516
      %v4746 = vmul.f32 %v4733, %v517
      %v4747 = vmul.f32 %v4732, %v518
      %4748 = vrot.lane.b32.xlu0 %v4434, 1
      %v4749 = vpop.permute.xlu0 %4748
      %4750 = vrot.lane.b32.xlu0 %v4436, 1
      %v4751 = vpop.permute.xlu0 %4750
      %4752 = vrot.lane.b32.xlu0 %v4505, 1
      %v4753 = vpop.permute.xlu0 %4752
      %4754 = vrot.lane.b32.xlu0 %v4507, 1
      %v4755 = vpop.permute.xlu0 %4754
      %4756 = vrot.lane.b32.xlu0 %v4576, 1
      %v4757 = vpop.permute.xlu0 %4756
      %4758 = vrot.lane.b32.xlu0 %v4578, 1
      %v4759 = vpop.permute.xlu0 %4758
      %4760 = vrot.lane.b32.xlu0 %v4647, 1
      %v4761 = vpop.permute.xlu0 %4760
      %4762 = vrot.lane.b32.xlu0 %v4649, 1
      %v4763 = vpop.permute.xlu0 %4762
      %v4764 = vsel %vm2568, %v4761, %v4763
      %v4765 = vsel %vm2568, %v4759, %v4761
      %v4766 = vsel %vm2568, %v4757, %v4759
      %v4767 = vsel %vm2568, %v4755, %v4757
      %v4768 = vsel %vm2568, %v4753, %v4755
      %v4769 = vsel %vm2568, %v4751, %v4753
      %v4770 = vsel %vm2568, %v4749, %v4751
      %v4771 = vsel %vm2568, %v4763, %v4749
      %v4772 = vmul.f32 %v4771, %v447
      %v4773 = vmul.f32 %v4770, %v448
      %v4774 = vmul.f32 %v4769, %v449
      %v4775 = vmul.f32 %v4768, %v450
      %v4776 = vmul.f32 %v4767, %v451
      %v4777 = vmul.f32 %v4766, %v452
      %v4778 = vmul.f32 %v4765, %v453
      %v4779 = vmul.f32 %v4764, %v454
      %4780 = vrot.lane.b32.xlu0 %v4434, 127
      %v4781 = vpop.permute.xlu0 %4780
      %4782 = vrot.lane.b32.xlu0 %v4436, 127
      %v4783 = vpop.permute.xlu0 %4782
      %4784 = vrot.lane.b32.xlu0 %v4505, 127
      %v4785 = vpop.permute.xlu0 %4784
      %4786 = vrot.lane.b32.xlu0 %v4507, 127
      %v4787 = vpop.permute.xlu0 %4786
      %4788 = vrot.lane.b32.xlu0 %v4576, 127
      %v4789 = vpop.permute.xlu0 %4788
      %4790 = vrot.lane.b32.xlu0 %v4578, 127
      %v4791 = vpop.permute.xlu0 %4790
      %4792 = vrot.lane.b32.xlu0 %v4647, 127
      %v4793 = vpop.permute.xlu0 %4792
      %4794 = vrot.lane.b32.xlu0 %v4649, 127
      %v4795 = vpop.permute.xlu0 %4794
      %v4796 = vsel %vm2577, %v4793, %v4795
      %v4797 = vsel %vm2577, %v4791, %v4793
      %v4798 = vsel %vm2577, %v4789, %v4791
      %v4799 = vsel %vm2577, %v4787, %v4789
      %v4800 = vsel %vm2577, %v4785, %v4787
      %v4801 = vsel %vm2577, %v4783, %v4785
      %v4802 = vsel %vm2577, %v4781, %v4783
      %v4803 = vsel %vm2577, %v4795, %v4781
      %v4804 = vmul.f32 %v4802, %v463
      %v4805 = vmul.f32 %v4801, %v464
      %v4806 = vmul.f32 %v4800, %v465
      %v4807 = vmul.f32 %v4799, %v466
      %v4808 = vmul.f32 %v4798, %v467
      %v4809 = vmul.f32 %v4797, %v468
      %v4810 = vmul.f32 %v4796, %v469
      %v4811 = vmul.f32 %v4803, %v470
      %4812 = vrot.lane.b32.xlu0 %v4434, 97
      %v4813 = vpop.permute.xlu0 %4812
      %4814 = vrot.lane.b32.xlu0 %v4436, 97
      %v4815 = vpop.permute.xlu0 %4814
      %4816 = vrot.lane.b32.xlu0 %v4505, 97
      %v4817 = vpop.permute.xlu0 %4816
      %4818 = vrot.lane.b32.xlu0 %v4507, 97
      %v4819 = vpop.permute.xlu0 %4818
      %4820 = vrot.lane.b32.xlu0 %v4576, 97
      %v4821 = vpop.permute.xlu0 %4820
      %4822 = vrot.lane.b32.xlu0 %v4578, 97
      %v4823 = vpop.permute.xlu0 %4822
      %4824 = vrot.lane.b32.xlu0 %v4647, 97
      %v4825 = vpop.permute.xlu0 %4824
      %4826 = vrot.lane.b32.xlu0 %v4649, 97
      %v4827 = vpop.permute.xlu0 %4826
      %v4828 = vsel %vm4281, %v4825, %v4827
      %v4829 = vsel %vm4281, %v4823, %v4825
      %v4830 = vsel %vm4281, %v4821, %v4823
      %v4831 = vsel %vm4281, %v4819, %v4821
      %v4832 = vsel %vm4281, %v4817, %v4819
      %v4833 = vsel %vm4281, %v4815, %v4817
      %v4834 = vsel %vm4281, %v4813, %v4815
      %v4835 = vsel %vm4281, %v4827, %v4813
      %v4836 = vmul.f32 %v4834, %v519
      %v4837 = vmul.f32 %v4833, %v520
      %v4838 = vmul.f32 %v4832, %v521
      %v4839 = vmul.f32 %v4831, %v522
      %v4840 = vmul.f32 %v4830, %v523
      %v4841 = vmul.f32 %v4829, %v524
      %v4842 = vmul.f32 %v4828, %v525
      %v4843 = vmul.f32 %v4835, %v526
      %4844 = vrot.lane.b32.xlu0 %v4434, 96
      %v4845 = vpop.permute.xlu0 %4844
      %4846 = vrot.lane.b32.xlu0 %v4436, 96
      %v4847 = vpop.permute.xlu0 %4846
      %4848 = vrot.lane.b32.xlu0 %v4505, 96
      %v4849 = vpop.permute.xlu0 %4848
      %4850 = vrot.lane.b32.xlu0 %v4507, 96
      %v4851 = vpop.permute.xlu0 %4850
      %4852 = vrot.lane.b32.xlu0 %v4576, 96
      %v4853 = vpop.permute.xlu0 %4852
      %4854 = vrot.lane.b32.xlu0 %v4578, 96
      %v4855 = vpop.permute.xlu0 %4854
      %4856 = vrot.lane.b32.xlu0 %v4647, 96
      %v4857 = vpop.permute.xlu0 %4856
      %4858 = vrot.lane.b32.xlu0 %v4649, 96
      %v4859 = vpop.permute.xlu0 %4858
      %v4860 = vsel %vm4314, %v4857, %v4859
      %v4861 = vsel %vm4314, %v4855, %v4857
      %v4862 = vsel %vm4314, %v4853, %v4855
      %v4863 = vsel %vm4314, %v4851, %v4853
      %v4864 = vsel %vm4314, %v4849, %v4851
      %v4865 = vsel %vm4314, %v4847, %v4849
      %v4866 = vsel %vm4314, %v4845, %v4847
      %v4867 = vsel %vm4314, %v4859, %v4845
      %v4868 = vmul.f32 %v4866, %v495
      %v4869 = vmul.f32 %v4865, %v496
      %v4870 = vmul.f32 %v4864, %v497
      %v4871 = vmul.f32 %v4863, %v498
      %v4872 = vmul.f32 %v4862, %v499
      %v4873 = vmul.f32 %v4861, %v500
      %v4874 = vmul.f32 %v4860, %v501
      %v4875 = vmul.f32 %v4867, %v502
      %4876 = vrot.lane.b32.xlu0 %v4434, 95
      %v4877 = vpop.permute.xlu0 %4876
      %4878 = vrot.lane.b32.xlu0 %v4436, 95
      %v4879 = vpop.permute.xlu0 %4878
      %4880 = vrot.lane.b32.xlu0 %v4505, 95
      %v4881 = vpop.permute.xlu0 %4880
      %4882 = vrot.lane.b32.xlu0 %v4507, 95
      %v4883 = vpop.permute.xlu0 %4882
      %4884 = vrot.lane.b32.xlu0 %v4576, 95
      %v4885 = vpop.permute.xlu0 %4884
      %4886 = vrot.lane.b32.xlu0 %v4578, 95
      %v4887 = vpop.permute.xlu0 %4886
      %4888 = vrot.lane.b32.xlu0 %v4647, 95
      %v4889 = vpop.permute.xlu0 %4888
      %4890 = vrot.lane.b32.xlu0 %v4649, 95
      %v4891 = vpop.permute.xlu0 %4890
      %v4892 = vsel %vm4347, %v4889, %v4891
      %v4893 = vsel %vm4347, %v4887, %v4889
      %v4894 = vsel %vm4347, %v4885, %v4887
      %v4895 = vsel %vm4347, %v4883, %v4885
      %v4896 = vsel %vm4347, %v4881, %v4883
      %v4897 = vsel %vm4347, %v4879, %v4881
      %v4898 = vsel %vm4347, %v4877, %v4879
      %v4899 = vsel %vm4347, %v4891, %v4877
      %v4900 = vmul.f32 %v4898, %v527
      %v4901 = vmul.f32 %v4897, %v528
      %v4902 = vmul.f32 %v4896, %v529
      %v4903 = vmul.f32 %v4895, %v530
      %v4904 = vmul.f32 %v4894, %v531
      %v4905 = vmul.f32 %v4893, %v532
      %v4906 = vmul.f32 %v4892, %v533
      %v4907 = vmul.f32 %v4899, %v534
      %v4909 = vsel %vm2317, %v4651, 0
      %4911 = vmatprep.subr.mxu0 %v4677
      %4912 = vmatpush1.msra.mxu0 %v4676
      %4913 = vmatprep.subr.mxu0 %v4709
      %4914 = vmatpush1.msra.mxu0 %v4708
      %4915 = vmatprep.subr.mxu0 %v4741
      %4916 = vmatpush1.msra.mxu0 %v4740
      %4917 = vmatprep.subr.mxu0 %v4773
      %4918 = vmatpush1.msra.mxu0 %v4772
      %4919 = vmatprep.subr.mxu0 %v4436
      %4920 = vmatpush1.msra.mxu0 %v4434
      %4921 = vmatprep.subr.mxu0 %v4805
      %4922 = vmatpush1.msra.mxu0 %v4804
      %4923 = vmatprep.subr.mxu0 %v4837
      %4924 = vmatpush1.msra.mxu0 %v4836
      %4925 = vmatprep.subr.mxu0 %v4869
      %4926 = vmatpush1.msra.mxu0 %v4868
      %4927 = vmatprep.subr.mxu0 %v4901
      %4928 = vmatpush1.msra.mxu0 %v4900
      %4929 = vmatprep.subr.mxu0 %v829
      %4930 = vmatpush1.msra.mxu0 %v829
      %4931 = vmatprep.subr.mxu0 0.0
      %4932 = vmatpush1.msra.mxu0 0.0
      %4933 = vmatprep.subr.mxu0 0.0
      %4934 = vmatpush1.msra.mxu0 0.0
      %4935 = vmatprep.subr.mxu0 0.0
      %4936 = vmatpush1.msra.mxu0 0.0
      %4937 = vmatprep.subr.mxu0 0.0
      %4938 = vmatpush1.msra.mxu0 0.0
      %4939 = vmatprep.subr.mxu0 0.0
      %4940 = vmatpush1.msra.mxu0 0.0
      %4941 = vmatprep.subr.mxu0 0.0
      %4942 = vmatpush1.msra.mxu0 0.0
      %4943 = vmatprep.subr.mxu0 0.0
      %4944 = vmatpush1.msra.mxu0 0.0
      %4945 = vmatprep.subr.mxu0 0.0
      %4946 = vmatpush1.msra.mxu0 0.0
      %4947 = vmatprep.subr.mxu0 0.0
      %4948 = vmatpush1.msra.mxu0 0.0
      %4949 = vmatprep.subr.mxu0 0.0
      %4950 = vmatpush1.msra.mxu0 0.0
      %4951 = vmatprep.subr.mxu0 0.0
      %4952 = vmatpush1.msra.mxu0 0.0
      %4953 = vmatprep.subr.mxu0 0.0
      %4954 = vmatpush1.msra.mxu0 0.0
      %4955 = vmatprep.subr.mxu0 0.0
      %4956 = vmatpush1.msra.mxu0 0.0
      %4957 = vmatprep.subr.mxu0 0.0
      %4958 = vmatpush1.msra.mxu0 0.0
      %4959 = vmatprep.subr.mxu0 0.0
      %4960 = vmatpush1.msra.mxu0 0.0
      %4961 = vmatprep.subr.mxu0 0.0
      %4962 = vmatpush1.msra.mxu0 0.0
      %4963 = vmatprep.subr.mxu0 0.0
      %4964 = vmatpush1.msra.mxu0 0.0
      %4965 = vmatprep.subr.mxu0 0.0
      %4966 = vmatpush1.msra.mxu0 0.0
      %4967 = vmatprep.subr.mxu0 0.0
      %4968 = vmatpush1.msra.mxu0 0.0
      %4969 = vmatprep.subr.mxu0 0.0
      %4970 = vmatpush1.msra.mxu0 0.0
      %4971 = vmatprep.subr.mxu0 0.0
      %4972 = vmatpush1.msra.mxu0 0.0
      %4973 = vmatprep.subr.mxu0 0.0
      %4974 = vmatpush1.msra.mxu0 0.0
      %4975 = vmatprep.mubr.f32.mxu0 0.0
      %4976 = vmatmul.mubr.f32.gmra.mrb[0].mxu0 %v4909
      %v4977 = vpop.f32.mrb[0].mxu0
      %v4978 = vadd.f32 0.0, %v4977
      %v4979 = vpop.f32.mrb[0].mxu0
      %v4980 = vadd.f32 0.0, %v4979
      %4981 = vdwg.mxu0
      %4982 = vmatprep.subr.mxu0 %v4679
      %4983 = vmatpush1.msra.mxu0 %v4678
      %4984 = vmatprep.subr.mxu0 %v4711
      %4985 = vmatpush1.msra.mxu0 %v4710
      %4986 = vmatprep.subr.mxu0 %v4743
      %4987 = vmatpush1.msra.mxu0 %v4742
      %4988 = vmatprep.subr.mxu0 %v4775
      %4989 = vmatpush1.msra.mxu0 %v4774
      %4990 = vmatprep.subr.mxu0 %v4507
      %4991 = vmatpush1.msra.mxu0 %v4505
      %4992 = vmatprep.subr.mxu0 %v4807
      %4993 = vmatpush1.msra.mxu0 %v4806
      %4994 = vmatprep.subr.mxu0 %v4839
      %4995 = vmatpush1.msra.mxu0 %v4838
      %4996 = vmatprep.subr.mxu0 %v4871
      %4997 = vmatpush1.msra.mxu0 %v4870
      %4998 = vmatprep.subr.mxu0 %v4903
      %4999 = vmatpush1.msra.mxu0 %v4902
      %5000 = vmatprep.subr.mxu0 %v829
      %5001 = vmatpush1.msra.mxu0 %v829
      %5002 = vmatprep.subr.mxu0 0.0
      %5003 = vmatpush1.msra.mxu0 0.0
      %5004 = vmatprep.subr.mxu0 0.0
      %5005 = vmatpush1.msra.mxu0 0.0
      %5006 = vmatprep.subr.mxu0 0.0
      %5007 = vmatpush1.msra.mxu0 0.0
      %5008 = vmatprep.subr.mxu0 0.0
      %5009 = vmatpush1.msra.mxu0 0.0
      %5010 = vmatprep.subr.mxu0 0.0
      %5011 = vmatpush1.msra.mxu0 0.0
      %5012 = vmatprep.subr.mxu0 0.0
      %5013 = vmatpush1.msra.mxu0 0.0
      %5014 = vmatprep.subr.mxu0 0.0
      %5015 = vmatpush1.msra.mxu0 0.0
      %5016 = vmatprep.subr.mxu0 0.0
      %5017 = vmatpush1.msra.mxu0 0.0
      %5018 = vmatprep.subr.mxu0 0.0
      %5019 = vmatpush1.msra.mxu0 0.0
      %5020 = vmatprep.subr.mxu0 0.0
      %5021 = vmatpush1.msra.mxu0 0.0
      %5022 = vmatprep.subr.mxu0 0.0
      %5023 = vmatpush1.msra.mxu0 0.0
      %5024 = vmatprep.subr.mxu0 0.0
      %5025 = vmatpush1.msra.mxu0 0.0
      %5026 = vmatprep.subr.mxu0 0.0
      %5027 = vmatpush1.msra.mxu0 0.0
      %5028 = vmatprep.subr.mxu0 0.0
      %5029 = vmatpush1.msra.mxu0 0.0
      %5030 = vmatprep.subr.mxu0 0.0
      %5031 = vmatpush1.msra.mxu0 0.0
      %5032 = vmatprep.subr.mxu0 0.0
      %5033 = vmatpush1.msra.mxu0 0.0
      %5034 = vmatprep.subr.mxu0 0.0
      %5035 = vmatpush1.msra.mxu0 0.0
      %5036 = vmatprep.subr.mxu0 0.0
      %5037 = vmatpush1.msra.mxu0 0.0
      %5038 = vmatprep.subr.mxu0 0.0
      %5039 = vmatpush1.msra.mxu0 0.0
      %5040 = vmatprep.subr.mxu0 0.0
      %5041 = vmatpush1.msra.mxu0 0.0
      %5042 = vmatprep.subr.mxu0 0.0
      %5043 = vmatpush1.msra.mxu0 0.0
      %5044 = vmatprep.subr.mxu0 0.0
      %5045 = vmatpush1.msra.mxu0 0.0
      %5046 = vmatprep.mubr.f32.mxu0 0.0
      %5047 = vmatmul.mubr.f32.gmra.mrb[0].mxu0 %v4909
      %v5048 = vpop.f32.mrb[0].mxu0
      %v5049 = vadd.f32 0.0, %v5048
      %v5050 = vpop.f32.mrb[0].mxu0
      %v5051 = vadd.f32 0.0, %v5050
      %5052 = vdwg.mxu0
      %5053 = vmatprep.subr.mxu0 %v4681
      %5054 = vmatpush1.msra.mxu0 %v4680
      %5055 = vmatprep.subr.mxu0 %v4713
      %5056 = vmatpush1.msra.mxu0 %v4712
      %5057 = vmatprep.subr.mxu0 %v4745
      %5058 = vmatpush1.msra.mxu0 %v4744
      %5059 = vmatprep.subr.mxu0 %v4777
      %5060 = vmatpush1.msra.mxu0 %v4776
      %5061 = vmatprep.subr.mxu0 %v4578
      %5062 = vmatpush1.msra.mxu0 %v4576
      %5063 = vmatprep.subr.mxu0 %v4809
      %5064 = vmatpush1.msra.mxu0 %v4808
      %5065 = vmatprep.subr.mxu0 %v4841
      %5066 = vmatpush1.msra.mxu0 %v4840
      %5067 = vmatprep.subr.mxu0 %v4873
      %5068 = vmatpush1.msra.mxu0 %v4872
      %5069 = vmatprep.subr.mxu0 %v4905
      %5070 = vmatpush1.msra.mxu0 %v4904
      %5071 = vmatprep.subr.mxu0 %v829
      %5072 = vmatpush1.msra.mxu0 %v829
      %5073 = vmatprep.subr.mxu0 0.0
      %5074 = vmatpush1.msra.mxu0 0.0
      %5075 = vmatprep.subr.mxu0 0.0
      %5076 = vmatpush1.msra.mxu0 0.0
      %5077 = vmatprep.subr.mxu0 0.0
      %5078 = vmatpush1.msra.mxu0 0.0
      %5079 = vmatprep.subr.mxu0 0.0
      %5080 = vmatpush1.msra.mxu0 0.0
      %5081 = vmatprep.subr.mxu0 0.0
      %5082 = vmatpush1.msra.mxu0 0.0
      %5083 = vmatprep.subr.mxu0 0.0
      %5084 = vmatpush1.msra.mxu0 0.0
      %5085 = vmatprep.subr.mxu0 0.0
      %5086 = vmatpush1.msra.mxu0 0.0
      %5087 = vmatprep.subr.mxu0 0.0
      %5088 = vmatpush1.msra.mxu0 0.0
      %5089 = vmatprep.subr.mxu0 0.0
      %5090 = vmatpush1.msra.mxu0 0.0
      %5091 = vmatprep.subr.mxu0 0.0
      %5092 = vmatpush1.msra.mxu0 0.0
      %5093 = vmatprep.subr.mxu0 0.0
      %5094 = vmatpush1.msra.mxu0 0.0
      %5095 = vmatprep.subr.mxu0 0.0
      %5096 = vmatpush1.msra.mxu0 0.0
      %5097 = vmatprep.subr.mxu0 0.0
      %5098 = vmatpush1.msra.mxu0 0.0
      %5099 = vmatprep.subr.mxu0 0.0
      %5100 = vmatpush1.msra.mxu0 0.0
      %5101 = vmatprep.subr.mxu0 0.0
      %5102 = vmatpush1.msra.mxu0 0.0
      %5103 = vmatprep.subr.mxu0 0.0
      %5104 = vmatpush1.msra.mxu0 0.0
      %5105 = vmatprep.subr.mxu0 0.0
      %5106 = vmatpush1.msra.mxu0 0.0
      %5107 = vmatprep.subr.mxu0 0.0
      %5108 = vmatpush1.msra.mxu0 0.0
      %5109 = vmatprep.subr.mxu0 0.0
      %5110 = vmatpush1.msra.mxu0 0.0
      %5111 = vmatprep.subr.mxu0 0.0
      %5112 = vmatpush1.msra.mxu0 0.0
      %5113 = vmatprep.subr.mxu0 0.0
      %5114 = vmatpush1.msra.mxu0 0.0
      %5115 = vmatprep.subr.mxu0 0.0
      %5116 = vmatpush1.msra.mxu0 0.0
      %5117 = vmatprep.mubr.f32.mxu0 0.0
      %5118 = vmatmul.mubr.f32.gmra.mrb[0].mxu0 %v4909
      %v5119 = vpop.f32.mrb[0].mxu0
      %v5120 = vadd.f32 0.0, %v5119
      %v5121 = vpop.f32.mrb[0].mxu0
      %v5122 = vadd.f32 0.0, %v5121
      %5123 = vdwg.mxu0
      %5124 = vmatprep.subr.mxu0 %v4683
      %5125 = vmatpush1.msra.mxu0 %v4682
      %5126 = vmatprep.subr.mxu0 %v4715
      %5127 = vmatpush1.msra.mxu0 %v4714
      %5128 = vmatprep.subr.mxu0 %v4747
      %5129 = vmatpush1.msra.mxu0 %v4746
      %5130 = vmatprep.subr.mxu0 %v4779
      %5131 = vmatpush1.msra.mxu0 %v4778
      %5132 = vmatprep.subr.mxu0 %v4649
      %5133 = vmatpush1.msra.mxu0 %v4647
      %5134 = vmatprep.subr.mxu0 %v4811
      %5135 = vmatpush1.msra.mxu0 %v4810
      %5136 = vmatprep.subr.mxu0 %v4843
      %5137 = vmatpush1.msra.mxu0 %v4842
      %5138 = vmatprep.subr.mxu0 %v4875
      %5139 = vmatpush1.msra.mxu0 %v4874
      %5140 = vmatprep.subr.mxu0 %v4907
      %5141 = vmatpush1.msra.mxu0 %v4906
      %5142 = vmatprep.subr.mxu0 %v829
      %5143 = vmatpush1.msra.mxu0 %v829
      %5144 = vmatprep.subr.mxu0 0.0
      %5145 = vmatpush1.msra.mxu0 0.0
      %5146 = vmatprep.subr.mxu0 0.0
      %5147 = vmatpush1.msra.mxu0 0.0
      %5148 = vmatprep.subr.mxu0 0.0
      %5149 = vmatpush1.msra.mxu0 0.0
      %5150 = vmatprep.subr.mxu0 0.0
      %5151 = vmatpush1.msra.mxu0 0.0
      %5152 = vmatprep.subr.mxu0 0.0
      %5153 = vmatpush1.msra.mxu0 0.0
      %5154 = vmatprep.subr.mxu0 0.0
      %5155 = vmatpush1.msra.mxu0 0.0
      %5156 = vmatprep.subr.mxu0 0.0
      %5157 = vmatpush1.msra.mxu0 0.0
      %5158 = vmatprep.subr.mxu0 0.0
      %5159 = vmatpush1.msra.mxu0 0.0
      %5160 = vmatprep.subr.mxu0 0.0
      %5161 = vmatpush1.msra.mxu0 0.0
      %5162 = vmatprep.subr.mxu0 0.0
      %5163 = vmatpush1.msra.mxu0 0.0
      %5164 = vmatprep.subr.mxu0 0.0
      %5165 = vmatpush1.msra.mxu0 0.0
      %5166 = vmatprep.subr.mxu0 0.0
      %5167 = vmatpush1.msra.mxu0 0.0
      %5168 = vmatprep.subr.mxu0 0.0
      %5169 = vmatpush1.msra.mxu0 0.0
      %5170 = vmatprep.subr.mxu0 0.0
      %5171 = vmatpush1.msra.mxu0 0.0
      %5172 = vmatprep.subr.mxu0 0.0
      %5173 = vmatpush1.msra.mxu0 0.0
      %5174 = vmatprep.subr.mxu0 0.0
      %5175 = vmatpush1.msra.mxu0 0.0
      %5176 = vmatprep.subr.mxu0 0.0
      %5177 = vmatpush1.msra.mxu0 0.0
      %5178 = vmatprep.subr.mxu0 0.0
      %5179 = vmatpush1.msra.mxu0 0.0
      %5180 = vmatprep.subr.mxu0 0.0
      %5181 = vmatpush1.msra.mxu0 0.0
      %5182 = vmatprep.subr.mxu0 0.0
      %5183 = vmatpush1.msra.mxu0 0.0
      %5184 = vmatprep.subr.mxu0 0.0
      %5185 = vmatpush1.msra.mxu0 0.0
      %5186 = vmatprep.subr.mxu0 0.0
      %5187 = vmatpush1.msra.mxu0 0.0
      %5188 = vmatprep.mubr.f32.mxu0 0.0
      %5189 = vmatmul.mubr.f32.gmra.mrb[0].mxu0 %v4909
      %v5190 = vpop.f32.mrb[0].mxu0
      %v5191 = vadd.f32 0.0, %v5190
      %v5192 = vpop.f32.mrb[0].mxu0
      %v5193 = vadd.f32 0.0, %v5192
      %5194 = vdwg.mxu0
      %v5195 = vld [vmem:[%s6 + $0x280] sm:$0xf]
      %v5196 = vld [vmem:[%s352] sm:$0x3f]
      %v5197 = vld [vmem:[%s352 + $0x8] sm:$0x3f]
      %v5198 = vld [vmem:[%s352 + $0x10] sm:$0x3f]
      %v5199 = vld [vmem:[%s352 + $0x18] sm:$0x3f]
      %v5200 = vld [vmem:[%s352 + $0x20] sm:$0x3f]
      %v5201 = vld [vmem:[%s352 + $0x28] sm:$0x3f]
      %v5202 = vld [vmem:[%s352 + $0x30] sm:$0x3f]
      %v5203 = vld [vmem:[%s352 + $0x38] sm:$0x3f]
      %v5204 = vld [vmem:[%s6 + $0x2a8] sm:$0xff]
      %5205 = vrot.lane.b32.xlu0 %v5196, 33
      %v5206 = vpop.permute.xlu0 %5205
      %5207 = vrot.lane.b32.xlu0 %v5197, 33
      %v5208 = vpop.permute.xlu0 %5207
      %5209 = vrot.lane.b32.xlu0 %v5198, 33
      %v5210 = vpop.permute.xlu0 %5209
      %5211 = vrot.lane.b32.xlu0 %v5199, 33
      %v5212 = vpop.permute.xlu0 %5211
      %5213 = vrot.lane.b32.xlu0 %v5200, 33
      %v5214 = vpop.permute.xlu0 %5213
      %5215 = vrot.lane.b32.xlu0 %v5201, 33
      %v5216 = vpop.permute.xlu0 %5215
      %5217 = vrot.lane.b32.xlu0 %v5202, 33
      %v5218 = vpop.permute.xlu0 %5217
      %5219 = vrot.lane.b32.xlu0 %v5203, 33
      %v5220 = vpop.permute.xlu0 %5219
      %v5221 = vsel %vm4118, %v5218, %v5220
      %v5222 = vsel %vm4118, %v5216, %v5218
      %v5223 = vsel %vm4118, %v5214, %v5216
      %v5224 = vsel %vm4118, %v5212, %v5214
      %v5225 = vsel %vm4118, %v5210, %v5212
      %v5226 = vsel %vm4118, %v5208, %v5210
      %v5227 = vsel %vm4118, %v5206, %v5208
      %v5228 = vsel %vm4118, %v5220, %v5206
      %v5229 = vmul.f32 %v5228, %v503
      %v5230 = vmul.f32 %v5227, %v504
      %v5231 = vmul.f32 %v5226, %v505
      %v5232 = vmul.f32 %v5225, %v506
      %v5233 = vmul.f32 %v5224, %v507
      %v5234 = vmul.f32 %v5223, %v508
      %v5235 = vmul.f32 %v5222, %v509
      %v5236 = vmul.f32 %v5221, %v510
      %5237 = vrot.lane.b32.xlu0 %v5196, 32
      %v5238 = vpop.permute.xlu0 %5237
      %5239 = vrot.lane.b32.xlu0 %v5197, 32
      %v5240 = vpop.permute.xlu0 %5239
      %5241 = vrot.lane.b32.xlu0 %v5198, 32
      %v5242 = vpop.permute.xlu0 %5241
      %5243 = vrot.lane.b32.xlu0 %v5199, 32
      %v5244 = vpop.permute.xlu0 %5243
      %5245 = vrot.lane.b32.xlu0 %v5200, 32
      %v5246 = vpop.permute.xlu0 %5245
      %5247 = vrot.lane.b32.xlu0 %v5201, 32
      %v5248 = vpop.permute.xlu0 %5247
      %5249 = vrot.lane.b32.xlu0 %v5202, 32
      %v5250 = vpop.permute.xlu0 %5249
      %5251 = vrot.lane.b32.xlu0 %v5203, 32
      %v5252 = vpop.permute.xlu0 %5251
      %v5253 = vsel %vm4151, %v5250, %v5252
      %v5254 = vsel %vm4151, %v5248, %v5250
      %v5255 = vsel %vm4151, %v5246, %v5248
      %v5256 = vsel %vm4151, %v5244, %v5246
      %v5257 = vsel %vm4151, %v5242, %v5244
      %v5258 = vsel %vm4151, %v5240, %v5242
      %v5259 = vsel %vm4151, %v5238, %v5240
      %v5260 = vsel %vm4151, %v5252, %v5238
      %v5261 = vmul.f32 %v5260, %v479
      %v5262 = vmul.f32 %v5259, %v480
      %v5263 = vmul.f32 %v5258, %v481
      %v5264 = vmul.f32 %v5257, %v482
      %v5265 = vmul.f32 %v5256, %v483
      %v5266 = vmul.f32 %v5255, %v484
      %v5267 = vmul.f32 %v5254, %v485
      %v5268 = vmul.f32 %v5253, %v486
      %5269 = vrot.lane.b32.xlu0 %v5196, 31
      %v5270 = vpop.permute.xlu0 %5269
      %5271 = vrot.lane.b32.xlu0 %v5197, 31
      %v5272 = vpop.permute.xlu0 %5271
      %5273 = vrot.lane.b32.xlu0 %v5198, 31
      %v5274 = vpop.permute.xlu0 %5273
      %5275 = vrot.lane.b32.xlu0 %v5199, 31
      %v5276 = vpop.permute.xlu0 %5275
      %5277 = vrot.lane.b32.xlu0 %v5200, 31
      %v5278 = vpop.permute.xlu0 %5277
      %5279 = vrot.lane.b32.xlu0 %v5201, 31
      %v5280 = vpop.permute.xlu0 %5279
      %5281 = vrot.lane.b32.xlu0 %v5202, 31
      %v5282 = vpop.permute.xlu0 %5281
      %5283 = vrot.lane.b32.xlu0 %v5203, 31
      %v5284 = vpop.permute.xlu0 %5283
      %v5285 = vsel %vm4184, %v5282, %v5284
      %v5286 = vsel %vm4184, %v5280, %v5282
      %v5287 = vsel %vm4184, %v5278, %v5280
      %v5288 = vsel %vm4184, %v5276, %v5278
      %v5289 = vsel %vm4184, %v5274, %v5276
      %v5290 = vsel %vm4184, %v5272, %v5274
      %v5291 = vsel %vm4184, %v5270, %v5272
      %v5292 = vsel %vm4184, %v5284, %v5270
      %v5293 = vmul.f32 %v5292, %v511
      %v5294 = vmul.f32 %v5291, %v512
      %v5295 = vmul.f32 %v5290, %v513
      %v5296 = vmul.f32 %v5289, %v514
      %v5297 = vmul.f32 %v5288, %v515
      %v5298 = vmul.f32 %v5287, %v516
      %v5299 = vmul.f32 %v5286, %v517
      %v5300 = vmul.f32 %v5285, %v518
      %5301 = vrot.lane.b32.xlu0 %v5196, 1
      %v5302 = vpop.permute.xlu0 %5301
      %5303 = vrot.lane.b32.xlu0 %v5197, 1
      %v5304 = vpop.permute.xlu0 %5303
      %5305 = vrot.lane.b32.xlu0 %v5198, 1
      %v5306 = vpop.permute.xlu0 %5305
      %5307 = vrot.lane.b32.xlu0 %v5199, 1
      %v5308 = vpop.permute.xlu0 %5307
      %5309 = vrot.lane.b32.xlu0 %v5200, 1
      %v5310 = vpop.permute.xlu0 %5309
      %5311 = vrot.lane.b32.xlu0 %v5201, 1
      %v5312 = vpop.permute.xlu0 %5311
      %5313 = vrot.lane.b32.xlu0 %v5202, 1
      %v5314 = vpop.permute.xlu0 %5313
      %5315 = vrot.lane.b32.xlu0 %v5203, 1
      %v5316 = vpop.permute.xlu0 %5315
      %v5317 = vsel %vm2568, %v5314, %v5316
      %v5318 = vsel %vm2568, %v5312, %v5314
      %v5319 = vsel %vm2568, %v5310, %v5312
      %v5320 = vsel %vm2568, %v5308, %v5310
      %v5321 = vsel %vm2568, %v5306, %v5308
      %v5322 = vsel %vm2568, %v5304, %v5306
      %v5323 = vsel %vm2568, %v5302, %v5304
      %v5324 = vsel %vm2568, %v5316, %v5302
      %v5325 = vmul.f32 %v5324, %v447
      %v5326 = vmul.f32 %v5323, %v448
      %v5327 = vmul.f32 %v5322, %v449
      %v5328 = vmul.f32 %v5321, %v450
      %v5329 = vmul.f32 %v5320, %v451
      %v5330 = vmul.f32 %v5319, %v452
      %v5331 = vmul.f32 %v5318, %v453
      %v5332 = vmul.f32 %v5317, %v454
      %5333 = vrot.lane.b32.xlu0 %v5196, 127
      %v5334 = vpop.permute.xlu0 %5333
      %5335 = vrot.lane.b32.xlu0 %v5197, 127
      %v5336 = vpop.permute.xlu0 %5335
      %5337 = vrot.lane.b32.xlu0 %v5198, 127
      %v5338 = vpop.permute.xlu0 %5337
      %5339 = vrot.lane.b32.xlu0 %v5199, 127
      %v5340 = vpop.permute.xlu0 %5339
      %5341 = vrot.lane.b32.xlu0 %v5200, 127
      %v5342 = vpop.permute.xlu0 %5341
      %5343 = vrot.lane.b32.xlu0 %v5201, 127
      %v5344 = vpop.permute.xlu0 %5343
      %5345 = vrot.lane.b32.xlu0 %v5202, 127
      %v5346 = vpop.permute.xlu0 %5345
      %5347 = vrot.lane.b32.xlu0 %v5203, 127
      %v5348 = vpop.permute.xlu0 %5347
      %v5349 = vsel %vm2577, %v5346, %v5348
      %v5350 = vsel %vm2577, %v5344, %v5346
      %v5351 = vsel %vm2577, %v5342, %v5344
      %v5352 = vsel %vm2577, %v5340, %v5342
      %v5353 = vsel %vm2577, %v5338, %v5340
      %v5354 = vsel %vm2577, %v5336, %v5338
      %v5355 = vsel %vm2577, %v5334, %v5336
      %v5356 = vsel %vm2577, %v5348, %v5334
      %v5357 = vmul.f32 %v5355, %v463
      %v5358 = vmul.f32 %v5354, %v464
      %v5359 = vmul.f32 %v5353, %v465
      %v5360 = vmul.f32 %v5352, %v466
      %v5361 = vmul.f32 %v5351, %v467
      %v5362 = vmul.f32 %v5350, %v468
      %v5363 = vmul.f32 %v5349, %v469
      %v5364 = vmul.f32 %v5356, %v470
      %5365 = vrot.lane.b32.xlu0 %v5196, 97
      %v5366 = vpop.permute.xlu0 %5365
      %5367 = vrot.lane.b32.xlu0 %v5197, 97
      %v5368 = vpop.permute.xlu0 %5367
      %5369 = vrot.lane.b32.xlu0 %v5198, 97
      %v5370 = vpop.permute.xlu0 %5369
      %5371 = vrot.lane.b32.xlu0 %v5199, 97
      %v5372 = vpop.permute.xlu0 %5371
      %5373 = vrot.lane.b32.xlu0 %v5200, 97
      %v5374 = vpop.permute.xlu0 %5373
      %5375 = vrot.lane.b32.xlu0 %v5201, 97
      %v5376 = vpop.permute.xlu0 %5375
      %5377 = vrot.lane.b32.xlu0 %v5202, 97
      %v5378 = vpop.permute.xlu0 %5377
      %5379 = vrot.lane.b32.xlu0 %v5203, 97
      %v5380 = vpop.permute.xlu0 %5379
      %v5381 = vsel %vm4281, %v5378, %v5380
      %v5382 = vsel %vm4281, %v5376, %v5378
      %v5383 = vsel %vm4281, %v5374, %v5376
      %v5384 = vsel %vm4281, %v5372, %v5374
      %v5385 = vsel %vm4281, %v5370, %v5372
      %v5386 = vsel %vm4281, %v5368, %v5370
      %v5387 = vsel %vm4281, %v5366, %v5368
      %v5388 = vsel %vm4281, %v5380, %v5366
      %v5389 = vmul.f32 %v5387, %v519
      %v5390 = vmul.f32 %v5386, %v520
      %v5391 = vmul.f32 %v5385, %v521
      %v5392 = vmul.f32 %v5384, %v522
      %v5393 = vmul.f32 %v5383, %v523
      %v5394 = vmul.f32 %v5382, %v524
      %v5395 = vmul.f32 %v5381, %v525
      %v5396 = vmul.f32 %v5388, %v526
      %5397 = vrot.lane.b32.xlu0 %v5196, 96
      %v5398 = vpop.permute.xlu0 %5397
      %5399 = vrot.lane.b32.xlu0 %v5197, 96
      %v5400 = vpop.permute.xlu0 %5399
      %5401 = vrot.lane.b32.xlu0 %v5198, 96
      %v5402 = vpop.permute.xlu0 %5401
      %5403 = vrot.lane.b32.xlu0 %v5199, 96
      %v5404 = vpop.permute.xlu0 %5403
      %5405 = vrot.lane.b32.xlu0 %v5200, 96
      %v5406 = vpop.permute.xlu0 %5405
      %5407 = vrot.lane.b32.xlu0 %v5201, 96
      %v5408 = vpop.permute.xlu0 %5407
      %5409 = vrot.lane.b32.xlu0 %v5202, 96
      %v5410 = vpop.permute.xlu0 %5409
      %5411 = vrot.lane.b32.xlu0 %v5203, 96
      %v5412 = vpop.permute.xlu0 %5411
      %v5413 = vsel %vm4314, %v5410, %v5412
      %v5414 = vsel %vm4314, %v5408, %v5410
      %v5415 = vsel %vm4314, %v5406, %v5408
      %v5416 = vsel %vm4314, %v5404, %v5406
      %v5417 = vsel %vm4314, %v5402, %v5404
      %v5418 = vsel %vm4314, %v5400, %v5402
      %v5419 = vsel %vm4314, %v5398, %v5400
      %v5420 = vsel %vm4314, %v5412, %v5398
      %v5421 = vmul.f32 %v5419, %v495
      %v5422 = vmul.f32 %v5418, %v496
      %v5423 = vmul.f32 %v5417, %v497
      %v5424 = vmul.f32 %v5416, %v498
      %v5425 = vmul.f32 %v5415, %v499
      %v5426 = vmul.f32 %v5414, %v500
      %v5427 = vmul.f32 %v5413, %v501
      %v5428 = vmul.f32 %v5420, %v502
      %5429 = vrot.lane.b32.xlu0 %v5196, 95
      %v5430 = vpop.permute.xlu0 %5429
      %5431 = vrot.lane.b32.xlu0 %v5197, 95
      %v5432 = vpop.permute.xlu0 %5431
      %5433 = vrot.lane.b32.xlu0 %v5198, 95
      %v5434 = vpop.permute.xlu0 %5433
      %5435 = vrot.lane.b32.xlu0 %v5199, 95
      %v5436 = vpop.permute.xlu0 %5435
      %5437 = vrot.lane.b32.xlu0 %v5200, 95
      %v5438 = vpop.permute.xlu0 %5437
      %5439 = vrot.lane.b32.xlu0 %v5201, 95
      %v5440 = vpop.permute.xlu0 %5439
      %5441 = vrot.lane.b32.xlu0 %v5202, 95
      %v5442 = vpop.permute.xlu0 %5441
      %5443 = vrot.lane.b32.xlu0 %v5203, 95
      %v5444 = vpop.permute.xlu0 %5443
      %v5445 = vsel %vm4347, %v5442, %v5444
      %v5446 = vsel %vm4347, %v5440, %v5442
      %v5447 = vsel %vm4347, %v5438, %v5440
      %v5448 = vsel %vm4347, %v5436, %v5438
      %v5449 = vsel %vm4347, %v5434, %v5436
      %v5450 = vsel %vm4347, %v5432, %v5434
      %v5451 = vsel %vm4347, %v5430, %v5432
      %v5452 = vsel %vm4347, %v5444, %v5430
      %v5453 = vmul.f32 %v5451, %v527
      %v5454 = vmul.f32 %v5450, %v528
      %v5455 = vmul.f32 %v5449, %v529
      %v5456 = vmul.f32 %v5448, %v530
      %v5457 = vmul.f32 %v5447, %v531
      %v5458 = vmul.f32 %v5446, %v532
      %v5459 = vmul.f32 %v5445, %v533
      %v5460 = vmul.f32 %v5452, %v534
      %v5469 = vrot.slane %v5261, 2
      %v5470 = vrot.slane %v5262, 2
      %v5471 = vrot.slane %v5263, 2
      %v5472 = vrot.slane %v5264, 2
      %v5473 = vrot.slane %v5265, 2
      %v5474 = vrot.slane %v5266, 2
      %v5475 = vrot.slane %v5267, 2
      %v5476 = vrot.slane %v5268, 2
      %v5493 = vrot.slane %v5293, 4
      %v5494 = vrot.slane %v5294, 4
      %v5495 = vrot.slane %v5295, 4
      %v5496 = vrot.slane %v5296, 4
      %v5497 = vrot.slane %v5297, 4
      %v5498 = vrot.slane %v5298, 4
      %v5499 = vrot.slane %v5299, 4
      %v5500 = vrot.slane %v5300, 4
      %v5517 = vrot.slane %v5325, 6
      %v5518 = vrot.slane %v5326, 6
      %v5519 = vrot.slane %v5327, 6
      %v5520 = vrot.slane %v5328, 6
      %v5521 = vrot.slane %v5329, 6
      %v5522 = vrot.slane %v5330, 6
      %v5523 = vrot.slane %v5331, 6
      %v5524 = vrot.slane %v5332, 6
      %v5541 = vrot.slane %v5357, 2
      %v5542 = vrot.slane %v5358, 2
      %v5543 = vrot.slane %v5359, 2
      %v5544 = vrot.slane %v5360, 2
      %v5545 = vrot.slane %v5361, 2
      %v5546 = vrot.slane %v5362, 2
      %v5547 = vrot.slane %v5363, 2
      %v5548 = vrot.slane %v5364, 2
      %v5565 = vrot.slane %v5389, 4
      %v5566 = vrot.slane %v5390, 4
      %v5567 = vrot.slane %v5391, 4
      %v5568 = vrot.slane %v5392, 4
      %v5569 = vrot.slane %v5393, 4
      %v5570 = vrot.slane %v5394, 4
      %v5571 = vrot.slane %v5395, 4
      %v5572 = vrot.slane %v5396, 4
      %v5589 = vrot.slane %v5421, 6
      %v5590 = vrot.slane %v5422, 6
      %v5591 = vrot.slane %v5423, 6
      %v5592 = vrot.slane %v5424, 6
      %v5593 = vrot.slane %v5425, 6
      %v5594 = vrot.slane %v5426, 6
      %v5595 = vrot.slane %v5427, 6
      %v5596 = vrot.slane %v5428, 6
      %v5605 = vsel %vm1304, %v5229, %v5469
      %v5606 = vsel %vm1304, %v5230, %v5470
      %v5607 = vsel %vm1304, %v5231, %v5471
      %v5608 = vsel %vm1304, %v5232, %v5472
      %v5609 = vsel %vm1304, %v5233, %v5473
      %v5610 = vsel %vm1304, %v5234, %v5474
      %v5611 = vsel %vm1304, %v5235, %v5475
      %v5612 = vsel %vm1304, %v5236, %v5476
      %v5613 = vsel %vm1306, %v5469, %v5493
      %v5614 = vsel %vm1306, %v5470, %v5494
      %v5615 = vsel %vm1306, %v5471, %v5495
      %v5616 = vsel %vm1306, %v5472, %v5496
      %v5617 = vsel %vm1306, %v5473, %v5497
      %v5618 = vsel %vm1306, %v5474, %v5498
      %v5619 = vsel %vm1306, %v5475, %v5499
      %v5620 = vsel %vm1306, %v5476, %v5500
      %v5621 = vsel %vm1308, %v5493, %v5517
      %v5622 = vsel %vm1308, %v5494, %v5518
      %v5623 = vsel %vm1308, %v5495, %v5519
      %v5624 = vsel %vm1308, %v5496, %v5520
      %v5625 = vsel %vm1308, %v5497, %v5521
      %v5626 = vsel %vm1308, %v5498, %v5522
      %v5627 = vsel %vm1308, %v5499, %v5523
      %v5628 = vsel %vm1308, %v5500, %v5524
      %v5629 = vsel %vm1304, %v5196, %v5541
      %v5630 = vsel %vm1304, %v5197, %v5542
      %v5631 = vsel %vm1304, %v5198, %v5543
      %v5632 = vsel %vm1304, %v5199, %v5544
      %v5633 = vsel %vm1304, %v5200, %v5545
      %v5634 = vsel %vm1304, %v5201, %v5546
      %v5635 = vsel %vm1304, %v5202, %v5547
      %v5636 = vsel %vm1304, %v5203, %v5548
      %v5637 = vsel %vm1306, %v5541, %v5565
      %v5638 = vsel %vm1306, %v5542, %v5566
      %v5639 = vsel %vm1306, %v5543, %v5567
      %v5640 = vsel %vm1306, %v5544, %v5568
      %v5641 = vsel %vm1306, %v5545, %v5569
      %v5642 = vsel %vm1306, %v5546, %v5570
      %v5643 = vsel %vm1306, %v5547, %v5571
      %v5644 = vsel %vm1306, %v5548, %v5572
      %v5645 = vsel %vm1308, %v5565, %v5589
      %v5646 = vsel %vm1308, %v5566, %v5590
      %v5647 = vsel %vm1308, %v5567, %v5591
      %v5648 = vsel %vm1308, %v5568, %v5592
      %v5649 = vsel %vm1308, %v5569, %v5593
      %v5650 = vsel %vm1308, %v5570, %v5594
      %v5651 = vsel %vm1308, %v5571, %v5595
      %v5652 = vsel %vm1308, %v5572, %v5596
      %v5653 = vsel %vm1304, %v5453, 1.0
      %v5654 = vsel %vm1304, %v5454, 1.0
      %v5655 = vsel %vm1304, %v5455, 1.0
      %v5656 = vsel %vm1304, %v5456, 1.0
      %v5657 = vsel %vm1304, %v5457, 1.0
      %v5658 = vsel %vm1304, %v5458, 1.0
      %v5659 = vsel %vm1304, %v5459, 1.0
      %v5660 = vsel %vm1304, %v5460, 1.0
      %v5662 = vsel %vm1314, %v5204, 0
      %v5665 = vsel %vm1318, %v5653, 0
      %v5668 = vsel %vm1318, %v5654, 0
      %v5671 = vsel %vm1318, %v5655, 0
      %v5674 = vsel %vm1318, %v5656, 0
      %v5677 = vsel %vm1318, %v5657, 0
      %v5680 = vsel %vm1318, %v5658, 0
      %v5683 = vsel %vm1318, %v5659, 0
      %v5686 = vsel %vm1318, %v5660, 0
      %5688 = vmatprep.subr.mxu0 %v5606
      %5689 = vmatpush1.msra.mxu0 %v5605
      %5690 = vmatprep.subr.mxu0 %v5614
      %5691 = vmatpush1.msra.mxu0 %v5613
      %5692 = vmatprep.subr.mxu0 %v5622
      %5693 = vmatpush1.msra.mxu0 %v5621
      %5694 = vmatprep.subr.mxu0 %v5630
      %5695 = vmatpush1.msra.mxu0 %v5629
      %5696 = vmatprep.subr.mxu0 %v5638
      %5697 = vmatpush1.msra.mxu0 %v5637
      %5698 = vmatprep.subr.mxu0 %v5646
      %5699 = vmatpush1.msra.mxu0 %v5645
      %5700 = vmatprep.subr.mxu0 %v5668
      %5701 = vmatpush1.msra.mxu0 %v5665
      %5702 = vmatprep.subr.mxu0 0.0
      %5703 = vmatpush1.msra.mxu0 0.0
      %5704 = vmatprep.subr.mxu0 0.0
      %5705 = vmatpush1.msra.mxu0 0.0
      %5706 = vmatprep.subr.mxu0 0.0
      %5707 = vmatpush1.msra.mxu0 0.0
      %5708 = vmatprep.subr.mxu0 0.0
      %5709 = vmatpush1.msra.mxu0 0.0
      %5710 = vmatprep.subr.mxu0 0.0
      %5711 = vmatpush1.msra.mxu0 0.0
      %5712 = vmatprep.subr.mxu0 0.0
      %5713 = vmatpush1.msra.mxu0 0.0
      %5714 = vmatprep.subr.mxu0 0.0
      %5715 = vmatpush1.msra.mxu0 0.0
      %5716 = vmatprep.subr.mxu0 0.0
      %5717 = vmatpush1.msra.mxu0 0.0
      %5718 = vmatprep.subr.mxu0 0.0
      %5719 = vmatpush1.msra.mxu0 0.0
      %5720 = vmatprep.subr.mxu0 0.0
      %5721 = vmatpush1.msra.mxu0 0.0
      %5722 = vmatprep.subr.mxu0 0.0
      %5723 = vmatpush1.msra.mxu0 0.0
      %5724 = vmatprep.subr.mxu0 0.0
      %5725 = vmatpush1.msra.mxu0 0.0
      %5726 = vmatprep.subr.mxu0 0.0
      %5727 = vmatpush1.msra.mxu0 0.0
      %5728 = vmatprep.subr.mxu0 0.0
      %5729 = vmatpush1.msra.mxu0 0.0
      %5730 = vmatprep.subr.mxu0 0.0
      %5731 = vmatpush1.msra.mxu0 0.0
      %5732 = vmatprep.subr.mxu0 0.0
      %5733 = vmatpush1.msra.mxu0 0.0
      %5734 = vmatprep.subr.mxu0 0.0
      %5735 = vmatpush1.msra.mxu0 0.0
      %5736 = vmatprep.subr.mxu0 0.0
      %5737 = vmatpush1.msra.mxu0 0.0
      %5738 = vmatprep.subr.mxu0 0.0
      %5739 = vmatpush1.msra.mxu0 0.0
      %5740 = vmatprep.subr.mxu0 0.0
      %5741 = vmatpush1.msra.mxu0 0.0
      %5742 = vmatprep.subr.mxu0 0.0
      %5743 = vmatpush1.msra.mxu0 0.0
      %5744 = vmatprep.subr.mxu0 0.0
      %5745 = vmatpush1.msra.mxu0 0.0
      %5746 = vmatprep.subr.mxu0 0.0
      %5747 = vmatpush1.msra.mxu0 0.0
      %5748 = vmatprep.subr.mxu0 0.0
      %5749 = vmatpush1.msra.mxu0 0.0
      %5750 = vmatprep.subr.mxu0 0.0
      %5751 = vmatpush1.msra.mxu0 0.0
      %5752 = vmatprep.mubr.f32.mxu0 0.0
      %5753 = vmatmul.mubr.f32.gmra.mrb[0].mxu0 %v5662
      %v5754 = vpop.f32.mrb[0].mxu0
      %v5755 = vadd.f32 0.0, %v5754
      %v5756 = vpop.f32.mrb[0].mxu0
      %v5757 = vadd.f32 0.0, %v5756
      %5758 = vdwg.mxu0
      %5759 = vmatprep.subr.mxu0 %v5608
      %5760 = vmatpush1.msra.mxu0 %v5607
      %5761 = vmatprep.subr.mxu0 %v5616
      %5762 = vmatpush1.msra.mxu0 %v5615
      %5763 = vmatprep.subr.mxu0 %v5624
      %5764 = vmatpush1.msra.mxu0 %v5623
      %5765 = vmatprep.subr.mxu0 %v5632
      %5766 = vmatpush1.msra.mxu0 %v5631
      %5767 = vmatprep.subr.mxu0 %v5640
      %5768 = vmatpush1.msra.mxu0 %v5639
      %5769 = vmatprep.subr.mxu0 %v5648
      %5770 = vmatpush1.msra.mxu0 %v5647
      %5771 = vmatprep.subr.mxu0 %v5674
      %5772 = vmatpush1.msra.mxu0 %v5671
      %5773 = vmatprep.subr.mxu0 0.0
      %5774 = vmatpush1.msra.mxu0 0.0
      %5775 = vmatprep.subr.mxu0 0.0
      %5776 = vmatpush1.msra.mxu0 0.0
      %5777 = vmatprep.subr.mxu0 0.0
      %5778 = vmatpush1.msra.mxu0 0.0
      %5779 = vmatprep.subr.mxu0 0.0
      %5780 = vmatpush1.msra.mxu0 0.0
      %5781 = vmatprep.subr.mxu0 0.0
      %5782 = vmatpush1.msra.mxu0 0.0
      %5783 = vmatprep.subr.mxu0 0.0
      %5784 = vmatpush1.msra.mxu0 0.0
      %5785 = vmatprep.subr.mxu0 0.0
      %5786 = vmatpush1.msra.mxu0 0.0
      %5787 = vmatprep.subr.mxu0 0.0
      %5788 = vmatpush1.msra.mxu0 0.0
      %5789 = vmatprep.subr.mxu0 0.0
      %5790 = vmatpush1.msra.mxu0 0.0
      %5791 = vmatprep.subr.mxu0 0.0
      %5792 = vmatpush1.msra.mxu0 0.0
      %5793 = vmatprep.subr.mxu0 0.0
      %5794 = vmatpush1.msra.mxu0 0.0
      %5795 = vmatprep.subr.mxu0 0.0
      %5796 = vmatpush1.msra.mxu0 0.0
      %5797 = vmatprep.subr.mxu0 0.0
      %5798 = vmatpush1.msra.mxu0 0.0
      %5799 = vmatprep.subr.mxu0 0.0
      %5800 = vmatpush1.msra.mxu0 0.0
      %5801 = vmatprep.subr.mxu0 0.0
      %5802 = vmatpush1.msra.mxu0 0.0
      %5803 = vmatprep.subr.mxu0 0.0
      %5804 = vmatpush1.msra.mxu0 0.0
      %5805 = vmatprep.subr.mxu0 0.0
      %5806 = vmatpush1.msra.mxu0 0.0
      %5807 = vmatprep.subr.mxu0 0.0
      %5808 = vmatpush1.msra.mxu0 0.0
      %5809 = vmatprep.subr.mxu0 0.0
      %5810 = vmatpush1.msra.mxu0 0.0
      %5811 = vmatprep.subr.mxu0 0.0
      %5812 = vmatpush1.msra.mxu0 0.0
      %5813 = vmatprep.subr.mxu0 0.0
      %5814 = vmatpush1.msra.mxu0 0.0
      %5815 = vmatprep.subr.mxu0 0.0
      %5816 = vmatpush1.msra.mxu0 0.0
      %5817 = vmatprep.subr.mxu0 0.0
      %5818 = vmatpush1.msra.mxu0 0.0
      %5819 = vmatprep.subr.mxu0 0.0
      %5820 = vmatpush1.msra.mxu0 0.0
      %5821 = vmatprep.subr.mxu0 0.0
      %5822 = vmatpush1.msra.mxu0 0.0
      %5823 = vmatprep.mubr.f32.mxu0 0.0
      %5824 = vmatmul.mubr.f32.gmra.mrb[0].mxu0 %v5662
      %v5825 = vpop.f32.mrb[0].mxu0
      %v5826 = vadd.f32 0.0, %v5825
      %v5827 = vpop.f32.mrb[0].mxu0
      %v5828 = vadd.f32 0.0, %v5827
      %5829 = vdwg.mxu0
      %5830 = vmatprep.subr.mxu0 %v5610
      %5831 = vmatpush1.msra.mxu0 %v5609
      %5832 = vmatprep.subr.mxu0 %v5618
      %5833 = vmatpush1.msra.mxu0 %v5617
      %5834 = vmatprep.subr.mxu0 %v5626
      %5835 = vmatpush1.msra.mxu0 %v5625
      %5836 = vmatprep.subr.mxu0 %v5634
      %5837 = vmatpush1.msra.mxu0 %v5633
      %5838 = vmatprep.subr.mxu0 %v5642
      %5839 = vmatpush1.msra.mxu0 %v5641
      %5840 = vmatprep.subr.mxu0 %v5650
      %5841 = vmatpush1.msra.mxu0 %v5649
      %5842 = vmatprep.subr.mxu0 %v5680
      %5843 = vmatpush1.msra.mxu0 %v5677
      %5844 = vmatprep.subr.mxu0 0.0
      %5845 = vmatpush1.msra.mxu0 0.0
      %5846 = vmatprep.subr.mxu0 0.0
      %5847 = vmatpush1.msra.mxu0 0.0
      %5848 = vmatprep.subr.mxu0 0.0
      %5849 = vmatpush1.msra.mxu0 0.0
      %5850 = vmatprep.subr.mxu0 0.0
      %5851 = vmatpush1.msra.mxu0 0.0
      %5852 = vmatprep.subr.mxu0 0.0
      %5853 = vmatpush1.msra.mxu0 0.0
      %5854 = vmatprep.subr.mxu0 0.0
      %5855 = vmatpush1.msra.mxu0 0.0
      %5856 = vmatprep.subr.mxu0 0.0
      %5857 = vmatpush1.msra.mxu0 0.0
      %5858 = vmatprep.subr.mxu0 0.0
      %5859 = vmatpush1.msra.mxu0 0.0
      %5860 = vmatprep.subr.mxu0 0.0
      %5861 = vmatpush1.msra.mxu0 0.0
      %5862 = vmatprep.subr.mxu0 0.0
      %5863 = vmatpush1.msra.mxu0 0.0
      %5864 = vmatprep.subr.mxu0 0.0
      %5865 = vmatpush1.msra.mxu0 0.0
      %5866 = vmatprep.subr.mxu0 0.0
      %5867 = vmatpush1.msra.mxu0 0.0
      %5868 = vmatprep.subr.mxu0 0.0
      %5869 = vmatpush1.msra.mxu0 0.0
      %5870 = vmatprep.subr.mxu0 0.0
      %5871 = vmatpush1.msra.mxu0 0.0
      %5872 = vmatprep.subr.mxu0 0.0
      %5873 = vmatpush1.msra.mxu0 0.0
      %5874 = vmatprep.subr.mxu0 0.0
      %5875 = vmatpush1.msra.mxu0 0.0
      %5876 = vmatprep.subr.mxu0 0.0
      %5877 = vmatpush1.msra.mxu0 0.0
      %5878 = vmatprep.subr.mxu0 0.0
      %5879 = vmatpush1.msra.mxu0 0.0
      %5880 = vmatprep.subr.mxu0 0.0
      %5881 = vmatpush1.msra.mxu0 0.0
      %5882 = vmatprep.subr.mxu0 0.0
      %5883 = vmatpush1.msra.mxu0 0.0
      %5884 = vmatprep.subr.mxu0 0.0
      %5885 = vmatpush1.msra.mxu0 0.0
      %5886 = vmatprep.subr.mxu0 0.0
      %5887 = vmatpush1.msra.mxu0 0.0
      %5888 = vmatprep.subr.mxu0 0.0
      %5889 = vmatpush1.msra.mxu0 0.0
      %5890 = vmatprep.subr.mxu0 0.0
      %5891 = vmatpush1.msra.mxu0 0.0
      %5892 = vmatprep.subr.mxu0 0.0
      %5893 = vmatpush1.msra.mxu0 0.0
      %5894 = vmatprep.mubr.f32.mxu0 0.0
      %5895 = vmatmul.mubr.f32.gmra.mrb[0].mxu0 %v5662
      %v5896 = vpop.f32.mrb[0].mxu0
      %v5897 = vadd.f32 0.0, %v5896
      %v5898 = vpop.f32.mrb[0].mxu0
      %v5899 = vadd.f32 0.0, %v5898
      %5900 = vdwg.mxu0
      %5901 = vmatprep.subr.mxu0 %v5612
      %5902 = vmatpush1.msra.mxu0 %v5611
      %5903 = vmatprep.subr.mxu0 %v5620
      %5904 = vmatpush1.msra.mxu0 %v5619
      %5905 = vmatprep.subr.mxu0 %v5628
      %5906 = vmatpush1.msra.mxu0 %v5627
      %5907 = vmatprep.subr.mxu0 %v5636
      %5908 = vmatpush1.msra.mxu0 %v5635
      %5909 = vmatprep.subr.mxu0 %v5644
      %5910 = vmatpush1.msra.mxu0 %v5643
      %5911 = vmatprep.subr.mxu0 %v5652
      %5912 = vmatpush1.msra.mxu0 %v5651
      %5913 = vmatprep.subr.mxu0 %v5686
      %5914 = vmatpush1.msra.mxu0 %v5683
      %5915 = vmatprep.subr.mxu0 0.0
      %5916 = vmatpush1.msra.mxu0 0.0
      %5917 = vmatprep.subr.mxu0 0.0
      %5918 = vmatpush1.msra.mxu0 0.0
      %5919 = vmatprep.subr.mxu0 0.0
      %5920 = vmatpush1.msra.mxu0 0.0
      %5921 = vmatprep.subr.mxu0 0.0
      %5922 = vmatpush1.msra.mxu0 0.0
      %5923 = vmatprep.subr.mxu0 0.0
      %5924 = vmatpush1.msra.mxu0 0.0
      %5925 = vmatprep.subr.mxu0 0.0
      %5926 = vmatpush1.msra.mxu0 0.0
      %5927 = vmatprep.subr.mxu0 0.0
      %5928 = vmatpush1.msra.mxu0 0.0
      %5929 = vmatprep.subr.mxu0 0.0
      %5930 = vmatpush1.msra.mxu0 0.0
      %5931 = vmatprep.subr.mxu0 0.0
      %5932 = vmatpush1.msra.mxu0 0.0
      %5933 = vmatprep.subr.mxu0 0.0
      %5934 = vmatpush1.msra.mxu0 0.0
      %5935 = vmatprep.subr.mxu0 0.0
      %5936 = vmatpush1.msra.mxu0 0.0
      %5937 = vmatprep.subr.mxu0 0.0
      %5938 = vmatpush1.msra.mxu0 0.0
      %5939 = vmatprep.subr.mxu0 0.0
      %5940 = vmatpush1.msra.mxu0 0.0
      %5941 = vmatprep.subr.mxu0 0.0
      %5942 = vmatpush1.msra.mxu0 0.0
      %5943 = vmatprep.subr.mxu0 0.0
      %5944 = vmatpush1.msra.mxu0 0.0
      %5945 = vmatprep.subr.mxu0 0.0
      %5946 = vmatpush1.msra.mxu0 0.0
      %5947 = vmatprep.subr.mxu0 0.0
      %5948 = vmatpush1.msra.mxu0 0.0
      %5949 = vmatprep.subr.mxu0 0.0
      %5950 = vmatpush1.msra.mxu0 0.0
      %5951 = vmatprep.subr.mxu0 0.0
      %5952 = vmatpush1.msra.mxu0 0.0
      %5953 = vmatprep.subr.mxu0 0.0
      %5954 = vmatpush1.msra.mxu0 0.0
      %5955 = vmatprep.subr.mxu0 0.0
      %5956 = vmatpush1.msra.mxu0 0.0
      %5957 = vmatprep.subr.mxu0 0.0
      %5958 = vmatpush1.msra.mxu0 0.0
      %5959 = vmatprep.subr.mxu0 0.0
      %5960 = vmatpush1.msra.mxu0 0.0
      %5961 = vmatprep.subr.mxu0 0.0
      %5962 = vmatpush1.msra.mxu0 0.0
      %5963 = vmatprep.subr.mxu0 0.0
      %5964 = vmatpush1.msra.mxu0 0.0
      %5965 = vmatprep.mubr.f32.mxu0 0.0
      %5966 = vmatmul.mubr.f32.gmra.mrb[0].mxu0 %v5662
      %v5967 = vpop.f32.mrb[0].mxu0
      %v5968 = vadd.f32 0.0, %v5967
      %v5969 = vpop.f32.mrb[0].mxu0
      %v5970 = vadd.f32 0.0, %v5969
      %5971 = vdwg.mxu0
      %v5972 = vld [vmem:[%s6 + $0x2d0] sm:$0xff]
      %5973 = vrot.lane.b32.xlu0 %v5755, 33
      %v5974 = vpop.permute.xlu0 %5973
      %5975 = vrot.lane.b32.xlu0 %v5757, 33
      %v5976 = vpop.permute.xlu0 %5975
      %5977 = vrot.lane.b32.xlu0 %v5826, 33
      %v5978 = vpop.permute.xlu0 %5977
      %5979 = vrot.lane.b32.xlu0 %v5828, 33
      %v5980 = vpop.permute.xlu0 %5979
      %5981 = vrot.lane.b32.xlu0 %v5897, 33
      %v5982 = vpop.permute.xlu0 %5981
      %5983 = vrot.lane.b32.xlu0 %v5899, 33
      %v5984 = vpop.permute.xlu0 %5983
      %5985 = vrot.lane.b32.xlu0 %v5968, 33
      %v5986 = vpop.permute.xlu0 %5985
      %5987 = vrot.lane.b32.xlu0 %v5970, 33
      %v5988 = vpop.permute.xlu0 %5987
      %v5989 = vsel %vm4118, %v5986, %v5988
      %v5990 = vsel %vm4118, %v5984, %v5986
      %v5991 = vsel %vm4118, %v5982, %v5984
      %v5992 = vsel %vm4118, %v5980, %v5982
      %v5993 = vsel %vm4118, %v5978, %v5980
      %v5994 = vsel %vm4118, %v5976, %v5978
      %v5995 = vsel %vm4118, %v5974, %v5976
      %v5996 = vsel %vm4118, %v5988, %v5974
      %v5997 = vmul.f32 %v5996, %v503
      %v5998 = vmul.f32 %v5995, %v504
      %v5999 = vmul.f32 %v5994, %v505
      %v6000 = vmul.f32 %v5993, %v506
      %v6001 = vmul.f32 %v5992, %v507
      %v6002 = vmul.f32 %v5991, %v508
      %v6003 = vmul.f32 %v5990, %v509
      %v6004 = vmul.f32 %v5989, %v510
      %6005 = vrot.lane.b32.xlu0 %v5755, 32
      %v6006 = vpop.permute.xlu0 %6005
      %6007 = vrot.lane.b32.xlu0 %v5757, 32
      %v6008 = vpop.permute.xlu0 %6007
      %6009 = vrot.lane.b32.xlu0 %v5826, 32
      %v6010 = vpop.permute.xlu0 %6009
      %6011 = vrot.lane.b32.xlu0 %v5828, 32
      %v6012 = vpop.permute.xlu0 %6011
      %6013 = vrot.lane.b32.xlu0 %v5897, 32
      %v6014 = vpop.permute.xlu0 %6013
      %6015 = vrot.lane.b32.xlu0 %v5899, 32
      %v6016 = vpop.permute.xlu0 %6015
      %6017 = vrot.lane.b32.xlu0 %v5968, 32
      %v6018 = vpop.permute.xlu0 %6017
      %6019 = vrot.lane.b32.xlu0 %v5970, 32
      %v6020 = vpop.permute.xlu0 %6019
      %v6021 = vsel %vm4151, %v6018, %v6020
      %v6022 = vsel %vm4151, %v6016, %v6018
      %v6023 = vsel %vm4151, %v6014, %v6016
      %v6024 = vsel %vm4151, %v6012, %v6014
      %v6025 = vsel %vm4151, %v6010, %v6012
      %v6026 = vsel %vm4151, %v6008, %v6010
      %v6027 = vsel %vm4151, %v6006, %v6008
      %v6028 = vsel %vm4151, %v6020, %v6006
      %v6029 = vmul.f32 %v6028, %v479
      %v6030 = vmul.f32 %v6027, %v480
      %v6031 = vmul.f32 %v6026, %v481
      %v6032 = vmul.f32 %v6025, %v482
      %v6033 = vmul.f32 %v6024, %v483
      %v6034 = vmul.f32 %v6023, %v484
      %v6035 = vmul.f32 %v6022, %v485
      %v6036 = vmul.f32 %v6021, %v486
      %6037 = vrot.lane.b32.xlu0 %v5755, 31
      %v6038 = vpop.permute.xlu0 %6037
      %6039 = vrot.lane.b32.xlu0 %v5757, 31
      %v6040 = vpop.permute.xlu0 %6039
      %6041 = vrot.lane.b32.xlu0 %v5826, 31
      %v6042 = vpop.permute.xlu0 %6041
      %6043 = vrot.lane.b32.xlu0 %v5828, 31
      %v6044 = vpop.permute.xlu0 %6043
      %6045 = vrot.lane.b32.xlu0 %v5897, 31
      %v6046 = vpop.permute.xlu0 %6045
      %6047 = vrot.lane.b32.xlu0 %v5899, 31
      %v6048 = vpop.permute.xlu0 %6047
      %6049 = vrot.lane.b32.xlu0 %v5968, 31
      %v6050 = vpop.permute.xlu0 %6049
      %6051 = vrot.lane.b32.xlu0 %v5970, 31
      %v6052 = vpop.permute.xlu0 %6051
      %v6053 = vsel %vm4184, %v6050, %v6052
      %v6054 = vsel %vm4184, %v6048, %v6050
      %v6055 = vsel %vm4184, %v6046, %v6048
      %v6056 = vsel %vm4184, %v6044, %v6046
      %v6057 = vsel %vm4184, %v6042, %v6044
      %v6058 = vsel %vm4184, %v6040, %v6042
      %v6059 = vsel %vm4184, %v6038, %v6040
      %v6060 = vsel %vm4184, %v6052, %v6038
      %v6061 = vmul.f32 %v6060, %v511
      %v6062 = vmul.f32 %v6059, %v512
      %v6063 = vmul.f32 %v6058, %v513
      %v6064 = vmul.f32 %v6057, %v514
      %v6065 = vmul.f32 %v6056, %v515
      %v6066 = vmul.f32 %v6055, %v516
      %v6067 = vmul.f32 %v6054, %v517
      %v6068 = vmul.f32 %v6053, %v518
      %6069 = vrot.lane.b32.xlu0 %v5755, 1
      %v6070 = vpop.permute.xlu0 %6069
      %6071 = vrot.lane.b32.xlu0 %v5757, 1
      %v6072 = vpop.permute.xlu0 %6071
      %6073 = vrot.lane.b32.xlu0 %v5826, 1
      %v6074 = vpop.permute.xlu0 %6073
      %6075 = vrot.lane.b32.xlu0 %v5828, 1
      %v6076 = vpop.permute.xlu0 %6075
      %6077 = vrot.lane.b32.xlu0 %v5897, 1
      %v6078 = vpop.permute.xlu0 %6077
      %6079 = vrot.lane.b32.xlu0 %v5899, 1
      %v6080 = vpop.permute.xlu0 %6079
      %6081 = vrot.lane.b32.xlu0 %v5968, 1
      %v6082 = vpop.permute.xlu0 %6081
      %6083 = vrot.lane.b32.xlu0 %v5970, 1
      %v6084 = vpop.permute.xlu0 %6083
      %v6085 = vsel %vm2568, %v6082, %v6084
      %v6086 = vsel %vm2568, %v6080, %v6082
      %v6087 = vsel %vm2568, %v6078, %v6080
      %v6088 = vsel %vm2568, %v6076, %v6078
      %v6089 = vsel %vm2568, %v6074, %v6076
      %v6090 = vsel %vm2568, %v6072, %v6074
      %v6091 = vsel %vm2568, %v6070, %v6072
      %v6092 = vsel %vm2568, %v6084, %v6070
      %v6093 = vmul.f32 %v6092, %v447
      %v6094 = vmul.f32 %v6091, %v448
      %v6095 = vmul.f32 %v6090, %v449
      %v6096 = vmul.f32 %v6089, %v450
      %v6097 = vmul.f32 %v6088, %v451
      %v6098 = vmul.f32 %v6087, %v452
      %v6099 = vmul.f32 %v6086, %v453
      %v6100 = vmul.f32 %v6085, %v454
      %6101 = vrot.lane.b32.xlu0 %v5755, 127
      %v6102 = vpop.permute.xlu0 %6101
      %6103 = vrot.lane.b32.xlu0 %v5757, 127
      %v6104 = vpop.permute.xlu0 %6103
      %6105 = vrot.lane.b32.xlu0 %v5826, 127
      %v6106 = vpop.permute.xlu0 %6105
      %6107 = vrot.lane.b32.xlu0 %v5828, 127
      %v6108 = vpop.permute.xlu0 %6107
      %6109 = vrot.lane.b32.xlu0 %v5897, 127
      %v6110 = vpop.permute.xlu0 %6109
      %6111 = vrot.lane.b32.xlu0 %v5899, 127
      %v6112 = vpop.permute.xlu0 %6111
      %6113 = vrot.lane.b32.xlu0 %v5968, 127
      %v6114 = vpop.permute.xlu0 %6113
      %6115 = vrot.lane.b32.xlu0 %v5970, 127
      %v6116 = vpop.permute.xlu0 %6115
      %v6117 = vsel %vm2577, %v6114, %v6116
      %v6118 = vsel %vm2577, %v6112, %v6114
      %v6119 = vsel %vm2577, %v6110, %v6112
      %v6120 = vsel %vm2577, %v6108, %v6110
      %v6121 = vsel %vm2577, %v6106, %v6108
      %v6122 = vsel %vm2577, %v6104, %v6106
      %v6123 = vsel %vm2577, %v6102, %v6104
      %v6124 = vsel %vm2577, %v6116, %v6102
      %v6125 = vmul.f32 %v6123, %v463
      %v6126 = vmul.f32 %v6122, %v464
      %v6127 = vmul.f32 %v6121, %v465
      %v6128 = vmul.f32 %v6120, %v466
      %v6129 = vmul.f32 %v6119, %v467
      %v6130 = vmul.f32 %v6118, %v468
      %v6131 = vmul.f32 %v6117, %v469
      %v6132 = vmul.f32 %v6124, %v470
      %6133 = vrot.lane.b32.xlu0 %v5755, 97
      %v6134 = vpop.permute.xlu0 %6133
      %6135 = vrot.lane.b32.xlu0 %v5757, 97
      %v6136 = vpop.permute.xlu0 %6135
      %6137 = vrot.lane.b32.xlu0 %v5826, 97
      %v6138 = vpop.permute.xlu0 %6137
      %6139 = vrot.lane.b32.xlu0 %v5828, 97
      %v6140 = vpop.permute.xlu0 %6139
      %6141 = vrot.lane.b32.xlu0 %v5897, 97
      %v6142 = vpop.permute.xlu0 %6141
      %6143 = vrot.lane.b32.xlu0 %v5899, 97
      %v6144 = vpop.permute.xlu0 %6143
      %6145 = vrot.lane.b32.xlu0 %v5968, 97
      %v6146 = vpop.permute.xlu0 %6145
      %6147 = vrot.lane.b32.xlu0 %v5970, 97
      %v6148 = vpop.permute.xlu0 %6147
      %v6149 = vsel %vm4281, %v6146, %v6148
      %v6150 = vsel %vm4281, %v6144, %v6146
      %v6151 = vsel %vm4281, %v6142, %v6144
      %v6152 = vsel %vm4281, %v6140, %v6142
      %v6153 = vsel %vm4281, %v6138, %v6140
      %v6154 = vsel %vm4281, %v6136, %v6138
      %v6155 = vsel %vm4281, %v6134, %v6136
      %v6156 = vsel %vm4281, %v6148, %v6134
      %v6157 = vmul.f32 %v6155, %v519
      %v6158 = vmul.f32 %v6154, %v520
      %v6159 = vmul.f32 %v6153, %v521
      %v6160 = vmul.f32 %v6152, %v522
      %v6161 = vmul.f32 %v6151, %v523
      %v6162 = vmul.f32 %v6150, %v524
      %v6163 = vmul.f32 %v6149, %v525
      %v6164 = vmul.f32 %v6156, %v526
      %6165 = vrot.lane.b32.xlu0 %v5755, 96
      %v6166 = vpop.permute.xlu0 %6165
      %6167 = vrot.lane.b32.xlu0 %v5757, 96
      %v6168 = vpop.permute.xlu0 %6167
      %6169 = vrot.lane.b32.xlu0 %v5826, 96
      %v6170 = vpop.permute.xlu0 %6169
      %6171 = vrot.lane.b32.xlu0 %v5828, 96
      %v6172 = vpop.permute.xlu0 %6171
      %6173 = vrot.lane.b32.xlu0 %v5897, 96
      %v6174 = vpop.permute.xlu0 %6173
      %6175 = vrot.lane.b32.xlu0 %v5899, 96
      %v6176 = vpop.permute.xlu0 %6175
      %6177 = vrot.lane.b32.xlu0 %v5968, 96
      %v6178 = vpop.permute.xlu0 %6177
      %6179 = vrot.lane.b32.xlu0 %v5970, 96
      %v6180 = vpop.permute.xlu0 %6179
      %v6181 = vsel %vm4314, %v6178, %v6180
      %v6182 = vsel %vm4314, %v6176, %v6178
      %v6183 = vsel %vm4314, %v6174, %v6176
      %v6184 = vsel %vm4314, %v6172, %v6174
      %v6185 = vsel %vm4314, %v6170, %v6172
      %v6186 = vsel %vm4314, %v6168, %v6170
      %v6187 = vsel %vm4314, %v6166, %v6168
      %v6188 = vsel %vm4314, %v6180, %v6166
      %v6189 = vmul.f32 %v6187, %v495
      %v6190 = vmul.f32 %v6186, %v496
      %v6191 = vmul.f32 %v6185, %v497
      %v6192 = vmul.f32 %v6184, %v498
      %v6193 = vmul.f32 %v6183, %v499
      %v6194 = vmul.f32 %v6182, %v500
      %v6195 = vmul.f32 %v6181, %v501
      %v6196 = vmul.f32 %v6188, %v502
      %6197 = vrot.lane.b32.xlu0 %v5755, 95
      %v6198 = vpop.permute.xlu0 %6197
      %6199 = vrot.lane.b32.xlu0 %v5757, 95
      %v6200 = vpop.permute.xlu0 %6199
      %6201 = vrot.lane.b32.xlu0 %v5826, 95
      %v6202 = vpop.permute.xlu0 %6201
      %6203 = vrot.lane.b32.xlu0 %v5828, 95
      %v6204 = vpop.permute.xlu0 %6203
      %6205 = vrot.lane.b32.xlu0 %v5897, 95
      %v6206 = vpop.permute.xlu0 %6205
      %6207 = vrot.lane.b32.xlu0 %v5899, 95
      %v6208 = vpop.permute.xlu0 %6207
      %6209 = vrot.lane.b32.xlu0 %v5968, 95
      %v6210 = vpop.permute.xlu0 %6209
      %6211 = vrot.lane.b32.xlu0 %v5970, 95
      %v6212 = vpop.permute.xlu0 %6211
      %v6213 = vsel %vm4347, %v6210, %v6212
      %v6214 = vsel %vm4347, %v6208, %v6210
      %v6215 = vsel %vm4347, %v6206, %v6208
      %v6216 = vsel %vm4347, %v6204, %v6206
      %v6217 = vsel %vm4347, %v6202, %v6204
      %v6218 = vsel %vm4347, %v6200, %v6202
      %v6219 = vsel %vm4347, %v6198, %v6200
      %v6220 = vsel %vm4347, %v6212, %v6198
      %v6221 = vmul.f32 %v6219, %v527
      %v6222 = vmul.f32 %v6218, %v528
      %v6223 = vmul.f32 %v6217, %v529
      %v6224 = vmul.f32 %v6216, %v530
      %v6225 = vmul.f32 %v6215, %v531
      %v6226 = vmul.f32 %v6214, %v532
      %v6227 = vmul.f32 %v6213, %v533
      %v6228 = vmul.f32 %v6220, %v534
      %v6230 = vsel %vm2317, %v5972, 0
      %6232 = vmatprep.subr.mxu0 %v5998
      %6233 = vmatpush1.msra.mxu0 %v5997
      %6234 = vmatprep.subr.mxu0 %v6030
      %6235 = vmatpush1.msra.mxu0 %v6029
      %6236 = vmatprep.subr.mxu0 %v6062
      %6237 = vmatpush1.msra.mxu0 %v6061
      %6238 = vmatprep.subr.mxu0 %v6094
      %6239 = vmatpush1.msra.mxu0 %v6093
      %6240 = vmatprep.subr.mxu0 %v5757
      %6241 = vmatpush1.msra.mxu0 %v5755
      %6242 = vmatprep.subr.mxu0 %v6126
      %6243 = vmatpush1.msra.mxu0 %v6125
      %6244 = vmatprep.subr.mxu0 %v6158
      %6245 = vmatpush1.msra.mxu0 %v6157
      %6246 = vmatprep.subr.mxu0 %v6190
      %6247 = vmatpush1.msra.mxu0 %v6189
      %6248 = vmatprep.subr.mxu0 %v6222
      %6249 = vmatpush1.msra.mxu0 %v6221
      %6250 = vmatprep.subr.mxu0 %v829
      %6251 = vmatpush1.msra.mxu0 %v829
      %6252 = vmatprep.subr.mxu0 0.0
      %6253 = vmatpush1.msra.mxu0 0.0
      %6254 = vmatprep.subr.mxu0 0.0
      %6255 = vmatpush1.msra.mxu0 0.0
      %6256 = vmatprep.subr.mxu0 0.0
      %6257 = vmatpush1.msra.mxu0 0.0
      %6258 = vmatprep.subr.mxu0 0.0
      %6259 = vmatpush1.msra.mxu0 0.0
      %6260 = vmatprep.subr.mxu0 0.0
      %6261 = vmatpush1.msra.mxu0 0.0
      %6262 = vmatprep.subr.mxu0 0.0
      %6263 = vmatpush1.msra.mxu0 0.0
      %6264 = vmatprep.subr.mxu0 0.0
      %6265 = vmatpush1.msra.mxu0 0.0
      %6266 = vmatprep.subr.mxu0 0.0
      %6267 = vmatpush1.msra.mxu0 0.0
      %6268 = vmatprep.subr.mxu0 0.0
      %6269 = vmatpush1.msra.mxu0 0.0
      %6270 = vmatprep.subr.mxu0 0.0
      %6271 = vmatpush1.msra.mxu0 0.0
      %6272 = vmatprep.subr.mxu0 0.0
      %6273 = vmatpush1.msra.mxu0 0.0
      %6274 = vmatprep.subr.mxu0 0.0
      %6275 = vmatpush1.msra.mxu0 0.0
      %6276 = vmatprep.subr.mxu0 0.0
      %6277 = vmatpush1.msra.mxu0 0.0
      %6278 = vmatprep.subr.mxu0 0.0
      %6279 = vmatpush1.msra.mxu0 0.0
      %6280 = vmatprep.subr.mxu0 0.0
      %6281 = vmatpush1.msra.mxu0 0.0
      %6282 = vmatprep.subr.mxu0 0.0
      %6283 = vmatpush1.msra.mxu0 0.0
      %6284 = vmatprep.subr.mxu0 0.0
      %6285 = vmatpush1.msra.mxu0 0.0
      %6286 = vmatprep.subr.mxu0 0.0
      %6287 = vmatpush1.msra.mxu0 0.0
      %6288 = vmatprep.subr.mxu0 0.0
      %6289 = vmatpush1.msra.mxu0 0.0
      %6290 = vmatprep.subr.mxu0 0.0
      %6291 = vmatpush1.msra.mxu0 0.0
      %6292 = vmatprep.subr.mxu0 0.0
      %6293 = vmatpush1.msra.mxu0 0.0
      %6294 = vmatprep.subr.mxu0 0.0
      %6295 = vmatpush1.msra.mxu0 0.0
      %6296 = vmatprep.mubr.f32.mxu0 0.0
      %6297 = vmatmul.mubr.f32.gmra.mrb[0].mxu0 %v6230
      %v6298 = vpop.f32.mrb[0].mxu0
      %v6299 = vadd.f32 0.0, %v6298
      %v6300 = vpop.f32.mrb[0].mxu0
      %v6301 = vadd.f32 0.0, %v6300
      %6302 = vdwg.mxu0
      %6303 = vmatprep.subr.mxu0 %v6000
      %6304 = vmatpush1.msra.mxu0 %v5999
      %6305 = vmatprep.subr.mxu0 %v6032
      %6306 = vmatpush1.msra.mxu0 %v6031
      %6307 = vmatprep.subr.mxu0 %v6064
      %6308 = vmatpush1.msra.mxu0 %v6063
      %6309 = vmatprep.subr.mxu0 %v6096
      %6310 = vmatpush1.msra.mxu0 %v6095
      %6311 = vmatprep.subr.mxu0 %v5828
      %6312 = vmatpush1.msra.mxu0 %v5826
      %6313 = vmatprep.subr.mxu0 %v6128
      %6314 = vmatpush1.msra.mxu0 %v6127
      %6315 = vmatprep.subr.mxu0 %v6160
      %6316 = vmatpush1.msra.mxu0 %v6159
      %6317 = vmatprep.subr.mxu0 %v6192
      %6318 = vmatpush1.msra.mxu0 %v6191
      %6319 = vmatprep.subr.mxu0 %v6224
      %6320 = vmatpush1.msra.mxu0 %v6223
      %6321 = vmatprep.subr.mxu0 %v829
      %6322 = vmatpush1.msra.mxu0 %v829
      %6323 = vmatprep.subr.mxu0 0.0
      %6324 = vmatpush1.msra.mxu0 0.0
      %6325 = vmatprep.subr.mxu0 0.0
      %6326 = vmatpush1.msra.mxu0 0.0
      %6327 = vmatprep.subr.mxu0 0.0
      %6328 = vmatpush1.msra.mxu0 0.0
      %6329 = vmatprep.subr.mxu0 0.0
      %6330 = vmatpush1.msra.mxu0 0.0
      %6331 = vmatprep.subr.mxu0 0.0
      %6332 = vmatpush1.msra.mxu0 0.0
      %6333 = vmatprep.subr.mxu0 0.0
      %6334 = vmatpush1.msra.mxu0 0.0
      %6335 = vmatprep.subr.mxu0 0.0
      %6336 = vmatpush1.msra.mxu0 0.0
      %6337 = vmatprep.subr.mxu0 0.0
      %6338 = vmatpush1.msra.mxu0 0.0
      %6339 = vmatprep.subr.mxu0 0.0
      %6340 = vmatpush1.msra.mxu0 0.0
      %6341 = vmatprep.subr.mxu0 0.0
      %6342 = vmatpush1.msra.mxu0 0.0
      %6343 = vmatprep.subr.mxu0 0.0
      %6344 = vmatpush1.msra.mxu0 0.0
      %6345 = vmatprep.subr.mxu0 0.0
      %6346 = vmatpush1.msra.mxu0 0.0
      %6347 = vmatprep.subr.mxu0 0.0
      %6348 = vmatpush1.msra.mxu0 0.0
      %6349 = vmatprep.subr.mxu0 0.0
      %6350 = vmatpush1.msra.mxu0 0.0
      %6351 = vmatprep.subr.mxu0 0.0
      %6352 = vmatpush1.msra.mxu0 0.0
      %6353 = vmatprep.subr.mxu0 0.0
      %6354 = vmatpush1.msra.mxu0 0.0
      %6355 = vmatprep.subr.mxu0 0.0
      %6356 = vmatpush1.msra.mxu0 0.0
      %6357 = vmatprep.subr.mxu0 0.0
      %6358 = vmatpush1.msra.mxu0 0.0
      %6359 = vmatprep.subr.mxu0 0.0
      %6360 = vmatpush1.msra.mxu0 0.0
      %6361 = vmatprep.subr.mxu0 0.0
      %6362 = vmatpush1.msra.mxu0 0.0
      %6363 = vmatprep.subr.mxu0 0.0
      %6364 = vmatpush1.msra.mxu0 0.0
      %6365 = vmatprep.subr.mxu0 0.0
      %6366 = vmatpush1.msra.mxu0 0.0
      %6367 = vmatprep.mubr.f32.mxu0 0.0
      %6368 = vmatmul.mubr.f32.gmra.mrb[0].mxu0 %v6230
      %v6369 = vpop.f32.mrb[0].mxu0
      %v6370 = vadd.f32 0.0, %v6369
      %v6371 = vpop.f32.mrb[0].mxu0
      %v6372 = vadd.f32 0.0, %v6371
      %6373 = vdwg.mxu0
      %6374 = vmatprep.subr.mxu0 %v6002
      %6375 = vmatpush1.msra.mxu0 %v6001
      %6376 = vmatprep.subr.mxu0 %v6034
      %6377 = vmatpush1.msra.mxu0 %v6033
      %6378 = vmatprep.subr.mxu0 %v6066
      %6379 = vmatpush1.msra.mxu0 %v6065
      %6380 = vmatprep.subr.mxu0 %v6098
      %6381 = vmatpush1.msra.mxu0 %v6097
      %6382 = vmatprep.subr.mxu0 %v5899
      %6383 = vmatpush1.msra.mxu0 %v5897
      %6384 = vmatprep.subr.mxu0 %v6130
      %6385 = vmatpush1.msra.mxu0 %v6129
      %6386 = vmatprep.subr.mxu0 %v6162
      %6387 = vmatpush1.msra.mxu0 %v6161
      %6388 = vmatprep.subr.mxu0 %v6194
      %6389 = vmatpush1.msra.mxu0 %v6193
      %6390 = vmatprep.subr.mxu0 %v6226
      %6391 = vmatpush1.msra.mxu0 %v6225
      %6392 = vmatprep.subr.mxu0 %v829
      %6393 = vmatpush1.msra.mxu0 %v829
      %6394 = vmatprep.subr.mxu0 0.0
      %6395 = vmatpush1.msra.mxu0 0.0
      %6396 = vmatprep.subr.mxu0 0.0
      %6397 = vmatpush1.msra.mxu0 0.0
      %6398 = vmatprep.subr.mxu0 0.0
      %6399 = vmatpush1.msra.mxu0 0.0
      %6400 = vmatprep.subr.mxu0 0.0
      %6401 = vmatpush1.msra.mxu0 0.0
      %6402 = vmatprep.subr.mxu0 0.0
      %6403 = vmatpush1.msra.mxu0 0.0
      %6404 = vmatprep.subr.mxu0 0.0
      %6405 = vmatpush1.msra.mxu0 0.0
      %6406 = vmatprep.subr.mxu0 0.0
      %6407 = vmatpush1.msra.mxu0 0.0
      %6408 = vmatprep.subr.mxu0 0.0
      %6409 = vmatpush1.msra.mxu0 0.0
      %6410 = vmatprep.subr.mxu0 0.0
      %6411 = vmatpush1.msra.mxu0 0.0
      %6412 = vmatprep.subr.mxu0 0.0
      %6413 = vmatpush1.msra.mxu0 0.0
      %6414 = vmatprep.subr.mxu0 0.0
      %6415 = vmatpush1.msra.mxu0 0.0
      %6416 = vmatprep.subr.mxu0 0.0
      %6417 = vmatpush1.msra.mxu0 0.0
      %6418 = vmatprep.subr.mxu0 0.0
      %6419 = vmatpush1.msra.mxu0 0.0
      %6420 = vmatprep.subr.mxu0 0.0
      %6421 = vmatpush1.msra.mxu0 0.0
      %6422 = vmatprep.subr.mxu0 0.0
      %6423 = vmatpush1.msra.mxu0 0.0
      %6424 = vmatprep.subr.mxu0 0.0
      %6425 = vmatpush1.msra.mxu0 0.0
      %6426 = vmatprep.subr.mxu0 0.0
      %6427 = vmatpush1.msra.mxu0 0.0
      %6428 = vmatprep.subr.mxu0 0.0
      %6429 = vmatpush1.msra.mxu0 0.0
      %6430 = vmatprep.subr.mxu0 0.0
      %6431 = vmatpush1.msra.mxu0 0.0
      %6432 = vmatprep.subr.mxu0 0.0
      %6433 = vmatpush1.msra.mxu0 0.0
      %6434 = vmatprep.subr.mxu0 0.0
      %6435 = vmatpush1.msra.mxu0 0.0
      %6436 = vmatprep.subr.mxu0 0.0
      %6437 = vmatpush1.msra.mxu0 0.0
      %6438 = vmatprep.mubr.f32.mxu0 0.0
      %6439 = vmatmul.mubr.f32.gmra.mrb[0].mxu0 %v6230
      %v6440 = vpop.f32.mrb[0].mxu0
      %v6441 = vadd.f32 0.0, %v6440
      %v6442 = vpop.f32.mrb[0].mxu0
      %v6443 = vadd.f32 0.0, %v6442
      %6444 = vdwg.mxu0
      %6445 = vmatprep.subr.mxu0 %v6004
      %6446 = vmatpush1.msra.mxu0 %v6003
      %6447 = vmatprep.subr.mxu0 %v6036
      %6448 = vmatpush1.msra.mxu0 %v6035
      %6449 = vmatprep.subr.mxu0 %v6068
      %6450 = vmatpush1.msra.mxu0 %v6067
      %6451 = vmatprep.subr.mxu0 %v6100
      %6452 = vmatpush1.msra.mxu0 %v6099
      %6453 = vmatprep.subr.mxu0 %v5970
      %6454 = vmatpush1.msra.mxu0 %v5968
      %6455 = vmatprep.subr.mxu0 %v6132
      %6456 = vmatpush1.msra.mxu0 %v6131
      %6457 = vmatprep.subr.mxu0 %v6164
      %6458 = vmatpush1.msra.mxu0 %v6163
      %6459 = vmatprep.subr.mxu0 %v6196
      %6460 = vmatpush1.msra.mxu0 %v6195
      %6461 = vmatprep.subr.mxu0 %v6228
      %6462 = vmatpush1.msra.mxu0 %v6227
      %6463 = vmatprep.subr.mxu0 %v829
      %6464 = vmatpush1.msra.mxu0 %v829
      %6465 = vmatprep.subr.mxu0 0.0
      %6466 = vmatpush1.msra.mxu0 0.0
      %6467 = vmatprep.subr.mxu0 0.0
      %6468 = vmatpush1.msra.mxu0 0.0
      %6469 = vmatprep.subr.mxu0 0.0
      %6470 = vmatpush1.msra.mxu0 0.0
      %6471 = vmatprep.subr.mxu0 0.0
      %6472 = vmatpush1.msra.mxu0 0.0
      %6473 = vmatprep.subr.mxu0 0.0
      %6474 = vmatpush1.msra.mxu0 0.0
      %6475 = vmatprep.subr.mxu0 0.0
      %6476 = vmatpush1.msra.mxu0 0.0
      %6477 = vmatprep.subr.mxu0 0.0
      %6478 = vmatpush1.msra.mxu0 0.0
      %6479 = vmatprep.subr.mxu0 0.0
      %6480 = vmatpush1.msra.mxu0 0.0
      %6481 = vmatprep.subr.mxu0 0.0
      %6482 = vmatpush1.msra.mxu0 0.0
      %6483 = vmatprep.subr.mxu0 0.0
      %6484 = vmatpush1.msra.mxu0 0.0
      %6485 = vmatprep.subr.mxu0 0.0
      %6486 = vmatpush1.msra.mxu0 0.0
      %6487 = vmatprep.subr.mxu0 0.0
      %6488 = vmatpush1.msra.mxu0 0.0
      %6489 = vmatprep.subr.mxu0 0.0
      %6490 = vmatpush1.msra.mxu0 0.0
      %6491 = vmatprep.subr.mxu0 0.0
      %6492 = vmatpush1.msra.mxu0 0.0
      %6493 = vmatprep.subr.mxu0 0.0
      %6494 = vmatpush1.msra.mxu0 0.0
      %6495 = vmatprep.subr.mxu0 0.0
      %6496 = vmatpush1.msra.mxu0 0.0
      %6497 = vmatprep.subr.mxu0 0.0
      %6498 = vmatpush1.msra.mxu0 0.0
      %6499 = vmatprep.subr.mxu0 0.0
      %6500 = vmatpush1.msra.mxu0 0.0
      %6501 = vmatprep.subr.mxu0 0.0
      %6502 = vmatpush1.msra.mxu0 0.0
      %6503 = vmatprep.subr.mxu0 0.0
      %6504 = vmatpush1.msra.mxu0 0.0
      %6505 = vmatprep.subr.mxu0 0.0
      %6506 = vmatpush1.msra.mxu0 0.0
      %6507 = vmatprep.subr.mxu0 0.0
      %6508 = vmatpush1.msra.mxu0 0.0
      %6509 = vmatprep.mubr.f32.mxu0 0.0
      %6510 = vmatmul.mubr.f32.gmra.mrb[0].mxu0 %v6230
      %v6511 = vpop.f32.mrb[0].mxu0
      %v6512 = vadd.f32 0.0, %v6511
      %v6513 = vpop.f32.mrb[0].mxu0
      %v6514 = vadd.f32 0.0, %v6513
      %6515 = vdwg.mxu0
      %v6516 = vld [vmem:[%s6 + $0x2f8] sm:$0xf]
      %v6518 = vsel %vm2095, %v6516, 0
      %6520 = vmatprep.subr.mxu0 %v6301
      %6521 = vmatpush1.msra.mxu0 %v6299
      %6522 = vmatprep.subr.mxu0 %v829
      %6523 = vmatpush1.msra.mxu0 %v829
      %6524 = vmatprep.subr.mxu0 0.0
      %6525 = vmatpush1.msra.mxu0 0.0
      %6526 = vmatprep.subr.mxu0 0.0
      %6527 = vmatpush1.msra.mxu0 0.0
      %6528 = vmatprep.subr.mxu0 0.0
      %6529 = vmatpush1.msra.mxu0 0.0
      %6530 = vmatprep.subr.mxu0 0.0
      %6531 = vmatpush1.msra.mxu0 0.0
      %6532 = vmatprep.subr.mxu0 0.0
      %6533 = vmatpush1.msra.mxu0 0.0
      %6534 = vmatprep.subr.mxu0 0.0
      %6535 = vmatpush1.msra.mxu0 0.0
      %6536 = vmatprep.subr.mxu0 0.0
      %6537 = vmatpush1.msra.mxu0 0.0
      %6538 = vmatprep.subr.mxu0 0.0
      %6539 = vmatpush1.msra.mxu0 0.0
      %6540 = vmatprep.subr.mxu0 0.0
      %6541 = vmatpush1.msra.mxu0 0.0
      %6542 = vmatprep.subr.mxu0 0.0
      %6543 = vmatpush1.msra.mxu0 0.0
      %6544 = vmatprep.subr.mxu0 0.0
      %6545 = vmatpush1.msra.mxu0 0.0
      %6546 = vmatprep.subr.mxu0 0.0
      %6547 = vmatpush1.msra.mxu0 0.0
      %6548 = vmatprep.subr.mxu0 0.0
      %6549 = vmatpush1.msra.mxu0 0.0
      %6550 = vmatprep.subr.mxu0 0.0
      %6551 = vmatpush1.msra.mxu0 0.0
      %6552 = vmatprep.subr.mxu0 0.0
      %6553 = vmatpush1.msra.mxu0 0.0
      %6554 = vmatprep.subr.mxu0 0.0
      %6555 = vmatpush1.msra.mxu0 0.0
      %6556 = vmatprep.subr.mxu0 0.0
      %6557 = vmatpush1.msra.mxu0 0.0
      %6558 = vmatprep.subr.mxu0 0.0
      %6559 = vmatpush1.msra.mxu0 0.0
      %6560 = vmatprep.subr.mxu0 0.0
      %6561 = vmatpush1.msra.mxu0 0.0
      %6562 = vmatprep.subr.mxu0 0.0
      %6563 = vmatpush1.msra.mxu0 0.0
      %6564 = vmatprep.subr.mxu0 0.0
      %6565 = vmatpush1.msra.mxu0 0.0
      %6566 = vmatprep.subr.mxu0 0.0
      %6567 = vmatpush1.msra.mxu0 0.0
      %6568 = vmatprep.subr.mxu0 0.0
      %6569 = vmatpush1.msra.mxu0 0.0
      %6570 = vmatprep.subr.mxu0 0.0
      %6571 = vmatpush1.msra.mxu0 0.0
      %6572 = vmatprep.subr.mxu0 0.0
      %6573 = vmatpush1.msra.mxu0 0.0
      %6574 = vmatprep.subr.mxu0 0.0
      %6575 = vmatpush1.msra.mxu0 0.0
      %6576 = vmatprep.subr.mxu0 0.0
      %6577 = vmatpush1.msra.mxu0 0.0
      %6578 = vmatprep.subr.mxu0 0.0
      %6579 = vmatpush1.msra.mxu0 0.0
      %6580 = vmatprep.subr.mxu0 0.0
      %6581 = vmatpush1.msra.mxu0 0.0
      %6582 = vmatprep.subr.mxu0 0.0
      %6583 = vmatpush1.msra.mxu0 0.0
      %6584 = vmatprep.mubr.f32.mxu0 0.0
      %6585 = vmatmul.mubr.f32.gmra.mrb[0].mxu0 %v6518
      %v6586 = vpop.f32.mrb[0].mxu0
      %v6587 = vadd.f32 0.0, %v6586
      %v6588 = vpop.f32.mrb[0].mxu0
      %v6589 = vadd.f32 0.0, %v6588
      %6590 = vdwg.mxu0
      %6591 = vmatprep.subr.mxu0 %v6372
      %6592 = vmatpush1.msra.mxu0 %v6370
      %6593 = vmatprep.subr.mxu0 %v829
      %6594 = vmatpush1.msra.mxu0 %v829
      %6595 = vmatprep.subr.mxu0 0.0
      %6596 = vmatpush1.msra.mxu0 0.0
      %6597 = vmatprep.subr.mxu0 0.0
      %6598 = vmatpush1.msra.mxu0 0.0
      %6599 = vmatprep.subr.mxu0 0.0
      %6600 = vmatpush1.msra.mxu0 0.0
      %6601 = vmatprep.subr.mxu0 0.0
      %6602 = vmatpush1.msra.mxu0 0.0
      %6603 = vmatprep.subr.mxu0 0.0
      %6604 = vmatpush1.msra.mxu0 0.0
      %6605 = vmatprep.subr.mxu0 0.0
      %6606 = vmatpush1.msra.mxu0 0.0
      %6607 = vmatprep.subr.mxu0 0.0
      %6608 = vmatpush1.msra.mxu0 0.0
      %6609 = vmatprep.subr.mxu0 0.0
      %6610 = vmatpush1.msra.mxu0 0.0
      %6611 = vmatprep.subr.mxu0 0.0
      %6612 = vmatpush1.msra.mxu0 0.0
      %6613 = vmatprep.subr.mxu0 0.0
      %6614 = vmatpush1.msra.mxu0 0.0
      %6615 = vmatprep.subr.mxu0 0.0
      %6616 = vmatpush1.msra.mxu0 0.0
      %6617 = vmatprep.subr.mxu0 0.0
      %6618 = vmatpush1.msra.mxu0 0.0
      %6619 = vmatprep.subr.mxu0 0.0
      %6620 = vmatpush1.msra.mxu0 0.0
      %6621 = vmatprep.subr.mxu0 0.0
      %6622 = vmatpush1.msra.mxu0 0.0
      %6623 = vmatprep.subr.mxu0 0.0
      %6624 = vmatpush1.msra.mxu0 0.0
      %6625 = vmatprep.subr.mxu0 0.0
      %6626 = vmatpush1.msra.mxu0 0.0
      %6627 = vmatprep.subr.mxu0 0.0
      %6628 = vmatpush1.msra.mxu0 0.0
      %6629 = vmatprep.subr.mxu0 0.0
      %6630 = vmatpush1.msra.mxu0 0.0
      %6631 = vmatprep.subr.mxu0 0.0
      %6632 = vmatpush1.msra.mxu0 0.0
      %6633 = vmatprep.subr.mxu0 0.0
      %6634 = vmatpush1.msra.mxu0 0.0
      %6635 = vmatprep.subr.mxu0 0.0
      %6636 = vmatpush1.msra.mxu0 0.0
      %6637 = vmatprep.subr.mxu0 0.0
      %6638 = vmatpush1.msra.mxu0 0.0
      %6639 = vmatprep.subr.mxu0 0.0
      %6640 = vmatpush1.msra.mxu0 0.0
      %6641 = vmatprep.subr.mxu0 0.0
      %6642 = vmatpush1.msra.mxu0 0.0
      %6643 = vmatprep.subr.mxu0 0.0
      %6644 = vmatpush1.msra.mxu0 0.0
      %6645 = vmatprep.subr.mxu0 0.0
      %6646 = vmatpush1.msra.mxu0 0.0
      %6647 = vmatprep.subr.mxu0 0.0
      %6648 = vmatpush1.msra.mxu0 0.0
      %6649 = vmatprep.subr.mxu0 0.0
      %6650 = vmatpush1.msra.mxu0 0.0
      %6651 = vmatprep.subr.mxu0 0.0
      %6652 = vmatpush1.msra.mxu0 0.0
      %6653 = vmatprep.subr.mxu0 0.0
      %6654 = vmatpush1.msra.mxu0 0.0
      %6655 = vmatprep.mubr.f32.mxu0 0.0
      %6656 = vmatmul.mubr.f32.gmra.mrb[0].mxu0 %v6518
      %v6657 = vpop.f32.mrb[0].mxu0
      %v6658 = vadd.f32 0.0, %v6657
      %v6659 = vpop.f32.mrb[0].mxu0
      %v6660 = vadd.f32 0.0, %v6659
      %6661 = vdwg.mxu0
      %6662 = vmatprep.subr.mxu0 %v6443
      %6663 = vmatpush1.msra.mxu0 %v6441
      %6664 = vmatprep.subr.mxu0 %v829
      %6665 = vmatpush1.msra.mxu0 %v829
      %6666 = vmatprep.subr.mxu0 0.0
      %6667 = vmatpush1.msra.mxu0 0.0
      %6668 = vmatprep.subr.mxu0 0.0
      %6669 = vmatpush1.msra.mxu0 0.0
      %6670 = vmatprep.subr.mxu0 0.0
      %6671 = vmatpush1.msra.mxu0 0.0
      %6672 = vmatprep.subr.mxu0 0.0
      %6673 = vmatpush1.msra.mxu0 0.0
      %6674 = vmatprep.subr.mxu0 0.0
      %6675 = vmatpush1.msra.mxu0 0.0
      %6676 = vmatprep.subr.mxu0 0.0
      %6677 = vmatpush1.msra.mxu0 0.0
      %6678 = vmatprep.subr.mxu0 0.0
      %6679 = vmatpush1.msra.mxu0 0.0
      %6680 = vmatprep.subr.mxu0 0.0
      %6681 = vmatpush1.msra.mxu0 0.0
      %6682 = vmatprep.subr.mxu0 0.0
      %6683 = vmatpush1.msra.mxu0 0.0
      %6684 = vmatprep.subr.mxu0 0.0
      %6685 = vmatpush1.msra.mxu0 0.0
      %6686 = vmatprep.subr.mxu0 0.0
      %6687 = vmatpush1.msra.mxu0 0.0
      %6688 = vmatprep.subr.mxu0 0.0
      %6689 = vmatpush1.msra.mxu0 0.0
      %6690 = vmatprep.subr.mxu0 0.0
      %6691 = vmatpush1.msra.mxu0 0.0
      %6692 = vmatprep.subr.mxu0 0.0
      %6693 = vmatpush1.msra.mxu0 0.0
      %6694 = vmatprep.subr.mxu0 0.0
      %6695 = vmatpush1.msra.mxu0 0.0
      %6696 = vmatprep.subr.mxu0 0.0
      %6697 = vmatpush1.msra.mxu0 0.0
      %6698 = vmatprep.subr.mxu0 0.0
      %6699 = vmatpush1.msra.mxu0 0.0
      %6700 = vmatprep.subr.mxu0 0.0
      %6701 = vmatpush1.msra.mxu0 0.0
      %6702 = vmatprep.subr.mxu0 0.0
      %6703 = vmatpush1.msra.mxu0 0.0
      %6704 = vmatprep.subr.mxu0 0.0
      %6705 = vmatpush1.msra.mxu0 0.0
      %6706 = vmatprep.subr.mxu0 0.0
      %6707 = vmatpush1.msra.mxu0 0.0
      %6708 = vmatprep.subr.mxu0 0.0
      %6709 = vmatpush1.msra.mxu0 0.0
      %6710 = vmatprep.subr.mxu0 0.0
      %6711 = vmatpush1.msra.mxu0 0.0
      %6712 = vmatprep.subr.mxu0 0.0
      %6713 = vmatpush1.msra.mxu0 0.0
      %6714 = vmatprep.subr.mxu0 0.0
      %6715 = vmatpush1.msra.mxu0 0.0
      %6716 = vmatprep.subr.mxu0 0.0
      %6717 = vmatpush1.msra.mxu0 0.0
      %6718 = vmatprep.subr.mxu0 0.0
      %6719 = vmatpush1.msra.mxu0 0.0
      %6720 = vmatprep.subr.mxu0 0.0
      %6721 = vmatpush1.msra.mxu0 0.0
      %6722 = vmatprep.subr.mxu0 0.0
      %6723 = vmatpush1.msra.mxu0 0.0
      %6724 = vmatprep.subr.mxu0 0.0
      %6725 = vmatpush1.msra.mxu0 0.0
      %6726 = vmatprep.mubr.f32.mxu0 0.0
      %6727 = vmatmul.mubr.f32.gmra.mrb[0].mxu0 %v6518
      %v6728 = vpop.f32.mrb[0].mxu0
      %v6729 = vadd.f32 0.0, %v6728
      %v6730 = vpop.f32.mrb[0].mxu0
      %v6731 = vadd.f32 0.0, %v6730
      %6732 = vdwg.mxu0
      %6733 = vmatprep.subr.mxu0 %v6514
      %6734 = vmatpush1.msra.mxu0 %v6512
      %6735 = vmatprep.subr.mxu0 %v829
      %6736 = vmatpush1.msra.mxu0 %v829
      %6737 = vmatprep.subr.mxu0 0.0
      %6738 = vmatpush1.msra.mxu0 0.0
      %6739 = vmatprep.subr.mxu0 0.0
      %6740 = vmatpush1.msra.mxu0 0.0
      %6741 = vmatprep.subr.mxu0 0.0
      %6742 = vmatpush1.msra.mxu0 0.0
      %6743 = vmatprep.subr.mxu0 0.0
      %6744 = vmatpush1.msra.mxu0 0.0
      %6745 = vmatprep.subr.mxu0 0.0
      %6746 = vmatpush1.msra.mxu0 0.0
      %6747 = vmatprep.subr.mxu0 0.0
      %6748 = vmatpush1.msra.mxu0 0.0
      %6749 = vmatprep.subr.mxu0 0.0
      %6750 = vmatpush1.msra.mxu0 0.0
      %6751 = vmatprep.subr.mxu0 0.0
      %6752 = vmatpush1.msra.mxu0 0.0
      %6753 = vmatprep.subr.mxu0 0.0
      %6754 = vmatpush1.msra.mxu0 0.0
      %6755 = vmatprep.subr.mxu0 0.0
      %6756 = vmatpush1.msra.mxu0 0.0
      %6757 = vmatprep.subr.mxu0 0.0
      %6758 = vmatpush1.msra.mxu0 0.0
      %6759 = vmatprep.subr.mxu0 0.0
      %6760 = vmatpush1.msra.mxu0 0.0
      %6761 = vmatprep.subr.mxu0 0.0
      %6762 = vmatpush1.msra.mxu0 0.0
      %6763 = vmatprep.subr.mxu0 0.0
      %6764 = vmatpush1.msra.mxu0 0.0
      %6765 = vmatprep.subr.mxu0 0.0
      %6766 = vmatpush1.msra.mxu0 0.0
      %6767 = vmatprep.subr.mxu0 0.0
      %6768 = vmatpush1.msra.mxu0 0.0
      %6769 = vmatprep.subr.mxu0 0.0
      %6770 = vmatpush1.msra.mxu0 0.0
      %6771 = vmatprep.subr.mxu0 0.0
      %6772 = vmatpush1.msra.mxu0 0.0
      %6773 = vmatprep.subr.mxu0 0.0
      %6774 = vmatpush1.msra.mxu0 0.0
      %6775 = vmatprep.subr.mxu0 0.0
      %6776 = vmatpush1.msra.mxu0 0.0
      %6777 = vmatprep.subr.mxu0 0.0
      %6778 = vmatpush1.msra.mxu0 0.0
      %6779 = vmatprep.subr.mxu0 0.0
      %6780 = vmatpush1.msra.mxu0 0.0
      %6781 = vmatprep.subr.mxu0 0.0
      %6782 = vmatpush1.msra.mxu0 0.0
      %6783 = vmatprep.subr.mxu0 0.0
      %6784 = vmatpush1.msra.mxu0 0.0
      %6785 = vmatprep.subr.mxu0 0.0
      %6786 = vmatpush1.msra.mxu0 0.0
      %6787 = vmatprep.subr.mxu0 0.0
      %6788 = vmatpush1.msra.mxu0 0.0
      %6789 = vmatprep.subr.mxu0 0.0
      %6790 = vmatpush1.msra.mxu0 0.0
      %6791 = vmatprep.subr.mxu0 0.0
      %6792 = vmatpush1.msra.mxu0 0.0
      %6793 = vmatprep.subr.mxu0 0.0
      %6794 = vmatpush1.msra.mxu0 0.0
      %6795 = vmatprep.subr.mxu0 0.0
      %6796 = vmatpush1.msra.mxu0 0.0
      %6797 = vmatprep.mubr.f32.mxu0 0.0
      %6798 = vmatmul.mubr.f32.gmra.mrb[0].mxu0 %v6518
      %v6799 = vpop.f32.mrb[0].mxu0
      %v6800 = vadd.f32 0.0, %v6799
      %v6801 = vpop.f32.mrb[0].mxu0
      %v6802 = vadd.f32 0.0, %v6801
      %6803 = vdwg.mxu0
      %v6805 = vsel %vm2095, %v5195, 0
      %6807 = vmatprep.subr.mxu0 %v4980
      %6808 = vmatpush1.msra.mxu0 %v4978
      %6809 = vmatprep.subr.mxu0 %v829
      %6810 = vmatpush1.msra.mxu0 %v829
      %6811 = vmatprep.subr.mxu0 0.0
      %6812 = vmatpush1.msra.mxu0 0.0
      %6813 = vmatprep.subr.mxu0 0.0
      %6814 = vmatpush1.msra.mxu0 0.0
      %6815 = vmatprep.subr.mxu0 0.0
      %6816 = vmatpush1.msra.mxu0 0.0
      %6817 = vmatprep.subr.mxu0 0.0
      %6818 = vmatpush1.msra.mxu0 0.0
      %6819 = vmatprep.subr.mxu0 0.0
      %6820 = vmatpush1.msra.mxu0 0.0
      %6821 = vmatprep.subr.mxu0 0.0
      %6822 = vmatpush1.msra.mxu0 0.0
      %6823 = vmatprep.subr.mxu0 0.0
      %6824 = vmatpush1.msra.mxu0 0.0
      %6825 = vmatprep.subr.mxu0 0.0
      %6826 = vmatpush1.msra.mxu0 0.0
      %6827 = vmatprep.subr.mxu0 0.0
      %6828 = vmatpush1.msra.mxu0 0.0
      %6829 = vmatprep.subr.mxu0 0.0
      %6830 = vmatpush1.msra.mxu0 0.0
      %6831 = vmatprep.subr.mxu0 0.0
      %6832 = vmatpush1.msra.mxu0 0.0
      %6833 = vmatprep.subr.mxu0 0.0
      %6834 = vmatpush1.msra.mxu0 0.0
      %6835 = vmatprep.subr.mxu0 0.0
      %6836 = vmatpush1.msra.mxu0 0.0
      %6837 = vmatprep.subr.mxu0 0.0
      %6838 = vmatpush1.msra.mxu0 0.0
      %6839 = vmatprep.subr.mxu0 0.0
      %6840 = vmatpush1.msra.mxu0 0.0
      %6841 = vmatprep.subr.mxu0 0.0
      %6842 = vmatpush1.msra.mxu0 0.0
      %6843 = vmatprep.subr.mxu0 0.0
      %6844 = vmatpush1.msra.mxu0 0.0
      %6845 = vmatprep.subr.mxu0 0.0
      %6846 = vmatpush1.msra.mxu0 0.0
      %6847 = vmatprep.subr.mxu0 0.0
      %6848 = vmatpush1.msra.mxu0 0.0
      %6849 = vmatprep.subr.mxu0 0.0
      %6850 = vmatpush1.msra.mxu0 0.0
      %6851 = vmatprep.subr.mxu0 0.0
      %6852 = vmatpush1.msra.mxu0 0.0
      %6853 = vmatprep.subr.mxu0 0.0
      %6854 = vmatpush1.msra.mxu0 0.0
      %6855 = vmatprep.subr.mxu0 0.0
      %6856 = vmatpush1.msra.mxu0 0.0
      %6857 = vmatprep.subr.mxu0 0.0
      %6858 = vmatpush1.msra.mxu0 0.0
      %6859 = vmatprep.subr.mxu0 0.0
      %6860 = vmatpush1.msra.mxu0 0.0
      %6861 = vmatprep.subr.mxu0 0.0
      %6862 = vmatpush1.msra.mxu0 0.0
      %6863 = vmatprep.subr.mxu0 0.0
      %6864 = vmatpush1.msra.mxu0 0.0
      %6865 = vmatprep.subr.mxu0 0.0
      %6866 = vmatpush1.msra.mxu0 0.0
      %6867 = vmatprep.subr.mxu0 0.0
      %6868 = vmatpush1.msra.mxu0 0.0
      %6869 = vmatprep.subr.mxu0 0.0
      %6870 = vmatpush1.msra.mxu0 0.0
      %6871 = vmatprep.mubr.f32.mxu0 0.0
      %6872 = vmatmul.mubr.f32.gmra.mrb[0].mxu0 %v6805
      %v6873 = vpop.f32.mrb[0].mxu0
      %v6874 = vadd.f32 %v6587, %v6873
      %v6875 = vpop.f32.mrb[0].mxu0
      %v6876 = vadd.f32 %v6589, %v6875
      %6877 = vdwg.mxu0
      %6878 = vmatprep.subr.mxu0 %v5051
      %6879 = vmatpush1.msra.mxu0 %v5049
      %6880 = vmatprep.subr.mxu0 %v829
      %6881 = vmatpush1.msra.mxu0 %v829
      %6882 = vmatprep.subr.mxu0 0.0
      %6883 = vmatpush1.msra.mxu0 0.0
      %6884 = vmatprep.subr.mxu0 0.0
      %6885 = vmatpush1.msra.mxu0 0.0
      %6886 = vmatprep.subr.mxu0 0.0
      %6887 = vmatpush1.msra.mxu0 0.0
      %6888 = vmatprep.subr.mxu0 0.0
      %6889 = vmatpush1.msra.mxu0 0.0
      %6890 = vmatprep.subr.mxu0 0.0
      %6891 = vmatpush1.msra.mxu0 0.0
      %6892 = vmatprep.subr.mxu0 0.0
      %6893 = vmatpush1.msra.mxu0 0.0
      %6894 = vmatprep.subr.mxu0 0.0
      %6895 = vmatpush1.msra.mxu0 0.0
      %6896 = vmatprep.subr.mxu0 0.0
      %6897 = vmatpush1.msra.mxu0 0.0
      %6898 = vmatprep.subr.mxu0 0.0
      %6899 = vmatpush1.msra.mxu0 0.0
      %6900 = vmatprep.subr.mxu0 0.0
      %6901 = vmatpush1.msra.mxu0 0.0
      %6902 = vmatprep.subr.mxu0 0.0
      %6903 = vmatpush1.msra.mxu0 0.0
      %6904 = vmatprep.subr.mxu0 0.0
      %6905 = vmatpush1.msra.mxu0 0.0
      %6906 = vmatprep.subr.mxu0 0.0
      %6907 = vmatpush1.msra.mxu0 0.0
      %6908 = vmatprep.subr.mxu0 0.0
      %6909 = vmatpush1.msra.mxu0 0.0
      %6910 = vmatprep.subr.mxu0 0.0
      %6911 = vmatpush1.msra.mxu0 0.0
      %6912 = vmatprep.subr.mxu0 0.0
      %6913 = vmatpush1.msra.mxu0 0.0
      %6914 = vmatprep.subr.mxu0 0.0
      %6915 = vmatpush1.msra.mxu0 0.0
      %6916 = vmatprep.subr.mxu0 0.0
      %6917 = vmatpush1.msra.mxu0 0.0
      %6918 = vmatprep.subr.mxu0 0.0
      %6919 = vmatpush1.msra.mxu0 0.0
      %6920 = vmatprep.subr.mxu0 0.0
      %6921 = vmatpush1.msra.mxu0 0.0
      %6922 = vmatprep.subr.mxu0 0.0
      %6923 = vmatpush1.msra.mxu0 0.0
      %6924 = vmatprep.subr.mxu0 0.0
      %6925 = vmatpush1.msra.mxu0 0.0
      %6926 = vmatprep.subr.mxu0 0.0
      %6927 = vmatpush1.msra.mxu0 0.0
      %6928 = vmatprep.subr.mxu0 0.0
      %6929 = vmatpush1.msra.mxu0 0.0
      %6930 = vmatprep.subr.mxu0 0.0
      %6931 = vmatpush1.msra.mxu0 0.0
      %6932 = vmatprep.subr.mxu0 0.0
      %6933 = vmatpush1.msra.mxu0 0.0
      %6934 = vmatprep.subr.mxu0 0.0
      %6935 = vmatpush1.msra.mxu0 0.0
      %6936 = vmatprep.subr.mxu0 0.0
      %6937 = vmatpush1.msra.mxu0 0.0
      %6938 = vmatprep.subr.mxu0 0.0
      %6939 = vmatpush1.msra.mxu0 0.0
      %6940 = vmatprep.subr.mxu0 0.0
      %6941 = vmatpush1.msra.mxu0 0.0
      %6942 = vmatprep.mubr.f32.mxu0 0.0
      %6943 = vmatmul.mubr.f32.gmra.mrb[0].mxu0 %v6805
      %v6944 = vpop.f32.mrb[0].mxu0
      %v6945 = vadd.f32 %v6658, %v6944
      %v6946 = vpop.f32.mrb[0].mxu0
      %v6947 = vadd.f32 %v6660, %v6946
      %6948 = vdwg.mxu0
      %6949 = vmatprep.subr.mxu0 %v5122
      %6950 = vmatpush1.msra.mxu0 %v5120
      %6951 = vmatprep.subr.mxu0 %v829
      %6952 = vmatpush1.msra.mxu0 %v829
      %6953 = vmatprep.subr.mxu0 0.0
      %6954 = vmatpush1.msra.mxu0 0.0
      %6955 = vmatprep.subr.mxu0 0.0
      %6956 = vmatpush1.msra.mxu0 0.0
      %6957 = vmatprep.subr.mxu0 0.0
      %6958 = vmatpush1.msra.mxu0 0.0
      %6959 = vmatprep.subr.mxu0 0.0
      %6960 = vmatpush1.msra.mxu0 0.0
      %6961 = vmatprep.subr.mxu0 0.0
      %6962 = vmatpush1.msra.mxu0 0.0
      %6963 = vmatprep.subr.mxu0 0.0
      %6964 = vmatpush1.msra.mxu0 0.0
      %6965 = vmatprep.subr.mxu0 0.0
      %6966 = vmatpush1.msra.mxu0 0.0
      %6967 = vmatprep.subr.mxu0 0.0
      %6968 = vmatpush1.msra.mxu0 0.0
      %6969 = vmatprep.subr.mxu0 0.0
      %6970 = vmatpush1.msra.mxu0 0.0
      %6971 = vmatprep.subr.mxu0 0.0
      %6972 = vmatpush1.msra.mxu0 0.0
      %6973 = vmatprep.subr.mxu0 0.0
      %6974 = vmatpush1.msra.mxu0 0.0
      %6975 = vmatprep.subr.mxu0 0.0
      %6976 = vmatpush1.msra.mxu0 0.0
      %6977 = vmatprep.subr.mxu0 0.0
      %6978 = vmatpush1.msra.mxu0 0.0
      %6979 = vmatprep.subr.mxu0 0.0
      %6980 = vmatpush1.msra.mxu0 0.0
      %6981 = vmatprep.subr.mxu0 0.0
      %6982 = vmatpush1.msra.mxu0 0.0
      %6983 = vmatprep.subr.mxu0 0.0
      %6984 = vmatpush1.msra.mxu0 0.0
      %6985 = vmatprep.subr.mxu0 0.0
      %6986 = vmatpush1.msra.mxu0 0.0
      %6987 = vmatprep.subr.mxu0 0.0
      %6988 = vmatpush1.msra.mxu0 0.0
      %6989 = vmatprep.subr.mxu0 0.0
      %6990 = vmatpush1.msra.mxu0 0.0
      %6991 = vmatprep.subr.mxu0 0.0
      %6992 = vmatpush1.msra.mxu0 0.0
      %6993 = vmatprep.subr.mxu0 0.0
      %6994 = vmatpush1.msra.mxu0 0.0
      %6995 = vmatprep.subr.mxu0 0.0
      %6996 = vmatpush1.msra.mxu0 0.0
      %6997 = vmatprep.subr.mxu0 0.0
      %6998 = vmatpush1.msra.mxu0 0.0
      %6999 = vmatprep.subr.mxu0 0.0
      %7000 = vmatpush1.msra.mxu0 0.0
      %7001 = vmatprep.subr.mxu0 0.0
      %7002 = vmatpush1.msra.mxu0 0.0
      %7003 = vmatprep.subr.mxu0 0.0
      %7004 = vmatpush1.msra.mxu0 0.0
      %7005 = vmatprep.subr.mxu0 0.0
      %7006 = vmatpush1.msra.mxu0 0.0
      %7007 = vmatprep.subr.mxu0 0.0
      %7008 = vmatpush1.msra.mxu0 0.0
      %7009 = vmatprep.subr.mxu0 0.0
      %7010 = vmatpush1.msra.mxu0 0.0
      %7011 = vmatprep.subr.mxu0 0.0
      %7012 = vmatpush1.msra.mxu0 0.0
      %7013 = vmatprep.mubr.f32.mxu0 0.0
      %7014 = vmatmul.mubr.f32.gmra.mrb[0].mxu0 %v6805
      %v7015 = vpop.f32.mrb[0].mxu0
      %v7016 = vadd.f32 %v6729, %v7015
      %v7017 = vpop.f32.mrb[0].mxu0
      %v7018 = vadd.f32 %v6731, %v7017
      %7019 = vdwg.mxu0
      %7020 = vmatprep.subr.mxu0 %v5193
      %7021 = vmatpush1.msra.mxu0 %v5191
      %7022 = vmatprep.subr.mxu0 %v829
      %7023 = vmatpush1.msra.mxu0 %v829
      %7024 = vmatprep.subr.mxu0 0.0
      %7025 = vmatpush1.msra.mxu0 0.0
      %7026 = vmatprep.subr.mxu0 0.0
      %7027 = vmatpush1.msra.mxu0 0.0
      %7028 = vmatprep.subr.mxu0 0.0
      %7029 = vmatpush1.msra.mxu0 0.0
      %7030 = vmatprep.subr.mxu0 0.0
      %7031 = vmatpush1.msra.mxu0 0.0
      %7032 = vmatprep.subr.mxu0 0.0
      %7033 = vmatpush1.msra.mxu0 0.0
      %7034 = vmatprep.subr.mxu0 0.0
      %7035 = vmatpush1.msra.mxu0 0.0
      %7036 = vmatprep.subr.mxu0 0.0
      %7037 = vmatpush1.msra.mxu0 0.0
      %7038 = vmatprep.subr.mxu0 0.0
      %7039 = vmatpush1.msra.mxu0 0.0
      %7040 = vmatprep.subr.mxu0 0.0
      %7041 = vmatpush1.msra.mxu0 0.0
      %7042 = vmatprep.subr.mxu0 0.0
      %7043 = vmatpush1.msra.mxu0 0.0
      %7044 = vmatprep.subr.mxu0 0.0
      %7045 = vmatpush1.msra.mxu0 0.0
      %7046 = vmatprep.subr.mxu0 0.0
      %7047 = vmatpush1.msra.mxu0 0.0
      %7048 = vmatprep.subr.mxu0 0.0
      %7049 = vmatpush1.msra.mxu0 0.0
      %7050 = vmatprep.subr.mxu0 0.0
      %7051 = vmatpush1.msra.mxu0 0.0
      %7052 = vmatprep.subr.mxu0 0.0
      %7053 = vmatpush1.msra.mxu0 0.0
      %7054 = vmatprep.subr.mxu0 0.0
      %7055 = vmatpush1.msra.mxu0 0.0
      %7056 = vmatprep.subr.mxu0 0.0
      %7057 = vmatpush1.msra.mxu0 0.0
      %7058 = vmatprep.subr.mxu0 0.0
      %7059 = vmatpush1.msra.mxu0 0.0
      %7060 = vmatprep.subr.mxu0 0.0
      %7061 = vmatpush1.msra.mxu0 0.0
      %7062 = vmatprep.subr.mxu0 0.0
      %7063 = vmatpush1.msra.mxu0 0.0
      %7064 = vmatprep.subr.mxu0 0.0
      %7065 = vmatpush1.msra.mxu0 0.0
      %7066 = vmatprep.subr.mxu0 0.0
      %7067 = vmatpush1.msra.mxu0 0.0
      %7068 = vmatprep.subr.mxu0 0.0
      %7069 = vmatpush1.msra.mxu0 0.0
      %7070 = vmatprep.subr.mxu0 0.0
      %7071 = vmatpush1.msra.mxu0 0.0
      %7072 = vmatprep.subr.mxu0 0.0
      %7073 = vmatpush1.msra.mxu0 0.0
      %7074 = vmatprep.subr.mxu0 0.0
      %7075 = vmatpush1.msra.mxu0 0.0
      %7076 = vmatprep.subr.mxu0 0.0
      %7077 = vmatpush1.msra.mxu0 0.0
      %7078 = vmatprep.subr.mxu0 0.0
      %7079 = vmatpush1.msra.mxu0 0.0
      %7080 = vmatprep.subr.mxu0 0.0
      %7081 = vmatpush1.msra.mxu0 0.0
      %7082 = vmatprep.subr.mxu0 0.0
      %7083 = vmatpush1.msra.mxu0 0.0
      %7084 = vmatprep.mubr.f32.mxu0 0.0
      %7085 = vmatmul.mubr.f32.gmra.mrb[0].mxu0 %v6805
      %v7086 = vpop.f32.mrb[0].mxu0
      %v7087 = vadd.f32 %v6800, %v7086
      %v7088 = vpop.f32.mrb[0].mxu0
      %v7089 = vadd.f32 %v6802, %v7088
      %7090 = vdwg.mxu0
      %v7091 = vld [vmem:[%s6 + $0x320] sm:$0xf]
      %7092 = vrot.lane.b32.xlu0 %v6874, 33
      %v7093 = vpop.permute.xlu0 %7092
      %7094 = vrot.lane.b32.xlu0 %v6876, 33
      %v7095 = vpop.permute.xlu0 %7094
      %7096 = vrot.lane.b32.xlu0 %v6945, 33
      %v7097 = vpop.permute.xlu0 %7096
      %7098 = vrot.lane.b32.xlu0 %v6947, 33
      %v7099 = vpop.permute.xlu0 %7098
      %7100 = vrot.lane.b32.xlu0 %v7016, 33
      %v7101 = vpop.permute.xlu0 %7100
      %7102 = vrot.lane.b32.xlu0 %v7018, 33
      %v7103 = vpop.permute.xlu0 %7102
      %7104 = vrot.lane.b32.xlu0 %v7087, 33
      %v7105 = vpop.permute.xlu0 %7104
      %7106 = vrot.lane.b32.xlu0 %v7089, 33
      %v7107 = vpop.permute.xlu0 %7106
      %v7108 = vsel %vm4118, %v7105, %v7107
      %v7109 = vsel %vm4118, %v7103, %v7105
      %v7110 = vsel %vm4118, %v7101, %v7103
      %v7111 = vsel %vm4118, %v7099, %v7101
      %v7112 = vsel %vm4118, %v7097, %v7099
      %v7113 = vsel %vm4118, %v7095, %v7097
      %v7114 = vsel %vm4118, %v7093, %v7095
      %v7115 = vsel %vm4118, %v7107, %v7093
      %v7116 = vmul.f32 %v7115, %v503
      %v7117 = vmul.f32 %v7114, %v504
      %v7118 = vmul.f32 %v7113, %v505
      %v7119 = vmul.f32 %v7112, %v506
      %v7120 = vmul.f32 %v7111, %v507
      %v7121 = vmul.f32 %v7110, %v508
      %v7122 = vmul.f32 %v7109, %v509
      %v7123 = vmul.f32 %v7108, %v510
      %7124 = vrot.lane.b32.xlu0 %v6874, 32
      %v7125 = vpop.permute.xlu0 %7124
      %7126 = vrot.lane.b32.xlu0 %v6876, 32
      %v7127 = vpop.permute.xlu0 %7126
      %7128 = vrot.lane.b32.xlu0 %v6945, 32
      %v7129 = vpop.permute.xlu0 %7128
      %7130 = vrot.lane.b32.xlu0 %v6947, 32
      %v7131 = vpop.permute.xlu0 %7130
      %7132 = vrot.lane.b32.xlu0 %v7016, 32
      %v7133 = vpop.permute.xlu0 %7132
      %7134 = vrot.lane.b32.xlu0 %v7018, 32
      %v7135 = vpop.permute.xlu0 %7134
      %7136 = vrot.lane.b32.xlu0 %v7087, 32
      %v7137 = vpop.permute.xlu0 %7136
      %7138 = vrot.lane.b32.xlu0 %v7089, 32
      %v7139 = vpop.permute.xlu0 %7138
      %v7140 = vsel %vm4151, %v7137, %v7139
      %v7141 = vsel %vm4151, %v7135, %v7137
      %v7142 = vsel %vm4151, %v7133, %v7135
      %v7143 = vsel %vm4151, %v7131, %v7133
      %v7144 = vsel %vm4151, %v7129, %v7131
      %v7145 = vsel %vm4151, %v7127, %v7129
      %v7146 = vsel %vm4151, %v7125, %v7127
      %v7147 = vsel %vm4151, %v7139, %v7125
      %v7148 = vmul.f32 %v7147, %v479
      %v7149 = vmul.f32 %v7146, %v480
      %v7150 = vmul.f32 %v7145, %v481
      %v7151 = vmul.f32 %v7144, %v482
      %v7152 = vmul.f32 %v7143, %v483
      %v7153 = vmul.f32 %v7142, %v484
      %v7154 = vmul.f32 %v7141, %v485
      %v7155 = vmul.f32 %v7140, %v486
      %7156 = vrot.lane.b32.xlu0 %v6874, 31
      %v7157 = vpop.permute.xlu0 %7156
      %7158 = vrot.lane.b32.xlu0 %v6876, 31
      %v7159 = vpop.permute.xlu0 %7158
      %7160 = vrot.lane.b32.xlu0 %v6945, 31
      %v7161 = vpop.permute.xlu0 %7160
      %7162 = vrot.lane.b32.xlu0 %v6947, 31
      %v7163 = vpop.permute.xlu0 %7162
      %7164 = vrot.lane.b32.xlu0 %v7016, 31
      %v7165 = vpop.permute.xlu0 %7164
      %7166 = vrot.lane.b32.xlu0 %v7018, 31
      %v7167 = vpop.permute.xlu0 %7166
      %7168 = vrot.lane.b32.xlu0 %v7087, 31
      %v7169 = vpop.permute.xlu0 %7168
      %7170 = vrot.lane.b32.xlu0 %v7089, 31
      %v7171 = vpop.permute.xlu0 %7170
      %v7172 = vsel %vm4184, %v7169, %v7171
      %v7173 = vsel %vm4184, %v7167, %v7169
      %v7174 = vsel %vm4184, %v7165, %v7167
      %v7175 = vsel %vm4184, %v7163, %v7165
      %v7176 = vsel %vm4184, %v7161, %v7163
      %v7177 = vsel %vm4184, %v7159, %v7161
      %v7178 = vsel %vm4184, %v7157, %v7159
      %v7179 = vsel %vm4184, %v7171, %v7157
      %v7180 = vmul.f32 %v7179, %v511
      %v7181 = vmul.f32 %v7178, %v512
      %v7182 = vmul.f32 %v7177, %v513
      %v7183 = vmul.f32 %v7176, %v514
      %v7184 = vmul.f32 %v7175, %v515
      %v7185 = vmul.f32 %v7174, %v516
      %v7186 = vmul.f32 %v7173, %v517
      %v7187 = vmul.f32 %v7172, %v518
      %7188 = vrot.lane.b32.xlu0 %v6874, 1
      %v7189 = vpop.permute.xlu0 %7188
      %7190 = vrot.lane.b32.xlu0 %v6876, 1
      %v7191 = vpop.permute.xlu0 %7190
      %7192 = vrot.lane.b32.xlu0 %v6945, 1
      %v7193 = vpop.permute.xlu0 %7192
      %7194 = vrot.lane.b32.xlu0 %v6947, 1
      %v7195 = vpop.permute.xlu0 %7194
      %7196 = vrot.lane.b32.xlu0 %v7016, 1
      %v7197 = vpop.permute.xlu0 %7196
      %7198 = vrot.lane.b32.xlu0 %v7018, 1
      %v7199 = vpop.permute.xlu0 %7198
      %7200 = vrot.lane.b32.xlu0 %v7087, 1
      %v7201 = vpop.permute.xlu0 %7200
      %7202 = vrot.lane.b32.xlu0 %v7089, 1
      %v7203 = vpop.permute.xlu0 %7202
      %v7204 = vsel %vm2568, %v7201, %v7203
      %v7205 = vsel %vm2568, %v7199, %v7201
      %v7206 = vsel %vm2568, %v7197, %v7199
      %v7207 = vsel %vm2568, %v7195, %v7197
      %v7208 = vsel %vm2568, %v7193, %v7195
      %v7209 = vsel %vm2568, %v7191, %v7193
      %v7210 = vsel %vm2568, %v7189, %v7191
      %v7211 = vsel %vm2568, %v7203, %v7189
      %v7212 = vmul.f32 %v7211, %v447
      %v7213 = vmul.f32 %v7210, %v448
      %v7214 = vmul.f32 %v7209, %v449
      %v7215 = vmul.f32 %v7208, %v450
      %v7216 = vmul.f32 %v7207, %v451
      %v7217 = vmul.f32 %v7206, %v452
      %v7218 = vmul.f32 %v7205, %v453
      %v7219 = vmul.f32 %v7204, %v454
      %7220 = vrot.lane.b32.xlu0 %v6874, 127
      %v7221 = vpop.permute.xlu0 %7220
      %7222 = vrot.lane.b32.xlu0 %v6876, 127
      %v7223 = vpop.permute.xlu0 %7222
      %7224 = vrot.lane.b32.xlu0 %v6945, 127
      %v7225 = vpop.permute.xlu0 %7224
      %7226 = vrot.lane.b32.xlu0 %v6947, 127
      %v7227 = vpop.permute.xlu0 %7226
      %7228 = vrot.lane.b32.xlu0 %v7016, 127
      %v7229 = vpop.permute.xlu0 %7228
      %7230 = vrot.lane.b32.xlu0 %v7018, 127
      %v7231 = vpop.permute.xlu0 %7230
      %7232 = vrot.lane.b32.xlu0 %v7087, 127
      %v7233 = vpop.permute.xlu0 %7232
      %7234 = vrot.lane.b32.xlu0 %v7089, 127
      %v7235 = vpop.permute.xlu0 %7234
      %v7236 = vsel %vm2577, %v7233, %v7235
      %v7237 = vsel %vm2577, %v7231, %v7233
      %v7238 = vsel %vm2577, %v7229, %v7231
      %v7239 = vsel %vm2577, %v7227, %v7229
      %v7240 = vsel %vm2577, %v7225, %v7227
      %v7241 = vsel %vm2577, %v7223, %v7225
      %v7242 = vsel %vm2577, %v7221, %v7223
      %v7243 = vsel %vm2577, %v7235, %v7221
      %v7244 = vmul.f32 %v7242, %v463
      %v7245 = vmul.f32 %v7241, %v464
      %v7246 = vmul.f32 %v7240, %v465
      %v7247 = vmul.f32 %v7239, %v466
      %v7248 = vmul.f32 %v7238, %v467
      %v7249 = vmul.f32 %v7237, %v468
      %v7250 = vmul.f32 %v7236, %v469
      %v7251 = vmul.f32 %v7243, %v470
      %7252 = vrot.lane.b32.xlu0 %v6874, 97
      %v7253 = vpop.permute.xlu0 %7252
      %7254 = vrot.lane.b32.xlu0 %v6876, 97
      %v7255 = vpop.permute.xlu0 %7254
      %7256 = vrot.lane.b32.xlu0 %v6945, 97
      %v7257 = vpop.permute.xlu0 %7256
      %7258 = vrot.lane.b32.xlu0 %v6947, 97
      %v7259 = vpop.permute.xlu0 %7258
      %7260 = vrot.lane.b32.xlu0 %v7016, 97
      %v7261 = vpop.permute.xlu0 %7260
      %7262 = vrot.lane.b32.xlu0 %v7018, 97
      %v7263 = vpop.permute.xlu0 %7262
      %7264 = vrot.lane.b32.xlu0 %v7087, 97
      %v7265 = vpop.permute.xlu0 %7264
      %7266 = vrot.lane.b32.xlu0 %v7089, 97
      %v7267 = vpop.permute.xlu0 %7266
      %v7268 = vsel %vm4281, %v7265, %v7267
      %v7269 = vsel %vm4281, %v7263, %v7265
      %v7270 = vsel %vm4281, %v7261, %v7263
      %v7271 = vsel %vm4281, %v7259, %v7261
      %v7272 = vsel %vm4281, %v7257, %v7259
      %v7273 = vsel %vm4281, %v7255, %v7257
      %v7274 = vsel %vm4281, %v7253, %v7255
      %v7275 = vsel %vm4281, %v7267, %v7253
      %v7276 = vmul.f32 %v7274, %v519
      %v7277 = vmul.f32 %v7273, %v520
      %v7278 = vmul.f32 %v7272, %v521
      %v7279 = vmul.f32 %v7271, %v522
      %v7280 = vmul.f32 %v7270, %v523
      %v7281 = vmul.f32 %v7269, %v524
      %v7282 = vmul.f32 %v7268, %v525
      %v7283 = vmul.f32 %v7275, %v526
      %7284 = vrot.lane.b32.xlu0 %v6874, 96
      %v7285 = vpop.permute.xlu0 %7284
      %7286 = vrot.lane.b32.xlu0 %v6876, 96
      %v7287 = vpop.permute.xlu0 %7286
      %7288 = vrot.lane.b32.xlu0 %v6945, 96
      %v7289 = vpop.permute.xlu0 %7288
      %7290 = vrot.lane.b32.xlu0 %v6947, 96
      %v7291 = vpop.permute.xlu0 %7290
      %7292 = vrot.lane.b32.xlu0 %v7016, 96
      %v7293 = vpop.permute.xlu0 %7292
      %7294 = vrot.lane.b32.xlu0 %v7018, 96
      %v7295 = vpop.permute.xlu0 %7294
      %7296 = vrot.lane.b32.xlu0 %v7087, 96
      %v7297 = vpop.permute.xlu0 %7296
      %7298 = vrot.lane.b32.xlu0 %v7089, 96
      %v7299 = vpop.permute.xlu0 %7298
      %v7300 = vsel %vm4314, %v7297, %v7299
      %v7301 = vsel %vm4314, %v7295, %v7297
      %v7302 = vsel %vm4314, %v7293, %v7295
      %v7303 = vsel %vm4314, %v7291, %v7293
      %v7304 = vsel %vm4314, %v7289, %v7291
      %v7305 = vsel %vm4314, %v7287, %v7289
      %v7306 = vsel %vm4314, %v7285, %v7287
      %v7307 = vsel %vm4314, %v7299, %v7285
      %v7308 = vmul.f32 %v7306, %v495
      %v7309 = vmul.f32 %v7305, %v496
      %v7310 = vmul.f32 %v7304, %v497
      %v7311 = vmul.f32 %v7303, %v498
      %v7312 = vmul.f32 %v7302, %v499
      %v7313 = vmul.f32 %v7301, %v500
      %v7314 = vmul.f32 %v7300, %v501
      %v7315 = vmul.f32 %v7307, %v502
      %7316 = vrot.lane.b32.xlu0 %v6874, 95
      %v7317 = vpop.permute.xlu0 %7316
      %7318 = vrot.lane.b32.xlu0 %v6876, 95
      %v7319 = vpop.permute.xlu0 %7318
      %7320 = vrot.lane.b32.xlu0 %v6945, 95
      %v7321 = vpop.permute.xlu0 %7320
      %7322 = vrot.lane.b32.xlu0 %v6947, 95
      %v7323 = vpop.permute.xlu0 %7322
      %7324 = vrot.lane.b32.xlu0 %v7016, 95
      %v7325 = vpop.permute.xlu0 %7324
      %7326 = vrot.lane.b32.xlu0 %v7018, 95
      %v7327 = vpop.permute.xlu0 %7326
      %7328 = vrot.lane.b32.xlu0 %v7087, 95
      %v7329 = vpop.permute.xlu0 %7328
      %7330 = vrot.lane.b32.xlu0 %v7089, 95
      %v7331 = vpop.permute.xlu0 %7330
      %v7332 = vsel %vm4347, %v7329, %v7331
      %v7333 = vsel %vm4347, %v7327, %v7329
      %v7334 = vsel %vm4347, %v7325, %v7327
      %v7335 = vsel %vm4347, %v7323, %v7325
      %v7336 = vsel %vm4347, %v7321, %v7323
      %v7337 = vsel %vm4347, %v7319, %v7321
      %v7338 = vsel %vm4347, %v7317, %v7319
      %v7339 = vsel %vm4347, %v7331, %v7317
      %v7340 = vmul.f32 %v7338, %v527
      %v7341 = vmul.f32 %v7337, %v528
      %v7342 = vmul.f32 %v7336, %v529
      %v7343 = vmul.f32 %v7335, %v530
      %v7344 = vmul.f32 %v7334, %v531
      %v7345 = vmul.f32 %v7333, %v532
      %v7346 = vmul.f32 %v7332, %v533
      %v7347 = vmul.f32 %v7339, %v534
      %v7356 = vrot.slane %v7148, 4
      %v7357 = vrot.slane %v7149, 4
      %v7358 = vrot.slane %v7150, 4
      %v7359 = vrot.slane %v7151, 4
      %v7360 = vrot.slane %v7152, 4
      %v7361 = vrot.slane %v7153, 4
      %v7362 = vrot.slane %v7154, 4
      %v7363 = vrot.slane %v7155, 4
      %v7380 = vrot.slane %v7212, 4
      %v7381 = vrot.slane %v7213, 4
      %v7382 = vrot.slane %v7214, 4
      %v7383 = vrot.slane %v7215, 4
      %v7384 = vrot.slane %v7216, 4
      %v7385 = vrot.slane %v7217, 4
      %v7386 = vrot.slane %v7218, 4
      %v7387 = vrot.slane %v7219, 4
      %v7404 = vrot.slane %v7244, 4
      %v7405 = vrot.slane %v7245, 4
      %v7406 = vrot.slane %v7246, 4
      %v7407 = vrot.slane %v7247, 4
      %v7408 = vrot.slane %v7248, 4
      %v7409 = vrot.slane %v7249, 4
      %v7410 = vrot.slane %v7250, 4
      %v7411 = vrot.slane %v7251, 4
      %v7428 = vrot.slane %v7308, 4
      %v7429 = vrot.slane %v7309, 4
      %v7430 = vrot.slane %v7310, 4
      %v7431 = vrot.slane %v7311, 4
      %v7432 = vrot.slane %v7312, 4
      %v7433 = vrot.slane %v7313, 4
      %v7434 = vrot.slane %v7314, 4
      %v7435 = vrot.slane %v7315, 4
      %v7444 = vsel %vm1306, %v7116, %v7356
      %v7445 = vsel %vm1306, %v7117, %v7357
      %v7446 = vsel %vm1306, %v7118, %v7358
      %v7447 = vsel %vm1306, %v7119, %v7359
      %v7448 = vsel %vm1306, %v7120, %v7360
      %v7449 = vsel %vm1306, %v7121, %v7361
      %v7450 = vsel %vm1306, %v7122, %v7362
      %v7451 = vsel %vm1306, %v7123, %v7363
      %v7452 = vsel %vm1306, %v7180, %v7380
      %v7453 = vsel %vm1306, %v7181, %v7381
      %v7454 = vsel %vm1306, %v7182, %v7382
      %v7455 = vsel %vm1306, %v7183, %v7383
      %v7456 = vsel %vm1306, %v7184, %v7384
      %v7457 = vsel %vm1306, %v7185, %v7385
      %v7458 = vsel %vm1306, %v7186, %v7386
      %v7459 = vsel %vm1306, %v7187, %v7387
      %v7460 = vsel %vm1306, %v6874, %v7404
      %v7461 = vsel %vm1306, %v6876, %v7405
      %v7462 = vsel %vm1306, %v6945, %v7406
      %v7463 = vsel %vm1306, %v6947, %v7407
      %v7464 = vsel %vm1306, %v7016, %v7408
      %v7465 = vsel %vm1306, %v7018, %v7409
      %v7466 = vsel %vm1306, %v7087, %v7410
      %v7467 = vsel %vm1306, %v7089, %v7411
      %v7468 = vsel %vm1306, %v7276, %v7428
      %v7469 = vsel %vm1306, %v7277, %v7429
      %v7470 = vsel %vm1306, %v7278, %v7430
      %v7471 = vsel %vm1306, %v7279, %v7431
      %v7472 = vsel %vm1306, %v7280, %v7432
      %v7473 = vsel %vm1306, %v7281, %v7433
      %v7474 = vsel %vm1306, %v7282, %v7434
      %v7475 = vsel %vm1306, %v7283, %v7435
      %v7476 = vsel %vm1306, %v7340, 1.0
      %v7477 = vsel %vm1306, %v7341, 1.0
      %v7478 = vsel %vm1306, %v7342, 1.0
      %v7479 = vsel %vm1306, %v7343, 1.0
      %v7480 = vsel %vm1306, %v7344, 1.0
      %v7481 = vsel %vm1306, %v7345, 1.0
      %v7482 = vsel %vm1306, %v7346, 1.0
      %v7483 = vsel %vm1306, %v7347, 1.0
      %v7485 = vsel %vm2836, %v7091, 0
      %v7488 = vsel %vm2840, %v7476, 0
      %v7491 = vsel %vm2840, %v7477, 0
      %v7494 = vsel %vm2840, %v7478, 0
      %v7497 = vsel %vm2840, %v7479, 0
      %v7500 = vsel %vm2840, %v7480, 0
      %v7503 = vsel %vm2840, %v7481, 0
      %v7506 = vsel %vm2840, %v7482, 0
      %v7509 = vsel %vm2840, %v7483, 0
      %7511 = vmatprep.subr.mxu0 %v7445
      %7512 = vmatpush1.msra.mxu0 %v7444
      %7513 = vmatprep.subr.mxu0 %v7453
      %7514 = vmatpush1.msra.mxu0 %v7452
      %7515 = vmatprep.subr.mxu0 %v7461
      %7516 = vmatpush1.msra.mxu0 %v7460
      %7517 = vmatprep.subr.mxu0 %v7469
      %7518 = vmatpush1.msra.mxu0 %v7468
      %7519 = vmatprep.subr.mxu0 %v7491
      %7520 = vmatpush1.msra.mxu0 %v7488
      %7521 = vmatprep.subr.mxu0 0.0
      %7522 = vmatpush1.msra.mxu0 0.0
      %7523 = vmatprep.subr.mxu0 0.0
      %7524 = vmatpush1.msra.mxu0 0.0
      %7525 = vmatprep.subr.mxu0 0.0
      %7526 = vmatpush1.msra.mxu0 0.0
      %7527 = vmatprep.subr.mxu0 0.0
      %7528 = vmatpush1.msra.mxu0 0.0
      %7529 = vmatprep.subr.mxu0 0.0
      %7530 = vmatpush1.msra.mxu0 0.0
      %7531 = vmatprep.subr.mxu0 0.0
      %7532 = vmatpush1.msra.mxu0 0.0
      %7533 = vmatprep.subr.mxu0 0.0
      %7534 = vmatpush1.msra.mxu0 0.0
      %7535 = vmatprep.subr.mxu0 0.0
      %7536 = vmatpush1.msra.mxu0 0.0
      %7537 = vmatprep.subr.mxu0 0.0
      %7538 = vmatpush1.msra.mxu0 0.0
      %7539 = vmatprep.subr.mxu0 0.0
      %7540 = vmatpush1.msra.mxu0 0.0
      %7541 = vmatprep.subr.mxu0 0.0
      %7542 = vmatpush1.msra.mxu0 0.0
      %7543 = vmatprep.subr.mxu0 0.0
      %7544 = vmatpush1.msra.mxu0 0.0
      %7545 = vmatprep.subr.mxu0 0.0
      %7546 = vmatpush1.msra.mxu0 0.0
      %7547 = vmatprep.subr.mxu0 0.0
      %7548 = vmatpush1.msra.mxu0 0.0
      %7549 = vmatprep.subr.mxu0 0.0
      %7550 = vmatpush1.msra.mxu0 0.0
      %7551 = vmatprep.subr.mxu0 0.0
      %7552 = vmatpush1.msra.mxu0 0.0
      %7553 = vmatprep.subr.mxu0 0.0
      %7554 = vmatpush1.msra.mxu0 0.0
      %7555 = vmatprep.subr.mxu0 0.0
      %7556 = vmatpush1.msra.mxu0 0.0
      %7557 = vmatprep.subr.mxu0 0.0
      %7558 = vmatpush1.msra.mxu0 0.0
      %7559 = vmatprep.subr.mxu0 0.0
      %7560 = vmatpush1.msra.mxu0 0.0
      %7561 = vmatprep.subr.mxu0 0.0
      %7562 = vmatpush1.msra.mxu0 0.0
      %7563 = vmatprep.subr.mxu0 0.0
      %7564 = vmatpush1.msra.mxu0 0.0
      %7565 = vmatprep.subr.mxu0 0.0
      %7566 = vmatpush1.msra.mxu0 0.0
      %7567 = vmatprep.subr.mxu0 0.0
      %7568 = vmatpush1.msra.mxu0 0.0
      %7569 = vmatprep.subr.mxu0 0.0
      %7570 = vmatpush1.msra.mxu0 0.0
      %7571 = vmatprep.subr.mxu0 0.0
      %7572 = vmatpush1.msra.mxu0 0.0
      %7573 = vmatprep.subr.mxu0 0.0
      %7574 = vmatpush1.msra.mxu0 0.0
      %7575 = vmatprep.mubr.f32.mxu0 0.0
      %7576 = vmatmul.mubr.f32.gmra.mrb[0].mxu0 %v7485
      %v7577 = vpop.f32.mrb[0].mxu0
      %v7578 = vadd.f32 0.0, %v7577
      %v7579 = vpop.f32.mrb[0].mxu0
      %v7580 = vadd.f32 0.0, %v7579
      %7581 = vdwg.mxu0
      %7582 = vmatprep.subr.mxu0 %v7447
      %7583 = vmatpush1.msra.mxu0 %v7446
      %7584 = vmatprep.subr.mxu0 %v7455
      %7585 = vmatpush1.msra.mxu0 %v7454
      %7586 = vmatprep.subr.mxu0 %v7463
      %7587 = vmatpush1.msra.mxu0 %v7462
      %7588 = vmatprep.subr.mxu0 %v7471
      %7589 = vmatpush1.msra.mxu0 %v7470
      %7590 = vmatprep.subr.mxu0 %v7497
      %7591 = vmatpush1.msra.mxu0 %v7494
      %7592 = vmatprep.subr.mxu0 0.0
      %7593 = vmatpush1.msra.mxu0 0.0
      %7594 = vmatprep.subr.mxu0 0.0
      %7595 = vmatpush1.msra.mxu0 0.0
      %7596 = vmatprep.subr.mxu0 0.0
      %7597 = vmatpush1.msra.mxu0 0.0
      %7598 = vmatprep.subr.mxu0 0.0
      %7599 = vmatpush1.msra.mxu0 0.0
      %7600 = vmatprep.subr.mxu0 0.0
      %7601 = vmatpush1.msra.mxu0 0.0
      %7602 = vmatprep.subr.mxu0 0.0
      %7603 = vmatpush1.msra.mxu0 0.0
      %7604 = vmatprep.subr.mxu0 0.0
      %7605 = vmatpush1.msra.mxu0 0.0
      %7606 = vmatprep.subr.mxu0 0.0
      %7607 = vmatpush1.msra.mxu0 0.0
      %7608 = vmatprep.subr.mxu0 0.0
      %7609 = vmatpush1.msra.mxu0 0.0
      %7610 = vmatprep.subr.mxu0 0.0
      %7611 = vmatpush1.msra.mxu0 0.0
      %7612 = vmatprep.subr.mxu0 0.0
      %7613 = vmatpush1.msra.mxu0 0.0
      %7614 = vmatprep.subr.mxu0 0.0
      %7615 = vmatpush1.msra.mxu0 0.0
      %7616 = vmatprep.subr.mxu0 0.0
      %7617 = vmatpush1.msra.mxu0 0.0
      %7618 = vmatprep.subr.mxu0 0.0
      %7619 = vmatpush1.msra.mxu0 0.0
      %7620 = vmatprep.subr.mxu0 0.0
      %7621 = vmatpush1.msra.mxu0 0.0
      %7622 = vmatprep.subr.mxu0 0.0
      %7623 = vmatpush1.msra.mxu0 0.0
      %7624 = vmatprep.subr.mxu0 0.0
      %7625 = vmatpush1.msra.mxu0 0.0
      %7626 = vmatprep.subr.mxu0 0.0
      %7627 = vmatpush1.msra.mxu0 0.0
      %7628 = vmatprep.subr.mxu0 0.0
      %7629 = vmatpush1.msra.mxu0 0.0
      %7630 = vmatprep.subr.mxu0 0.0
      %7631 = vmatpush1.msra.mxu0 0.0
      %7632 = vmatprep.subr.mxu0 0.0
      %7633 = vmatpush1.msra.mxu0 0.0
      %7634 = vmatprep.subr.mxu0 0.0
      %7635 = vmatpush1.msra.mxu0 0.0
      %7636 = vmatprep.subr.mxu0 0.0
      %7637 = vmatpush1.msra.mxu0 0.0
      %7638 = vmatprep.subr.mxu0 0.0
      %7639 = vmatpush1.msra.mxu0 0.0
      %7640 = vmatprep.subr.mxu0 0.0
      %7641 = vmatpush1.msra.mxu0 0.0
      %7642 = vmatprep.subr.mxu0 0.0
      %7643 = vmatpush1.msra.mxu0 0.0
      %7644 = vmatprep.subr.mxu0 0.0
      %7645 = vmatpush1.msra.mxu0 0.0
      %7646 = vmatprep.mubr.f32.mxu0 0.0
      %7647 = vmatmul.mubr.f32.gmra.mrb[0].mxu0 %v7485
      %v7648 = vpop.f32.mrb[0].mxu0
      %v7649 = vadd.f32 0.0, %v7648
      %v7650 = vpop.f32.mrb[0].mxu0
      %v7651 = vadd.f32 0.0, %v7650
      %7652 = vdwg.mxu0
      %7653 = vmatprep.subr.mxu0 %v7449
      %7654 = vmatpush1.msra.mxu0 %v7448
      %7655 = vmatprep.subr.mxu0 %v7457
      %7656 = vmatpush1.msra.mxu0 %v7456
      %7657 = vmatprep.subr.mxu0 %v7465
      %7658 = vmatpush1.msra.mxu0 %v7464
      %7659 = vmatprep.subr.mxu0 %v7473
      %7660 = vmatpush1.msra.mxu0 %v7472
      %7661 = vmatprep.subr.mxu0 %v7503
      %7662 = vmatpush1.msra.mxu0 %v7500
      %7663 = vmatprep.subr.mxu0 0.0
      %7664 = vmatpush1.msra.mxu0 0.0
      %7665 = vmatprep.subr.mxu0 0.0
      %7666 = vmatpush1.msra.mxu0 0.0
      %7667 = vmatprep.subr.mxu0 0.0
      %7668 = vmatpush1.msra.mxu0 0.0
      %7669 = vmatprep.subr.mxu0 0.0
      %7670 = vmatpush1.msra.mxu0 0.0
      %7671 = vmatprep.subr.mxu0 0.0
      %7672 = vmatpush1.msra.mxu0 0.0
      %7673 = vmatprep.subr.mxu0 0.0
      %7674 = vmatpush1.msra.mxu0 0.0
      %7675 = vmatprep.subr.mxu0 0.0
      %7676 = vmatpush1.msra.mxu0 0.0
      %7677 = vmatprep.subr.mxu0 0.0
      %7678 = vmatpush1.msra.mxu0 0.0
      %7679 = vmatprep.subr.mxu0 0.0
      %7680 = vmatpush1.msra.mxu0 0.0
      %7681 = vmatprep.subr.mxu0 0.0
      %7682 = vmatpush1.msra.mxu0 0.0
      %7683 = vmatprep.subr.mxu0 0.0
      %7684 = vmatpush1.msra.mxu0 0.0
      %7685 = vmatprep.subr.mxu0 0.0
      %7686 = vmatpush1.msra.mxu0 0.0
      %7687 = vmatprep.subr.mxu0 0.0
      %7688 = vmatpush1.msra.mxu0 0.0
      %7689 = vmatprep.subr.mxu0 0.0
      %7690 = vmatpush1.msra.mxu0 0.0
      %7691 = vmatprep.subr.mxu0 0.0
      %7692 = vmatpush1.msra.mxu0 0.0
      %7693 = vmatprep.subr.mxu0 0.0
      %7694 = vmatpush1.msra.mxu0 0.0
      %7695 = vmatprep.subr.mxu0 0.0
      %7696 = vmatpush1.msra.mxu0 0.0
      %7697 = vmatprep.subr.mxu0 0.0
      %7698 = vmatpush1.msra.mxu0 0.0
      %7699 = vmatprep.subr.mxu0 0.0
      %7700 = vmatpush1.msra.mxu0 0.0
      %7701 = vmatprep.subr.mxu0 0.0
      %7702 = vmatpush1.msra.mxu0 0.0
      %7703 = vmatprep.subr.mxu0 0.0
      %7704 = vmatpush1.msra.mxu0 0.0
      %7705 = vmatprep.subr.mxu0 0.0
      %7706 = vmatpush1.msra.mxu0 0.0
      %7707 = vmatprep.subr.mxu0 0.0
      %7708 = vmatpush1.msra.mxu0 0.0
      %7709 = vmatprep.subr.mxu0 0.0
      %7710 = vmatpush1.msra.mxu0 0.0
      %7711 = vmatprep.subr.mxu0 0.0
      %7712 = vmatpush1.msra.mxu0 0.0
      %7713 = vmatprep.subr.mxu0 0.0
      %7714 = vmatpush1.msra.mxu0 0.0
      %7715 = vmatprep.subr.mxu0 0.0
      %7716 = vmatpush1.msra.mxu0 0.0
      %7717 = vmatprep.mubr.f32.mxu0 0.0
      %7718 = vmatmul.mubr.f32.gmra.mrb[0].mxu0 %v7485
      %v7719 = vpop.f32.mrb[0].mxu0
      %v7720 = vadd.f32 0.0, %v7719
      %v7721 = vpop.f32.mrb[0].mxu0
      %v7722 = vadd.f32 0.0, %v7721
      %7723 = vdwg.mxu0
      %7724 = vmatprep.subr.mxu0 %v7451
      %7725 = vmatpush1.msra.mxu0 %v7450
      %7726 = vmatprep.subr.mxu0 %v7459
      %7727 = vmatpush1.msra.mxu0 %v7458
      %7728 = vmatprep.subr.mxu0 %v7467
      %7729 = vmatpush1.msra.mxu0 %v7466
      %7730 = vmatprep.subr.mxu0 %v7475
      %7731 = vmatpush1.msra.mxu0 %v7474
      %7732 = vmatprep.subr.mxu0 %v7509
      %7733 = vmatpush1.msra.mxu0 %v7506
      %7734 = vmatprep.subr.mxu0 0.0
      %7735 = vmatpush1.msra.mxu0 0.0
      %7736 = vmatprep.subr.mxu0 0.0
      %7737 = vmatpush1.msra.mxu0 0.0
      %7738 = vmatprep.subr.mxu0 0.0
      %7739 = vmatpush1.msra.mxu0 0.0
      %7740 = vmatprep.subr.mxu0 0.0
      %7741 = vmatpush1.msra.mxu0 0.0
      %7742 = vmatprep.subr.mxu0 0.0
      %7743 = vmatpush1.msra.mxu0 0.0
      %7744 = vmatprep.subr.mxu0 0.0
      %7745 = vmatpush1.msra.mxu0 0.0
      %7746 = vmatprep.subr.mxu0 0.0
      %7747 = vmatpush1.msra.mxu0 0.0
      %7748 = vmatprep.subr.mxu0 0.0
      %7749 = vmatpush1.msra.mxu0 0.0
      %7750 = vmatprep.subr.mxu0 0.0
      %7751 = vmatpush1.msra.mxu0 0.0
      %7752 = vmatprep.subr.mxu0 0.0
      %7753 = vmatpush1.msra.mxu0 0.0
      %7754 = vmatprep.subr.mxu0 0.0
      %7755 = vmatpush1.msra.mxu0 0.0
      %7756 = vmatprep.subr.mxu0 0.0
      %7757 = vmatpush1.msra.mxu0 0.0
      %7758 = vmatprep.subr.mxu0 0.0
      %7759 = vmatpush1.msra.mxu0 0.0
      %7760 = vmatprep.subr.mxu0 0.0
      %7761 = vmatpush1.msra.mxu0 0.0
      %7762 = vmatprep.subr.mxu0 0.0
      %7763 = vmatpush1.msra.mxu0 0.0
      %7764 = vmatprep.subr.mxu0 0.0
      %7765 = vmatpush1.msra.mxu0 0.0
      %7766 = vmatprep.subr.mxu0 0.0
      %7767 = vmatpush1.msra.mxu0 0.0
      %7768 = vmatprep.subr.mxu0 0.0
      %7769 = vmatpush1.msra.mxu0 0.0
      %7770 = vmatprep.subr.mxu0 0.0
      %7771 = vmatpush1.msra.mxu0 0.0
      %7772 = vmatprep.subr.mxu0 0.0
      %7773 = vmatpush1.msra.mxu0 0.0
      %7774 = vmatprep.subr.mxu0 0.0
      %7775 = vmatpush1.msra.mxu0 0.0
      %7776 = vmatprep.subr.mxu0 0.0
      %7777 = vmatpush1.msra.mxu0 0.0
      %7778 = vmatprep.subr.mxu0 0.0
      %7779 = vmatpush1.msra.mxu0 0.0
      %7780 = vmatprep.subr.mxu0 0.0
      %7781 = vmatpush1.msra.mxu0 0.0
      %7782 = vmatprep.subr.mxu0 0.0
      %7783 = vmatpush1.msra.mxu0 0.0
      %7784 = vmatprep.subr.mxu0 0.0
      %7785 = vmatpush1.msra.mxu0 0.0
      %7786 = vmatprep.subr.mxu0 0.0
      %7787 = vmatpush1.msra.mxu0 0.0
      %7788 = vmatprep.mubr.f32.mxu0 0.0
      %7789 = vmatmul.mubr.f32.gmra.mrb[0].mxu0 %v7485
      %v7790 = vpop.f32.mrb[0].mxu0
      %v7791 = vadd.f32 0.0, %v7790
      %v7792 = vpop.f32.mrb[0].mxu0
      %v7793 = vadd.f32 0.0, %v7792
      %7794 = vdwg.mxu0
      %v7795 = vld [vmem:[%s6 + $0x348] ss:$0 sm:$0xff]
      %7796 = vrot.lane.b32.xlu0 %v7578, 33
      %v7797 = vpop.permute.xlu0 %7796
      %7798 = vrot.lane.b32.xlu0 %v7580, 33
      %v7799 = vpop.permute.xlu0 %7798
      %7800 = vrot.lane.b32.xlu0 %v7649, 33
      %v7801 = vpop.permute.xlu0 %7800
      %7802 = vrot.lane.b32.xlu0 %v7651, 33
      %v7803 = vpop.permute.xlu0 %7802
      %7804 = vrot.lane.b32.xlu0 %v7720, 33
      %v7805 = vpop.permute.xlu0 %7804
      %7806 = vrot.lane.b32.xlu0 %v7722, 33
      %v7807 = vpop.permute.xlu0 %7806
      %7808 = vrot.lane.b32.xlu0 %v7791, 33
      %v7809 = vpop.permute.xlu0 %7808
      %7810 = vrot.lane.b32.xlu0 %v7793, 33
      %v7811 = vpop.permute.xlu0 %7810
      %v7812 = vsel %vm4118, %v7809, %v7811
      %v7813 = vsel %vm4118, %v7807, %v7809
      %v7814 = vsel %vm4118, %v7805, %v7807
      %v7815 = vsel %vm4118, %v7803, %v7805
      %v7816 = vsel %vm4118, %v7801, %v7803
      %v7817 = vsel %vm4118, %v7799, %v7801
      %v7818 = vsel %vm4118, %v7797, %v7799
      %v7819 = vsel %vm4118, %v7811, %v7797
      %v7820 = vmul.f32 %v7819, %v503
      %v7821 = vmul.f32 %v7818, %v504
      %v7822 = vmul.f32 %v7817, %v505
      %v7823 = vmul.f32 %v7816, %v506
      %v7824 = vmul.f32 %v7815, %v507
      %v7825 = vmul.f32 %v7814, %v508
      %v7826 = vmul.f32 %v7813, %v509
      %v7827 = vmul.f32 %v7812, %v510
      %7828 = vrot.lane.b32.xlu0 %v7578, 32
      %v7829 = vpop.permute.xlu0 %7828
      %7830 = vrot.lane.b32.xlu0 %v7580, 32
      %v7831 = vpop.permute.xlu0 %7830
      %7832 = vrot.lane.b32.xlu0 %v7649, 32
      %v7833 = vpop.permute.xlu0 %7832
      %7834 = vrot.lane.b32.xlu0 %v7651, 32
      %v7835 = vpop.permute.xlu0 %7834
      %7836 = vrot.lane.b32.xlu0 %v7720, 32
      %v7837 = vpop.permute.xlu0 %7836
      %7838 = vrot.lane.b32.xlu0 %v7722, 32
      %v7839 = vpop.permute.xlu0 %7838
      %7840 = vrot.lane.b32.xlu0 %v7791, 32
      %v7841 = vpop.permute.xlu0 %7840
      %7842 = vrot.lane.b32.xlu0 %v7793, 32
      %v7843 = vpop.permute.xlu0 %7842
      %v7844 = vsel %vm4151, %v7841, %v7843
      %v7845 = vsel %vm4151, %v7839, %v7841
      %v7846 = vsel %vm4151, %v7837, %v7839
      %v7847 = vsel %vm4151, %v7835, %v7837
      %v7848 = vsel %vm4151, %v7833, %v7835
      %v7849 = vsel %vm4151, %v7831, %v7833
      %v7850 = vsel %vm4151, %v7829, %v7831
      %v7851 = vsel %vm4151, %v7843, %v7829
      %v7852 = vmul.f32 %v7851, %v479
      %v7853 = vmul.f32 %v7850, %v480
      %v7854 = vmul.f32 %v7849, %v481
      %v7855 = vmul.f32 %v7848, %v482
      %v7856 = vmul.f32 %v7847, %v483
      %v7857 = vmul.f32 %v7846, %v484
      %v7858 = vmul.f32 %v7845, %v485
      %v7859 = vmul.f32 %v7844, %v486
      %7860 = vrot.lane.b32.xlu0 %v7578, 31
      %v7861 = vpop.permute.xlu0 %7860
      %7862 = vrot.lane.b32.xlu0 %v7580, 31
      %v7863 = vpop.permute.xlu0 %7862
      %7864 = vrot.lane.b32.xlu0 %v7649, 31
      %v7865 = vpop.permute.xlu0 %7864
      %7866 = vrot.lane.b32.xlu0 %v7651, 31
      %v7867 = vpop.permute.xlu0 %7866
      %7868 = vrot.lane.b32.xlu0 %v7720, 31
      %v7869 = vpop.permute.xlu0 %7868
      %7870 = vrot.lane.b32.xlu0 %v7722, 31
      %v7871 = vpop.permute.xlu0 %7870
      %7872 = vrot.lane.b32.xlu0 %v7791, 31
      %v7873 = vpop.permute.xlu0 %7872
      %7874 = vrot.lane.b32.xlu0 %v7793, 31
      %v7875 = vpop.permute.xlu0 %7874
      %v7876 = vsel %vm4184, %v7873, %v7875
      %v7877 = vsel %vm4184, %v7871, %v7873
      %v7878 = vsel %vm4184, %v7869, %v7871
      %v7879 = vsel %vm4184, %v7867, %v7869
      %v7880 = vsel %vm4184, %v7865, %v7867
      %v7881 = vsel %vm4184, %v7863, %v7865
      %v7882 = vsel %vm4184, %v7861, %v7863
      %v7883 = vsel %vm4184, %v7875, %v7861
      %v7884 = vmul.f32 %v7883, %v511
      %v7885 = vmul.f32 %v7882, %v512
      %v7886 = vmul.f32 %v7881, %v513
      %v7887 = vmul.f32 %v7880, %v514
      %v7888 = vmul.f32 %v7879, %v515
      %v7889 = vmul.f32 %v7878, %v516
      %v7890 = vmul.f32 %v7877, %v517
      %v7891 = vmul.f32 %v7876, %v518
      %7892 = vrot.lane.b32.xlu0 %v7578, 1
      %v7893 = vpop.permute.xlu0 %7892
      %7894 = vrot.lane.b32.xlu0 %v7580, 1
      %v7895 = vpop.permute.xlu0 %7894
      %7896 = vrot.lane.b32.xlu0 %v7649, 1
      %v7897 = vpop.permute.xlu0 %7896
      %7898 = vrot.lane.b32.xlu0 %v7651, 1
      %v7899 = vpop.permute.xlu0 %7898
      %7900 = vrot.lane.b32.xlu0 %v7720, 1
      %v7901 = vpop.permute.xlu0 %7900
      %7902 = vrot.lane.b32.xlu0 %v7722, 1
      %v7903 = vpop.permute.xlu0 %7902
      %7904 = vrot.lane.b32.xlu0 %v7791, 1
      %v7905 = vpop.permute.xlu0 %7904
      %7906 = vrot.lane.b32.xlu0 %v7793, 1
      %v7907 = vpop.permute.xlu0 %7906
      %v7908 = vsel %vm2568, %v7905, %v7907
      %v7909 = vsel %vm2568, %v7903, %v7905
      %v7910 = vsel %vm2568, %v7901, %v7903
      %v7911 = vsel %vm2568, %v7899, %v7901
      %v7912 = vsel %vm2568, %v7897, %v7899
      %v7913 = vsel %vm2568, %v7895, %v7897
      %v7914 = vsel %vm2568, %v7893, %v7895
      %v7915 = vsel %vm2568, %v7907, %v7893
      %v7916 = vmul.f32 %v7915, %v447
      %v7917 = vmul.f32 %v7914, %v448
      %v7918 = vmul.f32 %v7913, %v449
      %v7919 = vmul.f32 %v7912, %v450
      %v7920 = vmul.f32 %v7911, %v451
      %v7921 = vmul.f32 %v7910, %v452
      %v7922 = vmul.f32 %v7909, %v453
      %v7923 = vmul.f32 %v7908, %v454
      %7924 = vrot.lane.b32.xlu0 %v7578, 127
      %v7925 = vpop.permute.xlu0 %7924
      %7926 = vrot.lane.b32.xlu0 %v7580, 127
      %v7927 = vpop.permute.xlu0 %7926
      %7928 = vrot.lane.b32.xlu0 %v7649, 127
      %v7929 = vpop.permute.xlu0 %7928
      %7930 = vrot.lane.b32.xlu0 %v7651, 127
      %v7931 = vpop.permute.xlu0 %7930
      %7932 = vrot.lane.b32.xlu0 %v7720, 127
      %v7933 = vpop.permute.xlu0 %7932
      %7934 = vrot.lane.b32.xlu0 %v7722, 127
      %v7935 = vpop.permute.xlu0 %7934
      %7936 = vrot.lane.b32.xlu0 %v7791, 127
      %v7937 = vpop.permute.xlu0 %7936
      %7938 = vrot.lane.b32.xlu0 %v7793, 127
      %v7939 = vpop.permute.xlu0 %7938
      %v7940 = vsel %vm2577, %v7937, %v7939
      %v7941 = vsel %vm2577, %v7935, %v7937
      %v7942 = vsel %vm2577, %v7933, %v7935
      %v7943 = vsel %vm2577, %v7931, %v7933
      %v7944 = vsel %vm2577, %v7929, %v7931
      %v7945 = vsel %vm2577, %v7927, %v7929
      %v7946 = vsel %vm2577, %v7925, %v7927
      %v7947 = vsel %vm2577, %v7939, %v7925
      %v7948 = vmul.f32 %v7946, %v463
      %v7949 = vmul.f32 %v7945, %v464
      %v7950 = vmul.f32 %v7944, %v465
      %v7951 = vmul.f32 %v7943, %v466
      %v7952 = vmul.f32 %v7942, %v467
      %v7953 = vmul.f32 %v7941, %v468
      %v7954 = vmul.f32 %v7940, %v469
      %v7955 = vmul.f32 %v7947, %v470
      %7956 = vrot.lane.b32.xlu0 %v7578, 97
      %v7957 = vpop.permute.xlu0 %7956
      %7958 = vrot.lane.b32.xlu0 %v7580, 97
      %v7959 = vpop.permute.xlu0 %7958
      %7960 = vrot.lane.b32.xlu0 %v7649, 97
      %v7961 = vpop.permute.xlu0 %7960
      %7962 = vrot.lane.b32.xlu0 %v7651, 97
      %v7963 = vpop.permute.xlu0 %7962
      %7964 = vrot.lane.b32.xlu0 %v7720, 97
      %v7965 = vpop.permute.xlu0 %7964
      %7966 = vrot.lane.b32.xlu0 %v7722, 97
      %v7967 = vpop.permute.xlu0 %7966
      %7968 = vrot.lane.b32.xlu0 %v7791, 97
      %v7969 = vpop.permute.xlu0 %7968
      %7970 = vrot.lane.b32.xlu0 %v7793, 97
      %v7971 = vpop.permute.xlu0 %7970
      %v7972 = vsel %vm4281, %v7969, %v7971
      %v7973 = vsel %vm4281, %v7967, %v7969
      %v7974 = vsel %vm4281, %v7965, %v7967
      %v7975 = vsel %vm4281, %v7963, %v7965
      %v7976 = vsel %vm4281, %v7961, %v7963
      %v7977 = vsel %vm4281, %v7959, %v7961
      %v7978 = vsel %vm4281, %v7957, %v7959
      %v7979 = vsel %vm4281, %v7971, %v7957
      %v7980 = vmul.f32 %v7978, %v519
      %v7981 = vmul.f32 %v7977, %v520
      %v7982 = vmul.f32 %v7976, %v521
      %v7983 = vmul.f32 %v7975, %v522
      %v7984 = vmul.f32 %v7974, %v523
      %v7985 = vmul.f32 %v7973, %v524
      %v7986 = vmul.f32 %v7972, %v525
      %v7987 = vmul.f32 %v7979, %v526
      %7988 = vrot.lane.b32.xlu0 %v7578, 96
      %v7989 = vpop.permute.xlu0 %7988
      %7990 = vrot.lane.b32.xlu0 %v7580, 96
      %v7991 = vpop.permute.xlu0 %7990
      %7992 = vrot.lane.b32.xlu0 %v7649, 96
      %v7993 = vpop.permute.xlu0 %7992
      %7994 = vrot.lane.b32.xlu0 %v7651, 96
      %v7995 = vpop.permute.xlu0 %7994
      %7996 = vrot.lane.b32.xlu0 %v7720, 96
      %v7997 = vpop.permute.xlu0 %7996
      %7998 = vrot.lane.b32.xlu0 %v7722, 96
      %v7999 = vpop.permute.xlu0 %7998
      %8000 = vrot.lane.b32.xlu0 %v7791, 96
      %v8001 = vpop.permute.xlu0 %8000
      %8002 = vrot.lane.b32.xlu0 %v7793, 96
      %v8003 = vpop.permute.xlu0 %8002
      %v8004 = vsel %vm4314, %v8001, %v8003
      %v8005 = vsel %vm4314, %v7999, %v8001
      %v8006 = vsel %vm4314, %v7997, %v7999
      %v8007 = vsel %vm4314, %v7995, %v7997
      %v8008 = vsel %vm4314, %v7993, %v7995
      %v8009 = vsel %vm4314, %v7991, %v7993
      %v8010 = vsel %vm4314, %v7989, %v7991
      %v8011 = vsel %vm4314, %v8003, %v7989
      %v8012 = vmul.f32 %v8010, %v495
      %v8013 = vmul.f32 %v8009, %v496
      %v8014 = vmul.f32 %v8008, %v497
      %v8015 = vmul.f32 %v8007, %v498
      %v8016 = vmul.f32 %v8006, %v499
      %v8017 = vmul.f32 %v8005, %v500
      %v8018 = vmul.f32 %v8004, %v501
      %v8019 = vmul.f32 %v8011, %v502
      %8020 = vrot.lane.b32.xlu0 %v7578, 95
      %v8021 = vpop.permute.xlu0 %8020
      %8022 = vrot.lane.b32.xlu0 %v7580, 95
      %v8023 = vpop.permute.xlu0 %8022
      %8024 = vrot.lane.b32.xlu0 %v7649, 95
      %v8025 = vpop.permute.xlu0 %8024
      %8026 = vrot.lane.b32.xlu0 %v7651, 95
      %v8027 = vpop.permute.xlu0 %8026
      %8028 = vrot.lane.b32.xlu0 %v7720, 95
      %v8029 = vpop.permute.xlu0 %8028
      %8030 = vrot.lane.b32.xlu0 %v7722, 95
      %v8031 = vpop.permute.xlu0 %8030
      %8032 = vrot.lane.b32.xlu0 %v7791, 95
      %v8033 = vpop.permute.xlu0 %8032
      %8034 = vrot.lane.b32.xlu0 %v7793, 95
      %v8035 = vpop.permute.xlu0 %8034
      %v8036 = vsel %vm4347, %v8033, %v8035
      %v8037 = vsel %vm4347, %v8031, %v8033
      %v8038 = vsel %vm4347, %v8029, %v8031
      %v8039 = vsel %vm4347, %v8027, %v8029
      %v8040 = vsel %vm4347, %v8025, %v8027
      %v8041 = vsel %vm4347, %v8023, %v8025
      %v8042 = vsel %vm4347, %v8021, %v8023
      %v8043 = vsel %vm4347, %v8035, %v8021
      %v8044 = vmul.f32 %v8042, %v527
      %v8045 = vmul.f32 %v8041, %v528
      %v8046 = vmul.f32 %v8040, %v529
      %v8047 = vmul.f32 %v8039, %v530
      %v8048 = vmul.f32 %v8038, %v531
      %v8049 = vmul.f32 %v8037, %v532
      %v8050 = vmul.f32 %v8036, %v533
      %v8051 = vmul.f32 %v8043, %v534
      %v8060 = vrot.slane %v7852, 4
      %v8061 = vrot.slane %v7853, 4
      %v8062 = vrot.slane %v7854, 4
      %v8063 = vrot.slane %v7855, 4
      %v8064 = vrot.slane %v7856, 4
      %v8065 = vrot.slane %v7857, 4
      %v8066 = vrot.slane %v7858, 4
      %v8067 = vrot.slane %v7859, 4
      %v8084 = vrot.slane %v7916, 4
      %v8085 = vrot.slane %v7917, 4
      %v8086 = vrot.slane %v7918, 4
      %v8087 = vrot.slane %v7919, 4
      %v8088 = vrot.slane %v7920, 4
      %v8089 = vrot.slane %v7921, 4
      %v8090 = vrot.slane %v7922, 4
      %v8091 = vrot.slane %v7923, 4
      %v8108 = vrot.slane %v7948, 4
      %v8109 = vrot.slane %v7949, 4
      %v8110 = vrot.slane %v7950, 4
      %v8111 = vrot.slane %v7951, 4
      %v8112 = vrot.slane %v7952, 4
      %v8113 = vrot.slane %v7953, 4
      %v8114 = vrot.slane %v7954, 4
      %v8115 = vrot.slane %v7955, 4
      %v8132 = vrot.slane %v8012, 4
      %v8133 = vrot.slane %v8013, 4
      %v8134 = vrot.slane %v8014, 4
      %v8135 = vrot.slane %v8015, 4
      %v8136 = vrot.slane %v8016, 4
      %v8137 = vrot.slane %v8017, 4
      %v8138 = vrot.slane %v8018, 4
      %v8139 = vrot.slane %v8019, 4
      %v8148 = vsel %vm1306, %v7820, %v8060
      %v8149 = vsel %vm1306, %v7821, %v8061
      %v8150 = vsel %vm1306, %v7822, %v8062
      %v8151 = vsel %vm1306, %v7823, %v8063
      %v8152 = vsel %vm1306, %v7824, %v8064
      %v8153 = vsel %vm1306, %v7825, %v8065
      %v8154 = vsel %vm1306, %v7826, %v8066
      %v8155 = vsel %vm1306, %v7827, %v8067
      %v8156 = vsel %vm1306, %v7884, %v8084
      %v8157 = vsel %vm1306, %v7885, %v8085
      %v8158 = vsel %vm1306, %v7886, %v8086
      %v8159 = vsel %vm1306, %v7887, %v8087
      %v8160 = vsel %vm1306, %v7888, %v8088
      %v8161 = vsel %vm1306, %v7889, %v8089
      %v8162 = vsel %vm1306, %v7890, %v8090
      %v8163 = vsel %vm1306, %v7891, %v8091
      %v8164 = vsel %vm1306, %v7578, %v8108
      %v8165 = vsel %vm1306, %v7580, %v8109
      %v8166 = vsel %vm1306, %v7649, %v8110
      %v8167 = vsel %vm1306, %v7651, %v8111
      %v8168 = vsel %vm1306, %v7720, %v8112
      %v8169 = vsel %vm1306, %v7722, %v8113
      %v8170 = vsel %vm1306, %v7791, %v8114
      %v8171 = vsel %vm1306, %v7793, %v8115
      %v8172 = vsel %vm1306, %v7980, %v8132
      %v8173 = vsel %vm1306, %v7981, %v8133
      %v8174 = vsel %vm1306, %v7982, %v8134
      %v8175 = vsel %vm1306, %v7983, %v8135
      %v8176 = vsel %vm1306, %v7984, %v8136
      %v8177 = vsel %vm1306, %v7985, %v8137
      %v8178 = vsel %vm1306, %v7986, %v8138
      %v8179 = vsel %vm1306, %v7987, %v8139
      %v8180 = vsel %vm1306, %v8044, 1.0
      %v8181 = vsel %vm1306, %v8045, 1.0
      %v8182 = vsel %vm1306, %v8046, 1.0
      %v8183 = vsel %vm1306, %v8047, 1.0
      %v8184 = vsel %vm1306, %v8048, 1.0
      %v8185 = vsel %vm1306, %v8049, 1.0
      %v8186 = vsel %vm1306, %v8050, 1.0
      %v8187 = vsel %vm1306, %v8051, 1.0
      %v8189 = vsel %vm2836, %v7795, 0
      %v8192 = vsel %vm2840, %v8180, 0
      %v8195 = vsel %vm2840, %v8181, 0
      %v8198 = vsel %vm2840, %v8182, 0
      %v8201 = vsel %vm2840, %v8183, 0
      %v8204 = vsel %vm2840, %v8184, 0
      %v8207 = vsel %vm2840, %v8185, 0
      %v8210 = vsel %vm2840, %v8186, 0
      %v8213 = vsel %vm2840, %v8187, 0
      %8215 = vmatprep.subr.mxu0 %v8149
      %8216 = vmatpush1.msra.mxu0 %v8148
      %8217 = vmatprep.subr.mxu0 %v8157
      %8218 = vmatpush1.msra.mxu0 %v8156
      %8219 = vmatprep.subr.mxu0 %v8165
      %8220 = vmatpush1.msra.mxu0 %v8164
      %8221 = vmatprep.subr.mxu0 %v8173
      %8222 = vmatpush1.msra.mxu0 %v8172
      %8223 = vmatprep.subr.mxu0 %v8195
      %8224 = vmatpush1.msra.mxu0 %v8192
      %8225 = vmatprep.subr.mxu0 0.0
      %8226 = vmatpush1.msra.mxu0 0.0
      %8227 = vmatprep.subr.mxu0 0.0
      %8228 = vmatpush1.msra.mxu0 0.0
      %8229 = vmatprep.subr.mxu0 0.0
      %8230 = vmatpush1.msra.mxu0 0.0
      %8231 = vmatprep.subr.mxu0 0.0
      %8232 = vmatpush1.msra.mxu0 0.0
      %8233 = vmatprep.subr.mxu0 0.0
      %8234 = vmatpush1.msra.mxu0 0.0
      %8235 = vmatprep.subr.mxu0 0.0
      %8236 = vmatpush1.msra.mxu0 0.0
      %8237 = vmatprep.subr.mxu0 0.0
      %8238 = vmatpush1.msra.mxu0 0.0
      %8239 = vmatprep.subr.mxu0 0.0
      %8240 = vmatpush1.msra.mxu0 0.0
      %8241 = vmatprep.subr.mxu0 0.0
      %8242 = vmatpush1.msra.mxu0 0.0
      %8243 = vmatprep.subr.mxu0 0.0
      %8244 = vmatpush1.msra.mxu0 0.0
      %8245 = vmatprep.subr.mxu0 0.0
      %8246 = vmatpush1.msra.mxu0 0.0
      %8247 = vmatprep.subr.mxu0 0.0
      %8248 = vmatpush1.msra.mxu0 0.0
      %8249 = vmatprep.subr.mxu0 0.0
      %8250 = vmatpush1.msra.mxu0 0.0
      %8251 = vmatprep.subr.mxu0 0.0
      %8252 = vmatpush1.msra.mxu0 0.0
      %8253 = vmatprep.subr.mxu0 0.0
      %8254 = vmatpush1.msra.mxu0 0.0
      %8255 = vmatprep.subr.mxu0 0.0
      %8256 = vmatpush1.msra.mxu0 0.0
      %8257 = vmatprep.subr.mxu0 0.0
      %8258 = vmatpush1.msra.mxu0 0.0
      %8259 = vmatprep.subr.mxu0 0.0
      %8260 = vmatpush1.msra.mxu0 0.0
      %8261 = vmatprep.subr.mxu0 0.0
      %8262 = vmatpush1.msra.mxu0 0.0
      %8263 = vmatprep.subr.mxu0 0.0
      %8264 = vmatpush1.msra.mxu0 0.0
      %8265 = vmatprep.subr.mxu0 0.0
      %8266 = vmatpush1.msra.mxu0 0.0
      %8267 = vmatprep.subr.mxu0 0.0
      %8268 = vmatpush1.msra.mxu0 0.0
      %8269 = vmatprep.subr.mxu0 0.0
      %8270 = vmatpush1.msra.mxu0 0.0
      %8271 = vmatprep.subr.mxu0 0.0
      %8272 = vmatpush1.msra.mxu0 0.0
      %8273 = vmatprep.subr.mxu0 0.0
      %8274 = vmatpush1.msra.mxu0 0.0
      %8275 = vmatprep.subr.mxu0 0.0
      %8276 = vmatpush1.msra.mxu0 0.0
      %8277 = vmatprep.subr.mxu0 0.0
      %8278 = vmatpush1.msra.mxu0 0.0
      %8279 = vmatprep.mubr.f32.mxu0 0.0
      %8280 = vmatmul.mubr.f32.gmra.mrb[0].mxu0 %v8189
      %v8281 = vpop.f32.mrb[0].mxu0
      %v8282 = vadd.f32 0.0, %v8281
      %v8283 = vpop.f32.mrb[0].mxu0
      %v8284 = vadd.f32 0.0, %v8283
      %8285 = vdwg.mxu0
      %8286 = vmatprep.subr.mxu0 %v8151
      %8287 = vmatpush1.msra.mxu0 %v8150
      %8288 = vmatprep.subr.mxu0 %v8159
      %8289 = vmatpush1.msra.mxu0 %v8158
      %8290 = vmatprep.subr.mxu0 %v8167
      %8291 = vmatpush1.msra.mxu0 %v8166
      %8292 = vmatprep.subr.mxu0 %v8175
      %8293 = vmatpush1.msra.mxu0 %v8174
      %8294 = vmatprep.subr.mxu0 %v8201
      %8295 = vmatpush1.msra.mxu0 %v8198
      %8296 = vmatprep.subr.mxu0 0.0
      %8297 = vmatpush1.msra.mxu0 0.0
      %8298 = vmatprep.subr.mxu0 0.0
      %8299 = vmatpush1.msra.mxu0 0.0
      %8300 = vmatprep.subr.mxu0 0.0
      %8301 = vmatpush1.msra.mxu0 0.0
      %8302 = vmatprep.subr.mxu0 0.0
      %8303 = vmatpush1.msra.mxu0 0.0
      %8304 = vmatprep.subr.mxu0 0.0
      %8305 = vmatpush1.msra.mxu0 0.0
      %8306 = vmatprep.subr.mxu0 0.0
      %8307 = vmatpush1.msra.mxu0 0.0
      %8308 = vmatprep.subr.mxu0 0.0
      %8309 = vmatpush1.msra.mxu0 0.0
      %8310 = vmatprep.subr.mxu0 0.0
      %8311 = vmatpush1.msra.mxu0 0.0
      %8312 = vmatprep.subr.mxu0 0.0
      %8313 = vmatpush1.msra.mxu0 0.0
      %8314 = vmatprep.subr.mxu0 0.0
      %8315 = vmatpush1.msra.mxu0 0.0
      %8316 = vmatprep.subr.mxu0 0.0
      %8317 = vmatpush1.msra.mxu0 0.0
      %8318 = vmatprep.subr.mxu0 0.0
      %8319 = vmatpush1.msra.mxu0 0.0
      %8320 = vmatprep.subr.mxu0 0.0
      %8321 = vmatpush1.msra.mxu0 0.0
      %8322 = vmatprep.subr.mxu0 0.0
      %8323 = vmatpush1.msra.mxu0 0.0
      %8324 = vmatprep.subr.mxu0 0.0
      %8325 = vmatpush1.msra.mxu0 0.0
      %8326 = vmatprep.subr.mxu0 0.0
      %8327 = vmatpush1.msra.mxu0 0.0
      %8328 = vmatprep.subr.mxu0 0.0
      %8329 = vmatpush1.msra.mxu0 0.0
      %8330 = vmatprep.subr.mxu0 0.0
      %8331 = vmatpush1.msra.mxu0 0.0
      %8332 = vmatprep.subr.mxu0 0.0
      %8333 = vmatpush1.msra.mxu0 0.0
      %8334 = vmatprep.subr.mxu0 0.0
      %8335 = vmatpush1.msra.mxu0 0.0
      %8336 = vmatprep.subr.mxu0 0.0
      %8337 = vmatpush1.msra.mxu0 0.0
      %8338 = vmatprep.subr.mxu0 0.0
      %8339 = vmatpush1.msra.mxu0 0.0
      %8340 = vmatprep.subr.mxu0 0.0
      %8341 = vmatpush1.msra.mxu0 0.0
      %8342 = vmatprep.subr.mxu0 0.0
      %8343 = vmatpush1.msra.mxu0 0.0
      %8344 = vmatprep.subr.mxu0 0.0
      %8345 = vmatpush1.msra.mxu0 0.0
      %8346 = vmatprep.subr.mxu0 0.0
      %8347 = vmatpush1.msra.mxu0 0.0
      %8348 = vmatprep.subr.mxu0 0.0
      %8349 = vmatpush1.msra.mxu0 0.0
      %8350 = vmatprep.mubr.f32.mxu0 0.0
      %8351 = vmatmul.mubr.f32.gmra.mrb[0].mxu0 %v8189
      %v8352 = vpop.f32.mrb[0].mxu0
      %v8353 = vadd.f32 0.0, %v8352
      %v8354 = vpop.f32.mrb[0].mxu0
      %v8355 = vadd.f32 0.0, %v8354
      %8356 = vdwg.mxu0
      %8357 = vmatprep.subr.mxu0 %v8153
      %8358 = vmatpush1.msra.mxu0 %v8152
      %8359 = vmatprep.subr.mxu0 %v8161
      %8360 = vmatpush1.msra.mxu0 %v8160
      %8361 = vmatprep.subr.mxu0 %v8169
      %8362 = vmatpush1.msra.mxu0 %v8168
      %8363 = vmatprep.subr.mxu0 %v8177
      %8364 = vmatpush1.msra.mxu0 %v8176
      %8365 = vmatprep.subr.mxu0 %v8207
      %8366 = vmatpush1.msra.mxu0 %v8204
      %8367 = vmatprep.subr.mxu0 0.0
      %8368 = vmatpush1.msra.mxu0 0.0
      %8369 = vmatprep.subr.mxu0 0.0
      %8370 = vmatpush1.msra.mxu0 0.0
      %8371 = vmatprep.subr.mxu0 0.0
      %8372 = vmatpush1.msra.mxu0 0.0
      %8373 = vmatprep.subr.mxu0 0.0
      %8374 = vmatpush1.msra.mxu0 0.0
      %8375 = vmatprep.subr.mxu0 0.0
      %8376 = vmatpush1.msra.mxu0 0.0
      %8377 = vmatprep.subr.mxu0 0.0
      %8378 = vmatpush1.msra.mxu0 0.0
      %8379 = vmatprep.subr.mxu0 0.0
      %8380 = vmatpush1.msra.mxu0 0.0
      %8381 = vmatprep.subr.mxu0 0.0
      %8382 = vmatpush1.msra.mxu0 0.0
      %8383 = vmatprep.subr.mxu0 0.0
      %8384 = vmatpush1.msra.mxu0 0.0
      %8385 = vmatprep.subr.mxu0 0.0
      %8386 = vmatpush1.msra.mxu0 0.0
      %8387 = vmatprep.subr.mxu0 0.0
      %8388 = vmatpush1.msra.mxu0 0.0
      %8389 = vmatprep.subr.mxu0 0.0
      %8390 = vmatpush1.msra.mxu0 0.0
      %8391 = vmatprep.subr.mxu0 0.0
      %8392 = vmatpush1.msra.mxu0 0.0
      %8393 = vmatprep.subr.mxu0 0.0
      %8394 = vmatpush1.msra.mxu0 0.0
      %8395 = vmatprep.subr.mxu0 0.0
      %8396 = vmatpush1.msra.mxu0 0.0
      %8397 = vmatprep.subr.mxu0 0.0
      %8398 = vmatpush1.msra.mxu0 0.0
      %8399 = vmatprep.subr.mxu0 0.0
      %8400 = vmatpush1.msra.mxu0 0.0
      %8401 = vmatprep.subr.mxu0 0.0
      %8402 = vmatpush1.msra.mxu0 0.0
      %8403 = vmatprep.subr.mxu0 0.0
      %8404 = vmatpush1.msra.mxu0 0.0
      %8405 = vmatprep.subr.mxu0 0.0
      %8406 = vmatpush1.msra.mxu0 0.0
      %8407 = vmatprep.subr.mxu0 0.0
      %8408 = vmatpush1.msra.mxu0 0.0
      %8409 = vmatprep.subr.mxu0 0.0
      %8410 = vmatpush1.msra.mxu0 0.0
      %8411 = vmatprep.subr.mxu0 0.0
      %8412 = vmatpush1.msra.mxu0 0.0
      %8413 = vmatprep.subr.mxu0 0.0
      %8414 = vmatpush1.msra.mxu0 0.0
      %8415 = vmatprep.subr.mxu0 0.0
      %8416 = vmatpush1.msra.mxu0 0.0
      %8417 = vmatprep.subr.mxu0 0.0
      %8418 = vmatpush1.msra.mxu0 0.0
      %8419 = vmatprep.subr.mxu0 0.0
      %8420 = vmatpush1.msra.mxu0 0.0
      %8421 = vmatprep.mubr.f32.mxu0 0.0
      %8422 = vmatmul.mubr.f32.gmra.mrb[0].mxu0 %v8189
      %v8423 = vpop.f32.mrb[0].mxu0
      %v8424 = vadd.f32 0.0, %v8423
      %v8425 = vpop.f32.mrb[0].mxu0
      %v8426 = vadd.f32 0.0, %v8425
      %8427 = vdwg.mxu0
      %8428 = vmatprep.subr.mxu0 %v8155
      %8429 = vmatpush1.msra.mxu0 %v8154
      %8430 = vmatprep.subr.mxu0 %v8163
      %8431 = vmatpush1.msra.mxu0 %v8162
      %8432 = vmatprep.subr.mxu0 %v8171
      %8433 = vmatpush1.msra.mxu0 %v8170
      %8434 = vmatprep.subr.mxu0 %v8179
      %8435 = vmatpush1.msra.mxu0 %v8178
      %8436 = vmatprep.subr.mxu0 %v8213
      %8437 = vmatpush1.msra.mxu0 %v8210
      %8438 = vmatprep.subr.mxu0 0.0
      %8439 = vmatpush1.msra.mxu0 0.0
      %8440 = vmatprep.subr.mxu0 0.0
      %8441 = vmatpush1.msra.mxu0 0.0
      %8442 = vmatprep.subr.mxu0 0.0
      %8443 = vmatpush1.msra.mxu0 0.0
      %8444 = vmatprep.subr.mxu0 0.0
      %8445 = vmatpush1.msra.mxu0 0.0
      %8446 = vmatprep.subr.mxu0 0.0
      %8447 = vmatpush1.msra.mxu0 0.0
      %8448 = vmatprep.subr.mxu0 0.0
      %8449 = vmatpush1.msra.mxu0 0.0
      %8450 = vmatprep.subr.mxu0 0.0
      %8451 = vmatpush1.msra.mxu0 0.0
      %8452 = vmatprep.subr.mxu0 0.0
      %8453 = vmatpush1.msra.mxu0 0.0
      %8454 = vmatprep.subr.mxu0 0.0
      %8455 = vmatpush1.msra.mxu0 0.0
      %8456 = vmatprep.subr.mxu0 0.0
      %8457 = vmatpush1.msra.mxu0 0.0
      %8458 = vmatprep.subr.mxu0 0.0
      %8459 = vmatpush1.msra.mxu0 0.0
      %8460 = vmatprep.subr.mxu0 0.0
      %8461 = vmatpush1.msra.mxu0 0.0
      %8462 = vmatprep.subr.mxu0 0.0
      %8463 = vmatpush1.msra.mxu0 0.0
      %8464 = vmatprep.subr.mxu0 0.0
      %8465 = vmatpush1.msra.mxu0 0.0
      %8466 = vmatprep.subr.mxu0 0.0
      %8467 = vmatpush1.msra.mxu0 0.0
      %8468 = vmatprep.subr.mxu0 0.0
      %8469 = vmatpush1.msra.mxu0 0.0
      %8470 = vmatprep.subr.mxu0 0.0
      %8471 = vmatpush1.msra.mxu0 0.0
      %8472 = vmatprep.subr.mxu0 0.0
      %8473 = vmatpush1.msra.mxu0 0.0
      %8474 = vmatprep.subr.mxu0 0.0
      %8475 = vmatpush1.msra.mxu0 0.0
      %8476 = vmatprep.subr.mxu0 0.0
      %8477 = vmatpush1.msra.mxu0 0.0
      %8478 = vmatprep.subr.mxu0 0.0
      %8479 = vmatpush1.msra.mxu0 0.0
      %8480 = vmatprep.subr.mxu0 0.0
      %8481 = vmatpush1.msra.mxu0 0.0
      %8482 = vmatprep.subr.mxu0 0.0
      %8483 = vmatpush1.msra.mxu0 0.0
      %8484 = vmatprep.subr.mxu0 0.0
      %8485 = vmatpush1.msra.mxu0 0.0
      %8486 = vmatprep.subr.mxu0 0.0
      %8487 = vmatpush1.msra.mxu0 0.0
      %8488 = vmatprep.subr.mxu0 0.0
      %8489 = vmatpush1.msra.mxu0 0.0
      %8490 = vmatprep.subr.mxu0 0.0
      %8491 = vmatpush1.msra.mxu0 0.0
      %8492 = vmatprep.mubr.f32.mxu0 0.0
      %8493 = vmatmul.mubr.f32.gmra.mrb[0].mxu0 %v8189
      %v8494 = vpop.f32.mrb[0].mxu0
      %v8495 = vadd.f32 0.0, %v8494
      %v8496 = vpop.f32.mrb[0].mxu0
      %v8497 = vadd.f32 0.0, %v8496
      %8498 = vdwg.mxu0
      %v8499 = vand.u32 2147483647, %v8282
      %v8500 = vand.u32 2147483647, %v8284
      %v8501 = vand.u32 2147483647, %v8353
      %v8502 = vand.u32 2147483647, %v8355
      %v8503 = vand.u32 2147483647, %v8424
      %v8504 = vand.u32 2147483647, %v8426
      %v8505 = vand.u32 2147483647, %v8495
      %v8506 = vand.u32 2147483647, %v8497
      %v8507 = vsub.f32 0.0, %v8499
      %v8508 = vsub.f32 0.0, %v8500
      %v8509 = vsub.f32 0.0, %v8501
      %v8510 = vsub.f32 0.0, %v8502
      %v8511 = vsub.f32 0.0, %v8503
      %v8512 = vsub.f32 0.0, %v8504
      %v8513 = vsub.f32 0.0, %v8505
      %v8514 = vsub.f32 0.0, %v8506
      %v8515 = vmul.f32 %v8507, 1.442695
      %v8516 = vpow.pop %v8515
      %v8517 = vmul.f32 %v8508, 1.442695
      %v8518 = vpow.pop %v8517
      %v8519 = vmul.f32 %v8509, 1.442695
      %v8520 = vpow.pop %v8519
      %v8521 = vmul.f32 %v8510, 1.442695
      %v8522 = vpow.pop %v8521
      %v8523 = vmul.f32 %v8511, 1.442695
      %v8524 = vpow.pop %v8523
      %v8525 = vmul.f32 %v8512, 1.442695
      %v8526 = vpow.pop %v8525
      %v8527 = vmul.f32 %v8513, 1.442695
      %v8528 = vpow.pop %v8527
      %v8529 = vmul.f32 %v8514, 1.442695
      %v8530 = vpow.pop %v8529
      %v8531 = vadd.f32 %v8516, 1.0
      %v8532 = vadd.f32 %v8518, 1.0
      %v8533 = vadd.f32 %v8520, 1.0
      %v8534 = vadd.f32 %v8522, 1.0
      %v8535 = vadd.f32 %v8524, 1.0
      %v8536 = vadd.f32 %v8526, 1.0
      %v8537 = vadd.f32 %v8528, 1.0
      %v8538 = vadd.f32 %v8530, 1.0
      %v8539 = vrcp.pop %v8531
      %v8540 = vrcp.pop %v8532
      %v8541 = vrcp.pop %v8533
      %v8542 = vrcp.pop %v8534
      %v8543 = vrcp.pop %v8535
      %v8544 = vrcp.pop %v8536
      %v8545 = vrcp.pop %v8537
      %v8546 = vrcp.pop %v8538
      %vm8547 = vcmp.ge.f32.partialorder %v8282, 0.0
      %vm8548 = vcmp.ge.f32.partialorder %v8284, 0.0
      %vm8549 = vcmp.ge.f32.partialorder %v8353, 0.0
      %vm8550 = vcmp.ge.f32.partialorder %v8355, 0.0
      %vm8551 = vcmp.ge.f32.partialorder %v8424, 0.0
      %vm8552 = vcmp.ge.f32.partialorder %v8426, 0.0
      %vm8553 = vcmp.ge.f32.partialorder %v8495, 0.0
      %vm8554 = vcmp.ge.f32.partialorder %v8497, 0.0
      %v8555 = vmul.f32 %v8516, %v8539
      %v8556 = vmul.f32 %v8518, %v8540
      %v8557 = vmul.f32 %v8520, %v8541
      %v8558 = vmul.f32 %v8522, %v8542
      %v8559 = vmul.f32 %v8524, %v8543
      %v8560 = vmul.f32 %v8526, %v8544
      %v8561 = vmul.f32 %v8528, %v8545
      %v8562 = vmul.f32 %v8530, %v8546
      %v8563 = vsel %vm8547, %v8539, %v8555
      %v8564 = vsel %vm8548, %v8540, %v8556
      %v8565 = vsel %vm8549, %v8541, %v8557
      %v8566 = vsel %vm8550, %v8542, %v8558
      %v8567 = vsel %vm8551, %v8543, %v8559
      %v8568 = vsel %vm8552, %v8544, %v8560
      %v8569 = vsel %vm8553, %v8545, %v8561
      %v8570 = vsel %vm8554, %v8546, %v8562
      %v8571 = vmax.f32 %v8563, 0.0
      %v8572 = vmax.f32 %v8564, 0.0
      %v8573 = vmax.f32 %v8565, 0.0
      %v8574 = vmax.f32 %v8566, 0.0
      %v8575 = vmax.f32 %v8567, 0.0
      %v8576 = vmax.f32 %v8568, 0.0
      %v8577 = vmax.f32 %v8569, 0.0
      %v8578 = vmax.f32 %v8570, 0.0
      %v8579 = vmin.f32 %v8571, 1.0
      %v8580 = vmin.f32 %v8572, 1.0
      %v8581 = vmin.f32 %v8573, 1.0
      %v8582 = vmin.f32 %v8574, 1.0
      %v8583 = vmin.f32 %v8575, 1.0
      %v8584 = vmin.f32 %v8576, 1.0
      %v8585 = vmin.f32 %v8577, 1.0
      %v8586 = vmin.f32 %v8578, 1.0
      %v8595 = vcombine.low %v8579, %v8580
      %v8596 = vcombine.low %v8581, %v8582
      %v8597 = vcombine.low %v8583, %v8584
      %v8598 = vcombine.low %v8585, %v8586
      %v8600 = vunpack.c.l.s4 1966171168
      %v8601 = vunpack.c.0.s8 %v8600
      %v8602 = vlaneseq
      %v8603 = vshrl.u32 %v8602, 7
      %v8604 = vsub.s32 %v8601, %v8603
      %v8605 = vrot.slane %v8595, %v8604
      %v8607 = vunpack.c.l.s4 1966171168
      %v8608 = vunpack.c.0.s8 %v8607
      %v8609 = vlaneseq
      %v8610 = vshrl.u32 %v8609, 7
      %v8611 = vsub.s32 %v8608, %v8610
      %v8612 = vrot.slane %v8596, %v8611
      %v8614 = vunpack.c.l.s4 1966171168
      %v8615 = vunpack.c.0.s8 %v8614
      %v8616 = vlaneseq
      %v8617 = vshrl.u32 %v8616, 7
      %v8618 = vsub.s32 %v8615, %v8617
      %v8619 = vrot.slane %v8597, %v8618
      %v8621 = vunpack.c.l.s4 1966171168
      %v8622 = vunpack.c.0.s8 %v8621
      %v8623 = vlaneseq
      %v8624 = vshrl.u32 %v8623, 7
      %v8625 = vsub.s32 %v8622, %v8624
      %v8626 = vrot.slane %v8598, %v8625
      %v8627 = vcombine.low %v8605, %v8612
      %v8628 = vcombine.low %v8619, %v8626
      %v8630 = vunpack.c.l.s4 1966171168
      %v8631 = vunpack.c.0.s8 %v8630
      %v8632 = vlaneseq
      %v8633 = vshrl.u32 %v8632, 7
      %v8634 = vsub.s32 %v8631, %v8633
      %v8635 = vrot.slane %v8627, %v8634
      %v8637 = vunpack.c.l.s4 1966171168
      %v8638 = vunpack.c.0.s8 %v8637
      %v8639 = vlaneseq
      %v8640 = vshrl.u32 %v8639, 7
      %v8641 = vsub.s32 %v8638, %v8640
      %v8642 = vrot.slane %v8628, %v8641
      %v8643 = vcombine.low %v8635, %v8642
      %8645 = vst [vmem:[%s356] sm:$0xff] %v8643
      %p8646 = scmp.lt.s32.totalorder %s18, 1
      %s8647 = scalar_select %p8646, %s18, 1
      %s8648 = smul.addr %s8647, 8
      %s8649 = scalar_lea.vmem %s7, %s8648
      // Predicated region
      $region49: #{uncertainty_network_forward.1} parent=47 // pred_check
        %p8650 = pneg %p208
      $region50: #{uncertainty_network_forward.1} parent=47 // pred_check_branch
        %8652 = sbr.rel (%p8650) target = $region52
      $region51: #{uncertainty_network_forward.1} parent=47 // pred_region
        _
      $region52: #{uncertainty_network_forward.1} parent=47 // pred_fallthru
        _
    $region48: #{uncertainty_network_forward.1} parent=5 // pred_fallthru
      _
    %p8653 = scmp.le.s32.totalorder 2, %s13
    // Predicated region
    $region53: #{uncertainty_network_forward.1} parent=5 // pred_check
      %p8654 = pneg %p8653
    $region54: #{uncertainty_network_forward.1} parent=5 // pred_check_branch
      %8656 = sbr.rel (%p8654) target = $region56
    $region55: #{uncertainty_network_forward.1} parent=5 // pred_region
      %s8657 = ssub.s32 %s13, 2
      // Predicated region
      $region57: #{uncertainty_network_forward.1} parent=55 // pred_check
        %p8658 = pneg %p214
      $region58: #{uncertainty_network_forward.1} parent=55 // pred_check_branch
        %8660 = sbr.rel (%p8658) target = $region60
      $region59: #{uncertainty_network_forward.1} parent=55 // pred_region
        %p8661 = scmp.lt.s32.totalorder %s19, 1
        %s8662 = scalar_select %p8661, %s19, 1
        %s8663 = smul.addr %s8662, 8
        %s8664 = scalar_lea.vmem %s7, %s8663
      $region60: #{uncertainty_network_forward.1} parent=55 // pred_fallthru
        _
    $region56: #{uncertainty_network_forward.1} parent=5 // pred_fallthru
      _
  $region6: #{uncertainty_network_forward.1} parent=0 // loop_footer
    %s17 = sadd.s32 1, %s13
  $region7: #{uncertainty_network_forward.1} parent=0 // loop_footer_branch
    %12 = sbr.rel target = $region3
  $region8: #{uncertainty_network_forward.1} parent=0 // loop_exit
    _

</llo_original>
